<compile_context>
chip_gen: v5e
topology: v5e:2x2
jax: 0.10.0
libtpu: 0.0.40
codegen_flags: <defaults>
</compile_context>

<pallas_src>
import jax
import jax.numpy as jnp
from jax import lax
from jax.experimental import pallas as pl
from jax.experimental.pallas import tpu as pltpu

HIDDEN = 120            # real hidden size (PyTorch)
GPAD = 128              # lane-aligned per-gate slab width
GW = 4 * GPAD           # 512 packed gate columns, order [i | f | g | o]
L1_OUT = 10
HEAD_PAD = 128          # lane-dense head width (10 real + 118 zero lanes)
SLICE_T = 35            # forward slices the LSTM output at time step 35
NSTEPS = SLICE_T + 1    # only the first 36 recurrence steps matter


def _sigmoid(x):
    # Explicit form (exp -> EUP, add/div -> VPU); avoids depending on a lax.logistic
    # lowering inside Mosaic.  Numerically safe for the small preactivations here.
    return 1.0 / (1.0 + jnp.exp(-x))


def lstm_mlp_kernel(x_ref, wih_ref, whh_ref, b_ref,
                    w1_ref, b1_ref, w2t_ref, b2_ref,
                    out_ref, xwb_ref):
    """Whole forward pass in one kernel invocation (everything fits in VMEM).

    x_ref   : (36, B, 1) f32   first 36 steps of the input sequence
    wih_ref : (1, 512)   f32   packed input->gate weights   (gate order i,f,g,o)
    whh_ref : (128, 512) bf16  packed hidden->gate weights  (rows/lanes 120..127 zero)
    b_ref   : (1, 512)   f32   packed b_ih + b_hh
    w1_ref  : (128, 128) bf16  l1 weight (rows 120.., cols 10.. zero)
    b1_ref  : (1, 128)   f32   l1 bias   (lanes 10.. zero)
    w2t_ref : (1, 128)   f32   l2 weight transposed (lanes 10.. zero)
    b2_ref  : (1, 1)     f32
    out_ref : (B, 1)     f32
    xwb_ref : (36, B, 512) f32 VMEM scratch: precomputed x_t * W_ih + b
    """
    B = x_ref.shape[1]

    # ---- Phase 1: hoist the input projection off the serial chain (one dense op). --
    # input_size == 1, so x_t @ W_ih is just a broadcast multiply: (36,B,1)*(1,512).
    xwb_ref[...] = x_ref[...] * wih_ref[...] + b_ref[...]

    # ---- Phase 2: the 36-step recurrence (latency-bound, fully unrolled). ----------
    h = jnp.zeros((B, GPAD), dtype=jnp.float32)
    c = jnp.zeros((B, GPAD), dtype=jnp.float32)
    for t in range(NSTEPS):
        # bf16 operands, f32 accumulation; state/gates stay f32.
        rec = jnp.dot(h.astype(jnp.bfloat16), whh_ref[...],
                      preferred_element_type=jnp.float32)          # (B, 512)
        gates = xwb_ref[t] + rec
        # packed gate order: [ i | f | g | o ], each a 128-lane-aligned slab.
        # g first: its tanh feeds the c update, the longest dependence chain.
        i_f = _sigmoid(gates[:, 0:2 * GPAD])                        # i and f in one pass
        g = jnp.tanh(gates[:, 2 * GPAD:3 * GPAD])
        c = i_f[:, GPAD:2 * GPAD] * c + i_f[:, 0:GPAD] * g
        o = _sigmoid(gates[:, 3 * GPAD:4 * GPAD])                   # overlaps tanh(c)
        h = o * jnp.tanh(c)
    # h == LSTM output at t = 35, padded to 128 lanes (lanes 120..127 are exactly 0).

    # ---- Phase 3: the small MLP head. -----------------------------------------------
    z1 = jnp.dot(h.astype(jnp.bfloat16), w1_ref[...],
                 preferred_element_type=jnp.float32) + b1_ref[...]  # (B, 128) lane-dense
    z1 = jnp.maximum(z1, 0.0)   # intended ReLU semantics of self.l1Relu
    # 10->1 Linear as VPU multiply + lane reduction (no degenerate MXU matmul).
    out_ref[...] = jnp.sum(z1 * w2t_ref[...], axis=-1, keepdims=True) + b2_ref[...]


def single_lstm_forward(x, packed):
    """x: (T, B, 1) float32 -> (B, 1) float32, using packed/padded params."""
    T, B, _ = x.shape
    assert T > SLICE_T, "sequence length must be > 35 (forward takes x[35])"
    x36 = x[:NSTEPS]   # only the first 36 steps influence the output

    args = (x36, packed["wih"], packed["whh"], packed["b"],
            packed["w1"], packed["b1"], packed["w2t"], packed["b2"])

    # Block shapes equal the full array shapes, so the (8,128) divisibility rule does
    # not apply; everything is resident in VMEM for the single grid step.
    in_specs = [pl.BlockSpec(x36.shape, lambda i: (0, 0, 0))]
    in_specs += [pl.BlockSpec(a.shape, lambda i: (0, 0)) for a in args[1:]]

    return pl.pallas_call(
        lstm_mlp_kernel,
        out_shape=jax.ShapeDtypeStruct((B, 1), jnp.float32),
        grid=(1,),
        in_specs=in_specs,
        out_specs=pl.BlockSpec((B, 1), lambda i: (0, 0)),
        scratch_shapes=[pltpu.VMEM((NSTEPS, B, GW), jnp.float32)],
        compiler_params=pltpu.CompilerParams(dimension_semantics=("arbitrary",)),
    )(*args)


# ----------------------------- host-side param prep -----------------------------

def pack_params(p):
    """Repack PyTorch-layout params (gate order i,f,g,o, H=120) into 128-lane-aligned
    slabs; cast MXU operand weights (whh, w1) to bf16."""
    H, G = HIDDEN, GPAD

    def pack_cols(w):
        # w: (rows, 4H) in i,f,g,o order -> (rows, 4*G), each gate zero-padded to 128.
        gates = [w[:, k * H:(k + 1) * H] for k in range(4)]
        pad = lambda a: jnp.pad(a, ((0, 0), (0, G - H)))
        return jnp.concatenate([pad(a) for a in gates], axis=1)

    whh = pack_cols(p["whh"])                         # (120, 512)
    whh = jnp.pad(whh, ((0, G - H), (0, 0)))          # (128, 512), rows 120..127 zero
    w1 = jnp.pad(p["w1"], ((0, G - H), (0, HEAD_PAD - L1_OUT)))   # (128, 128)
    b1 = jnp.pad(p["b1"], ((0, 0), (0, HEAD_PAD - L1_OUT)))       # (1, 128)
    w2t = jnp.pad(p["w2"].T, ((0, 0), (0, HEAD_PAD - L1_OUT)))    # (1, 128)
    return {
        "wih": pack_cols(p["wih"]),                   # (1, 512)  f32
        "b":   pack_cols(p["b"]),                     # (1, 512)  f32
        "whh": whh.astype(jnp.bfloat16),              # (128, 512) bf16 MXU operand
        "w1":  w1.astype(jnp.bfloat16),               # (128, 128) bf16 MXU operand
        "b1":  b1,
        "w2t": w2t,
        "b2":  p["b2"],
    }


def reference_forward(x, params, *, matmul_dtype=jnp.float32, precision=None):
    """Pure-JAX reference with the original (unpacked, unpadded) math.

    matmul_dtype=float32 + precision=HIGHEST -> faithful fp32 PyTorch semantics.
    matmul_dtype=bfloat16                    -> emulates the kernel's bf16 MXU operands
                                                (f32 accumulation, f32 state/activations).
    """
    T, B, _ = x.shape
    H = HIDDEN
    wih, whh, b = params["wih"], params["whh"], params["b"]
    whh_m = whh.astype(matmul_dtype)

    def body(carry, x_t):
        h, c = carry
        rec = jnp.dot(h.astype(matmul_dtype), whh_m,
                      preferred_element_type=jnp.float32, precision=precision)
        gates = x_t * wih + b + rec                    # input_size == 1 -> broadcast mul
        i = _sigmoid(gates[:, 0:H])
        f = _sigmoid(gates[:, H:2 * H])
        g = jnp.tanh(gates[:, 2 * H:3 * H])
        o = _sigmoid(gates[:, 3 * H:4 * H])
        c_new = f * c + i * g
        h_new = o * jnp.tanh(c_new)
        return (h_new, c_new), h_new

    init = (jnp.zeros((B, H), jnp.float32), jnp.zeros((B, H), jnp.float32))
    _, hs = lax.scan(body, init, x)
    h35 = hs[SLICE_T]
    z1 = jnp.dot(h35.astype(matmul_dtype), params["w1"].astype(matmul_dtype),
                 preferred_element_type=jnp.float32, precision=precision) + params["b1"]
    z1 = jnp.maximum(z1, 0.0)
    # mathematically identical to z1 @ w2 (kept elementwise to mirror the kernel head)
    return jnp.sum(z1 * params["w2"].T, axis=-1, keepdims=True) + params["b2"]


def init_params(key):
    """Deterministic synthetic parameters matching PyTorch shapes (transposed),
    uniform(-1/sqrt(fan), 1/sqrt(fan)) like PyTorch's default init."""
    H, O1 = HIDDEN, L1_OUT
    ks = jax.random.split(key, 8)
    k_lstm = 1.0 / jnp.sqrt(jnp.float32(H))
    k_l1 = 1.0 / jnp.sqrt(jnp.float32(H))
    k_l2 = 1.0 / jnp.sqrt(jnp.float32(O1))

    def u(k, shape, scale):
        return jax.random.uniform(k, shape, jnp.float32, -scale, scale)

    wih = u(ks[0], (1, 4 * H), k_lstm)           # weight_ih_l0.T  (input_size=1)
    whh = u(ks[1], (H, 4 * H), k_lstm)           # weight_hh_l0.T
    b_ih = u(ks[2], (1, 4 * H), k_lstm)
    b_hh = u(ks[3], (1, 4 * H), k_lstm)
    w1 = u(ks[4], (H, O1), k_l1)                 # l1.weight.T
    b1 = u(ks[5], (1, O1), k_l1)
    w2 = u(ks[6], (O1, 1), k_l2)                 # l2.weight.T
    b2 = u(ks[7], (1, 1), k_l2)
    return {"wih": wih, "whh": whh, "b": b_ih + b_hh,
            "w1": w1, "b1": b1, "w2": w2, "b2": b2}


if __name__ == "__main__":
    key = jax.random.PRNGKey(0)
    k_x, k_p = jax.random.split(key)

    T, B = 40, 2  # seq_len must exceed 35 because forward takes x[35]
    x = jax.random.normal(k_x, (T, B, 1), dtype=jnp.float32)
    params = init_params(k_p)
    packed = pack_params(params)

    out = jax.block_until_ready(single_lstm_forward(x, packed))
    assert out.shape == (B, 1), out.shape

    # Tight check: reference emulating the kernel's bf16 MXU operands -- validates
    # packing, gate slicing and kernel logic (only accumulation-order noise remains).
    ref_bf16 = reference_forward(x, params, matmul_dtype=jnp.bfloat16)
    assert jnp.allclose(out, ref_bf16, atol=5e-4, rtol=5e-4), (out, ref_bf16)

    # Loose check: true-f32 PyTorch-semantics reference; the gap is the bf16-operand
    # rounding drift accumulated over the 36 recurrent steps (expected ~1e-3).
    ref_f32 = reference_forward(x, params, matmul_dtype=jnp.float32,
                                precision=lax.Precision.HIGHEST)
    assert jnp.allclose(out, ref_f32, atol=2e-2, rtol=2e-2), (out, ref_f32)

    print("KERNEL_OK")
</pallas_src>

<mosaic_0001>
module attributes {stable_mosaic.version = 11 : i64} {
  func.func @lstm_mlp_kernel(%arg0: i32, %arg1: memref<36x2x1xf32, #tpu.memory_space<vmem>>, %arg2: memref<1x512xf32, #tpu.memory_space<vmem>>, %arg3: memref<128x512xbf16, #tpu.memory_space<vmem>>, %arg4: memref<1x512xf32, #tpu.memory_space<vmem>>, %arg5: memref<128x128xbf16, #tpu.memory_space<vmem>>, %arg6: memref<1x128xf32, #tpu.memory_space<vmem>>, %arg7: memref<1x128xf32, #tpu.memory_space<vmem>>, %arg8: memref<1x1xf32, #tpu.memory_space<vmem>>, %arg9: memref<2x1xf32, #tpu.memory_space<vmem>>, %arg10: memref<36x2x512xf32, #tpu.memory_space<vmem>>) attributes {dimension_semantics = [#tpu.dimension_semantics<arbitrary>], iteration_bounds = array<i64: 1>, scalar_prefetch = 0 : i64, scratch_operands = 1 : i64, tpu.core_type = #tpu.core_type<tc>, window_params = [{pipeline_mode = #tpu.pipeline_mode<synchronous>, transform_indices = @transform_0, window_bounds = array<i64: 36, 2, 1>}, {pipeline_mode = #tpu.pipeline_mode<synchronous>, transform_indices = @transform_1, window_bounds = array<i64: 1, 512>}, {pipeline_mode = #tpu.pipeline_mode<synchronous>, transform_indices = @transform_2, window_bounds = array<i64: 128, 512>}, {pipeline_mode = #tpu.pipeline_mode<synchronous>, transform_indices = @transform_3, window_bounds = array<i64: 1, 512>}, {pipeline_mode = #tpu.pipeline_mode<synchronous>, transform_indices = @transform_4, window_bounds = array<i64: 128, 128>}, {pipeline_mode = #tpu.pipeline_mode<synchronous>, transform_indices = @transform_5, window_bounds = array<i64: 1, 128>}, {pipeline_mode = #tpu.pipeline_mode<synchronous>, transform_indices = @transform_6, window_bounds = array<i64: 1, 128>}, {pipeline_mode = #tpu.pipeline_mode<synchronous>, transform_indices = @transform_7, window_bounds = array<i64: 1, 1>}, {pipeline_mode = #tpu.pipeline_mode<synchronous>, transform_indices = @transform_8, window_bounds = array<i64: 2, 1>}]} {
    %c0 = arith.constant 0 : index
    %c0_0 = arith.constant 0 : index
    %c0_1 = arith.constant 0 : index
    %0 = vector.load %arg1[%c0, %c0_0, %c0_1] : memref<36x2x1xf32, #tpu.memory_space<vmem>>, vector<36x2x1xf32>
    %c0_2 = arith.constant 0 : index
    %c0_3 = arith.constant 0 : index
    %1 = vector.load %arg2[%c0_2, %c0_3] : memref<1x512xf32, #tpu.memory_space<vmem>>, vector<1x512xf32>
    %2 = vector.shape_cast %1 : vector<1x512xf32> to vector<1x1x512xf32>
    %3 = vector.broadcast %0 : vector<36x2x1xf32> to vector<36x2x512xf32>
    %4 = vector.broadcast %2 : vector<1x1x512xf32> to vector<36x2x512xf32>
    %5 = arith.mulf %3, %4 : vector<36x2x512xf32>
    %c0_4 = arith.constant 0 : index
    %c0_5 = arith.constant 0 : index
    %6 = vector.load %arg4[%c0_4, %c0_5] : memref<1x512xf32, #tpu.memory_space<vmem>>, vector<1x512xf32>
    %7 = vector.shape_cast %6 : vector<1x512xf32> to vector<1x1x512xf32>
    %8 = vector.broadcast %7 : vector<1x1x512xf32> to vector<36x2x512xf32>
    %9 = arith.addf %5, %8 : vector<36x2x512xf32>
    %c0_6 = arith.constant 0 : index
    %c0_7 = arith.constant 0 : index
    %c0_8 = arith.constant 0 : index
    %10 = vector.load %arg10[%c0_6, %c0_7, %c0_8] : memref<36x2x512xf32, #tpu.memory_space<vmem>>, vector<36x2x512xf32>
    tpu.vector_store %arg10[%c0_6, %c0_7, %c0_8], %9 {strides = array<i32>} : memref<36x2x512xf32, #tpu.memory_space<vmem>>, vector<36x2x512xf32>,
    %cst = arith.constant 0.000000e+00 : f32
    %11 = vector.broadcast %cst : f32 to vector<2x128xf32>
    %cst_9 = arith.constant 0.000000e+00 : f32
    %12 = vector.broadcast %cst_9 : f32 to vector<2x128xf32>
    %13 = arith.truncf %11 : vector<2x128xf32> to vector<2x128xbf16>
    %c0_10 = arith.constant 0 : index
    %c0_11 = arith.constant 0 : index
    %14 = vector.load %arg3[%c0_10, %c0_11] : memref<128x512xbf16, #tpu.memory_space<vmem>>, vector<128x512xbf16>
    %cst_12 = arith.constant dense<0.000000e+00> : vector<2x512xf32>
    %15 = tpu.matmul %13, %14, %cst_12 {dimension_numbers = #tpu.dot_dimension_numbers<[1], [0], [0], [1], [0, 0, 1, 1], [], []>} : vector<2x128xbf16>, vector<128x512xbf16>, vector<2x512xf32> -> vector<2x512xf32>
    %c0_13 = arith.constant 0 : index
    %c0_14 = arith.constant 0 : index
    %c0_15 = arith.constant 0 : index
    %16 = vector.load %arg10[%c0_13, %c0_14, %c0_15] : memref<36x2x512xf32, #tpu.memory_space<vmem>>, vector<1x2x512xf32>
    %17 = vector.shape_cast %16 : vector<1x2x512xf32> to vector<2x512xf32>
    %18 = arith.addf %17, %15 : vector<2x512xf32>
    %19 = vector.extract_strided_slice %18 {offsets = [0, 0], sizes = [2, 256], strides = [1, 1]} : vector<2x512xf32> to vector<2x256xf32>
    %cst_16 = arith.constant 0.000000e+00 : f32
    %20 = vector.broadcast %cst_16 : f32 to vector<2x256xf32>
    %21 = arith.subf %20, %19 : vector<2x256xf32>
    %22 = math.exp %21 : vector<2x256xf32>
    %cst_17 = arith.constant 1.000000e+00 : f32
    %23 = vector.broadcast %cst_17 : f32 to vector<2x256xf32>
    %24 = arith.addf %23, %22 : vector<2x256xf32>
    %cst_18 = arith.constant 1.000000e+00 : f32
    %25 = vector.broadcast %cst_18 : f32 to vector<2x256xf32>
    %26 = arith.divf %25, %24 : vector<2x256xf32>
    %27 = vector.extract_strided_slice %18 {offsets = [0, 256], sizes = [2, 128], strides = [1, 1]} : vector<2x512xf32> to vector<2x128xf32>
    %28 = math.tanh %27 : vector<2x128xf32>
    %29 = vector.extract_strided_slice %26 {offsets = [0, 128], sizes = [2, 128], strides = [1, 1]} : vector<2x256xf32> to vector<2x128xf32>
    %30 = arith.mulf %29, %12 : vector<2x128xf32>
    %31 = vector.extract_strided_slice %26 {offsets = [0, 0], sizes = [2, 128], strides = [1, 1]} : vector<2x256xf32> to vector<2x128xf32>
    %32 = arith.mulf %31, %28 : vector<2x128xf32>
    %33 = arith.addf %30, %32 : vector<2x128xf32>
    %34 = vector.extract_strided_slice %18 {offsets = [0, 384], sizes = [2, 128], strides = [1, 1]} : vector<2x512xf32> to vector<2x128xf32>
    %cst_19 = arith.constant 0.000000e+00 : f32
    %35 = vector.broadcast %cst_19 : f32 to vector<2x128xf32>
    %36 = arith.subf %35, %34 : vector<2x128xf32>
    %37 = math.exp %36 : vector<2x128xf32>
    %cst_20 = arith.constant 1.000000e+00 : f32
    %38 = vector.broadcast %cst_20 : f32 to vector<2x128xf32>
    %39 = arith.addf %38, %37 : vector<2x128xf32>
    %cst_21 = arith.constant 1.000000e+00 : f32
    %40 = vector.broadcast %cst_21 : f32 to vector<2x128xf32>
    %41 = arith.divf %40, %39 : vector<2x128xf32>
    %42 = math.tanh %33 : vector<2x128xf32>
    %43 = arith.mulf %41, %42 : vector<2x128xf32>
    %44 = arith.truncf %43 : vector<2x128xf32> to vector<2x128xbf16>
    %c0_22 = arith.constant 0 : index
    %c0_23 = arith.constant 0 : index
    %45 = vector.load %arg3[%c0_22, %c0_23] : memref<128x512xbf16, #tpu.memory_space<vmem>>, vector<128x512xbf16>
    %cst_24 = arith.constant dense<0.000000e+00> : vector<2x512xf32>
    %46 = tpu.matmul %44, %45, %cst_24 {dimension_numbers = #tpu.dot_dimension_numbers<[1], [0], [0], [1], [0, 0, 1, 1], [], []>} : vector<2x128xbf16>, vector<128x512xbf16>, vector<2x512xf32> -> vector<2x512xf32>
    %c1 = arith.constant 1 : index
    %c0_25 = arith.constant 0 : index
    %c0_26 = arith.constant 0 : index
    %47 = vector.load %arg10[%c1, %c0_25, %c0_26] : memref<36x2x512xf32, #tpu.memory_space<vmem>>, vector<1x2x512xf32>
    %48 = vector.shape_cast %47 : vector<1x2x512xf32> to vector<2x512xf32>
    %49 = arith.addf %48, %46 : vector<2x512xf32>
    %50 = vector.extract_strided_slice %49 {offsets = [0, 0], sizes = [2, 256], strides = [1, 1]} : vector<2x512xf32> to vector<2x256xf32>
    %cst_27 = arith.constant 0.000000e+00 : f32
    %51 = vector.broadcast %cst_27 : f32 to vector<2x256xf32>
    %52 = arith.subf %51, %50 : vector<2x256xf32>
    %53 = math.exp %52 : vector<2x256xf32>
    %cst_28 = arith.constant 1.000000e+00 : f32
    %54 = vector.broadcast %cst_28 : f32 to vector<2x256xf32>
    %55 = arith.addf %54, %53 : vector<2x256xf32>
    %cst_29 = arith.constant 1.000000e+00 : f32
    %56 = vector.broadcast %cst_29 : f32 to vector<2x256xf32>
    %57 = arith.divf %56, %55 : vector<2x256xf32>
    %58 = vector.extract_strided_slice %49 {offsets = [0, 256], sizes = [2, 128], strides = [1, 1]} : vector<2x512xf32> to vector<2x128xf32>
    %59 = math.tanh %58 : vector<2x128xf32>
    %60 = vector.extract_strided_slice %57 {offsets = [0, 128], sizes = [2, 128], strides = [1, 1]} : vector<2x256xf32> to vector<2x128xf32>
    %61 = arith.mulf %60, %33 : vector<2x128xf32>
    %62 = vector.extract_strided_slice %57 {offsets = [0, 0], sizes = [2, 128], strides = [1, 1]} : vector<2x256xf32> to vector<2x128xf32>
    %63 = arith.mulf %62, %59 : vector<2x128xf32>
    %64 = arith.addf %61, %63 : vector<2x128xf32>
    %65 = vector.extract_strided_slice %49 {offsets = [0, 384], sizes = [2, 128], strides = [1, 1]} : vector<2x512xf32> to vector<2x128xf32>
    %cst_30 = arith.constant 0.000000e+00 : f32
    %66 = vector.broadcast %cst_30 : f32 to vector<2x128xf32>
    %67 = arith.subf %66, %65 : vector<2x128xf32>
    %68 = math.exp %67 : vector<2x128xf32>
    %cst_31 = arith.constant 1.000000e+00 : f32
    %69 = vector.broadcast %cst_31 : f32 to vector<2x128xf32>
    %70 = arith.addf %69, %68 : vector<2x128xf32>
    %cst_32 = arith.constant 1.000000e+00 : f32
    %71 = vector.broadcast %cst_32 : f32 to vector<2x128xf32>
    %72 = arith.divf %71, %70 : vector<2x128xf32>
    %73 = math.tanh %64 : vector<2x128xf32>
    %74 = arith.mulf %72, %73 : vector<2x128xf32>
    %75 = arith.truncf %74 : vector<2x128xf32> to vector<2x128xbf16>
    %c0_33 = arith.constant 0 : index
    %c0_34 = arith.constant 0 : index
    %76 = vector.load %arg3[%c0_33, %c0_34] : memref<128x512xbf16, #tpu.memory_space<vmem>>, vector<128x512xbf16>
    %cst_35 = arith.constant dense<0.000000e+00> : vector<2x512xf32>
    %77 = tpu.matmul %75, %76, %cst_35 {dimension_numbers = #tpu.dot_dimension_numbers<[1], [0], [0], [1], [0, 0, 1, 1], [], []>} : vector<2x128xbf16>, vector<128x512xbf16>, vector<2x512xf32> -> vector<2x512xf32>
    %c2 = arith.constant 2 : index
    %c0_36 = arith.constant 0 : index
    %c0_37 = arith.constant 0 : index
    %78 = vector.load %arg10[%c2, %c0_36, %c0_37] : memref<36x2x512xf32, #tpu.memory_space<vmem>>, vector<1x2x512xf32>
    %79 = vector.shape_cast %78 : vector<1x2x512xf32> to vector<2x512xf32>
    %80 = arith.addf %79, %77 : vector<2x512xf32>
    %81 = vector.extract_strided_slice %80 {offsets = [0, 0], sizes = [2, 256], strides = [1, 1]} : vector<2x512xf32> to vector<2x256xf32>
    %cst_38 = arith.constant 0.000000e+00 : f32
    %82 = vector.broadcast %cst_38 : f32 to vector<2x256xf32>
    %83 = arith.subf %82, %81 : vector<2x256xf32>
    %84 = math.exp %83 : vector<2x256xf32>
    %cst_39 = arith.constant 1.000000e+00 : f32
    %85 = vector.broadcast %cst_39 : f32 to vector<2x256xf32>
    %86 = arith.addf %85, %84 : vector<2x256xf32>
    %cst_40 = arith.constant 1.000000e+00 : f32
    %87 = vector.broadcast %cst_40 : f32 to vector<2x256xf32>
    %88 = arith.divf %87, %86 : vector<2x256xf32>
    %89 = vector.extract_strided_slice %80 {offsets = [0, 256], sizes = [2, 128], strides = [1, 1]} : vector<2x512xf32> to vector<2x128xf32>
    %90 = math.tanh %89 : vector<2x128xf32>
    %91 = vector.extract_strided_slice %88 {offsets = [0, 128], sizes = [2, 128], strides = [1, 1]} : vector<2x256xf32> to vector<2x128xf32>
    %92 = arith.mulf %91, %64 : vector<2x128xf32>
    %93 = vector.extract_strided_slice %88 {offsets = [0, 0], sizes = [2, 128], strides = [1, 1]} : vector<2x256xf32> to vector<2x128xf32>
    %94 = arith.mulf %93, %90 : vector<2x128xf32>
    %95 = arith.addf %92, %94 : vector<2x128xf32>
    %96 = vector.extract_strided_slice %80 {offsets = [0, 384], sizes = [2, 128], strides = [1, 1]} : vector<2x512xf32> to vector<2x128xf32>
    %cst_41 = arith.constant 0.000000e+00 : f32
    %97 = vector.broadcast %cst_41 : f32 to vector<2x128xf32>
    %98 = arith.subf %97, %96 : vector<2x128xf32>
    %99 = math.exp %98 : vector<2x128xf32>
    %cst_42 = arith.constant 1.000000e+00 : f32
    %100 = vector.broadcast %cst_42 : f32 to vector<2x128xf32>
    %101 = arith.addf %100, %99 : vector<2x128xf32>
    %cst_43 = arith.constant 1.000000e+00 : f32
    %102 = vector.broadcast %cst_43 : f32 to vector<2x128xf32>
    %103 = arith.divf %102, %101 : vector<2x128xf32>
    %104 = math.tanh %95 : vector<2x128xf32>
    %105 = arith.mulf %103, %104 : vector<2x128xf32>
    %106 = arith.truncf %105 : vector<2x128xf32> to vector<2x128xbf16>
    %c0_44 = arith.constant 0 : index
    %c0_45 = arith.constant 0 : index
    %107 = vector.load %arg3[%c0_44, %c0_45] : memref<128x512xbf16, #tpu.memory_space<vmem>>, vector<128x512xbf16>
    %cst_46 = arith.constant dense<0.000000e+00> : vector<2x512xf32>
    %108 = tpu.matmul %106, %107, %cst_46 {dimension_numbers = #tpu.dot_dimension_numbers<[1], [0], [0], [1], [0, 0, 1, 1], [], []>} : vector<2x128xbf16>, vector<128x512xbf16>, vector<2x512xf32> -> vector<2x512xf32>
    %c3 = arith.constant 3 : index
    %c0_47 = arith.constant 0 : index
    %c0_48 = arith.constant 0 : index
    %109 = vector.load %arg10[%c3, %c0_47, %c0_48] : memref<36x2x512xf32, #tpu.memory_space<vmem>>, vector<1x2x512xf32>
    %110 = vector.shape_cast %109 : vector<1x2x512xf32> to vector<2x512xf32>
    %111 = arith.addf %110, %108 : vector<2x512xf32>
    %112 = vector.extract_strided_slice %111 {offsets = [0, 0], sizes = [2, 256], strides = [1, 1]} : vector<2x512xf32> to vector<2x256xf32>
    %cst_49 = arith.constant 0.000000e+00 : f32
    %113 = vector.broadcast %cst_49 : f32 to vector<2x256xf32>
    %114 = arith.subf %113, %112 : vector<2x256xf32>
    %115 = math.exp %114 : vector<2x256xf32>
    %cst_50 = arith.constant 1.000000e+00 : f32
    %116 = vector.broadcast %cst_50 : f32 to vector<2x256xf32>
    %117 = arith.addf %116, %115 : vector<2x256xf32>
    %cst_51 = arith.constant 1.000000e+00 : f32
    %118 = vector.broadcast %cst_51 : f32 to vector<2x256xf32>
    %119 = arith.divf %118, %117 : vector<2x256xf32>
    %120 = vector.extract_strided_slice %111 {offsets = [0, 256], sizes = [2, 128], strides = [1, 1]} : vector<2x512xf32> to vector<2x128xf32>
    %121 = math.tanh %120 : vector<2x128xf32>
    %122 = vector.extract_strided_slice %119 {offsets = [0, 128], sizes = [2, 128], strides = [1, 1]} : vector<2x256xf32> to vector<2x128xf32>
    %123 = arith.mulf %122, %95 : vector<2x128xf32>
    %124 = vector.extract_strided_slice %119 {offsets = [0, 0], sizes = [2, 128], strides = [1, 1]} : vector<2x256xf32> to vector<2x128xf32>
    %125 = arith.mulf %124, %121 : vector<2x128xf32>
    %126 = arith.addf %123, %125 : vector<2x128xf32>
    %127 = vector.extract_strided_slice %111 {offsets = [0, 384], sizes = [2, 128], strides = [1, 1]} : vector<2x512xf32> to vector<2x128xf32>
    %cst_52 = arith.constant 0.000000e+00 : f32
    %128 = vector.broadcast %cst_52 : f32 to vector<2x128xf32>
    %129 = arith.subf %128, %127 : vector<2x128xf32>
    %130 = math.exp %129 : vector<2x128xf32>
    %cst_53 = arith.constant 1.000000e+00 : f32
    %131 = vector.broadcast %cst_53 : f32 to vector<2x128xf32>
    %132 = arith.addf %131, %130 : vector<2x128xf32>
    %cst_54 = arith.constant 1.000000e+00 : f32
    %133 = vector.broadcast %cst_54 : f32 to vector<2x128xf32>
    %134 = arith.divf %133, %132 : vector<2x128xf32>
    %135 = math.tanh %126 : vector<2x128xf32>
    %136 = arith.mulf %134, %135 : vector<2x128xf32>
    %137 = arith.truncf %136 : vector<2x128xf32> to vector<2x128xbf16>
    %c0_55 = arith.constant 0 : index
    %c0_56 = arith.constant 0 : index
    %138 = vector.load %arg3[%c0_55, %c0_56] : memref<128x512xbf16, #tpu.memory_space<vmem>>, vector<128x512xbf16>
    %cst_57 = arith.constant dense<0.000000e+00> : vector<2x512xf32>
    %139 = tpu.matmul %137, %138, %cst_57 {dimension_numbers = #tpu.dot_dimension_numbers<[1], [0], [0], [1], [0, 0, 1, 1], [], []>} : vector<2x128xbf16>, vector<128x512xbf16>, vector<2x512xf32> -> vector<2x512xf32>
    %c4 = arith.constant 4 : index
    %c0_58 = arith.constant 0 : index
    %c0_59 = arith.constant 0 : index
    %140 = vector.load %arg10[%c4, %c0_58, %c0_59] : memref<36x2x512xf32, #tpu.memory_space<vmem>>, vector<1x2x512xf32>
    %141 = vector.shape_cast %140 : vector<1x2x512xf32> to vector<2x512xf32>
    %142 = arith.addf %141, %139 : vector<2x512xf32>
    %143 = vector.extract_strided_slice %142 {offsets = [0, 0], sizes = [2, 256], strides = [1, 1]} : vector<2x512xf32> to vector<2x256xf32>
    %cst_60 = arith.constant 0.000000e+00 : f32
    %144 = vector.broadcast %cst_60 : f32 to vector<2x256xf32>
    %145 = arith.subf %144, %143 : vector<2x256xf32>
    %146 = math.exp %145 : vector<2x256xf32>
    %cst_61 = arith.constant 1.000000e+00 : f32
    %147 = vector.broadcast %cst_61 : f32 to vector<2x256xf32>
    %148 = arith.addf %147, %146 : vector<2x256xf32>
    %cst_62 = arith.constant 1.000000e+00 : f32
    %149 = vector.broadcast %cst_62 : f32 to vector<2x256xf32>
    %150 = arith.divf %149, %148 : vector<2x256xf32>
    %151 = vector.extract_strided_slice %142 {offsets = [0, 256], sizes = [2, 128], strides = [1, 1]} : vector<2x512xf32> to vector<2x128xf32>
    %152 = math.tanh %151 : vector<2x128xf32>
    %153 = vector.extract_strided_slice %150 {offsets = [0, 128], sizes = [2, 128], strides = [1, 1]} : vector<2x256xf32> to vector<2x128xf32>
    %154 = arith.mulf %153, %126 : vector<2x128xf32>
    %155 = vector.extract_strided_slice %150 {offsets = [0, 0], sizes = [2, 128], strides = [1, 1]} : vector<2x256xf32> to vector<2x128xf32>
    %156 = arith.mulf %155, %152 : vector<2x128xf32>
    %157 = arith.addf %154, %156 : vector<2x128xf32>
    %158 = vector.extract_strided_slice %142 {offsets = [0, 384], sizes = [2, 128], strides = [1, 1]} : vector<2x512xf32> to vector<2x128xf32>
    %cst_63 = arith.constant 0.000000e+00 : f32
    %159 = vector.broadcast %cst_63 : f32 to vector<2x128xf32>
    %160 = arith.subf %159, %158 : vector<2x128xf32>
    %161 = math.exp %160 : vector<2x128xf32>
    %cst_64 = arith.constant 1.000000e+00 : f32
    %162 = vector.broadcast %cst_64 : f32 to vector<2x128xf32>
    %163 = arith.addf %162, %161 : vector<2x128xf32>
    %cst_65 = arith.constant 1.000000e+00 : f32
    %164 = vector.broadcast %cst_65 : f32 to vector<2x128xf32>
    %165 = arith.divf %164, %163 : vector<2x128xf32>
    %166 = math.tanh %157 : vector<2x128xf32>
    %167 = arith.mulf %165, %166 : vector<2x128xf32>
    %168 = arith.truncf %167 : vector<2x128xf32> to vector<2x128xbf16>
    %c0_66 = arith.constant 0 : index
    %c0_67 = arith.constant 0 : index
    %169 = vector.load %arg3[%c0_66, %c0_67] : memref<128x512xbf16, #tpu.memory_space<vmem>>, vector<128x512xbf16>
    %cst_68 = arith.constant dense<0.000000e+00> : vector<2x512xf32>
    %170 = tpu.matmul %168, %169, %cst_68 {dimension_numbers = #tpu.dot_dimension_numbers<[1], [0], [0], [1], [0, 0, 1, 1], [], []>} : vector<2x128xbf16>, vector<128x512xbf16>, vector<2x512xf32> -> vector<2x512xf32>
    %c5 = arith.constant 5 : index
    %c0_69 = arith.constant 0 : index
    %c0_70 = arith.constant 0 : index
    %171 = vector.load %arg10[%c5, %c0_69, %c0_70] : memref<36x2x512xf32, #tpu.memory_space<vmem>>, vector<1x2x512xf32>
    %172 = vector.shape_cast %171 : vector<1x2x512xf32> to vector<2x512xf32>
    %173 = arith.addf %172, %170 : vector<2x512xf32>
    %174 = vector.extract_strided_slice %173 {offsets = [0, 0], sizes = [2, 256], strides = [1, 1]} : vector<2x512xf32> to vector<2x256xf32>
    %cst_71 = arith.constant 0.000000e+00 : f32
    %175 = vector.broadcast %cst_71 : f32 to vector<2x256xf32>
    %176 = arith.subf %175, %174 : vector<2x256xf32>
    %177 = math.exp %176 : vector<2x256xf32>
    %cst_72 = arith.constant 1.000000e+00 : f32
    %178 = vector.broadcast %cst_72 : f32 to vector<2x256xf32>
    %179 = arith.addf %178, %177 : vector<2x256xf32>
    %cst_73 = arith.constant 1.000000e+00 : f32
    %180 = vector.broadcast %cst_73 : f32 to vector<2x256xf32>
    %181 = arith.divf %180, %179 : vector<2x256xf32>
    %182 = vector.extract_strided_slice %173 {offsets = [0, 256], sizes = [2, 128], strides = [1, 1]} : vector<2x512xf32> to vector<2x128xf32>
    %183 = math.tanh %182 : vector<2x128xf32>
    %184 = vector.extract_strided_slice %181 {offsets = [0, 128], sizes = [2, 128], strides = [1, 1]} : vector<2x256xf32> to vector<2x128xf32>
    %185 = arith.mulf %184, %157 : vector<2x128xf32>
    %186 = vector.extract_strided_slice %181 {offsets = [0, 0], sizes = [2, 128], strides = [1, 1]} : vector<2x256xf32> to vector<2x128xf32>
    %187 = arith.mulf %186, %183 : vector<2x128xf32>
    %188 = arith.addf %185, %187 : vector<2x128xf32>
    %189 = vector.extract_strided_slice %173 {offsets = [0, 384], sizes = [2, 128], strides = [1, 1]} : vector<2x512xf32> to vector<2x128xf32>
    %cst_74 = arith.constant 0.000000e+00 : f32
    %190 = vector.broadcast %cst_74 : f32 to vector<2x128xf32>
    %191 = arith.subf %190, %189 : vector<2x128xf32>
    %192 = math.exp %191 : vector<2x128xf32>
    %cst_75 = arith.constant 1.000000e+00 : f32
    %193 = vector.broadcast %cst_75 : f32 to vector<2x128xf32>
    %194 = arith.addf %193, %192 : vector<2x128xf32>
    %cst_76 = arith.constant 1.000000e+00 : f32
    %195 = vector.broadcast %cst_76 : f32 to vector<2x128xf32>
    %196 = arith.divf %195, %194 : vector<2x128xf32>
    %197 = math.tanh %188 : vector<2x128xf32>
    %198 = arith.mulf %196, %197 : vector<2x128xf32>
    %199 = arith.truncf %198 : vector<2x128xf32> to vector<2x128xbf16>
    %c0_77 = arith.constant 0 : index
    %c0_78 = arith.constant 0 : index
    %200 = vector.load %arg3[%c0_77, %c0_78] : memref<128x512xbf16, #tpu.memory_space<vmem>>, vector<128x512xbf16>
    %cst_79 = arith.constant dense<0.000000e+00> : vector<2x512xf32>
    %201 = tpu.matmul %199, %200, %cst_79 {dimension_numbers = #tpu.dot_dimension_numbers<[1], [0], [0], [1], [0, 0, 1, 1], [], []>} : vector<2x128xbf16>, vector<128x512xbf16>, vector<2x512xf32> -> vector<2x512xf32>
    %c6 = arith.constant 6 : index
    %c0_80 = arith.constant 0 : index
    %c0_81 = arith.constant 0 : index
    %202 = vector.load %arg10[%c6, %c0_80, %c0_81] : memref<36x2x512xf32, #tpu.memory_space<vmem>>, vector<1x2x512xf32>
    %203 = vector.shape_cast %202 : vector<1x2x512xf32> to vector<2x512xf32>
    %204 = arith.addf %203, %201 : vector<2x512xf32>
    %205 = vector.extract_strided_slice %204 {offsets = [0, 0], sizes = [2, 256], strides = [1, 1]} : vector<2x512xf32> to vector<2x256xf32>
    %cst_82 = arith.constant 0.000000e+00 : f32
    %206 = vector.broadcast %cst_82 : f32 to vector<2x256xf32>
    %207 = arith.subf %206, %205 : vector<2x256xf32>
    %208 = math.exp %207 : vector<2x256xf32>
    %cst_83 = arith.constant 1.000000e+00 : f32
    %209 = vector.broadcast %cst_83 : f32 to vector<2x256xf32>
    %210 = arith.addf %209, %208 : vector<2x256xf32>
    %cst_84 = arith.constant 1.000000e+00 : f32
    %211 = vector.broadcast %cst_84 : f32 to vector<2x256xf32>
    %212 = arith.divf %211, %210 : vector<2x256xf32>
    %213 = vector.extract_strided_slice %204 {offsets = [0, 256], sizes = [2, 128], strides = [1, 1]} : vector<2x512xf32> to vector<2x128xf32>
    %214 = math.tanh %213 : vector<2x128xf32>
    %215 = vector.extract_strided_slice %212 {offsets = [0, 128], sizes = [2, 128], strides = [1, 1]} : vector<2x256xf32> to vector<2x128xf32>
    %216 = arith.mulf %215, %188 : vector<2x128xf32>
    %217 = vector.extract_strided_slice %212 {offsets = [0, 0], sizes = [2, 128], strides = [1, 1]} : vector<2x256xf32> to vector<2x128xf32>
    %218 = arith.mulf %217, %214 : vector<2x128xf32>
    %219 = arith.addf %216, %218 : vector<2x128xf32>
    %220 = vector.extract_strided_slice %204 {offsets = [0, 384], sizes = [2, 128], strides = [1, 1]} : vector<2x512xf32> to vector<2x128xf32>
    %cst_85 = arith.constant 0.000000e+00 : f32
    %221 = vector.broadcast %cst_85 : f32 to vector<2x128xf32>
    %222 = arith.subf %221, %220 : vector<2x128xf32>
    %223 = math.exp %222 : vector<2x128xf32>
    %cst_86 = arith.constant 1.000000e+00 : f32
    %224 = vector.broadcast %cst_86 : f32 to vector<2x128xf32>
    %225 = arith.addf %224, %223 : vector<2x128xf32>
    %cst_87 = arith.constant 1.000000e+00 : f32
    %226 = vector.broadcast %cst_87 : f32 to vector<2x128xf32>
    %227 = arith.divf %226, %225 : vector<2x128xf32>
    %228 = math.tanh %219 : vector<2x128xf32>
    %229 = arith.mulf %227, %228 : vector<2x128xf32>
    %230 = arith.truncf %229 : vector<2x128xf32> to vector<2x128xbf16>
    %c0_88 = arith.constant 0 : index
    %c0_89 = arith.constant 0 : index
    %231 = vector.load %arg3[%c0_88, %c0_89] : memref<128x512xbf16, #tpu.memory_space<vmem>>, vector<128x512xbf16>
    %cst_90 = arith.constant dense<0.000000e+00> : vector<2x512xf32>
    %232 = tpu.matmul %230, %231, %cst_90 {dimension_numbers = #tpu.dot_dimension_numbers<[1], [0], [0], [1], [0, 0, 1, 1], [], []>} : vector<2x128xbf16>, vector<128x512xbf16>, vector<2x512xf32> -> vector<2x512xf32>
    %c7 = arith.constant 7 : index
    %c0_91 = arith.constant 0 : index
    %c0_92 = arith.constant 0 : index
    %233 = vector.load %arg10[%c7, %c0_91, %c0_92] : memref<36x2x512xf32, #tpu.memory_space<vmem>>, vector<1x2x512xf32>
    %234 = vector.shape_cast %233 : vector<1x2x512xf32> to vector<2x512xf32>
    %235 = arith.addf %234, %232 : vector<2x512xf32>
    %236 = vector.extract_strided_slice %235 {offsets = [0, 0], sizes = [2, 256], strides = [1, 1]} : vector<2x512xf32> to vector<2x256xf32>
    %cst_93 = arith.constant 0.000000e+00 : f32
    %237 = vector.broadcast %cst_93 : f32 to vector<2x256xf32>
    %238 = arith.subf %237, %236 : vector<2x256xf32>
    %239 = math.exp %238 : vector<2x256xf32>
    %cst_94 = arith.constant 1.000000e+00 : f32
    %240 = vector.broadcast %cst_94 : f32 to vector<2x256xf32>
    %241 = arith.addf %240, %239 : vector<2x256xf32>
    %cst_95 = arith.constant 1.000000e+00 : f32
    %242 = vector.broadcast %cst_95 : f32 to vector<2x256xf32>
    %243 = arith.divf %242, %241 : vector<2x256xf32>
    %244 = vector.extract_strided_slice %235 {offsets = [0, 256], sizes = [2, 128], strides = [1, 1]} : vector<2x512xf32> to vector<2x128xf32>
    %245 = math.tanh %244 : vector<2x128xf32>
    %246 = vector.extract_strided_slice %243 {offsets = [0, 128], sizes = [2, 128], strides = [1, 1]} : vector<2x256xf32> to vector<2x128xf32>
    %247 = arith.mulf %246, %219 : vector<2x128xf32>
    %248 = vector.extract_strided_slice %243 {offsets = [0, 0], sizes = [2, 128], strides = [1, 1]} : vector<2x256xf32> to vector<2x128xf32>
    %249 = arith.mulf %248, %245 : vector<2x128xf32>
    %250 = arith.addf %247, %249 : vector<2x128xf32>
    %251 = vector.extract_strided_slice %235 {offsets = [0, 384], sizes = [2, 128], strides = [1, 1]} : vector<2x512xf32> to vector<2x128xf32>
    %cst_96 = arith.constant 0.000000e+00 : f32
    %252 = vector.broadcast %cst_96 : f32 to vector<2x128xf32>
    %253 = arith.subf %252, %251 : vector<2x128xf32>
    %254 = math.exp %253 : vector<2x128xf32>
    %cst_97 = arith.constant 1.000000e+00 : f32
    %255 = vector.broadcast %cst_97 : f32 to vector<2x128xf32>
    %256 = arith.addf %255, %254 : vector<2x128xf32>
    %cst_98 = arith.constant 1.000000e+00 : f32
    %257 = vector.broadcast %cst_98 : f32 to vector<2x128xf32>
    %258 = arith.divf %257, %256 : vector<2x128xf32>
    %259 = math.tanh %250 : vector<2x128xf32>
    %260 = arith.mulf %258, %259 : vector<2x128xf32>
    %261 = arith.truncf %260 : vector<2x128xf32> to vector<2x128xbf16>
    %c0_99 = arith.constant 0 : index
    %c0_100 = arith.constant 0 : index
    %262 = vector.load %arg3[%c0_99, %c0_100] : memref<128x512xbf16, #tpu.memory_space<vmem>>, vector<128x512xbf16>
    %cst_101 = arith.constant dense<0.000000e+00> : vector<2x512xf32>
    %263 = tpu.matmul %261, %262, %cst_101 {dimension_numbers = #tpu.dot_dimension_numbers<[1], [0], [0], [1], [0, 0, 1, 1], [], []>} : vector<2x128xbf16>, vector<128x512xbf16>, vector<2x512xf32> -> vector<2x512xf32>
    %c8 = arith.constant 8 : index
    %c0_102 = arith.constant 0 : index
    %c0_103 = arith.constant 0 : index
    %264 = vector.load %arg10[%c8, %c0_102, %c0_103] : memref<36x2x512xf32, #tpu.memory_space<vmem>>, vector<1x2x512xf32>
    %265 = vector.shape_cast %264 : vector<1x2x512xf32> to vector<2x512xf32>
    %266 = arith.addf %265, %263 : vector<2x512xf32>
    %267 = vector.extract_strided_slice %266 {offsets = [0, 0], sizes = [2, 256], strides = [1, 1]} : vector<2x512xf32> to vector<2x256xf32>
    %cst_104 = arith.constant 0.000000e+00 : f32
    %268 = vector.broadcast %cst_104 : f32 to vector<2x256xf32>
    %269 = arith.subf %268, %267 : vector<2x256xf32>
    %270 = math.exp %269 : vector<2x256xf32>
    %cst_105 = arith.constant 1.000000e+00 : f32
    %271 = vector.broadcast %cst_105 : f32 to vector<2x256xf32>
    %272 = arith.addf %271, %270 : vector<2x256xf32>
    %cst_106 = arith.constant 1.000000e+00 : f32
    %273 = vector.broadcast %cst_106 : f32 to vector<2x256xf32>
    %274 = arith.divf %273, %272 : vector<2x256xf32>
    %275 = vector.extract_strided_slice %266 {offsets = [0, 256], sizes = [2, 128], strides = [1, 1]} : vector<2x512xf32> to vector<2x128xf32>
    %276 = math.tanh %275 : vector<2x128xf32>
    %277 = vector.extract_strided_slice %274 {offsets = [0, 128], sizes = [2, 128], strides = [1, 1]} : vector<2x256xf32> to vector<2x128xf32>
    %278 = arith.mulf %277, %250 : vector<2x128xf32>
    %279 = vector.extract_strided_slice %274 {offsets = [0, 0], sizes = [2, 128], strides = [1, 1]} : vector<2x256xf32> to vector<2x128xf32>
    %280 = arith.mulf %279, %276 : vector<2x128xf32>
    %281 = arith.addf %278, %280 : vector<2x128xf32>
    %282 = vector.extract_strided_slice %266 {offsets = [0, 384], sizes = [2, 128], strides = [1, 1]} : vector<2x512xf32> to vector<2x128xf32>
    %cst_107 = arith.constant 0.000000e+00 : f32
    %283 = vector.broadcast %cst_107 : f32 to vector<2x128xf32>
    %284 = arith.subf %283, %282 : vector<2x128xf32>
    %285 = math.exp %284 : vector<2x128xf32>
    %cst_108 = arith.constant 1.000000e+00 : f32
    %286 = vector.broadcast %cst_108 : f32 to vector<2x128xf32>
    %287 = arith.addf %286, %285 : vector<2x128xf32>
    %cst_109 = arith.constant 1.000000e+00 : f32
    %288 = vector.broadcast %cst_109 : f32 to vector<2x128xf32>
    %289 = arith.divf %288, %287 : vector<2x128xf32>
    %290 = math.tanh %281 : vector<2x128xf32>
    %291 = arith.mulf %289, %290 : vector<2x128xf32>
    %292 = arith.truncf %291 : vector<2x128xf32> to vector<2x128xbf16>
    %c0_110 = arith.constant 0 : index
    %c0_111 = arith.constant 0 : index
    %293 = vector.load %arg3[%c0_110, %c0_111] : memref<128x512xbf16, #tpu.memory_space<vmem>>, vector<128x512xbf16>
    %cst_112 = arith.constant dense<0.000000e+00> : vector<2x512xf32>
    %294 = tpu.matmul %292, %293, %cst_112 {dimension_numbers = #tpu.dot_dimension_numbers<[1], [0], [0], [1], [0, 0, 1, 1], [], []>} : vector<2x128xbf16>, vector<128x512xbf16>, vector<2x512xf32> -> vector<2x512xf32>
    %c9 = arith.constant 9 : index
    %c0_113 = arith.constant 0 : index
    %c0_114 = arith.constant 0 : index
    %295 = vector.load %arg10[%c9, %c0_113, %c0_114] : memref<36x2x512xf32, #tpu.memory_space<vmem>>, vector<1x2x512xf32>
    %296 = vector.shape_cast %295 : vector<1x2x512xf32> to vector<2x512xf32>
    %297 = arith.addf %296, %294 : vector<2x512xf32>
    %298 = vector.extract_strided_slice %297 {offsets = [0, 0], sizes = [2, 256], strides = [1, 1]} : vector<2x512xf32> to vector<2x256xf32>
    %cst_115 = arith.constant 0.000000e+00 : f32
    %299 = vector.broadcast %cst_115 : f32 to vector<2x256xf32>
    %300 = arith.subf %299, %298 : vector<2x256xf32>
    %301 = math.exp %300 : vector<2x256xf32>
    %cst_116 = arith.constant 1.000000e+00 : f32
    %302 = vector.broadcast %cst_116 : f32 to vector<2x256xf32>
    %303 = arith.addf %302, %301 : vector<2x256xf32>
    %cst_117 = arith.constant 1.000000e+00 : f32
    %304 = vector.broadcast %cst_117 : f32 to vector<2x256xf32>
    %305 = arith.divf %304, %303 : vector<2x256xf32>
    %306 = vector.extract_strided_slice %297 {offsets = [0, 256], sizes = [2, 128], strides = [1, 1]} : vector<2x512xf32> to vector<2x128xf32>
    %307 = math.tanh %306 : vector<2x128xf32>
    %308 = vector.extract_strided_slice %305 {offsets = [0, 128], sizes = [2, 128], strides = [1, 1]} : vector<2x256xf32> to vector<2x128xf32>
    %309 = arith.mulf %308, %281 : vector<2x128xf32>
    %310 = vector.extract_strided_slice %305 {offsets = [0, 0], sizes = [2, 128], strides = [1, 1]} : vector<2x256xf32> to vector<2x128xf32>
    %311 = arith.mulf %310, %307 : vector<2x128xf32>
    %312 = arith.addf %309, %311 : vector<2x128xf32>
    %313 = vector.extract_strided_slice %297 {offsets = [0, 384], sizes = [2, 128], strides = [1, 1]} : vector<2x512xf32> to vector<2x128xf32>
    %cst_118 = arith.constant 0.000000e+00 : f32
    %314 = vector.broadcast %cst_118 : f32 to vector<2x128xf32>
    %315 = arith.subf %314, %313 : vector<2x128xf32>
    %316 = math.exp %315 : vector<2x128xf32>
    %cst_119 = arith.constant 1.000000e+00 : f32
    %317 = vector.broadcast %cst_119 : f32 to vector<2x128xf32>
    %318 = arith.addf %317, %316 : vector<2x128xf32>
    %cst_120 = arith.constant 1.000000e+00 : f32
    %319 = vector.broadcast %cst_120 : f32 to vector<2x128xf32>
    %320 = arith.divf %319, %318 : vector<2x128xf32>
    %321 = math.tanh %312 : vector<2x128xf32>
    %322 = arith.mulf %320, %321 : vector<2x128xf32>
    %323 = arith.truncf %322 : vector<2x128xf32> to vector<2x128xbf16>
    %c0_121 = arith.constant 0 : index
    %c0_122 = arith.constant 0 : index
    %324 = vector.load %arg3[%c0_121, %c0_122] : memref<128x512xbf16, #tpu.memory_space<vmem>>, vector<128x512xbf16>
    %cst_123 = arith.constant dense<0.000000e+00> : vector<2x512xf32>
    %325 = tpu.matmul %323, %324, %cst_123 {dimension_numbers = #tpu.dot_dimension_numbers<[1], [0], [0], [1], [0, 0, 1, 1], [], []>} : vector<2x128xbf16>, vector<128x512xbf16>, vector<2x512xf32> -> vector<2x512xf32>
    %c10 = arith.constant 10 : index
    %c0_124 = arith.constant 0 : index
    %c0_125 = arith.constant 0 : index
    %326 = vector.load %arg10[%c10, %c0_124, %c0_125] : memref<36x2x512xf32, #tpu.memory_space<vmem>>, vector<1x2x512xf32>
    %327 = vector.shape_cast %326 : vector<1x2x512xf32> to vector<2x512xf32>
    %328 = arith.addf %327, %325 : vector<2x512xf32>
    %329 = vector.extract_strided_slice %328 {offsets = [0, 0], sizes = [2, 256], strides = [1, 1]} : vector<2x512xf32> to vector<2x256xf32>
    %cst_126 = arith.constant 0.000000e+00 : f32
    %330 = vector.broadcast %cst_126 : f32 to vector<2x256xf32>
    %331 = arith.subf %330, %329 : vector<2x256xf32>
    %332 = math.exp %331 : vector<2x256xf32>
    %cst_127 = arith.constant 1.000000e+00 : f32
    %333 = vector.broadcast %cst_127 : f32 to vector<2x256xf32>
    %334 = arith.addf %333, %332 : vector<2x256xf32>
    %cst_128 = arith.constant 1.000000e+00 : f32
    %335 = vector.broadcast %cst_128 : f32 to vector<2x256xf32>
    %336 = arith.divf %335, %334 : vector<2x256xf32>
    %337 = vector.extract_strided_slice %328 {offsets = [0, 256], sizes = [2, 128], strides = [1, 1]} : vector<2x512xf32> to vector<2x128xf32>
    %338 = math.tanh %337 : vector<2x128xf32>
    %339 = vector.extract_strided_slice %336 {offsets = [0, 128], sizes = [2, 128], strides = [1, 1]} : vector<2x256xf32> to vector<2x128xf32>
    %340 = arith.mulf %339, %312 : vector<2x128xf32>
    %341 = vector.extract_strided_slice %336 {offsets = [0, 0], sizes = [2, 128], strides = [1, 1]} : vector<2x256xf32> to vector<2x128xf32>
    %342 = arith.mulf %341, %338 : vector<2x128xf32>
    %343 = arith.addf %340, %342 : vector<2x128xf32>
    %344 = vector.extract_strided_slice %328 {offsets = [0, 384], sizes = [2, 128], strides = [1, 1]} : vector<2x512xf32> to vector<2x128xf32>
    %cst_129 = arith.constant 0.000000e+00 : f32
    %345 = vector.broadcast %cst_129 : f32 to vector<2x128xf32>
    %346 = arith.subf %345, %344 : vector<2x128xf32>
    %347 = math.exp %346 : vector<2x128xf32>
    %cst_130 = arith.constant 1.000000e+00 : f32
    %348 = vector.broadcast %cst_130 : f32 to vector<2x128xf32>
    %349 = arith.addf %348, %347 : vector<2x128xf32>
    %cst_131 = arith.constant 1.000000e+00 : f32
    %350 = vector.broadcast %cst_131 : f32 to vector<2x128xf32>
    %351 = arith.divf %350, %349 : vector<2x128xf32>
    %352 = math.tanh %343 : vector<2x128xf32>
    %353 = arith.mulf %351, %352 : vector<2x128xf32>
    %354 = arith.truncf %353 : vector<2x128xf32> to vector<2x128xbf16>
    %c0_132 = arith.constant 0 : index
    %c0_133 = arith.constant 0 : index
    %355 = vector.load %arg3[%c0_132, %c0_133] : memref<128x512xbf16, #tpu.memory_space<vmem>>, vector<128x512xbf16>
    %cst_134 = arith.constant dense<0.000000e+00> : vector<2x512xf32>
    %356 = tpu.matmul %354, %355, %cst_134 {dimension_numbers = #tpu.dot_dimension_numbers<[1], [0], [0], [1], [0, 0, 1, 1], [], []>} : vector<2x128xbf16>, vector<128x512xbf16>, vector<2x512xf32> -> vector<2x512xf32>
    %c11 = arith.constant 11 : index
    %c0_135 = arith.constant 0 : index
    %c0_136 = arith.constant 0 : index
    %357 = vector.load %arg10[%c11, %c0_135, %c0_136] : memref<36x2x512xf32, #tpu.memory_space<vmem>>, vector<1x2x512xf32>
    %358 = vector.shape_cast %357 : vector<1x2x512xf32> to vector<2x512xf32>
    %359 = arith.addf %358, %356 : vector<2x512xf32>
    %360 = vector.extract_strided_slice %359 {offsets = [0, 0], sizes = [2, 256], strides = [1, 1]} : vector<2x512xf32> to vector<2x256xf32>
    %cst_137 = arith.constant 0.000000e+00 : f32
    %361 = vector.broadcast %cst_137 : f32 to vector<2x256xf32>
    %362 = arith.subf %361, %360 : vector<2x256xf32>
    %363 = math.exp %362 : vector<2x256xf32>
    %cst_138 = arith.constant 1.000000e+00 : f32
    %364 = vector.broadcast %cst_138 : f32 to vector<2x256xf32>
    %365 = arith.addf %364, %363 : vector<2x256xf32>
    %cst_139 = arith.constant 1.000000e+00 : f32
    %366 = vector.broadcast %cst_139 : f32 to vector<2x256xf32>
    %367 = arith.divf %366, %365 : vector<2x256xf32>
    %368 = vector.extract_strided_slice %359 {offsets = [0, 256], sizes = [2, 128], strides = [1, 1]} : vector<2x512xf32> to vector<2x128xf32>
    %369 = math.tanh %368 : vector<2x128xf32>
    %370 = vector.extract_strided_slice %367 {offsets = [0, 128], sizes = [2, 128], strides = [1, 1]} : vector<2x256xf32> to vector<2x128xf32>
    %371 = arith.mulf %370, %343 : vector<2x128xf32>
    %372 = vector.extract_strided_slice %367 {offsets = [0, 0], sizes = [2, 128], strides = [1, 1]} : vector<2x256xf32> to vector<2x128xf32>
    %373 = arith.mulf %372, %369 : vector<2x128xf32>
    %374 = arith.addf %371, %373 : vector<2x128xf32>
    %375 = vector.extract_strided_slice %359 {offsets = [0, 384], sizes = [2, 128], strides = [1, 1]} : vector<2x512xf32> to vector<2x128xf32>
    %cst_140 = arith.constant 0.000000e+00 : f32
    %376 = vector.broadcast %cst_140 : f32 to vector<2x128xf32>
    %377 = arith.subf %376, %375 : vector<2x128xf32>
    %378 = math.exp %377 : vector<2x128xf32>
    %cst_141 = arith.constant 1.000000e+00 : f32
    %379 = vector.broadcast %cst_141 : f32 to vector<2x128xf32>
    %380 = arith.addf %379, %378 : vector<2x128xf32>
    %cst_142 = arith.constant 1.000000e+00 : f32
    %381 = vector.broadcast %cst_142 : f32 to vector<2x128xf32>
    %382 = arith.divf %381, %380 : vector<2x128xf32>
    %383 = math.tanh %374 : vector<2x128xf32>
    %384 = arith.mulf %382, %383 : vector<2x128xf32>
    %385 = arith.truncf %384 : vector<2x128xf32> to vector<2x128xbf16>
    %c0_143 = arith.constant 0 : index
    %c0_144 = arith.constant 0 : index
    %386 = vector.load %arg3[%c0_143, %c0_144] : memref<128x512xbf16, #tpu.memory_space<vmem>>, vector<128x512xbf16>
    %cst_145 = arith.constant dense<0.000000e+00> : vector<2x512xf32>
    %387 = tpu.matmul %385, %386, %cst_145 {dimension_numbers = #tpu.dot_dimension_numbers<[1], [0], [0], [1], [0, 0, 1, 1], [], []>} : vector<2x128xbf16>, vector<128x512xbf16>, vector<2x512xf32> -> vector<2x512xf32>
    %c12 = arith.constant 12 : index
    %c0_146 = arith.constant 0 : index
    %c0_147 = arith.constant 0 : index
    %388 = vector.load %arg10[%c12, %c0_146, %c0_147] : memref<36x2x512xf32, #tpu.memory_space<vmem>>, vector<1x2x512xf32>
    %389 = vector.shape_cast %388 : vector<1x2x512xf32> to vector<2x512xf32>
    %390 = arith.addf %389, %387 : vector<2x512xf32>
    %391 = vector.extract_strided_slice %390 {offsets = [0, 0], sizes = [2, 256], strides = [1, 1]} : vector<2x512xf32> to vector<2x256xf32>
    %cst_148 = arith.constant 0.000000e+00 : f32
    %392 = vector.broadcast %cst_148 : f32 to vector<2x256xf32>
    %393 = arith.subf %392, %391 : vector<2x256xf32>
    %394 = math.exp %393 : vector<2x256xf32>
    %cst_149 = arith.constant 1.000000e+00 : f32
    %395 = vector.broadcast %cst_149 : f32 to vector<2x256xf32>
    %396 = arith.addf %395, %394 : vector<2x256xf32>
    %cst_150 = arith.constant 1.000000e+00 : f32
    %397 = vector.broadcast %cst_150 : f32 to vector<2x256xf32>
    %398 = arith.divf %397, %396 : vector<2x256xf32>
    %399 = vector.extract_strided_slice %390 {offsets = [0, 256], sizes = [2, 128], strides = [1, 1]} : vector<2x512xf32> to vector<2x128xf32>
    %400 = math.tanh %399 : vector<2x128xf32>
    %401 = vector.extract_strided_slice %398 {offsets = [0, 128], sizes = [2, 128], strides = [1, 1]} : vector<2x256xf32> to vector<2x128xf32>
    %402 = arith.mulf %401, %374 : vector<2x128xf32>
    %403 = vector.extract_strided_slice %398 {offsets = [0, 0], sizes = [2, 128], strides = [1, 1]} : vector<2x256xf32> to vector<2x128xf32>
    %404 = arith.mulf %403, %400 : vector<2x128xf32>
    %405 = arith.addf %402, %404 : vector<2x128xf32>
    %406 = vector.extract_strided_slice %390 {offsets = [0, 384], sizes = [2, 128], strides = [1, 1]} : vector<2x512xf32> to vector<2x128xf32>
    %cst_151 = arith.constant 0.000000e+00 : f32
    %407 = vector.broadcast %cst_151 : f32 to vector<2x128xf32>
    %408 = arith.subf %407, %406 : vector<2x128xf32>
    %409 = math.exp %408 : vector<2x128xf32>
    %cst_152 = arith.constant 1.000000e+00 : f32
    %410 = vector.broadcast %cst_152 : f32 to vector<2x128xf32>
    %411 = arith.addf %410, %409 : vector<2x128xf32>
    %cst_153 = arith.constant 1.000000e+00 : f32
    %412 = vector.broadcast %cst_153 : f32 to vector<2x128xf32>
    %413 = arith.divf %412, %411 : vector<2x128xf32>
    %414 = math.tanh %405 : vector<2x128xf32>
    %415 = arith.mulf %413, %414 : vector<2x128xf32>
    %416 = arith.truncf %415 : vector<2x128xf32> to vector<2x128xbf16>
    %c0_154 = arith.constant 0 : index
    %c0_155 = arith.constant 0 : index
    %417 = vector.load %arg3[%c0_154, %c0_155] : memref<128x512xbf16, #tpu.memory_space<vmem>>, vector<128x512xbf16>
    %cst_156 = arith.constant dense<0.000000e+00> : vector<2x512xf32>
    %418 = tpu.matmul %416, %417, %cst_156 {dimension_numbers = #tpu.dot_dimension_numbers<[1], [0], [0], [1], [0, 0, 1, 1], [], []>} : vector<2x128xbf16>, vector<128x512xbf16>, vector<2x512xf32> -> vector<2x512xf32>
    %c13 = arith.constant 13 : index
    %c0_157 = arith.constant 0 : index
    %c0_158 = arith.constant 0 : index
    %419 = vector.load %arg10[%c13, %c0_157, %c0_158] : memref<36x2x512xf32, #tpu.memory_space<vmem>>, vector<1x2x512xf32>
    %420 = vector.shape_cast %419 : vector<1x2x512xf32> to vector<2x512xf32>
    %421 = arith.addf %420, %418 : vector<2x512xf32>
    %422 = vector.extract_strided_slice %421 {offsets = [0, 0], sizes = [2, 256], strides = [1, 1]} : vector<2x512xf32> to vector<2x256xf32>
    %cst_159 = arith.constant 0.000000e+00 : f32
    %423 = vector.broadcast %cst_159 : f32 to vector<2x256xf32>
    %424 = arith.subf %423, %422 : vector<2x256xf32>
    %425 = math.exp %424 : vector<2x256xf32>
    %cst_160 = arith.constant 1.000000e+00 : f32
    %426 = vector.broadcast %cst_160 : f32 to vector<2x256xf32>
    %427 = arith.addf %426, %425 : vector<2x256xf32>
    %cst_161 = arith.constant 1.000000e+00 : f32
    %428 = vector.broadcast %cst_161 : f32 to vector<2x256xf32>
    %429 = arith.divf %428, %427 : vector<2x256xf32>
    %430 = vector.extract_strided_slice %421 {offsets = [0, 256], sizes = [2, 128], strides = [1, 1]} : vector<2x512xf32> to vector<2x128xf32>
    %431 = math.tanh %430 : vector<2x128xf32>
    %432 = vector.extract_strided_slice %429 {offsets = [0, 128], sizes = [2, 128], strides = [1, 1]} : vector<2x256xf32> to vector<2x128xf32>
    %433 = arith.mulf %432, %405 : vector<2x128xf32>
    %434 = vector.extract_strided_slice %429 {offsets = [0, 0], sizes = [2, 128], strides = [1, 1]} : vector<2x256xf32> to vector<2x128xf32>
    %435 = arith.mulf %434, %431 : vector<2x128xf32>
    %436 = arith.addf %433, %435 : vector<2x128xf32>
    %437 = vector.extract_strided_slice %421 {offsets = [0, 384], sizes = [2, 128], strides = [1, 1]} : vector<2x512xf32> to vector<2x128xf32>
    %cst_162 = arith.constant 0.000000e+00 : f32
    %438 = vector.broadcast %cst_162 : f32 to vector<2x128xf32>
    %439 = arith.subf %438, %437 : vector<2x128xf32>
    %440 = math.exp %439 : vector<2x128xf32>
    %cst_163 = arith.constant 1.000000e+00 : f32
    %441 = vector.broadcast %cst_163 : f32 to vector<2x128xf32>
    %442 = arith.addf %441, %440 : vector<2x128xf32>
    %cst_164 = arith.constant 1.000000e+00 : f32
    %443 = vector.broadcast %cst_164 : f32 to vector<2x128xf32>
    %444 = arith.divf %443, %442 : vector<2x128xf32>
    %445 = math.tanh %436 : vector<2x128xf32>
    %446 = arith.mulf %444, %445 : vector<2x128xf32>
    %447 = arith.truncf %446 : vector<2x128xf32> to vector<2x128xbf16>
    %c0_165 = arith.constant 0 : index
    %c0_166 = arith.constant 0 : index
    %448 = vector.load %arg3[%c0_165, %c0_166] : memref<128x512xbf16, #tpu.memory_space<vmem>>, vector<128x512xbf16>
    %cst_167 = arith.constant dense<0.000000e+00> : vector<2x512xf32>
    %449 = tpu.matmul %447, %448, %cst_167 {dimension_numbers = #tpu.dot_dimension_numbers<[1], [0], [0], [1], [0, 0, 1, 1], [], []>} : vector<2x128xbf16>, vector<128x512xbf16>, vector<2x512xf32> -> vector<2x512xf32>
    %c14 = arith.constant 14 : index
    %c0_168 = arith.constant 0 : index
    %c0_169 = arith.constant 0 : index
    %450 = vector.load %arg10[%c14, %c0_168, %c0_169] : memref<36x2x512xf32, #tpu.memory_space<vmem>>, vector<1x2x512xf32>
    %451 = vector.shape_cast %450 : vector<1x2x512xf32> to vector<2x512xf32>
    %452 = arith.addf %451, %449 : vector<2x512xf32>
    %453 = vector.extract_strided_slice %452 {offsets = [0, 0], sizes = [2, 256], strides = [1, 1]} : vector<2x512xf32> to vector<2x256xf32>
    %cst_170 = arith.constant 0.000000e+00 : f32
    %454 = vector.broadcast %cst_170 : f32 to vector<2x256xf32>
    %455 = arith.subf %454, %453 : vector<2x256xf32>
    %456 = math.exp %455 : vector<2x256xf32>
    %cst_171 = arith.constant 1.000000e+00 : f32
    %457 = vector.broadcast %cst_171 : f32 to vector<2x256xf32>
    %458 = arith.addf %457, %456 : vector<2x256xf32>
    %cst_172 = arith.constant 1.000000e+00 : f32
    %459 = vector.broadcast %cst_172 : f32 to vector<2x256xf32>
    %460 = arith.divf %459, %458 : vector<2x256xf32>
    %461 = vector.extract_strided_slice %452 {offsets = [0, 256], sizes = [2, 128], strides = [1, 1]} : vector<2x512xf32> to vector<2x128xf32>
    %462 = math.tanh %461 : vector<2x128xf32>
    %463 = vector.extract_strided_slice %460 {offsets = [0, 128], sizes = [2, 128], strides = [1, 1]} : vector<2x256xf32> to vector<2x128xf32>
    %464 = arith.mulf %463, %436 : vector<2x128xf32>
    %465 = vector.extract_strided_slice %460 {offsets = [0, 0], sizes = [2, 128], strides = [1, 1]} : vector<2x256xf32> to vector<2x128xf32>
    %466 = arith.mulf %465, %462 : vector<2x128xf32>
    %467 = arith.addf %464, %466 : vector<2x128xf32>
    %468 = vector.extract_strided_slice %452 {offsets = [0, 384], sizes = [2, 128], strides = [1, 1]} : vector<2x512xf32> to vector<2x128xf32>
    %cst_173 = arith.constant 0.000000e+00 : f32
    %469 = vector.broadcast %cst_173 : f32 to vector<2x128xf32>
    %470 = arith.subf %469, %468 : vector<2x128xf32>
    %471 = math.exp %470 : vector<2x128xf32>
    %cst_174 = arith.constant 1.000000e+00 : f32
    %472 = vector.broadcast %cst_174 : f32 to vector<2x128xf32>
    %473 = arith.addf %472, %471 : vector<2x128xf32>
    %cst_175 = arith.constant 1.000000e+00 : f32
    %474 = vector.broadcast %cst_175 : f32 to vector<2x128xf32>
    %475 = arith.divf %474, %473 : vector<2x128xf32>
    %476 = math.tanh %467 : vector<2x128xf32>
    %477 = arith.mulf %475, %476 : vector<2x128xf32>
    %478 = arith.truncf %477 : vector<2x128xf32> to vector<2x128xbf16>
    %c0_176 = arith.constant 0 : index
    %c0_177 = arith.constant 0 : index
    %479 = vector.load %arg3[%c0_176, %c0_177] : memref<128x512xbf16, #tpu.memory_space<vmem>>, vector<128x512xbf16>
    %cst_178 = arith.constant dense<0.000000e+00> : vector<2x512xf32>
    %480 = tpu.matmul %478, %479, %cst_178 {dimension_numbers = #tpu.dot_dimension_numbers<[1], [0], [0], [1], [0, 0, 1, 1], [], []>} : vector<2x128xbf16>, vector<128x512xbf16>, vector<2x512xf32> -> vector<2x512xf32>
    %c15 = arith.constant 15 : index
    %c0_179 = arith.constant 0 : index
    %c0_180 = arith.constant 0 : index
    %481 = vector.load %arg10[%c15, %c0_179, %c0_180] : memref<36x2x512xf32, #tpu.memory_space<vmem>>, vector<1x2x512xf32>
    %482 = vector.shape_cast %481 : vector<1x2x512xf32> to vector<2x512xf32>
    %483 = arith.addf %482, %480 : vector<2x512xf32>
    %484 = vector.extract_strided_slice %483 {offsets = [0, 0], sizes = [2, 256], strides = [1, 1]} : vector<2x512xf32> to vector<2x256xf32>
    %cst_181 = arith.constant 0.000000e+00 : f32
    %485 = vector.broadcast %cst_181 : f32 to vector<2x256xf32>
    %486 = arith.subf %485, %484 : vector<2x256xf32>
    %487 = math.exp %486 : vector<2x256xf32>
    %cst_182 = arith.constant 1.000000e+00 : f32
    %488 = vector.broadcast %cst_182 : f32 to vector<2x256xf32>
    %489 = arith.addf %488, %487 : vector<2x256xf32>
    %cst_183 = arith.constant 1.000000e+00 : f32
    %490 = vector.broadcast %cst_183 : f32 to vector<2x256xf32>
    %491 = arith.divf %490, %489 : vector<2x256xf32>
    %492 = vector.extract_strided_slice %483 {offsets = [0, 256], sizes = [2, 128], strides = [1, 1]} : vector<2x512xf32> to vector<2x128xf32>
    %493 = math.tanh %492 : vector<2x128xf32>
    %494 = vector.extract_strided_slice %491 {offsets = [0, 128], sizes = [2, 128], strides = [1, 1]} : vector<2x256xf32> to vector<2x128xf32>
    %495 = arith.mulf %494, %467 : vector<2x128xf32>
    %496 = vector.extract_strided_slice %491 {offsets = [0, 0], sizes = [2, 128], strides = [1, 1]} : vector<2x256xf32> to vector<2x128xf32>
    %497 = arith.mulf %496, %493 : vector<2x128xf32>
    %498 = arith.addf %495, %497 : vector<2x128xf32>
    %499 = vector.extract_strided_slice %483 {offsets = [0, 384], sizes = [2, 128], strides = [1, 1]} : vector<2x512xf32> to vector<2x128xf32>
    %cst_184 = arith.constant 0.000000e+00 : f32
    %500 = vector.broadcast %cst_184 : f32 to vector<2x128xf32>
    %501 = arith.subf %500, %499 : vector<2x128xf32>
    %502 = math.exp %501 : vector<2x128xf32>
    %cst_185 = arith.constant 1.000000e+00 : f32
    %503 = vector.broadcast %cst_185 : f32 to vector<2x128xf32>
    %504 = arith.addf %503, %502 : vector<2x128xf32>
    %cst_186 = arith.constant 1.000000e+00 : f32
    %505 = vector.broadcast %cst_186 : f32 to vector<2x128xf32>
    %506 = arith.divf %505, %504 : vector<2x128xf32>
    %507 = math.tanh %498 : vector<2x128xf32>
    %508 = arith.mulf %506, %507 : vector<2x128xf32>
    %509 = arith.truncf %508 : vector<2x128xf32> to vector<2x128xbf16>
    %c0_187 = arith.constant 0 : index
    %c0_188 = arith.constant 0 : index
    %510 = vector.load %arg3[%c0_187, %c0_188] : memref<128x512xbf16, #tpu.memory_space<vmem>>, vector<128x512xbf16>
    %cst_189 = arith.constant dense<0.000000e+00> : vector<2x512xf32>
    %511 = tpu.matmul %509, %510, %cst_189 {dimension_numbers = #tpu.dot_dimension_numbers<[1], [0], [0], [1], [0, 0, 1, 1], [], []>} : vector<2x128xbf16>, vector<128x512xbf16>, vector<2x512xf32> -> vector<2x512xf32>
    %c16 = arith.constant 16 : index
    %c0_190 = arith.constant 0 : index
    %c0_191 = arith.constant 0 : index
    %512 = vector.load %arg10[%c16, %c0_190, %c0_191] : memref<36x2x512xf32, #tpu.memory_space<vmem>>, vector<1x2x512xf32>
    %513 = vector.shape_cast %512 : vector<1x2x512xf32> to vector<2x512xf32>
    %514 = arith.addf %513, %511 : vector<2x512xf32>
    %515 = vector.extract_strided_slice %514 {offsets = [0, 0], sizes = [2, 256], strides = [1, 1]} : vector<2x512xf32> to vector<2x256xf32>
    %cst_192 = arith.constant 0.000000e+00 : f32
    %516 = vector.broadcast %cst_192 : f32 to vector<2x256xf32>
    %517 = arith.subf %516, %515 : vector<2x256xf32>
    %518 = math.exp %517 : vector<2x256xf32>
    %cst_193 = arith.constant 1.000000e+00 : f32
    %519 = vector.broadcast %cst_193 : f32 to vector<2x256xf32>
    %520 = arith.addf %519, %518 : vector<2x256xf32>
    %cst_194 = arith.constant 1.000000e+00 : f32
    %521 = vector.broadcast %cst_194 : f32 to vector<2x256xf32>
    %522 = arith.divf %521, %520 : vector<2x256xf32>
    %523 = vector.extract_strided_slice %514 {offsets = [0, 256], sizes = [2, 128], strides = [1, 1]} : vector<2x512xf32> to vector<2x128xf32>
    %524 = math.tanh %523 : vector<2x128xf32>
    %525 = vector.extract_strided_slice %522 {offsets = [0, 128], sizes = [2, 128], strides = [1, 1]} : vector<2x256xf32> to vector<2x128xf32>
    %526 = arith.mulf %525, %498 : vector<2x128xf32>
    %527 = vector.extract_strided_slice %522 {offsets = [0, 0], sizes = [2, 128], strides = [1, 1]} : vector<2x256xf32> to vector<2x128xf32>
    %528 = arith.mulf %527, %524 : vector<2x128xf32>
    %529 = arith.addf %526, %528 : vector<2x128xf32>
    %530 = vector.extract_strided_slice %514 {offsets = [0, 384], sizes = [2, 128], strides = [1, 1]} : vector<2x512xf32> to vector<2x128xf32>
    %cst_195 = arith.constant 0.000000e+00 : f32
    %531 = vector.broadcast %cst_195 : f32 to vector<2x128xf32>
    %532 = arith.subf %531, %530 : vector<2x128xf32>
    %533 = math.exp %532 : vector<2x128xf32>
    %cst_196 = arith.constant 1.000000e+00 : f32
    %534 = vector.broadcast %cst_196 : f32 to vector<2x128xf32>
    %535 = arith.addf %534, %533 : vector<2x128xf32>
    %cst_197 = arith.constant 1.000000e+00 : f32
    %536 = vector.broadcast %cst_197 : f32 to vector<2x128xf32>
    %537 = arith.divf %536, %535 : vector<2x128xf32>
    %538 = math.tanh %529 : vector<2x128xf32>
    %539 = arith.mulf %537, %538 : vector<2x128xf32>
    %540 = arith.truncf %539 : vector<2x128xf32> to vector<2x128xbf16>
    %c0_198 = arith.constant 0 : index
    %c0_199 = arith.constant 0 : index
    %541 = vector.load %arg3[%c0_198, %c0_199] : memref<128x512xbf16, #tpu.memory_space<vmem>>, vector<128x512xbf16>
    %cst_200 = arith.constant dense<0.000000e+00> : vector<2x512xf32>
    %542 = tpu.matmul %540, %541, %cst_200 {dimension_numbers = #tpu.dot_dimension_numbers<[1], [0], [0], [1], [0, 0, 1, 1], [], []>} : vector<2x128xbf16>, vector<128x512xbf16>, vector<2x512xf32> -> vector<2x512xf32>
    %c17 = arith.constant 17 : index
    %c0_201 = arith.constant 0 : index
    %c0_202 = arith.constant 0 : index
    %543 = vector.load %arg10[%c17, %c0_201, %c0_202] : memref<36x2x512xf32, #tpu.memory_space<vmem>>, vector<1x2x512xf32>
    %544 = vector.shape_cast %543 : vector<1x2x512xf32> to vector<2x512xf32>
    %545 = arith.addf %544, %542 : vector<2x512xf32>
    %546 = vector.extract_strided_slice %545 {offsets = [0, 0], sizes = [2, 256], strides = [1, 1]} : vector<2x512xf32> to vector<2x256xf32>
    %cst_203 = arith.constant 0.000000e+00 : f32
    %547 = vector.broadcast %cst_203 : f32 to vector<2x256xf32>
    %548 = arith.subf %547, %546 : vector<2x256xf32>
    %549 = math.exp %548 : vector<2x256xf32>
    %cst_204 = arith.constant 1.000000e+00 : f32
    %550 = vector.broadcast %cst_204 : f32 to vector<2x256xf32>
    %551 = arith.addf %550, %549 : vector<2x256xf32>
    %cst_205 = arith.constant 1.000000e+00 : f32
    %552 = vector.broadcast %cst_205 : f32 to vector<2x256xf32>
    %553 = arith.divf %552, %551 : vector<2x256xf32>
    %554 = vector.extract_strided_slice %545 {offsets = [0, 256], sizes = [2, 128], strides = [1, 1]} : vector<2x512xf32> to vector<2x128xf32>
    %555 = math.tanh %554 : vector<2x128xf32>
    %556 = vector.extract_strided_slice %553 {offsets = [0, 128], sizes = [2, 128], strides = [1, 1]} : vector<2x256xf32> to vector<2x128xf32>
    %557 = arith.mulf %556, %529 : vector<2x128xf32>
    %558 = vector.extract_strided_slice %553 {offsets = [0, 0], sizes = [2, 128], strides = [1, 1]} : vector<2x256xf32> to vector<2x128xf32>
    %559 = arith.mulf %558, %555 : vector<2x128xf32>
    %560 = arith.addf %557, %559 : vector<2x128xf32>
    %561 = vector.extract_strided_slice %545 {offsets = [0, 384], sizes = [2, 128], strides = [1, 1]} : vector<2x512xf32> to vector<2x128xf32>
    %cst_206 = arith.constant 0.000000e+00 : f32
    %562 = vector.broadcast %cst_206 : f32 to vector<2x128xf32>
    %563 = arith.subf %562, %561 : vector<2x128xf32>
    %564 = math.exp %563 : vector<2x128xf32>
    %cst_207 = arith.constant 1.000000e+00 : f32
    %565 = vector.broadcast %cst_207 : f32 to vector<2x128xf32>
    %566 = arith.addf %565, %564 : vector<2x128xf32>
    %cst_208 = arith.constant 1.000000e+00 : f32
    %567 = vector.broadcast %cst_208 : f32 to vector<2x128xf32>
    %568 = arith.divf %567, %566 : vector<2x128xf32>
    %569 = math.tanh %560 : vector<2x128xf32>
    %570 = arith.mulf %568, %569 : vector<2x128xf32>
    %571 = arith.truncf %570 : vector<2x128xf32> to vector<2x128xbf16>
    %c0_209 = arith.constant 0 : index
    %c0_210 = arith.constant 0 : index
    %572 = vector.load %arg3[%c0_209, %c0_210] : memref<128x512xbf16, #tpu.memory_space<vmem>>, vector<128x512xbf16>
    %cst_211 = arith.constant dense<0.000000e+00> : vector<2x512xf32>
    %573 = tpu.matmul %571, %572, %cst_211 {dimension_numbers = #tpu.dot_dimension_numbers<[1], [0], [0], [1], [0, 0, 1, 1], [], []>} : vector<2x128xbf16>, vector<128x512xbf16>, vector<2x512xf32> -> vector<2x512xf32>
    %c18 = arith.constant 18 : index
    %c0_212 = arith.constant 0 : index
    %c0_213 = arith.constant 0 : index
    %574 = vector.load %arg10[%c18, %c0_212, %c0_213] : memref<36x2x512xf32, #tpu.memory_space<vmem>>, vector<1x2x512xf32>
    %575 = vector.shape_cast %574 : vector<1x2x512xf32> to vector<2x512xf32>
    %576 = arith.addf %575, %573 : vector<2x512xf32>
    %577 = vector.extract_strided_slice %576 {offsets = [0, 0], sizes = [2, 256], strides = [1, 1]} : vector<2x512xf32> to vector<2x256xf32>
    %cst_214 = arith.constant 0.000000e+00 : f32
    %578 = vector.broadcast %cst_214 : f32 to vector<2x256xf32>
    %579 = arith.subf %578, %577 : vector<2x256xf32>
    %580 = math.exp %579 : vector<2x256xf32>
    %cst_215 = arith.constant 1.000000e+00 : f32
    %581 = vector.broadcast %cst_215 : f32 to vector<2x256xf32>
    %582 = arith.addf %581, %580 : vector<2x256xf32>
    %cst_216 = arith.constant 1.000000e+00 : f32
    %583 = vector.broadcast %cst_216 : f32 to vector<2x256xf32>
    %584 = arith.divf %583, %582 : vector<2x256xf32>
    %585 = vector.extract_strided_slice %576 {offsets = [0, 256], sizes = [2, 128], strides = [1, 1]} : vector<2x512xf32> to vector<2x128xf32>
    %586 = math.tanh %585 : vector<2x128xf32>
    %587 = vector.extract_strided_slice %584 {offsets = [0, 128], sizes = [2, 128], strides = [1, 1]} : vector<2x256xf32> to vector<2x128xf32>
    %588 = arith.mulf %587, %560 : vector<2x128xf32>
    %589 = vector.extract_strided_slice %584 {offsets = [0, 0], sizes = [2, 128], strides = [1, 1]} : vector<2x256xf32> to vector<2x128xf32>
    %590 = arith.mulf %589, %586 : vector<2x128xf32>
    %591 = arith.addf %588, %590 : vector<2x128xf32>
    %592 = vector.extract_strided_slice %576 {offsets = [0, 384], sizes = [2, 128], strides = [1, 1]} : vector<2x512xf32> to vector<2x128xf32>
    %cst_217 = arith.constant 0.000000e+00 : f32
    %593 = vector.broadcast %cst_217 : f32 to vector<2x128xf32>
    %594 = arith.subf %593, %592 : vector<2x128xf32>
    %595 = math.exp %594 : vector<2x128xf32>
    %cst_218 = arith.constant 1.000000e+00 : f32
    %596 = vector.broadcast %cst_218 : f32 to vector<2x128xf32>
    %597 = arith.addf %596, %595 : vector<2x128xf32>
    %cst_219 = arith.constant 1.000000e+00 : f32
    %598 = vector.broadcast %cst_219 : f32 to vector<2x128xf32>
    %599 = arith.divf %598, %597 : vector<2x128xf32>
    %600 = math.tanh %591 : vector<2x128xf32>
    %601 = arith.mulf %599, %600 : vector<2x128xf32>
    %602 = arith.truncf %601 : vector<2x128xf32> to vector<2x128xbf16>
    %c0_220 = arith.constant 0 : index
    %c0_221 = arith.constant 0 : index
    %603 = vector.load %arg3[%c0_220, %c0_221] : memref<128x512xbf16, #tpu.memory_space<vmem>>, vector<128x512xbf16>
    %cst_222 = arith.constant dense<0.000000e+00> : vector<2x512xf32>
    %604 = tpu.matmul %602, %603, %cst_222 {dimension_numbers = #tpu.dot_dimension_numbers<[1], [0], [0], [1], [0, 0, 1, 1], [], []>} : vector<2x128xbf16>, vector<128x512xbf16>, vector<2x512xf32> -> vector<2x512xf32>
    %c19 = arith.constant 19 : index
    %c0_223 = arith.constant 0 : index
    %c0_224 = arith.constant 0 : index
    %605 = vector.load %arg10[%c19, %c0_223, %c0_224] : memref<36x2x512xf32, #tpu.memory_space<vmem>>, vector<1x2x512xf32>
    %606 = vector.shape_cast %605 : vector<1x2x512xf32> to vector<2x512xf32>
    %607 = arith.addf %606, %604 : vector<2x512xf32>
    %608 = vector.extract_strided_slice %607 {offsets = [0, 0], sizes = [2, 256], strides = [1, 1]} : vector<2x512xf32> to vector<2x256xf32>
    %cst_225 = arith.constant 0.000000e+00 : f32
    %609 = vector.broadcast %cst_225 : f32 to vector<2x256xf32>
    %610 = arith.subf %609, %608 : vector<2x256xf32>
    %611 = math.exp %610 : vector<2x256xf32>
    %cst_226 = arith.constant 1.000000e+00 : f32
    %612 = vector.broadcast %cst_226 : f32 to vector<2x256xf32>
    %613 = arith.addf %612, %611 : vector<2x256xf32>
    %cst_227 = arith.constant 1.000000e+00 : f32
    %614 = vector.broadcast %cst_227 : f32 to vector<2x256xf32>
    %615 = arith.divf %614, %613 : vector<2x256xf32>
    %616 = vector.extract_strided_slice %607 {offsets = [0, 256], sizes = [2, 128], strides = [1, 1]} : vector<2x512xf32> to vector<2x128xf32>
    %617 = math.tanh %616 : vector<2x128xf32>
    %618 = vector.extract_strided_slice %615 {offsets = [0, 128], sizes = [2, 128], strides = [1, 1]} : vector<2x256xf32> to vector<2x128xf32>
    %619 = arith.mulf %618, %591 : vector<2x128xf32>
    %620 = vector.extract_strided_slice %615 {offsets = [0, 0], sizes = [2, 128], strides = [1, 1]} : vector<2x256xf32> to vector<2x128xf32>
    %621 = arith.mulf %620, %617 : vector<2x128xf32>
    %622 = arith.addf %619, %621 : vector<2x128xf32>
    %623 = vector.extract_strided_slice %607 {offsets = [0, 384], sizes = [2, 128], strides = [1, 1]} : vector<2x512xf32> to vector<2x128xf32>
    %cst_228 = arith.constant 0.000000e+00 : f32
    %624 = vector.broadcast %cst_228 : f32 to vector<2x128xf32>
    %625 = arith.subf %624, %623 : vector<2x128xf32>
    %626 = math.exp %625 : vector<2x128xf32>
    %cst_229 = arith.constant 1.000000e+00 : f32
    %627 = vector.broadcast %cst_229 : f32 to vector<2x128xf32>
    %628 = arith.addf %627, %626 : vector<2x128xf32>
    %cst_230 = arith.constant 1.000000e+00 : f32
    %629 = vector.broadcast %cst_230 : f32 to vector<2x128xf32>
    %630 = arith.divf %629, %628 : vector<2x128xf32>
    %631 = math.tanh %622 : vector<2x128xf32>
    %632 = arith.mulf %630, %631 : vector<2x128xf32>
    %633 = arith.truncf %632 : vector<2x128xf32> to vector<2x128xbf16>
    %c0_231 = arith.constant 0 : index
    %c0_232 = arith.constant 0 : index
    %634 = vector.load %arg3[%c0_231, %c0_232] : memref<128x512xbf16, #tpu.memory_space<vmem>>, vector<128x512xbf16>
    %cst_233 = arith.constant dense<0.000000e+00> : vector<2x512xf32>
    %635 = tpu.matmul %633, %634, %cst_233 {dimension_numbers = #tpu.dot_dimension_numbers<[1], [0], [0], [1], [0, 0, 1, 1], [], []>} : vector<2x128xbf16>, vector<128x512xbf16>, vector<2x512xf32> -> vector<2x512xf32>
    %c20 = arith.constant 20 : index
    %c0_234 = arith.constant 0 : index
    %c0_235 = arith.constant 0 : index
    %636 = vector.load %arg10[%c20, %c0_234, %c0_235] : memref<36x2x512xf32, #tpu.memory_space<vmem>>, vector<1x2x512xf32>
    %637 = vector.shape_cast %636 : vector<1x2x512xf32> to vector<2x512xf32>
    %638 = arith.addf %637, %635 : vector<2x512xf32>
    %639 = vector.extract_strided_slice %638 {offsets = [0, 0], sizes = [2, 256], strides = [1, 1]} : vector<2x512xf32> to vector<2x256xf32>
    %cst_236 = arith.constant 0.000000e+00 : f32
    %640 = vector.broadcast %cst_236 : f32 to vector<2x256xf32>
    %641 = arith.subf %640, %639 : vector<2x256xf32>
    %642 = math.exp %641 : vector<2x256xf32>
    %cst_237 = arith.constant 1.000000e+00 : f32
    %643 = vector.broadcast %cst_237 : f32 to vector<2x256xf32>
    %644 = arith.addf %643, %642 : vector<2x256xf32>
    %cst_238 = arith.constant 1.000000e+00 : f32
    %645 = vector.broadcast %cst_238 : f32 to vector<2x256xf32>
    %646 = arith.divf %645, %644 : vector<2x256xf32>
    %647 = vector.extract_strided_slice %638 {offsets = [0, 256], sizes = [2, 128], strides = [1, 1]} : vector<2x512xf32> to vector<2x128xf32>
    %648 = math.tanh %647 : vector<2x128xf32>
    %649 = vector.extract_strided_slice %646 {offsets = [0, 128], sizes = [2, 128], strides = [1, 1]} : vector<2x256xf32> to vector<2x128xf32>
    %650 = arith.mulf %649, %622 : vector<2x128xf32>
    %651 = vector.extract_strided_slice %646 {offsets = [0, 0], sizes = [2, 128], strides = [1, 1]} : vector<2x256xf32> to vector<2x128xf32>
    %652 = arith.mulf %651, %648 : vector<2x128xf32>
    %653 = arith.addf %650, %652 : vector<2x128xf32>
    %654 = vector.extract_strided_slice %638 {offsets = [0, 384], sizes = [2, 128], strides = [1, 1]} : vector<2x512xf32> to vector<2x128xf32>
    %cst_239 = arith.constant 0.000000e+00 : f32
    %655 = vector.broadcast %cst_239 : f32 to vector<2x128xf32>
    %656 = arith.subf %655, %654 : vector<2x128xf32>
    %657 = math.exp %656 : vector<2x128xf32>
    %cst_240 = arith.constant 1.000000e+00 : f32
    %658 = vector.broadcast %cst_240 : f32 to vector<2x128xf32>
    %659 = arith.addf %658, %657 : vector<2x128xf32>
    %cst_241 = arith.constant 1.000000e+00 : f32
    %660 = vector.broadcast %cst_241 : f32 to vector<2x128xf32>
    %661 = arith.divf %660, %659 : vector<2x128xf32>
    %662 = math.tanh %653 : vector<2x128xf32>
    %663 = arith.mulf %661, %662 : vector<2x128xf32>
    %664 = arith.truncf %663 : vector<2x128xf32> to vector<2x128xbf16>
    %c0_242 = arith.constant 0 : index
    %c0_243 = arith.constant 0 : index
    %665 = vector.load %arg3[%c0_242, %c0_243] : memref<128x512xbf16, #tpu.memory_space<vmem>>, vector<128x512xbf16>
    %cst_244 = arith.constant dense<0.000000e+00> : vector<2x512xf32>
    %666 = tpu.matmul %664, %665, %cst_244 {dimension_numbers = #tpu.dot_dimension_numbers<[1], [0], [0], [1], [0, 0, 1, 1], [], []>} : vector<2x128xbf16>, vector<128x512xbf16>, vector<2x512xf32> -> vector<2x512xf32>
    %c21 = arith.constant 21 : index
    %c0_245 = arith.constant 0 : index
    %c0_246 = arith.constant 0 : index
    %667 = vector.load %arg10[%c21, %c0_245, %c0_246] : memref<36x2x512xf32, #tpu.memory_space<vmem>>, vector<1x2x512xf32>
    %668 = vector.shape_cast %667 : vector<1x2x512xf32> to vector<2x512xf32>
    %669 = arith.addf %668, %666 : vector<2x512xf32>
    %670 = vector.extract_strided_slice %669 {offsets = [0, 0], sizes = [2, 256], strides = [1, 1]} : vector<2x512xf32> to vector<2x256xf32>
    %cst_247 = arith.constant 0.000000e+00 : f32
    %671 = vector.broadcast %cst_247 : f32 to vector<2x256xf32>
    %672 = arith.subf %671, %670 : vector<2x256xf32>
    %673 = math.exp %672 : vector<2x256xf32>
    %cst_248 = arith.constant 1.000000e+00 : f32
    %674 = vector.broadcast %cst_248 : f32 to vector<2x256xf32>
    %675 = arith.addf %674, %673 : vector<2x256xf32>
    %cst_249 = arith.constant 1.000000e+00 : f32
    %676 = vector.broadcast %cst_249 : f32 to vector<2x256xf32>
    %677 = arith.divf %676, %675 : vector<2x256xf32>
    %678 = vector.extract_strided_slice %669 {offsets = [0, 256], sizes = [2, 128], strides = [1, 1]} : vector<2x512xf32> to vector<2x128xf32>
    %679 = math.tanh %678 : vector<2x128xf32>
    %680 = vector.extract_strided_slice %677 {offsets = [0, 128], sizes = [2, 128], strides = [1, 1]} : vector<2x256xf32> to vector<2x128xf32>
    %681 = arith.mulf %680, %653 : vector<2x128xf32>
    %682 = vector.extract_strided_slice %677 {offsets = [0, 0], sizes = [2, 128], strides = [1, 1]} : vector<2x256xf32> to vector<2x128xf32>
    %683 = arith.mulf %682, %679 : vector<2x128xf32>
    %684 = arith.addf %681, %683 : vector<2x128xf32>
    %685 = vector.extract_strided_slice %669 {offsets = [0, 384], sizes = [2, 128], strides = [1, 1]} : vector<2x512xf32> to vector<2x128xf32>
    %cst_250 = arith.constant 0.000000e+00 : f32
    %686 = vector.broadcast %cst_250 : f32 to vector<2x128xf32>
    %687 = arith.subf %686, %685 : vector<2x128xf32>
    %688 = math.exp %687 : vector<2x128xf32>
    %cst_251 = arith.constant 1.000000e+00 : f32
    %689 = vector.broadcast %cst_251 : f32 to vector<2x128xf32>
    %690 = arith.addf %689, %688 : vector<2x128xf32>
    %cst_252 = arith.constant 1.000000e+00 : f32
    %691 = vector.broadcast %cst_252 : f32 to vector<2x128xf32>
    %692 = arith.divf %691, %690 : vector<2x128xf32>
    %693 = math.tanh %684 : vector<2x128xf32>
    %694 = arith.mulf %692, %693 : vector<2x128xf32>
    %695 = arith.truncf %694 : vector<2x128xf32> to vector<2x128xbf16>
    %c0_253 = arith.constant 0 : index
    %c0_254 = arith.constant 0 : index
    %696 = vector.load %arg3[%c0_253, %c0_254] : memref<128x512xbf16, #tpu.memory_space<vmem>>, vector<128x512xbf16>
    %cst_255 = arith.constant dense<0.000000e+00> : vector<2x512xf32>
    %697 = tpu.matmul %695, %696, %cst_255 {dimension_numbers = #tpu.dot_dimension_numbers<[1], [0], [0], [1], [0, 0, 1, 1], [], []>} : vector<2x128xbf16>, vector<128x512xbf16>, vector<2x512xf32> -> vector<2x512xf32>
    %c22 = arith.constant 22 : index
    %c0_256 = arith.constant 0 : index
    %c0_257 = arith.constant 0 : index
    %698 = vector.load %arg10[%c22, %c0_256, %c0_257] : memref<36x2x512xf32, #tpu.memory_space<vmem>>, vector<1x2x512xf32>
    %699 = vector.shape_cast %698 : vector<1x2x512xf32> to vector<2x512xf32>
    %700 = arith.addf %699, %697 : vector<2x512xf32>
    %701 = vector.extract_strided_slice %700 {offsets = [0, 0], sizes = [2, 256], strides = [1, 1]} : vector<2x512xf32> to vector<2x256xf32>
    %cst_258 = arith.constant 0.000000e+00 : f32
    %702 = vector.broadcast %cst_258 : f32 to vector<2x256xf32>
    %703 = arith.subf %702, %701 : vector<2x256xf32>
    %704 = math.exp %703 : vector<2x256xf32>
    %cst_259 = arith.constant 1.000000e+00 : f32
    %705 = vector.broadcast %cst_259 : f32 to vector<2x256xf32>
    %706 = arith.addf %705, %704 : vector<2x256xf32>
    %cst_260 = arith.constant 1.000000e+00 : f32
    %707 = vector.broadcast %cst_260 : f32 to vector<2x256xf32>
    %708 = arith.divf %707, %706 : vector<2x256xf32>
    %709 = vector.extract_strided_slice %700 {offsets = [0, 256], sizes = [2, 128], strides = [1, 1]} : vector<2x512xf32> to vector<2x128xf32>
    %710 = math.tanh %709 : vector<2x128xf32>
    %711 = vector.extract_strided_slice %708 {offsets = [0, 128], sizes = [2, 128], strides = [1, 1]} : vector<2x256xf32> to vector<2x128xf32>
    %712 = arith.mulf %711, %684 : vector<2x128xf32>
    %713 = vector.extract_strided_slice %708 {offsets = [0, 0], sizes = [2, 128], strides = [1, 1]} : vector<2x256xf32> to vector<2x128xf32>
    %714 = arith.mulf %713, %710 : vector<2x128xf32>
    %715 = arith.addf %712, %714 : vector<2x128xf32>
    %716 = vector.extract_strided_slice %700 {offsets = [0, 384], sizes = [2, 128], strides = [1, 1]} : vector<2x512xf32> to vector<2x128xf32>
    %cst_261 = arith.constant 0.000000e+00 : f32
    %717 = vector.broadcast %cst_261 : f32 to vector<2x128xf32>
    %718 = arith.subf %717, %716 : vector<2x128xf32>
    %719 = math.exp %718 : vector<2x128xf32>
    %cst_262 = arith.constant 1.000000e+00 : f32
    %720 = vector.broadcast %cst_262 : f32 to vector<2x128xf32>
    %721 = arith.addf %720, %719 : vector<2x128xf32>
    %cst_263 = arith.constant 1.000000e+00 : f32
    %722 = vector.broadcast %cst_263 : f32 to vector<2x128xf32>
    %723 = arith.divf %722, %721 : vector<2x128xf32>
    %724 = math.tanh %715 : vector<2x128xf32>
    %725 = arith.mulf %723, %724 : vector<2x128xf32>
    %726 = arith.truncf %725 : vector<2x128xf32> to vector<2x128xbf16>
    %c0_264 = arith.constant 0 : index
    %c0_265 = arith.constant 0 : index
    %727 = vector.load %arg3[%c0_264, %c0_265] : memref<128x512xbf16, #tpu.memory_space<vmem>>, vector<128x512xbf16>
    %cst_266 = arith.constant dense<0.000000e+00> : vector<2x512xf32>
    %728 = tpu.matmul %726, %727, %cst_266 {dimension_numbers = #tpu.dot_dimension_numbers<[1], [0], [0], [1], [0, 0, 1, 1], [], []>} : vector<2x128xbf16>, vector<128x512xbf16>, vector<2x512xf32> -> vector<2x512xf32>
    %c23 = arith.constant 23 : index
    %c0_267 = arith.constant 0 : index
    %c0_268 = arith.constant 0 : index
    %729 = vector.load %arg10[%c23, %c0_267, %c0_268] : memref<36x2x512xf32, #tpu.memory_space<vmem>>, vector<1x2x512xf32>
    %730 = vector.shape_cast %729 : vector<1x2x512xf32> to vector<2x512xf32>
    %731 = arith.addf %730, %728 : vector<2x512xf32>
    %732 = vector.extract_strided_slice %731 {offsets = [0, 0], sizes = [2, 256], strides = [1, 1]} : vector<2x512xf32> to vector<2x256xf32>
    %cst_269 = arith.constant 0.000000e+00 : f32
    %733 = vector.broadcast %cst_269 : f32 to vector<2x256xf32>
    %734 = arith.subf %733, %732 : vector<2x256xf32>
    %735 = math.exp %734 : vector<2x256xf32>
    %cst_270 = arith.constant 1.000000e+00 : f32
    %736 = vector.broadcast %cst_270 : f32 to vector<2x256xf32>
    %737 = arith.addf %736, %735 : vector<2x256xf32>
    %cst_271 = arith.constant 1.000000e+00 : f32
    %738 = vector.broadcast %cst_271 : f32 to vector<2x256xf32>
    %739 = arith.divf %738, %737 : vector<2x256xf32>
    %740 = vector.extract_strided_slice %731 {offsets = [0, 256], sizes = [2, 128], strides = [1, 1]} : vector<2x512xf32> to vector<2x128xf32>
    %741 = math.tanh %740 : vector<2x128xf32>
    %742 = vector.extract_strided_slice %739 {offsets = [0, 128], sizes = [2, 128], strides = [1, 1]} : vector<2x256xf32> to vector<2x128xf32>
    %743 = arith.mulf %742, %715 : vector<2x128xf32>
    %744 = vector.extract_strided_slice %739 {offsets = [0, 0], sizes = [2, 128], strides = [1, 1]} : vector<2x256xf32> to vector<2x128xf32>
    %745 = arith.mulf %744, %741 : vector<2x128xf32>
    %746 = arith.addf %743, %745 : vector<2x128xf32>
    %747 = vector.extract_strided_slice %731 {offsets = [0, 384], sizes = [2, 128], strides = [1, 1]} : vector<2x512xf32> to vector<2x128xf32>
    %cst_272 = arith.constant 0.000000e+00 : f32
    %748 = vector.broadcast %cst_272 : f32 to vector<2x128xf32>
    %749 = arith.subf %748, %747 : vector<2x128xf32>
    %750 = math.exp %749 : vector<2x128xf32>
    %cst_273 = arith.constant 1.000000e+00 : f32
    %751 = vector.broadcast %cst_273 : f32 to vector<2x128xf32>
    %752 = arith.addf %751, %750 : vector<2x128xf32>
    %cst_274 = arith.constant 1.000000e+00 : f32
    %753 = vector.broadcast %cst_274 : f32 to vector<2x128xf32>
    %754 = arith.divf %753, %752 : vector<2x128xf32>
    %755 = math.tanh %746 : vector<2x128xf32>
    %756 = arith.mulf %754, %755 : vector<2x128xf32>
    %757 = arith.truncf %756 : vector<2x128xf32> to vector<2x128xbf16>
    %c0_275 = arith.constant 0 : index
    %c0_276 = arith.constant 0 : index
    %758 = vector.load %arg3[%c0_275, %c0_276] : memref<128x512xbf16, #tpu.memory_space<vmem>>, vector<128x512xbf16>
    %cst_277 = arith.constant dense<0.000000e+00> : vector<2x512xf32>
    %759 = tpu.matmul %757, %758, %cst_277 {dimension_numbers = #tpu.dot_dimension_numbers<[1], [0], [0], [1], [0, 0, 1, 1], [], []>} : vector<2x128xbf16>, vector<128x512xbf16>, vector<2x512xf32> -> vector<2x512xf32>
    %c24 = arith.constant 24 : index
    %c0_278 = arith.constant 0 : index
    %c0_279 = arith.constant 0 : index
    %760 = vector.load %arg10[%c24, %c0_278, %c0_279] : memref<36x2x512xf32, #tpu.memory_space<vmem>>, vector<1x2x512xf32>
    %761 = vector.shape_cast %760 : vector<1x2x512xf32> to vector<2x512xf32>
    %762 = arith.addf %761, %759 : vector<2x512xf32>
    %763 = vector.extract_strided_slice %762 {offsets = [0, 0], sizes = [2, 256], strides = [1, 1]} : vector<2x512xf32> to vector<2x256xf32>
    %cst_280 = arith.constant 0.000000e+00 : f32
    %764 = vector.broadcast %cst_280 : f32 to vector<2x256xf32>
    %765 = arith.subf %764, %763 : vector<2x256xf32>
    %766 = math.exp %765 : vector<2x256xf32>
    %cst_281 = arith.constant 1.000000e+00 : f32
    %767 = vector.broadcast %cst_281 : f32 to vector<2x256xf32>
    %768 = arith.addf %767, %766 : vector<2x256xf32>
    %cst_282 = arith.constant 1.000000e+00 : f32
    %769 = vector.broadcast %cst_282 : f32 to vector<2x256xf32>
    %770 = arith.divf %769, %768 : vector<2x256xf32>
    %771 = vector.extract_strided_slice %762 {offsets = [0, 256], sizes = [2, 128], strides = [1, 1]} : vector<2x512xf32> to vector<2x128xf32>
    %772 = math.tanh %771 : vector<2x128xf32>
    %773 = vector.extract_strided_slice %770 {offsets = [0, 128], sizes = [2, 128], strides = [1, 1]} : vector<2x256xf32> to vector<2x128xf32>
    %774 = arith.mulf %773, %746 : vector<2x128xf32>
    %775 = vector.extract_strided_slice %770 {offsets = [0, 0], sizes = [2, 128], strides = [1, 1]} : vector<2x256xf32> to vector<2x128xf32>
    %776 = arith.mulf %775, %772 : vector<2x128xf32>
    %777 = arith.addf %774, %776 : vector<2x128xf32>
    %778 = vector.extract_strided_slice %762 {offsets = [0, 384], sizes = [2, 128], strides = [1, 1]} : vector<2x512xf32> to vector<2x128xf32>
    %cst_283 = arith.constant 0.000000e+00 : f32
    %779 = vector.broadcast %cst_283 : f32 to vector<2x128xf32>
    %780 = arith.subf %779, %778 : vector<2x128xf32>
    %781 = math.exp %780 : vector<2x128xf32>
    %cst_284 = arith.constant 1.000000e+00 : f32
    %782 = vector.broadcast %cst_284 : f32 to vector<2x128xf32>
    %783 = arith.addf %782, %781 : vector<2x128xf32>
    %cst_285 = arith.constant 1.000000e+00 : f32
    %784 = vector.broadcast %cst_285 : f32 to vector<2x128xf32>
    %785 = arith.divf %784, %783 : vector<2x128xf32>
    %786 = math.tanh %777 : vector<2x128xf32>
    %787 = arith.mulf %785, %786 : vector<2x128xf32>
    %788 = arith.truncf %787 : vector<2x128xf32> to vector<2x128xbf16>
    %c0_286 = arith.constant 0 : index
    %c0_287 = arith.constant 0 : index
    %789 = vector.load %arg3[%c0_286, %c0_287] : memref<128x512xbf16, #tpu.memory_space<vmem>>, vector<128x512xbf16>
    %cst_288 = arith.constant dense<0.000000e+00> : vector<2x512xf32>
    %790 = tpu.matmul %788, %789, %cst_288 {dimension_numbers = #tpu.dot_dimension_numbers<[1], [0], [0], [1], [0, 0, 1, 1], [], []>} : vector<2x128xbf16>, vector<128x512xbf16>, vector<2x512xf32> -> vector<2x512xf32>
    %c25 = arith.constant 25 : index
    %c0_289 = arith.constant 0 : index
    %c0_290 = arith.constant 0 : index
    %791 = vector.load %arg10[%c25, %c0_289, %c0_290] : memref<36x2x512xf32, #tpu.memory_space<vmem>>, vector<1x2x512xf32>
    %792 = vector.shape_cast %791 : vector<1x2x512xf32> to vector<2x512xf32>
    %793 = arith.addf %792, %790 : vector<2x512xf32>
    %794 = vector.extract_strided_slice %793 {offsets = [0, 0], sizes = [2, 256], strides = [1, 1]} : vector<2x512xf32> to vector<2x256xf32>
    %cst_291 = arith.constant 0.000000e+00 : f32
    %795 = vector.broadcast %cst_291 : f32 to vector<2x256xf32>
    %796 = arith.subf %795, %794 : vector<2x256xf32>
    %797 = math.exp %796 : vector<2x256xf32>
    %cst_292 = arith.constant 1.000000e+00 : f32
    %798 = vector.broadcast %cst_292 : f32 to vector<2x256xf32>
    %799 = arith.addf %798, %797 : vector<2x256xf32>
    %cst_293 = arith.constant 1.000000e+00 : f32
    %800 = vector.broadcast %cst_293 : f32 to vector<2x256xf32>
    %801 = arith.divf %800, %799 : vector<2x256xf32>
    %802 = vector.extract_strided_slice %793 {offsets = [0, 256], sizes = [2, 128], strides = [1, 1]} : vector<2x512xf32> to vector<2x128xf32>
    %803 = math.tanh %802 : vector<2x128xf32>
    %804 = vector.extract_strided_slice %801 {offsets = [0, 128], sizes = [2, 128], strides = [1, 1]} : vector<2x256xf32> to vector<2x128xf32>
    %805 = arith.mulf %804, %777 : vector<2x128xf32>
    %806 = vector.extract_strided_slice %801 {offsets = [0, 0], sizes = [2, 128], strides = [1, 1]} : vector<2x256xf32> to vector<2x128xf32>
    %807 = arith.mulf %806, %803 : vector<2x128xf32>
    %808 = arith.addf %805, %807 : vector<2x128xf32>
    %809 = vector.extract_strided_slice %793 {offsets = [0, 384], sizes = [2, 128], strides = [1, 1]} : vector<2x512xf32> to vector<2x128xf32>
    %cst_294 = arith.constant 0.000000e+00 : f32
    %810 = vector.broadcast %cst_294 : f32 to vector<2x128xf32>
    %811 = arith.subf %810, %809 : vector<2x128xf32>
    %812 = math.exp %811 : vector<2x128xf32>
    %cst_295 = arith.constant 1.000000e+00 : f32
    %813 = vector.broadcast %cst_295 : f32 to vector<2x128xf32>
    %814 = arith.addf %813, %812 : vector<2x128xf32>
    %cst_296 = arith.constant 1.000000e+00 : f32
    %815 = vector.broadcast %cst_296 : f32 to vector<2x128xf32>
    %816 = arith.divf %815, %814 : vector<2x128xf32>
    %817 = math.tanh %808 : vector<2x128xf32>
    %818 = arith.mulf %816, %817 : vector<2x128xf32>
    %819 = arith.truncf %818 : vector<2x128xf32> to vector<2x128xbf16>
    %c0_297 = arith.constant 0 : index
    %c0_298 = arith.constant 0 : index
    %820 = vector.load %arg3[%c0_297, %c0_298] : memref<128x512xbf16, #tpu.memory_space<vmem>>, vector<128x512xbf16>
    %cst_299 = arith.constant dense<0.000000e+00> : vector<2x512xf32>
    %821 = tpu.matmul %819, %820, %cst_299 {dimension_numbers = #tpu.dot_dimension_numbers<[1], [0], [0], [1], [0, 0, 1, 1], [], []>} : vector<2x128xbf16>, vector<128x512xbf16>, vector<2x512xf32> -> vector<2x512xf32>
    %c26 = arith.constant 26 : index
    %c0_300 = arith.constant 0 : index
    %c0_301 = arith.constant 0 : index
    %822 = vector.load %arg10[%c26, %c0_300, %c0_301] : memref<36x2x512xf32, #tpu.memory_space<vmem>>, vector<1x2x512xf32>
    %823 = vector.shape_cast %822 : vector<1x2x512xf32> to vector<2x512xf32>
    %824 = arith.addf %823, %821 : vector<2x512xf32>
    %825 = vector.extract_strided_slice %824 {offsets = [0, 0], sizes = [2, 256], strides = [1, 1]} : vector<2x512xf32> to vector<2x256xf32>
    %cst_302 = arith.constant 0.000000e+00 : f32
    %826 = vector.broadcast %cst_302 : f32 to vector<2x256xf32>
    %827 = arith.subf %826, %825 : vector<2x256xf32>
    %828 = math.exp %827 : vector<2x256xf32>
    %cst_303 = arith.constant 1.000000e+00 : f32
    %829 = vector.broadcast %cst_303 : f32 to vector<2x256xf32>
    %830 = arith.addf %829, %828 : vector<2x256xf32>
    %cst_304 = arith.constant 1.000000e+00 : f32
    %831 = vector.broadcast %cst_304 : f32 to vector<2x256xf32>
    %832 = arith.divf %831, %830 : vector<2x256xf32>
    %833 = vector.extract_strided_slice %824 {offsets = [0, 256], sizes = [2, 128], strides = [1, 1]} : vector<2x512xf32> to vector<2x128xf32>
    %834 = math.tanh %833 : vector<2x128xf32>
    %835 = vector.extract_strided_slice %832 {offsets = [0, 128], sizes = [2, 128], strides = [1, 1]} : vector<2x256xf32> to vector<2x128xf32>
    %836 = arith.mulf %835, %808 : vector<2x128xf32>
    %837 = vector.extract_strided_slice %832 {offsets = [0, 0], sizes = [2, 128], strides = [1, 1]} : vector<2x256xf32> to vector<2x128xf32>
    %838 = arith.mulf %837, %834 : vector<2x128xf32>
    %839 = arith.addf %836, %838 : vector<2x128xf32>
    %840 = vector.extract_strided_slice %824 {offsets = [0, 384], sizes = [2, 128], strides = [1, 1]} : vector<2x512xf32> to vector<2x128xf32>
    %cst_305 = arith.constant 0.000000e+00 : f32
    %841 = vector.broadcast %cst_305 : f32 to vector<2x128xf32>
    %842 = arith.subf %841, %840 : vector<2x128xf32>
    %843 = math.exp %842 : vector<2x128xf32>
    %cst_306 = arith.constant 1.000000e+00 : f32
    %844 = vector.broadcast %cst_306 : f32 to vector<2x128xf32>
    %845 = arith.addf %844, %843 : vector<2x128xf32>
    %cst_307 = arith.constant 1.000000e+00 : f32
    %846 = vector.broadcast %cst_307 : f32 to vector<2x128xf32>
    %847 = arith.divf %846, %845 : vector<2x128xf32>
    %848 = math.tanh %839 : vector<2x128xf32>
    %849 = arith.mulf %847, %848 : vector<2x128xf32>
    %850 = arith.truncf %849 : vector<2x128xf32> to vector<2x128xbf16>
    %c0_308 = arith.constant 0 : index
    %c0_309 = arith.constant 0 : index
    %851 = vector.load %arg3[%c0_308, %c0_309] : memref<128x512xbf16, #tpu.memory_space<vmem>>, vector<128x512xbf16>
    %cst_310 = arith.constant dense<0.000000e+00> : vector<2x512xf32>
    %852 = tpu.matmul %850, %851, %cst_310 {dimension_numbers = #tpu.dot_dimension_numbers<[1], [0], [0], [1], [0, 0, 1, 1], [], []>} : vector<2x128xbf16>, vector<128x512xbf16>, vector<2x512xf32> -> vector<2x512xf32>
    %c27 = arith.constant 27 : index
    %c0_311 = arith.constant 0 : index
    %c0_312 = arith.constant 0 : index
    %853 = vector.load %arg10[%c27, %c0_311, %c0_312] : memref<36x2x512xf32, #tpu.memory_space<vmem>>, vector<1x2x512xf32>
    %854 = vector.shape_cast %853 : vector<1x2x512xf32> to vector<2x512xf32>
    %855 = arith.addf %854, %852 : vector<2x512xf32>
    %856 = vector.extract_strided_slice %855 {offsets = [0, 0], sizes = [2, 256], strides = [1, 1]} : vector<2x512xf32> to vector<2x256xf32>
    %cst_313 = arith.constant 0.000000e+00 : f32
    %857 = vector.broadcast %cst_313 : f32 to vector<2x256xf32>
    %858 = arith.subf %857, %856 : vector<2x256xf32>
    %859 = math.exp %858 : vector<2x256xf32>
    %cst_314 = arith.constant 1.000000e+00 : f32
    %860 = vector.broadcast %cst_314 : f32 to vector<2x256xf32>
    %861 = arith.addf %860, %859 : vector<2x256xf32>
    %cst_315 = arith.constant 1.000000e+00 : f32
    %862 = vector.broadcast %cst_315 : f32 to vector<2x256xf32>
    %863 = arith.divf %862, %861 : vector<2x256xf32>
    %864 = vector.extract_strided_slice %855 {offsets = [0, 256], sizes = [2, 128], strides = [1, 1]} : vector<2x512xf32> to vector<2x128xf32>
    %865 = math.tanh %864 : vector<2x128xf32>
    %866 = vector.extract_strided_slice %863 {offsets = [0, 128], sizes = [2, 128], strides = [1, 1]} : vector<2x256xf32> to vector<2x128xf32>
    %867 = arith.mulf %866, %839 : vector<2x128xf32>
    %868 = vector.extract_strided_slice %863 {offsets = [0, 0], sizes = [2, 128], strides = [1, 1]} : vector<2x256xf32> to vector<2x128xf32>
    %869 = arith.mulf %868, %865 : vector<2x128xf32>
    %870 = arith.addf %867, %869 : vector<2x128xf32>
    %871 = vector.extract_strided_slice %855 {offsets = [0, 384], sizes = [2, 128], strides = [1, 1]} : vector<2x512xf32> to vector<2x128xf32>
    %cst_316 = arith.constant 0.000000e+00 : f32
    %872 = vector.broadcast %cst_316 : f32 to vector<2x128xf32>
    %873 = arith.subf %872, %871 : vector<2x128xf32>
    %874 = math.exp %873 : vector<2x128xf32>
    %cst_317 = arith.constant 1.000000e+00 : f32
    %875 = vector.broadcast %cst_317 : f32 to vector<2x128xf32>
    %876 = arith.addf %875, %874 : vector<2x128xf32>
    %cst_318 = arith.constant 1.000000e+00 : f32
    %877 = vector.broadcast %cst_318 : f32 to vector<2x128xf32>
    %878 = arith.divf %877, %876 : vector<2x128xf32>
    %879 = math.tanh %870 : vector<2x128xf32>
    %880 = arith.mulf %878, %879 : vector<2x128xf32>
    %881 = arith.truncf %880 : vector<2x128xf32> to vector<2x128xbf16>
    %c0_319 = arith.constant 0 : index
    %c0_320 = arith.constant 0 : index
    %882 = vector.load %arg3[%c0_319, %c0_320] : memref<128x512xbf16, #tpu.memory_space<vmem>>, vector<128x512xbf16>
    %cst_321 = arith.constant dense<0.000000e+00> : vector<2x512xf32>
    %883 = tpu.matmul %881, %882, %cst_321 {dimension_numbers = #tpu.dot_dimension_numbers<[1], [0], [0], [1], [0, 0, 1, 1], [], []>} : vector<2x128xbf16>, vector<128x512xbf16>, vector<2x512xf32> -> vector<2x512xf32>
    %c28 = arith.constant 28 : index
    %c0_322 = arith.constant 0 : index
    %c0_323 = arith.constant 0 : index
    %884 = vector.load %arg10[%c28, %c0_322, %c0_323] : memref<36x2x512xf32, #tpu.memory_space<vmem>>, vector<1x2x512xf32>
    %885 = vector.shape_cast %884 : vector<1x2x512xf32> to vector<2x512xf32>
    %886 = arith.addf %885, %883 : vector<2x512xf32>
    %887 = vector.extract_strided_slice %886 {offsets = [0, 0], sizes = [2, 256], strides = [1, 1]} : vector<2x512xf32> to vector<2x256xf32>
    %cst_324 = arith.constant 0.000000e+00 : f32
    %888 = vector.broadcast %cst_324 : f32 to vector<2x256xf32>
    %889 = arith.subf %888, %887 : vector<2x256xf32>
    %890 = math.exp %889 : vector<2x256xf32>
    %cst_325 = arith.constant 1.000000e+00 : f32
    %891 = vector.broadcast %cst_325 : f32 to vector<2x256xf32>
    %892 = arith.addf %891, %890 : vector<2x256xf32>
    %cst_326 = arith.constant 1.000000e+00 : f32
    %893 = vector.broadcast %cst_326 : f32 to vector<2x256xf32>
    %894 = arith.divf %893, %892 : vector<2x256xf32>
    %895 = vector.extract_strided_slice %886 {offsets = [0, 256], sizes = [2, 128], strides = [1, 1]} : vector<2x512xf32> to vector<2x128xf32>
    %896 = math.tanh %895 : vector<2x128xf32>
    %897 = vector.extract_strided_slice %894 {offsets = [0, 128], sizes = [2, 128], strides = [1, 1]} : vector<2x256xf32> to vector<2x128xf32>
    %898 = arith.mulf %897, %870 : vector<2x128xf32>
    %899 = vector.extract_strided_slice %894 {offsets = [0, 0], sizes = [2, 128], strides = [1, 1]} : vector<2x256xf32> to vector<2x128xf32>
    %900 = arith.mulf %899, %896 : vector<2x128xf32>
    %901 = arith.addf %898, %900 : vector<2x128xf32>
    %902 = vector.extract_strided_slice %886 {offsets = [0, 384], sizes = [2, 128], strides = [1, 1]} : vector<2x512xf32> to vector<2x128xf32>
    %cst_327 = arith.constant 0.000000e+00 : f32
    %903 = vector.broadcast %cst_327 : f32 to vector<2x128xf32>
    %904 = arith.subf %903, %902 : vector<2x128xf32>
    %905 = math.exp %904 : vector<2x128xf32>
    %cst_328 = arith.constant 1.000000e+00 : f32
    %906 = vector.broadcast %cst_328 : f32 to vector<2x128xf32>
    %907 = arith.addf %906, %905 : vector<2x128xf32>
    %cst_329 = arith.constant 1.000000e+00 : f32
    %908 = vector.broadcast %cst_329 : f32 to vector<2x128xf32>
    %909 = arith.divf %908, %907 : vector<2x128xf32>
    %910 = math.tanh %901 : vector<2x128xf32>
    %911 = arith.mulf %909, %910 : vector<2x128xf32>
    %912 = arith.truncf %911 : vector<2x128xf32> to vector<2x128xbf16>
    %c0_330 = arith.constant 0 : index
    %c0_331 = arith.constant 0 : index
    %913 = vector.load %arg3[%c0_330, %c0_331] : memref<128x512xbf16, #tpu.memory_space<vmem>>, vector<128x512xbf16>
    %cst_332 = arith.constant dense<0.000000e+00> : vector<2x512xf32>
    %914 = tpu.matmul %912, %913, %cst_332 {dimension_numbers = #tpu.dot_dimension_numbers<[1], [0], [0], [1], [0, 0, 1, 1], [], []>} : vector<2x128xbf16>, vector<128x512xbf16>, vector<2x512xf32> -> vector<2x512xf32>
    %c29 = arith.constant 29 : index
    %c0_333 = arith.constant 0 : index
    %c0_334 = arith.constant 0 : index
    %915 = vector.load %arg10[%c29, %c0_333, %c0_334] : memref<36x2x512xf32, #tpu.memory_space<vmem>>, vector<1x2x512xf32>
    %916 = vector.shape_cast %915 : vector<1x2x512xf32> to vector<2x512xf32>
    %917 = arith.addf %916, %914 : vector<2x512xf32>
    %918 = vector.extract_strided_slice %917 {offsets = [0, 0], sizes = [2, 256], strides = [1, 1]} : vector<2x512xf32> to vector<2x256xf32>
    %cst_335 = arith.constant 0.000000e+00 : f32
    %919 = vector.broadcast %cst_335 : f32 to vector<2x256xf32>
    %920 = arith.subf %919, %918 : vector<2x256xf32>
    %921 = math.exp %920 : vector<2x256xf32>
    %cst_336 = arith.constant 1.000000e+00 : f32
    %922 = vector.broadcast %cst_336 : f32 to vector<2x256xf32>
    %923 = arith.addf %922, %921 : vector<2x256xf32>
    %cst_337 = arith.constant 1.000000e+00 : f32
    %924 = vector.broadcast %cst_337 : f32 to vector<2x256xf32>
    %925 = arith.divf %924, %923 : vector<2x256xf32>
    %926 = vector.extract_strided_slice %917 {offsets = [0, 256], sizes = [2, 128], strides = [1, 1]} : vector<2x512xf32> to vector<2x128xf32>
    %927 = math.tanh %926 : vector<2x128xf32>
    %928 = vector.extract_strided_slice %925 {offsets = [0, 128], sizes = [2, 128], strides = [1, 1]} : vector<2x256xf32> to vector<2x128xf32>
    %929 = arith.mulf %928, %901 : vector<2x128xf32>
    %930 = vector.extract_strided_slice %925 {offsets = [0, 0], sizes = [2, 128], strides = [1, 1]} : vector<2x256xf32> to vector<2x128xf32>
    %931 = arith.mulf %930, %927 : vector<2x128xf32>
    %932 = arith.addf %929, %931 : vector<2x128xf32>
    %933 = vector.extract_strided_slice %917 {offsets = [0, 384], sizes = [2, 128], strides = [1, 1]} : vector<2x512xf32> to vector<2x128xf32>
    %cst_338 = arith.constant 0.000000e+00 : f32
    %934 = vector.broadcast %cst_338 : f32 to vector<2x128xf32>
    %935 = arith.subf %934, %933 : vector<2x128xf32>
    %936 = math.exp %935 : vector<2x128xf32>
    %cst_339 = arith.constant 1.000000e+00 : f32
    %937 = vector.broadcast %cst_339 : f32 to vector<2x128xf32>
    %938 = arith.addf %937, %936 : vector<2x128xf32>
    %cst_340 = arith.constant 1.000000e+00 : f32
    %939 = vector.broadcast %cst_340 : f32 to vector<2x128xf32>
    %940 = arith.divf %939, %938 : vector<2x128xf32>
    %941 = math.tanh %932 : vector<2x128xf32>
    %942 = arith.mulf %940, %941 : vector<2x128xf32>
    %943 = arith.truncf %942 : vector<2x128xf32> to vector<2x128xbf16>
    %c0_341 = arith.constant 0 : index
    %c0_342 = arith.constant 0 : index
    %944 = vector.load %arg3[%c0_341, %c0_342] : memref<128x512xbf16, #tpu.memory_space<vmem>>, vector<128x512xbf16>
    %cst_343 = arith.constant dense<0.000000e+00> : vector<2x512xf32>
    %945 = tpu.matmul %943, %944, %cst_343 {dimension_numbers = #tpu.dot_dimension_numbers<[1], [0], [0], [1], [0, 0, 1, 1], [], []>} : vector<2x128xbf16>, vector<128x512xbf16>, vector<2x512xf32> -> vector<2x512xf32>
    %c30 = arith.constant 30 : index
    %c0_344 = arith.constant 0 : index
    %c0_345 = arith.constant 0 : index
    %946 = vector.load %arg10[%c30, %c0_344, %c0_345] : memref<36x2x512xf32, #tpu.memory_space<vmem>>, vector<1x2x512xf32>
    %947 = vector.shape_cast %946 : vector<1x2x512xf32> to vector<2x512xf32>
    %948 = arith.addf %947, %945 : vector<2x512xf32>
    %949 = vector.extract_strided_slice %948 {offsets = [0, 0], sizes = [2, 256], strides = [1, 1]} : vector<2x512xf32> to vector<2x256xf32>
    %cst_346 = arith.constant 0.000000e+00 : f32
    %950 = vector.broadcast %cst_346 : f32 to vector<2x256xf32>
    %951 = arith.subf %950, %949 : vector<2x256xf32>
    %952 = math.exp %951 : vector<2x256xf32>
    %cst_347 = arith.constant 1.000000e+00 : f32
    %953 = vector.broadcast %cst_347 : f32 to vector<2x256xf32>
    %954 = arith.addf %953, %952 : vector<2x256xf32>
    %cst_348 = arith.constant 1.000000e+00 : f32
    %955 = vector.broadcast %cst_348 : f32 to vector<2x256xf32>
    %956 = arith.divf %955, %954 : vector<2x256xf32>
    %957 = vector.extract_strided_slice %948 {offsets = [0, 256], sizes = [2, 128], strides = [1, 1]} : vector<2x512xf32> to vector<2x128xf32>
    %958 = math.tanh %957 : vector<2x128xf32>
    %959 = vector.extract_strided_slice %956 {offsets = [0, 128], sizes = [2, 128], strides = [1, 1]} : vector<2x256xf32> to vector<2x128xf32>
    %960 = arith.mulf %959, %932 : vector<2x128xf32>
    %961 = vector.extract_strided_slice %956 {offsets = [0, 0], sizes = [2, 128], strides = [1, 1]} : vector<2x256xf32> to vector<2x128xf32>
    %962 = arith.mulf %961, %958 : vector<2x128xf32>
    %963 = arith.addf %960, %962 : vector<2x128xf32>
    %964 = vector.extract_strided_slice %948 {offsets = [0, 384], sizes = [2, 128], strides = [1, 1]} : vector<2x512xf32> to vector<2x128xf32>
    %cst_349 = arith.constant 0.000000e+00 : f32
    %965 = vector.broadcast %cst_349 : f32 to vector<2x128xf32>
    %966 = arith.subf %965, %964 : vector<2x128xf32>
    %967 = math.exp %966 : vector<2x128xf32>
    %cst_350 = arith.constant 1.000000e+00 : f32
    %968 = vector.broadcast %cst_350 : f32 to vector<2x128xf32>
    %969 = arith.addf %968, %967 : vector<2x128xf32>
    %cst_351 = arith.constant 1.000000e+00 : f32
    %970 = vector.broadcast %cst_351 : f32 to vector<2x128xf32>
    %971 = arith.divf %970, %969 : vector<2x128xf32>
    %972 = math.tanh %963 : vector<2x128xf32>
    %973 = arith.mulf %971, %972 : vector<2x128xf32>
    %974 = arith.truncf %973 : vector<2x128xf32> to vector<2x128xbf16>
    %c0_352 = arith.constant 0 : index
    %c0_353 = arith.constant 0 : index
    %975 = vector.load %arg3[%c0_352, %c0_353] : memref<128x512xbf16, #tpu.memory_space<vmem>>, vector<128x512xbf16>
    %cst_354 = arith.constant dense<0.000000e+00> : vector<2x512xf32>
    %976 = tpu.matmul %974, %975, %cst_354 {dimension_numbers = #tpu.dot_dimension_numbers<[1], [0], [0], [1], [0, 0, 1, 1], [], []>} : vector<2x128xbf16>, vector<128x512xbf16>, vector<2x512xf32> -> vector<2x512xf32>
    %c31 = arith.constant 31 : index
    %c0_355 = arith.constant 0 : index
    %c0_356 = arith.constant 0 : index
    %977 = vector.load %arg10[%c31, %c0_355, %c0_356] : memref<36x2x512xf32, #tpu.memory_space<vmem>>, vector<1x2x512xf32>
    %978 = vector.shape_cast %977 : vector<1x2x512xf32> to vector<2x512xf32>
    %979 = arith.addf %978, %976 : vector<2x512xf32>
    %980 = vector.extract_strided_slice %979 {offsets = [0, 0], sizes = [2, 256], strides = [1, 1]} : vector<2x512xf32> to vector<2x256xf32>
    %cst_357 = arith.constant 0.000000e+00 : f32
    %981 = vector.broadcast %cst_357 : f32 to vector<2x256xf32>
    %982 = arith.subf %981, %980 : vector<2x256xf32>
    %983 = math.exp %982 : vector<2x256xf32>
    %cst_358 = arith.constant 1.000000e+00 : f32
    %984 = vector.broadcast %cst_358 : f32 to vector<2x256xf32>
    %985 = arith.addf %984, %983 : vector<2x256xf32>
    %cst_359 = arith.constant 1.000000e+00 : f32
    %986 = vector.broadcast %cst_359 : f32 to vector<2x256xf32>
    %987 = arith.divf %986, %985 : vector<2x256xf32>
    %988 = vector.extract_strided_slice %979 {offsets = [0, 256], sizes = [2, 128], strides = [1, 1]} : vector<2x512xf32> to vector<2x128xf32>
    %989 = math.tanh %988 : vector<2x128xf32>
    %990 = vector.extract_strided_slice %987 {offsets = [0, 128], sizes = [2, 128], strides = [1, 1]} : vector<2x256xf32> to vector<2x128xf32>
    %991 = arith.mulf %990, %963 : vector<2x128xf32>
    %992 = vector.extract_strided_slice %987 {offsets = [0, 0], sizes = [2, 128], strides = [1, 1]} : vector<2x256xf32> to vector<2x128xf32>
    %993 = arith.mulf %992, %989 : vector<2x128xf32>
    %994 = arith.addf %991, %993 : vector<2x128xf32>
    %995 = vector.extract_strided_slice %979 {offsets = [0, 384], sizes = [2, 128], strides = [1, 1]} : vector<2x512xf32> to vector<2x128xf32>
    %cst_360 = arith.constant 0.000000e+00 : f32
    %996 = vector.broadcast %cst_360 : f32 to vector<2x128xf32>
    %997 = arith.subf %996, %995 : vector<2x128xf32>
    %998 = math.exp %997 : vector<2x128xf32>
    %cst_361 = arith.constant 1.000000e+00 : f32
    %999 = vector.broadcast %cst_361 : f32 to vector<2x128xf32>
    %1000 = arith.addf %999, %998 : vector<2x128xf32>
    %cst_362 = arith.constant 1.000000e+00 : f32
    %1001 = vector.broadcast %cst_362 : f32 to vector<2x128xf32>
    %1002 = arith.divf %1001, %1000 : vector<2x128xf32>
    %1003 = math.tanh %994 : vector<2x128xf32>
    %1004 = arith.mulf %1002, %1003 : vector<2x128xf32>
    %1005 = arith.truncf %1004 : vector<2x128xf32> to vector<2x128xbf16>
    %c0_363 = arith.constant 0 : index
    %c0_364 = arith.constant 0 : index
    %1006 = vector.load %arg3[%c0_363, %c0_364] : memref<128x512xbf16, #tpu.memory_space<vmem>>, vector<128x512xbf16>
    %cst_365 = arith.constant dense<0.000000e+00> : vector<2x512xf32>
    %1007 = tpu.matmul %1005, %1006, %cst_365 {dimension_numbers = #tpu.dot_dimension_numbers<[1], [0], [0], [1], [0, 0, 1, 1], [], []>} : vector<2x128xbf16>, vector<128x512xbf16>, vector<2x512xf32> -> vector<2x512xf32>
    %c32 = arith.constant 32 : index
    %c0_366 = arith.constant 0 : index
    %c0_367 = arith.constant 0 : index
    %1008 = vector.load %arg10[%c32, %c0_366, %c0_367] : memref<36x2x512xf32, #tpu.memory_space<vmem>>, vector<1x2x512xf32>
    %1009 = vector.shape_cast %1008 : vector<1x2x512xf32> to vector<2x512xf32>
    %1010 = arith.addf %1009, %1007 : vector<2x512xf32>
    %1011 = vector.extract_strided_slice %1010 {offsets = [0, 0], sizes = [2, 256], strides = [1, 1]} : vector<2x512xf32> to vector<2x256xf32>
    %cst_368 = arith.constant 0.000000e+00 : f32
    %1012 = vector.broadcast %cst_368 : f32 to vector<2x256xf32>
    %1013 = arith.subf %1012, %1011 : vector<2x256xf32>
    %1014 = math.exp %1013 : vector<2x256xf32>
    %cst_369 = arith.constant 1.000000e+00 : f32
    %1015 = vector.broadcast %cst_369 : f32 to vector<2x256xf32>
    %1016 = arith.addf %1015, %1014 : vector<2x256xf32>
    %cst_370 = arith.constant 1.000000e+00 : f32
    %1017 = vector.broadcast %cst_370 : f32 to vector<2x256xf32>
    %1018 = arith.divf %1017, %1016 : vector<2x256xf32>
    %1019 = vector.extract_strided_slice %1010 {offsets = [0, 256], sizes = [2, 128], strides = [1, 1]} : vector<2x512xf32> to vector<2x128xf32>
    %1020 = math.tanh %1019 : vector<2x128xf32>
    %1021 = vector.extract_strided_slice %1018 {offsets = [0, 128], sizes = [2, 128], strides = [1, 1]} : vector<2x256xf32> to vector<2x128xf32>
    %1022 = arith.mulf %1021, %994 : vector<2x128xf32>
    %1023 = vector.extract_strided_slice %1018 {offsets = [0, 0], sizes = [2, 128], strides = [1, 1]} : vector<2x256xf32> to vector<2x128xf32>
    %1024 = arith.mulf %1023, %1020 : vector<2x128xf32>
    %1025 = arith.addf %1022, %1024 : vector<2x128xf32>
    %1026 = vector.extract_strided_slice %1010 {offsets = [0, 384], sizes = [2, 128], strides = [1, 1]} : vector<2x512xf32> to vector<2x128xf32>
    %cst_371 = arith.constant 0.000000e+00 : f32
    %1027 = vector.broadcast %cst_371 : f32 to vector<2x128xf32>
    %1028 = arith.subf %1027, %1026 : vector<2x128xf32>
    %1029 = math.exp %1028 : vector<2x128xf32>
    %cst_372 = arith.constant 1.000000e+00 : f32
    %1030 = vector.broadcast %cst_372 : f32 to vector<2x128xf32>
    %1031 = arith.addf %1030, %1029 : vector<2x128xf32>
    %cst_373 = arith.constant 1.000000e+00 : f32
    %1032 = vector.broadcast %cst_373 : f32 to vector<2x128xf32>
    %1033 = arith.divf %1032, %1031 : vector<2x128xf32>
    %1034 = math.tanh %1025 : vector<2x128xf32>
    %1035 = arith.mulf %1033, %1034 : vector<2x128xf32>
    %1036 = arith.truncf %1035 : vector<2x128xf32> to vector<2x128xbf16>
    %c0_374 = arith.constant 0 : index
    %c0_375 = arith.constant 0 : index
    %1037 = vector.load %arg3[%c0_374, %c0_375] : memref<128x512xbf16, #tpu.memory_space<vmem>>, vector<128x512xbf16>
    %cst_376 = arith.constant dense<0.000000e+00> : vector<2x512xf32>
    %1038 = tpu.matmul %1036, %1037, %cst_376 {dimension_numbers = #tpu.dot_dimension_numbers<[1], [0], [0], [1], [0, 0, 1, 1], [], []>} : vector<2x128xbf16>, vector<128x512xbf16>, vector<2x512xf32> -> vector<2x512xf32>
    %c33 = arith.constant 33 : index
    %c0_377 = arith.constant 0 : index
    %c0_378 = arith.constant 0 : index
    %1039 = vector.load %arg10[%c33, %c0_377, %c0_378] : memref<36x2x512xf32, #tpu.memory_space<vmem>>, vector<1x2x512xf32>
    %1040 = vector.shape_cast %1039 : vector<1x2x512xf32> to vector<2x512xf32>
    %1041 = arith.addf %1040, %1038 : vector<2x512xf32>
    %1042 = vector.extract_strided_slice %1041 {offsets = [0, 0], sizes = [2, 256], strides = [1, 1]} : vector<2x512xf32> to vector<2x256xf32>
    %cst_379 = arith.constant 0.000000e+00 : f32
    %1043 = vector.broadcast %cst_379 : f32 to vector<2x256xf32>
    %1044 = arith.subf %1043, %1042 : vector<2x256xf32>
    %1045 = math.exp %1044 : vector<2x256xf32>
    %cst_380 = arith.constant 1.000000e+00 : f32
    %1046 = vector.broadcast %cst_380 : f32 to vector<2x256xf32>
    %1047 = arith.addf %1046, %1045 : vector<2x256xf32>
    %cst_381 = arith.constant 1.000000e+00 : f32
    %1048 = vector.broadcast %cst_381 : f32 to vector<2x256xf32>
    %1049 = arith.divf %1048, %1047 : vector<2x256xf32>
    %1050 = vector.extract_strided_slice %1041 {offsets = [0, 256], sizes = [2, 128], strides = [1, 1]} : vector<2x512xf32> to vector<2x128xf32>
    %1051 = math.tanh %1050 : vector<2x128xf32>
    %1052 = vector.extract_strided_slice %1049 {offsets = [0, 128], sizes = [2, 128], strides = [1, 1]} : vector<2x256xf32> to vector<2x128xf32>
    %1053 = arith.mulf %1052, %1025 : vector<2x128xf32>
    %1054 = vector.extract_strided_slice %1049 {offsets = [0, 0], sizes = [2, 128], strides = [1, 1]} : vector<2x256xf32> to vector<2x128xf32>
    %1055 = arith.mulf %1054, %1051 : vector<2x128xf32>
    %1056 = arith.addf %1053, %1055 : vector<2x128xf32>
    %1057 = vector.extract_strided_slice %1041 {offsets = [0, 384], sizes = [2, 128], strides = [1, 1]} : vector<2x512xf32> to vector<2x128xf32>
    %cst_382 = arith.constant 0.000000e+00 : f32
    %1058 = vector.broadcast %cst_382 : f32 to vector<2x128xf32>
    %1059 = arith.subf %1058, %1057 : vector<2x128xf32>
    %1060 = math.exp %1059 : vector<2x128xf32>
    %cst_383 = arith.constant 1.000000e+00 : f32
    %1061 = vector.broadcast %cst_383 : f32 to vector<2x128xf32>
    %1062 = arith.addf %1061, %1060 : vector<2x128xf32>
    %cst_384 = arith.constant 1.000000e+00 : f32
    %1063 = vector.broadcast %cst_384 : f32 to vector<2x128xf32>
    %1064 = arith.divf %1063, %1062 : vector<2x128xf32>
    %1065 = math.tanh %1056 : vector<2x128xf32>
    %1066 = arith.mulf %1064, %1065 : vector<2x128xf32>
    %1067 = arith.truncf %1066 : vector<2x128xf32> to vector<2x128xbf16>
    %c0_385 = arith.constant 0 : index
    %c0_386 = arith.constant 0 : index
    %1068 = vector.load %arg3[%c0_385, %c0_386] : memref<128x512xbf16, #tpu.memory_space<vmem>>, vector<128x512xbf16>
    %cst_387 = arith.constant dense<0.000000e+00> : vector<2x512xf32>
    %1069 = tpu.matmul %1067, %1068, %cst_387 {dimension_numbers = #tpu.dot_dimension_numbers<[1], [0], [0], [1], [0, 0, 1, 1], [], []>} : vector<2x128xbf16>, vector<128x512xbf16>, vector<2x512xf32> -> vector<2x512xf32>
    %c34 = arith.constant 34 : index
    %c0_388 = arith.constant 0 : index
    %c0_389 = arith.constant 0 : index
    %1070 = vector.load %arg10[%c34, %c0_388, %c0_389] : memref<36x2x512xf32, #tpu.memory_space<vmem>>, vector<1x2x512xf32>
    %1071 = vector.shape_cast %1070 : vector<1x2x512xf32> to vector<2x512xf32>
    %1072 = arith.addf %1071, %1069 : vector<2x512xf32>
    %1073 = vector.extract_strided_slice %1072 {offsets = [0, 0], sizes = [2, 256], strides = [1, 1]} : vector<2x512xf32> to vector<2x256xf32>
    %cst_390 = arith.constant 0.000000e+00 : f32
    %1074 = vector.broadcast %cst_390 : f32 to vector<2x256xf32>
    %1075 = arith.subf %1074, %1073 : vector<2x256xf32>
    %1076 = math.exp %1075 : vector<2x256xf32>
    %cst_391 = arith.constant 1.000000e+00 : f32
    %1077 = vector.broadcast %cst_391 : f32 to vector<2x256xf32>
    %1078 = arith.addf %1077, %1076 : vector<2x256xf32>
    %cst_392 = arith.constant 1.000000e+00 : f32
    %1079 = vector.broadcast %cst_392 : f32 to vector<2x256xf32>
    %1080 = arith.divf %1079, %1078 : vector<2x256xf32>
    %1081 = vector.extract_strided_slice %1072 {offsets = [0, 256], sizes = [2, 128], strides = [1, 1]} : vector<2x512xf32> to vector<2x128xf32>
    %1082 = math.tanh %1081 : vector<2x128xf32>
    %1083 = vector.extract_strided_slice %1080 {offsets = [0, 128], sizes = [2, 128], strides = [1, 1]} : vector<2x256xf32> to vector<2x128xf32>
    %1084 = arith.mulf %1083, %1056 : vector<2x128xf32>
    %1085 = vector.extract_strided_slice %1080 {offsets = [0, 0], sizes = [2, 128], strides = [1, 1]} : vector<2x256xf32> to vector<2x128xf32>
    %1086 = arith.mulf %1085, %1082 : vector<2x128xf32>
    %1087 = arith.addf %1084, %1086 : vector<2x128xf32>
    %1088 = vector.extract_strided_slice %1072 {offsets = [0, 384], sizes = [2, 128], strides = [1, 1]} : vector<2x512xf32> to vector<2x128xf32>
    %cst_393 = arith.constant 0.000000e+00 : f32
    %1089 = vector.broadcast %cst_393 : f32 to vector<2x128xf32>
    %1090 = arith.subf %1089, %1088 : vector<2x128xf32>
    %1091 = math.exp %1090 : vector<2x128xf32>
    %cst_394 = arith.constant 1.000000e+00 : f32
    %1092 = vector.broadcast %cst_394 : f32 to vector<2x128xf32>
    %1093 = arith.addf %1092, %1091 : vector<2x128xf32>
    %cst_395 = arith.constant 1.000000e+00 : f32
    %1094 = vector.broadcast %cst_395 : f32 to vector<2x128xf32>
    %1095 = arith.divf %1094, %1093 : vector<2x128xf32>
    %1096 = math.tanh %1087 : vector<2x128xf32>
    %1097 = arith.mulf %1095, %1096 : vector<2x128xf32>
    %1098 = arith.truncf %1097 : vector<2x128xf32> to vector<2x128xbf16>
    %c0_396 = arith.constant 0 : index
    %c0_397 = arith.constant 0 : index
    %1099 = vector.load %arg3[%c0_396, %c0_397] : memref<128x512xbf16, #tpu.memory_space<vmem>>, vector<128x512xbf16>
    %cst_398 = arith.constant dense<0.000000e+00> : vector<2x512xf32>
    %1100 = tpu.matmul %1098, %1099, %cst_398 {dimension_numbers = #tpu.dot_dimension_numbers<[1], [0], [0], [1], [0, 0, 1, 1], [], []>} : vector<2x128xbf16>, vector<128x512xbf16>, vector<2x512xf32> -> vector<2x512xf32>
    %c35 = arith.constant 35 : index
    %c0_399 = arith.constant 0 : index
    %c0_400 = arith.constant 0 : index
    %1101 = vector.load %arg10[%c35, %c0_399, %c0_400] : memref<36x2x512xf32, #tpu.memory_space<vmem>>, vector<1x2x512xf32>
    %1102 = vector.shape_cast %1101 : vector<1x2x512xf32> to vector<2x512xf32>
    %1103 = arith.addf %1102, %1100 : vector<2x512xf32>
    %1104 = vector.extract_strided_slice %1103 {offsets = [0, 0], sizes = [2, 256], strides = [1, 1]} : vector<2x512xf32> to vector<2x256xf32>
    %cst_401 = arith.constant 0.000000e+00 : f32
    %1105 = vector.broadcast %cst_401 : f32 to vector<2x256xf32>
    %1106 = arith.subf %1105, %1104 : vector<2x256xf32>
    %1107 = math.exp %1106 : vector<2x256xf32>
    %cst_402 = arith.constant 1.000000e+00 : f32
    %1108 = vector.broadcast %cst_402 : f32 to vector<2x256xf32>
    %1109 = arith.addf %1108, %1107 : vector<2x256xf32>
    %cst_403 = arith.constant 1.000000e+00 : f32
    %1110 = vector.broadcast %cst_403 : f32 to vector<2x256xf32>
    %1111 = arith.divf %1110, %1109 : vector<2x256xf32>
    %1112 = vector.extract_strided_slice %1103 {offsets = [0, 256], sizes = [2, 128], strides = [1, 1]} : vector<2x512xf32> to vector<2x128xf32>
    %1113 = math.tanh %1112 : vector<2x128xf32>
    %1114 = vector.extract_strided_slice %1111 {offsets = [0, 128], sizes = [2, 128], strides = [1, 1]} : vector<2x256xf32> to vector<2x128xf32>
    %1115 = arith.mulf %1114, %1087 : vector<2x128xf32>
    %1116 = vector.extract_strided_slice %1111 {offsets = [0, 0], sizes = [2, 128], strides = [1, 1]} : vector<2x256xf32> to vector<2x128xf32>
    %1117 = arith.mulf %1116, %1113 : vector<2x128xf32>
    %1118 = arith.addf %1115, %1117 : vector<2x128xf32>
    %1119 = vector.extract_strided_slice %1103 {offsets = [0, 384], sizes = [2, 128], strides = [1, 1]} : vector<2x512xf32> to vector<2x128xf32>
    %cst_404 = arith.constant 0.000000e+00 : f32
    %1120 = vector.broadcast %cst_404 : f32 to vector<2x128xf32>
    %1121 = arith.subf %1120, %1119 : vector<2x128xf32>
    %1122 = math.exp %1121 : vector<2x128xf32>
    %cst_405 = arith.constant 1.000000e+00 : f32
    %1123 = vector.broadcast %cst_405 : f32 to vector<2x128xf32>
    %1124 = arith.addf %1123, %1122 : vector<2x128xf32>
    %cst_406 = arith.constant 1.000000e+00 : f32
    %1125 = vector.broadcast %cst_406 : f32 to vector<2x128xf32>
    %1126 = arith.divf %1125, %1124 : vector<2x128xf32>
    %1127 = math.tanh %1118 : vector<2x128xf32>
    %1128 = arith.mulf %1126, %1127 : vector<2x128xf32>
    %1129 = arith.truncf %1128 : vector<2x128xf32> to vector<2x128xbf16>
    %c0_407 = arith.constant 0 : index
    %c0_408 = arith.constant 0 : index
    %1130 = vector.load %arg5[%c0_407, %c0_408] : memref<128x128xbf16, #tpu.memory_space<vmem>>, vector<128x128xbf16>
    %cst_409 = arith.constant dense<0.000000e+00> : vector<2x128xf32>
    %1131 = tpu.matmul %1129, %1130, %cst_409 {dimension_numbers = #tpu.dot_dimension_numbers<[1], [0], [0], [1], [0, 0, 1, 1], [], []>} : vector<2x128xbf16>, vector<128x128xbf16>, vector<2x128xf32> -> vector<2x128xf32>
    %c0_410 = arith.constant 0 : index
    %c0_411 = arith.constant 0 : index
    %1132 = vector.load %arg6[%c0_410, %c0_411] : memref<1x128xf32, #tpu.memory_space<vmem>>, vector<1x128xf32>
    %1133 = vector.broadcast %1132 : vector<1x128xf32> to vector<2x128xf32>
    %1134 = arith.addf %1131, %1133 : vector<2x128xf32>
    %cst_412 = arith.constant 0.000000e+00 : f32
    %1135 = vector.broadcast %cst_412 : f32 to vector<2x128xf32>
    %1136 = arith.maximumf %1134, %1135 : vector<2x128xf32>
    %c0_413 = arith.constant 0 : index
    %c0_414 = arith.constant 0 : index
    %1137 = vector.load %arg7[%c0_413, %c0_414] : memref<1x128xf32, #tpu.memory_space<vmem>>, vector<1x128xf32>
    %1138 = vector.broadcast %1137 : vector<1x128xf32> to vector<2x128xf32>
    %1139 = arith.mulf %1136, %1138 : vector<2x128xf32>
    %cst_415 = arith.constant dense<0.000000e+00> : vector<2xf32>
    %1140 = vector.multi_reduction <add>, %1139, %cst_415 [1] : vector<2x128xf32> to vector<2xf32>
    %1141 = vector.shape_cast %1140 : vector<2xf32> to vector<2x1xf32>
    %c0_416 = arith.constant 0 : index
    %c0_417 = arith.constant 0 : index
    %1142 = vector.load %arg8[%c0_416, %c0_417] : memref<1x1xf32, #tpu.memory_space<vmem>>, vector<1x1xf32>
    %1143 = vector.broadcast %1142 : vector<1x1xf32> to vector<2x1xf32>
    %1144 = arith.addf %1141, %1143 : vector<2x1xf32>
    %c0_418 = arith.constant 0 : index
    %c0_419 = arith.constant 0 : index
    %1145 = vector.load %arg9[%c0_418, %c0_419] : memref<2x1xf32, #tpu.memory_space<vmem>>, vector<2x1xf32>
    tpu.vector_store %arg9[%c0_418, %c0_419], %1144 {strides = array<i32>} : memref<2x1xf32, #tpu.memory_space<vmem>>, vector<2x1xf32>,
    return
  }
  func.func @transform_0(%arg0: i32) -> (i32, i32, i32) {
    %c0_i32 = arith.constant 0 : i32
    %c0_i32_0 = arith.constant 0 : i32
    %c0_i32_1 = arith.constant 0 : i32
    %c0_i32_2 = arith.constant 0 : i32
    return %c0_i32, %c0_i32_0, %c0_i32_1 : i32, i32, i32
  }
  func.func @transform_1(%arg0: i32) -> (i32, i32) {
    %c0_i32 = arith.constant 0 : i32
    %c0_i32_0 = arith.constant 0 : i32
    %c0_i32_1 = arith.constant 0 : i32
    return %c0_i32, %c0_i32_0 : i32, i32
  }
  func.func @transform_2(%arg0: i32) -> (i32, i32) {
    %c0_i32 = arith.constant 0 : i32
    %c0_i32_0 = arith.constant 0 : i32
    %c0_i32_1 = arith.constant 0 : i32
    return %c0_i32, %c0_i32_0 : i32, i32
  }
  func.func @transform_3(%arg0: i32) -> (i32, i32) {
    %c0_i32 = arith.constant 0 : i32
    %c0_i32_0 = arith.constant 0 : i32
    %c0_i32_1 = arith.constant 0 : i32
    return %c0_i32, %c0_i32_0 : i32, i32
  }
  func.func @transform_4(%arg0: i32) -> (i32, i32) {
    %c0_i32 = arith.constant 0 : i32
    %c0_i32_0 = arith.constant 0 : i32
    %c0_i32_1 = arith.constant 0 : i32
    return %c0_i32, %c0_i32_0 : i32, i32
  }
  func.func @transform_5(%arg0: i32) -> (i32, i32) {
    %c0_i32 = arith.constant 0 : i32
    %c0_i32_0 = arith.constant 0 : i32
    %c0_i32_1 = arith.constant 0 : i32
    return %c0_i32, %c0_i32_0 : i32, i32
  }
  func.func @transform_6(%arg0: i32) -> (i32, i32) {
    %c0_i32 = arith.constant 0 : i32
    %c0_i32_0 = arith.constant 0 : i32
    %c0_i32_1 = arith.constant 0 : i32
    return %c0_i32, %c0_i32_0 : i32, i32
  }
  func.func @transform_7(%arg0: i32) -> (i32, i32) {
    %c0_i32 = arith.constant 0 : i32
    %c0_i32_0 = arith.constant 0 : i32
    %c0_i32_1 = arith.constant 0 : i32
    return %c0_i32, %c0_i32_0 : i32, i32
  }
  func.func @transform_8(%arg0: i32) -> (i32, i32) {
    %c0_i32 = arith.constant 0 : i32
    %c0_i32_0 = arith.constant 0 : i32
    %c0_i32_1 = arith.constant 0 : i32
    return %c0_i32, %c0_i32_0 : i32, i32
  }
}

</mosaic_0001>

<llo_original>
// kernel: tpu_custom_call.1
$region0: #{tpu_custom_call.1}
  #allocation0 [shape = 'u32[]', space=smem, size = 0x4, offset = 0x4, fixed_abs, tag = 'smem constant byte address 0x4 - core index']
  #allocation1 [shape = 'u32[72,128]{1,0:T(1,128)}', space=vmem, size = 0x9000, scoped, tag = 'internal scratch']
  #allocation2 [shape = 'f32[36,2,512]{2,1,0:T(2,128)}', space=vmem, size = 0x24000, scoped, tag = 'scratch operand']
  #allocation3 [shape = 'f32[1,1]{1,0:T(1,128)S(1)}', space=vmem, size = 0x200, scoped, tag = 'scoped memory for tpu_custom_call.1']
  %s0 = inlined_call_operand.vmem [shape: f32[36,2,1], index: 0, kind: input, shape index: {}]
  %s1 = inlined_call_operand.vmem [shape: f32[1,512], index: 1, kind: input, shape index: {}]
  %s2 = inlined_call_operand.hbm [shape: bf16[128,512], index: 2, kind: input, shape index: {}]
  %s3 = inlined_call_operand.vmem [shape: f32[1,512], index: 3, kind: input, shape index: {}]
  %s4 = inlined_call_operand.vmem [shape: bf16[128,128], index: 4, kind: input, shape index: {}]
  %s5 = inlined_call_operand.vmem [shape: f32[1,128], index: 5, kind: input, shape index: {}]
  %s6 = inlined_call_operand.vmem [shape: f32[1,128], index: 6, kind: input, shape index: {}]
  %s7 = inlined_call_operand.<no memory space> [shape: f32[1,1], index: 7, kind: input, shape index: {}]
  %s8 = inlined_call_operand.vmem [shape: f32[2,1], index: 8, kind: output, shape index: {}]
  %s9 = sld [smem:[#allocation0]]
  $region46: #{tpu_custom_call.1} parent=0
    _
  %s11 = ssub.s32 1, %s9
  %s12 = scalar_select 0, %s11, %s9
  %v13 = vstv %s7
  %14 = vst [vmem:[#allocation3] sm:$0x1] %v13
  $region1: #{tpu_custom_call.1} parent=0
    #allocation4 [shape = 'u8[131072]{0}', space=vmem, size = 0x20000, scoped, tag = 'input window, operand 2, single buffered']
    #allocation5 [shape = 's32[1]{0}', space=sflag, size = 0x4, scoped, tag = 'scoped memory for tpu_custom_call.1']
    %15 = vsyncpa [#allocation5], 0
    // Predicated region
    $region2: #{tpu_custom_call.1} parent=1 // pred_check
      _
    $region3: #{tpu_custom_call.1} parent=1 // pred_check_branch
      %17 = sbr.rel (0) target = $region5
    $region4: #{tpu_custom_call.1} parent=1 // pred_region
      _
    $region5: #{tpu_custom_call.1} parent=1 // pred_fallthru
      _
    // Predicated region
    $region6: #{tpu_custom_call.1} parent=1 // pred_check
      _
    $region7: #{tpu_custom_call.1} parent=1 // pred_check_branch
      %19 = sbr.rel (0) target = $region9
    $region8: #{tpu_custom_call.1} parent=1 // pred_region
      _
    $region9: #{tpu_custom_call.1} parent=1 // pred_fallthru
      _
    // Predicated region
    $region10: #{tpu_custom_call.1} parent=1 // pred_check
      _
    $region11: #{tpu_custom_call.1} parent=1 // pred_check_branch
      %21 = sbr.rel (0) target = $region13
    $region12: #{tpu_custom_call.1} parent=1 // pred_region
      %23 = vsyncadd [#allocation5], 0
      %s24 = sshll.u32 %s2, 4
      %s25 = int_to_ptr.hbm [resolvable:$true] %s24
      %s26 = sshll.u32 [#allocation4], 4
      %s27 = int_to_ptr.vmem [resolvable:$true] %s26
      %32 = dma.hbm_to_vmem [thread:$0]  %s25, 4096, %s27, [#allocation5], 256, 256, 16
    $region13: #{tpu_custom_call.1} parent=1 // pred_fallthru
      _
    // Predicated region
    $region14: #{tpu_custom_call.1} parent=1 // pred_check
      _
    $region15: #{tpu_custom_call.1} parent=1 // pred_check_branch
      %34 = sbr.rel (0) target = $region17
    $region16: #{tpu_custom_call.1} parent=1 // pred_region
      _
    $region17: #{tpu_custom_call.1} parent=1 // pred_fallthru
      _
    // Predicated region
    $region18: #{tpu_custom_call.1} parent=1 // pred_check
      _
    $region19: #{tpu_custom_call.1} parent=1 // pred_check_branch
      %36 = sbr.rel (0) target = $region21
    $region20: #{tpu_custom_call.1} parent=1 // pred_region
      _
    $region21: #{tpu_custom_call.1} parent=1 // pred_fallthru
      _
    // Predicated region
    $region22: #{tpu_custom_call.1} parent=1 // pred_check
      _
    $region23: #{tpu_custom_call.1} parent=1 // pred_check_branch
      %38 = sbr.rel (0) target = $region25
    $region24: #{tpu_custom_call.1} parent=1 // pred_region
      _
    $region25: #{tpu_custom_call.1} parent=1 // pred_fallthru
      _
    // Predicated region
    $region26: #{tpu_custom_call.1} parent=1 // pred_check
      _
    $region27: #{tpu_custom_call.1} parent=1 // pred_check_branch
      %40 = sbr.rel (0) target = $region29
    $region28: #{tpu_custom_call.1} parent=1 // pred_region
      _
    $region29: #{tpu_custom_call.1} parent=1 // pred_fallthru
      _
    // Predicated region
    $region30: #{tpu_custom_call.1} parent=1 // pred_check
      _
    $region31: #{tpu_custom_call.1} parent=1 // pred_check_branch
      %42 = sbr.rel (0) target = $region33
    $region32: #{tpu_custom_call.1} parent=1 // pred_region
      _
    $region33: #{tpu_custom_call.1} parent=1 // pred_fallthru
      _
    // Predicated region
    $region34: #{tpu_custom_call.1} parent=1 // pred_check
      _
    $region35: #{tpu_custom_call.1} parent=1 // pred_check_branch
      %44 = sbr.rel (0) target = $region37
    $region36: #{tpu_custom_call.1} parent=1 // pred_region
      %46 = dma.done [#allocation5], 4096
    $region37: #{tpu_custom_call.1} parent=1 // pred_fallthru
      _
    %v48 = vld [vmem:[%s0] sm:$0x3]
    %v49 = vld [vmem:[%s0 + $0x2] sm:$0x3]
    %v50 = vld [vmem:[%s0 + $0x4] sm:$0x3]
    %v51 = vld [vmem:[%s0 + $0x6] sm:$0x3]
    %v52 = vld [vmem:[%s0 + $0x8] sm:$0x3]
    %v53 = vld [vmem:[%s0 + $0xa] sm:$0x3]
    %v54 = vld [vmem:[%s0 + $0xc] sm:$0x3]
    %v55 = vld [vmem:[%s0 + $0xe] sm:$0x3]
    %v56 = vld [vmem:[%s0 + $0x10] sm:$0x3]
    %v57 = vld [vmem:[%s0 + $0x12] sm:$0x3]
    %v58 = vld [vmem:[%s0 + $0x14] sm:$0x3]
    %v59 = vld [vmem:[%s0 + $0x16] sm:$0x3]
    %v60 = vld [vmem:[%s0 + $0x18] sm:$0x3]
    %v61 = vld [vmem:[%s0 + $0x1a] sm:$0x3]
    %v62 = vld [vmem:[%s0 + $0x1c] sm:$0x3]
    %v63 = vld [vmem:[%s0 + $0x1e] sm:$0x3]
    %v64 = vld [vmem:[%s0 + $0x20] sm:$0x3]
    %v65 = vld [vmem:[%s0 + $0x22] sm:$0x3]
    %v66 = vld [vmem:[%s0 + $0x24] sm:$0x3]
    %v67 = vld [vmem:[%s0 + $0x26] sm:$0x3]
    %v68 = vld [vmem:[%s0 + $0x28] sm:$0x3]
    %v69 = vld [vmem:[%s0 + $0x2a] sm:$0x3]
    %v70 = vld [vmem:[%s0 + $0x2c] sm:$0x3]
    %v71 = vld [vmem:[%s0 + $0x2e] sm:$0x3]
    %v72 = vld [vmem:[%s0 + $0x30] sm:$0x3]
    %v73 = vld [vmem:[%s0 + $0x32] sm:$0x3]
    %v74 = vld [vmem:[%s0 + $0x34] sm:$0x3]
    %v75 = vld [vmem:[%s0 + $0x36] sm:$0x3]
    %v76 = vld [vmem:[%s0 + $0x38] sm:$0x3]
    %v77 = vld [vmem:[%s0 + $0x3a] sm:$0x3]
    %v78 = vld [vmem:[%s0 + $0x3c] sm:$0x3]
    %v79 = vld [vmem:[%s0 + $0x3e] sm:$0x3]
    %v80 = vld [vmem:[%s0 + $0x40] sm:$0x3]
    %v81 = vld [vmem:[%s0 + $0x42] sm:$0x3]
    %v82 = vld [vmem:[%s0 + $0x44] sm:$0x3]
    %v83 = vld [vmem:[%s0 + $0x46] sm:$0x3]
    %v84 = vld [vmem:[%s1] sm:$0xf]
    %86 = vset.pattern.permute.xlu0 0
    %87 = vperm.xlu0 %86, %v48
    %v88 = vpop.permute.xlu0 %87
    %91 = vset.pattern.permute.xlu0 0
    %92 = vperm.xlu0 %91, %v49
    %v93 = vpop.permute.xlu0 %92
    %96 = vset.pattern.permute.xlu0 0
    %97 = vperm.xlu0 %96, %v50
    %v98 = vpop.permute.xlu0 %97
    %101 = vset.pattern.permute.xlu0 0
    %102 = vperm.xlu0 %101, %v51
    %v103 = vpop.permute.xlu0 %102
    %106 = vset.pattern.permute.xlu0 0
    %107 = vperm.xlu0 %106, %v52
    %v108 = vpop.permute.xlu0 %107
    %111 = vset.pattern.permute.xlu0 0
    %112 = vperm.xlu0 %111, %v53
    %v113 = vpop.permute.xlu0 %112
    %116 = vset.pattern.permute.xlu0 0
    %117 = vperm.xlu0 %116, %v54
    %v118 = vpop.permute.xlu0 %117
    %121 = vset.pattern.permute.xlu0 0
    %122 = vperm.xlu0 %121, %v55
    %v123 = vpop.permute.xlu0 %122
    %126 = vset.pattern.permute.xlu0 0
    %127 = vperm.xlu0 %126, %v56
    %v128 = vpop.permute.xlu0 %127
    %131 = vset.pattern.permute.xlu0 0
    %132 = vperm.xlu0 %131, %v57
    %v133 = vpop.permute.xlu0 %132
    %136 = vset.pattern.permute.xlu0 0
    %137 = vperm.xlu0 %136, %v58
    %v138 = vpop.permute.xlu0 %137
    %141 = vset.pattern.permute.xlu0 0
    %142 = vperm.xlu0 %141, %v59
    %v143 = vpop.permute.xlu0 %142
    %146 = vset.pattern.permute.xlu0 0
    %147 = vperm.xlu0 %146, %v60
    %v148 = vpop.permute.xlu0 %147
    %151 = vset.pattern.permute.xlu0 0
    %152 = vperm.xlu0 %151, %v61
    %v153 = vpop.permute.xlu0 %152
    %156 = vset.pattern.permute.xlu0 0
    %157 = vperm.xlu0 %156, %v62
    %v158 = vpop.permute.xlu0 %157
    %161 = vset.pattern.permute.xlu0 0
    %162 = vperm.xlu0 %161, %v63
    %v163 = vpop.permute.xlu0 %162
    %166 = vset.pattern.permute.xlu0 0
    %167 = vperm.xlu0 %166, %v64
    %v168 = vpop.permute.xlu0 %167
    %171 = vset.pattern.permute.xlu0 0
    %172 = vperm.xlu0 %171, %v65
    %v173 = vpop.permute.xlu0 %172
    %176 = vset.pattern.permute.xlu0 0
    %177 = vperm.xlu0 %176, %v66
    %v178 = vpop.permute.xlu0 %177
    %181 = vset.pattern.permute.xlu0 0
    %182 = vperm.xlu0 %181, %v67
    %v183 = vpop.permute.xlu0 %182
    %186 = vset.pattern.permute.xlu0 0
    %187 = vperm.xlu0 %186, %v68
    %v188 = vpop.permute.xlu0 %187
    %191 = vset.pattern.permute.xlu0 0
    %192 = vperm.xlu0 %191, %v69
    %v193 = vpop.permute.xlu0 %192
    %196 = vset.pattern.permute.xlu0 0
    %197 = vperm.xlu0 %196, %v70
    %v198 = vpop.permute.xlu0 %197
    %201 = vset.pattern.permute.xlu0 0
    %202 = vperm.xlu0 %201, %v71
    %v203 = vpop.permute.xlu0 %202
    %206 = vset.pattern.permute.xlu0 0
    %207 = vperm.xlu0 %206, %v72
    %v208 = vpop.permute.xlu0 %207
    %211 = vset.pattern.permute.xlu0 0
    %212 = vperm.xlu0 %211, %v73
    %v213 = vpop.permute.xlu0 %212
    %216 = vset.pattern.permute.xlu0 0
    %217 = vperm.xlu0 %216, %v74
    %v218 = vpop.permute.xlu0 %217
    %221 = vset.pattern.permute.xlu0 0
    %222 = vperm.xlu0 %221, %v75
    %v223 = vpop.permute.xlu0 %222
    %226 = vset.pattern.permute.xlu0 0
    %227 = vperm.xlu0 %226, %v76
    %v228 = vpop.permute.xlu0 %227
    %231 = vset.pattern.permute.xlu0 0
    %232 = vperm.xlu0 %231, %v77
    %v233 = vpop.permute.xlu0 %232
    %236 = vset.pattern.permute.xlu0 0
    %237 = vperm.xlu0 %236, %v78
    %v238 = vpop.permute.xlu0 %237
    %241 = vset.pattern.permute.xlu0 0
    %242 = vperm.xlu0 %241, %v79
    %v243 = vpop.permute.xlu0 %242
    %246 = vset.pattern.permute.xlu0 0
    %247 = vperm.xlu0 %246, %v80
    %v248 = vpop.permute.xlu0 %247
    %251 = vset.pattern.permute.xlu0 0
    %252 = vperm.xlu0 %251, %v81
    %v253 = vpop.permute.xlu0 %252
    %256 = vset.pattern.permute.xlu0 0
    %257 = vperm.xlu0 %256, %v82
    %v258 = vpop.permute.xlu0 %257
    %261 = vset.pattern.permute.xlu0 0
    %262 = vperm.xlu0 %261, %v83
    %v263 = vpop.permute.xlu0 %262
    %v266 = vperm.slane %v84, 0
    %v267 = vperm.slane %v84, 1
    %v268 = vperm.slane %v84, 2
    %v269 = vperm.slane %v84, 3
    %v274 = vmul.f32 %v88, %v266
    %v275 = vmul.f32 %v88, %v267
    %v276 = vmul.f32 %v88, %v268
    %v277 = vmul.f32 %v88, %v269
    %v278 = vmul.f32 %v93, %v266
    %v279 = vmul.f32 %v93, %v267
    %v280 = vmul.f32 %v93, %v268
    %v281 = vmul.f32 %v93, %v269
    %v282 = vmul.f32 %v98, %v266
    %v283 = vmul.f32 %v98, %v267
    %v284 = vmul.f32 %v98, %v268
    %v285 = vmul.f32 %v98, %v269
    %v286 = vmul.f32 %v103, %v266
    %v287 = vmul.f32 %v103, %v267
    %v288 = vmul.f32 %v103, %v268
    %v289 = vmul.f32 %v103, %v269
    %v290 = vmul.f32 %v108, %v266
    %v291 = vmul.f32 %v108, %v267
    %v292 = vmul.f32 %v108, %v268
    %v293 = vmul.f32 %v108, %v269
    %v294 = vmul.f32 %v113, %v266
    %v295 = vmul.f32 %v113, %v267
    %v296 = vmul.f32 %v113, %v268
    %v297 = vmul.f32 %v113, %v269
    %v298 = vmul.f32 %v118, %v266
    %v299 = vmul.f32 %v118, %v267
    %v300 = vmul.f32 %v118, %v268
    %v301 = vmul.f32 %v118, %v269
    %v302 = vmul.f32 %v123, %v266
    %v303 = vmul.f32 %v123, %v267
    %v304 = vmul.f32 %v123, %v268
    %v305 = vmul.f32 %v123, %v269
    %v306 = vmul.f32 %v128, %v266
    %v307 = vmul.f32 %v128, %v267
    %v308 = vmul.f32 %v128, %v268
    %v309 = vmul.f32 %v128, %v269
    %v310 = vmul.f32 %v133, %v266
    %v311 = vmul.f32 %v133, %v267
    %v312 = vmul.f32 %v133, %v268
    %v313 = vmul.f32 %v133, %v269
    %v314 = vmul.f32 %v138, %v266
    %v315 = vmul.f32 %v138, %v267
    %v316 = vmul.f32 %v138, %v268
    %v317 = vmul.f32 %v138, %v269
    %v318 = vmul.f32 %v143, %v266
    %v319 = vmul.f32 %v143, %v267
    %v320 = vmul.f32 %v143, %v268
    %v321 = vmul.f32 %v143, %v269
    %v322 = vmul.f32 %v148, %v266
    %v323 = vmul.f32 %v148, %v267
    %v324 = vmul.f32 %v148, %v268
    %v325 = vmul.f32 %v148, %v269
    %v326 = vmul.f32 %v153, %v266
    %v327 = vmul.f32 %v153, %v267
    %v328 = vmul.f32 %v153, %v268
    %v329 = vmul.f32 %v153, %v269
    %v330 = vmul.f32 %v158, %v266
    %v331 = vmul.f32 %v158, %v267
    %v332 = vmul.f32 %v158, %v268
    %v333 = vmul.f32 %v158, %v269
    %v334 = vmul.f32 %v163, %v266
    %v335 = vmul.f32 %v163, %v267
    %v336 = vmul.f32 %v163, %v268
    %v337 = vmul.f32 %v163, %v269
    %v338 = vmul.f32 %v168, %v266
    %v339 = vmul.f32 %v168, %v267
    %v340 = vmul.f32 %v168, %v268
    %v341 = vmul.f32 %v168, %v269
    %v342 = vmul.f32 %v173, %v266
    %v343 = vmul.f32 %v173, %v267
    %v344 = vmul.f32 %v173, %v268
    %v345 = vmul.f32 %v173, %v269
    %v346 = vmul.f32 %v178, %v266
    %v347 = vmul.f32 %v178, %v267
    %v348 = vmul.f32 %v178, %v268
    %v349 = vmul.f32 %v178, %v269
    %v350 = vmul.f32 %v183, %v266
    %v351 = vmul.f32 %v183, %v267
    %v352 = vmul.f32 %v183, %v268
    %v353 = vmul.f32 %v183, %v269
    %v354 = vmul.f32 %v188, %v266
    %v355 = vmul.f32 %v188, %v267
    %v356 = vmul.f32 %v188, %v268
    %v357 = vmul.f32 %v188, %v269
    %v358 = vmul.f32 %v193, %v266
    %v359 = vmul.f32 %v193, %v267
    %v360 = vmul.f32 %v193, %v268
    %v361 = vmul.f32 %v193, %v269
    %v362 = vmul.f32 %v198, %v266
    %v363 = vmul.f32 %v198, %v267
    %v364 = vmul.f32 %v198, %v268
    %v365 = vmul.f32 %v198, %v269
    %v366 = vmul.f32 %v203, %v266
    %v367 = vmul.f32 %v203, %v267
    %v368 = vmul.f32 %v203, %v268
    %v369 = vmul.f32 %v203, %v269
    %v370 = vmul.f32 %v208, %v266
    %v371 = vmul.f32 %v208, %v267
    %v372 = vmul.f32 %v208, %v268
    %v373 = vmul.f32 %v208, %v269
    %v374 = vmul.f32 %v213, %v266
    %v375 = vmul.f32 %v213, %v267
    %v376 = vmul.f32 %v213, %v268
    %v377 = vmul.f32 %v213, %v269
    %v378 = vmul.f32 %v218, %v266
    %v379 = vmul.f32 %v218, %v267
    %v380 = vmul.f32 %v218, %v268
    %v381 = vmul.f32 %v218, %v269
    %v382 = vmul.f32 %v223, %v266
    %v383 = vmul.f32 %v223, %v267
    %v384 = vmul.f32 %v223, %v268
    %v385 = vmul.f32 %v223, %v269
    %v386 = vmul.f32 %v228, %v266
    %v387 = vmul.f32 %v228, %v267
    %v388 = vmul.f32 %v228, %v268
    %v389 = vmul.f32 %v228, %v269
    %v390 = vmul.f32 %v233, %v266
    %v391 = vmul.f32 %v233, %v267
    %v392 = vmul.f32 %v233, %v268
    %v393 = vmul.f32 %v233, %v269
    %v394 = vmul.f32 %v238, %v266
    %v395 = vmul.f32 %v238, %v267
    %v396 = vmul.f32 %v238, %v268
    %v397 = vmul.f32 %v238, %v269
    %v398 = vmul.f32 %v243, %v266
    %v399 = vmul.f32 %v243, %v267
    %v400 = vmul.f32 %v243, %v268
    %v401 = vmul.f32 %v243, %v269
    %v402 = vmul.f32 %v248, %v266
    %v403 = vmul.f32 %v248, %v267
    %v404 = vmul.f32 %v248, %v268
    %v405 = vmul.f32 %v248, %v269
    %v406 = vmul.f32 %v253, %v266
    %v407 = vmul.f32 %v253, %v267
    %v408 = vmul.f32 %v253, %v268
    %v409 = vmul.f32 %v253, %v269
    %v410 = vmul.f32 %v258, %v266
    %v411 = vmul.f32 %v258, %v267
    %v412 = vmul.f32 %v258, %v268
    %v413 = vmul.f32 %v258, %v269
    %v414 = vmul.f32 %v263, %v266
    %v415 = vmul.f32 %v263, %v267
    %v416 = vmul.f32 %v263, %v268
    %v417 = vmul.f32 %v263, %v269
    %v418 = vld [vmem:[%s3] sm:$0xf]
    %v420 = vperm.slane %v418, 0
    %v421 = vperm.slane %v418, 1
    %v422 = vperm.slane %v418, 2
    %v423 = vperm.slane %v418, 3
    %v428 = vadd.f32 %v274, %v420
    %v429 = vadd.f32 %v275, %v421
    %v430 = vadd.f32 %v276, %v422
    %v431 = vadd.f32 %v277, %v423
    %v432 = vadd.f32 %v278, %v420
    %v433 = vadd.f32 %v279, %v421
    %v434 = vadd.f32 %v280, %v422
    %v435 = vadd.f32 %v281, %v423
    %v436 = vadd.f32 %v282, %v420
    %v437 = vadd.f32 %v283, %v421
    %v438 = vadd.f32 %v284, %v422
    %v439 = vadd.f32 %v285, %v423
    %v440 = vadd.f32 %v286, %v420
    %v441 = vadd.f32 %v287, %v421
    %v442 = vadd.f32 %v288, %v422
    %v443 = vadd.f32 %v289, %v423
    %v444 = vadd.f32 %v290, %v420
    %v445 = vadd.f32 %v291, %v421
    %v446 = vadd.f32 %v292, %v422
    %v447 = vadd.f32 %v293, %v423
    %v448 = vadd.f32 %v294, %v420
    %v449 = vadd.f32 %v295, %v421
    %v450 = vadd.f32 %v296, %v422
    %v451 = vadd.f32 %v297, %v423
    %v452 = vadd.f32 %v298, %v420
    %v453 = vadd.f32 %v299, %v421
    %v454 = vadd.f32 %v300, %v422
    %v455 = vadd.f32 %v301, %v423
    %v456 = vadd.f32 %v302, %v420
    %v457 = vadd.f32 %v303, %v421
    %v458 = vadd.f32 %v304, %v422
    %v459 = vadd.f32 %v305, %v423
    %v460 = vadd.f32 %v306, %v420
    %v461 = vadd.f32 %v307, %v421
    %v462 = vadd.f32 %v308, %v422
    %v463 = vadd.f32 %v309, %v423
    %v464 = vadd.f32 %v310, %v420
    %v465 = vadd.f32 %v311, %v421
    %v466 = vadd.f32 %v312, %v422
    %v467 = vadd.f32 %v313, %v423
    %v468 = vadd.f32 %v314, %v420
    %v469 = vadd.f32 %v315, %v421
    %v470 = vadd.f32 %v316, %v422
    %v471 = vadd.f32 %v317, %v423
    %v472 = vadd.f32 %v318, %v420
    %v473 = vadd.f32 %v319, %v421
    %v474 = vadd.f32 %v320, %v422
    %v475 = vadd.f32 %v321, %v423
    %v476 = vadd.f32 %v322, %v420
    %v477 = vadd.f32 %v323, %v421
    %v478 = vadd.f32 %v324, %v422
    %v479 = vadd.f32 %v325, %v423
    %v480 = vadd.f32 %v326, %v420
    %v481 = vadd.f32 %v327, %v421
    %v482 = vadd.f32 %v328, %v422
    %v483 = vadd.f32 %v329, %v423
    %v484 = vadd.f32 %v330, %v420
    %v485 = vadd.f32 %v331, %v421
    %v486 = vadd.f32 %v332, %v422
    %v487 = vadd.f32 %v333, %v423
    %v488 = vadd.f32 %v334, %v420
    %v489 = vadd.f32 %v335, %v421
    %v490 = vadd.f32 %v336, %v422
    %v491 = vadd.f32 %v337, %v423
    %v492 = vadd.f32 %v338, %v420
    %v493 = vadd.f32 %v339, %v421
    %v494 = vadd.f32 %v340, %v422
    %v495 = vadd.f32 %v341, %v423
    %v496 = vadd.f32 %v342, %v420
    %v497 = vadd.f32 %v343, %v421
    %v498 = vadd.f32 %v344, %v422
    %v499 = vadd.f32 %v345, %v423
    %v500 = vadd.f32 %v346, %v420
    %v501 = vadd.f32 %v347, %v421
    %v502 = vadd.f32 %v348, %v422
    %v503 = vadd.f32 %v349, %v423
    %v504 = vadd.f32 %v350, %v420
    %v505 = vadd.f32 %v351, %v421
    %v506 = vadd.f32 %v352, %v422
    %v507 = vadd.f32 %v353, %v423
    %v508 = vadd.f32 %v354, %v420
    %v509 = vadd.f32 %v355, %v421
    %v510 = vadd.f32 %v356, %v422
    %v511 = vadd.f32 %v357, %v423
    %v512 = vadd.f32 %v358, %v420
    %v513 = vadd.f32 %v359, %v421
    %v514 = vadd.f32 %v360, %v422
    %v515 = vadd.f32 %v361, %v423
    %v516 = vadd.f32 %v362, %v420
    %v517 = vadd.f32 %v363, %v421
    %v518 = vadd.f32 %v364, %v422
    %v519 = vadd.f32 %v365, %v423
    %v520 = vadd.f32 %v366, %v420
    %v521 = vadd.f32 %v367, %v421
    %v522 = vadd.f32 %v368, %v422
    %v523 = vadd.f32 %v369, %v423
    %v524 = vadd.f32 %v370, %v420
    %v525 = vadd.f32 %v371, %v421
    %v526 = vadd.f32 %v372, %v422
    %v527 = vadd.f32 %v373, %v423
    %v528 = vadd.f32 %v374, %v420
    %v529 = vadd.f32 %v375, %v421
    %v530 = vadd.f32 %v376, %v422
    %v531 = vadd.f32 %v377, %v423
    %v532 = vadd.f32 %v378, %v420
    %v533 = vadd.f32 %v379, %v421
    %v534 = vadd.f32 %v380, %v422
    %v535 = vadd.f32 %v381, %v423
    %v536 = vadd.f32 %v382, %v420
    %v537 = vadd.f32 %v383, %v421
    %v538 = vadd.f32 %v384, %v422
    %v539 = vadd.f32 %v385, %v423
    %v540 = vadd.f32 %v386, %v420
    %v541 = vadd.f32 %v387, %v421
    %v542 = vadd.f32 %v388, %v422
    %v543 = vadd.f32 %v389, %v423
    %v544 = vadd.f32 %v390, %v420
    %v545 = vadd.f32 %v391, %v421
    %v546 = vadd.f32 %v392, %v422
    %v547 = vadd.f32 %v393, %v423
    %v548 = vadd.f32 %v394, %v420
    %v549 = vadd.f32 %v395, %v421
    %v550 = vadd.f32 %v396, %v422
    %v551 = vadd.f32 %v397, %v423
    %v552 = vadd.f32 %v398, %v420
    %v553 = vadd.f32 %v399, %v421
    %v554 = vadd.f32 %v400, %v422
    %v555 = vadd.f32 %v401, %v423
    %v556 = vadd.f32 %v402, %v420
    %v557 = vadd.f32 %v403, %v421
    %v558 = vadd.f32 %v404, %v422
    %v559 = vadd.f32 %v405, %v423
    %v560 = vadd.f32 %v406, %v420
    %v561 = vadd.f32 %v407, %v421
    %v562 = vadd.f32 %v408, %v422
    %v563 = vadd.f32 %v409, %v423
    %v564 = vadd.f32 %v410, %v420
    %v565 = vadd.f32 %v411, %v421
    %v566 = vadd.f32 %v412, %v422
    %v567 = vadd.f32 %v413, %v423
    %v568 = vadd.f32 %v414, %v420
    %v569 = vadd.f32 %v415, %v421
    %v570 = vadd.f32 %v416, %v422
    %v571 = vadd.f32 %v417, %v423
    %v716 = vrot.slane %v429, 6
    %v717 = vrot.slane %v430, 4
    %v718 = vrot.slane %v431, 2
    %v719 = vrot.slane %v433, 6
    %v720 = vrot.slane %v434, 4
    %v721 = vrot.slane %v435, 2
    %v722 = vrot.slane %v437, 6
    %v723 = vrot.slane %v438, 4
    %v724 = vrot.slane %v439, 2
    %v725 = vrot.slane %v441, 6
    %v726 = vrot.slane %v442, 4
    %v727 = vrot.slane %v443, 2
    %v728 = vrot.slane %v445, 6
    %v729 = vrot.slane %v446, 4
    %v730 = vrot.slane %v447, 2
    %v731 = vrot.slane %v449, 6
    %v732 = vrot.slane %v450, 4
    %v733 = vrot.slane %v451, 2
    %v734 = vrot.slane %v453, 6
    %v735 = vrot.slane %v454, 4
    %v736 = vrot.slane %v455, 2
    %v737 = vrot.slane %v457, 6
    %v738 = vrot.slane %v458, 4
    %v739 = vrot.slane %v459, 2
    %v740 = vrot.slane %v461, 6
    %v741 = vrot.slane %v462, 4
    %v742 = vrot.slane %v463, 2
    %v743 = vrot.slane %v465, 6
    %v744 = vrot.slane %v466, 4
    %v745 = vrot.slane %v467, 2
    %v746 = vrot.slane %v469, 6
    %v747 = vrot.slane %v470, 4
    %v748 = vrot.slane %v471, 2
    %v749 = vrot.slane %v473, 6
    %v750 = vrot.slane %v474, 4
    %v751 = vrot.slane %v475, 2
    %v752 = vrot.slane %v477, 6
    %v753 = vrot.slane %v478, 4
    %v754 = vrot.slane %v479, 2
    %v755 = vrot.slane %v481, 6
    %v756 = vrot.slane %v482, 4
    %v757 = vrot.slane %v483, 2
    %v758 = vrot.slane %v485, 6
    %v759 = vrot.slane %v486, 4
    %v760 = vrot.slane %v487, 2
    %v761 = vrot.slane %v489, 6
    %v762 = vrot.slane %v490, 4
    %v763 = vrot.slane %v491, 2
    %v764 = vrot.slane %v493, 6
    %v765 = vrot.slane %v494, 4
    %v766 = vrot.slane %v495, 2
    %v767 = vrot.slane %v497, 6
    %v768 = vrot.slane %v498, 4
    %v769 = vrot.slane %v499, 2
    %v770 = vrot.slane %v501, 6
    %v771 = vrot.slane %v502, 4
    %v772 = vrot.slane %v503, 2
    %v773 = vrot.slane %v505, 6
    %v774 = vrot.slane %v506, 4
    %v775 = vrot.slane %v507, 2
    %v776 = vrot.slane %v509, 6
    %v777 = vrot.slane %v510, 4
    %v778 = vrot.slane %v511, 2
    %v779 = vrot.slane %v513, 6
    %v780 = vrot.slane %v514, 4
    %v781 = vrot.slane %v515, 2
    %v782 = vrot.slane %v517, 6
    %v783 = vrot.slane %v518, 4
    %v784 = vrot.slane %v519, 2
    %v785 = vrot.slane %v521, 6
    %v786 = vrot.slane %v522, 4
    %v787 = vrot.slane %v523, 2
    %v788 = vrot.slane %v525, 6
    %v789 = vrot.slane %v526, 4
    %v790 = vrot.slane %v527, 2
    %v791 = vrot.slane %v529, 6
    %v792 = vrot.slane %v530, 4
    %v793 = vrot.slane %v531, 2
    %v794 = vrot.slane %v533, 6
    %v795 = vrot.slane %v534, 4
    %v796 = vrot.slane %v535, 2
    %v797 = vrot.slane %v537, 6
    %v798 = vrot.slane %v538, 4
    %v799 = vrot.slane %v539, 2
    %v800 = vrot.slane %v541, 6
    %v801 = vrot.slane %v542, 4
    %v802 = vrot.slane %v543, 2
    %v803 = vrot.slane %v545, 6
    %v804 = vrot.slane %v546, 4
    %v805 = vrot.slane %v547, 2
    %v806 = vrot.slane %v549, 6
    %v807 = vrot.slane %v550, 4
    %v808 = vrot.slane %v551, 2
    %v809 = vrot.slane %v553, 6
    %v810 = vrot.slane %v554, 4
    %v811 = vrot.slane %v555, 2
    %v812 = vrot.slane %v557, 6
    %v813 = vrot.slane %v558, 4
    %v814 = vrot.slane %v559, 2
    %v815 = vrot.slane %v561, 6
    %v816 = vrot.slane %v562, 4
    %v817 = vrot.slane %v563, 2
    %v818 = vrot.slane %v565, 6
    %v819 = vrot.slane %v566, 4
    %v820 = vrot.slane %v567, 2
    %v821 = vrot.slane %v569, 6
    %v822 = vrot.slane %v570, 4
    %v823 = vrot.slane %v571, 2
    %vm824 = vcmask 1041408
    %v825 = vsel %vm824, %v428, %v716
    %vm826 = vcmask 1045508
    %v827 = vsel %vm826, %v717, %v718
    %vm828 = vcmask 1043456
    %v829 = vsel %vm828, %v825, %v827
    %v830 = vsel %vm824, %v432, %v719
    %v831 = vsel %vm826, %v720, %v721
    %v832 = vsel %vm828, %v830, %v831
    %v833 = vsel %vm824, %v436, %v722
    %v834 = vsel %vm826, %v723, %v724
    %v835 = vsel %vm828, %v833, %v834
    %v836 = vsel %vm824, %v440, %v725
    %v837 = vsel %vm826, %v726, %v727
    %v838 = vsel %vm828, %v836, %v837
    %v839 = vsel %vm824, %v444, %v728
    %v840 = vsel %vm826, %v729, %v730
    %v841 = vsel %vm828, %v839, %v840
    %v842 = vsel %vm824, %v448, %v731
    %v843 = vsel %vm826, %v732, %v733
    %v844 = vsel %vm828, %v842, %v843
    %v845 = vsel %vm824, %v452, %v734
    %v846 = vsel %vm826, %v735, %v736
    %v847 = vsel %vm828, %v845, %v846
    %v848 = vsel %vm824, %v456, %v737
    %v849 = vsel %vm826, %v738, %v739
    %v850 = vsel %vm828, %v848, %v849
    %v851 = vsel %vm824, %v460, %v740
    %v852 = vsel %vm826, %v741, %v742
    %v853 = vsel %vm828, %v851, %v852
    %v854 = vsel %vm824, %v464, %v743
    %v855 = vsel %vm826, %v744, %v745
    %v856 = vsel %vm828, %v854, %v855
    %v857 = vsel %vm824, %v468, %v746
    %v858 = vsel %vm826, %v747, %v748
    %v859 = vsel %vm828, %v857, %v858
    %v860 = vsel %vm824, %v472, %v749
    %v861 = vsel %vm826, %v750, %v751
    %v862 = vsel %vm828, %v860, %v861
    %v863 = vsel %vm824, %v476, %v752
    %v864 = vsel %vm826, %v753, %v754
    %v865 = vsel %vm828, %v863, %v864
    %v866 = vsel %vm824, %v480, %v755
    %v867 = vsel %vm826, %v756, %v757
    %v868 = vsel %vm828, %v866, %v867
    %v869 = vsel %vm824, %v484, %v758
    %v870 = vsel %vm826, %v759, %v760
    %v871 = vsel %vm828, %v869, %v870
    %v872 = vsel %vm824, %v488, %v761
    %v873 = vsel %vm826, %v762, %v763
    %v874 = vsel %vm828, %v872, %v873
    %v875 = vsel %vm824, %v492, %v764
    %v876 = vsel %vm826, %v765, %v766
    %v877 = vsel %vm828, %v875, %v876
    %v878 = vsel %vm824, %v496, %v767
    %v879 = vsel %vm826, %v768, %v769
    %v880 = vsel %vm828, %v878, %v879
    %v881 = vsel %vm824, %v500, %v770
    %v882 = vsel %vm826, %v771, %v772
    %v883 = vsel %vm828, %v881, %v882
    %v884 = vsel %vm824, %v504, %v773
    %v885 = vsel %vm826, %v774, %v775
    %v886 = vsel %vm828, %v884, %v885
    %v887 = vsel %vm824, %v508, %v776
    %v888 = vsel %vm826, %v777, %v778
    %v889 = vsel %vm828, %v887, %v888
    %v890 = vsel %vm824, %v512, %v779
    %v891 = vsel %vm826, %v780, %v781
    %v892 = vsel %vm828, %v890, %v891
    %v893 = vsel %vm824, %v516, %v782
    %v894 = vsel %vm826, %v783, %v784
    %v895 = vsel %vm828, %v893, %v894
    %v896 = vsel %vm824, %v520, %v785
    %v897 = vsel %vm826, %v786, %v787
    %v898 = vsel %vm828, %v896, %v897
    %v899 = vsel %vm824, %v524, %v788
    %v900 = vsel %vm826, %v789, %v790
    %v901 = vsel %vm828, %v899, %v900
    %v902 = vsel %vm824, %v528, %v791
    %v903 = vsel %vm826, %v792, %v793
    %v904 = vsel %vm828, %v902, %v903
    %v905 = vsel %vm824, %v532, %v794
    %v906 = vsel %vm826, %v795, %v796
    %v907 = vsel %vm828, %v905, %v906
    %v908 = vsel %vm824, %v536, %v797
    %v909 = vsel %vm826, %v798, %v799
    %v910 = vsel %vm828, %v908, %v909
    %v911 = vsel %vm824, %v540, %v800
    %v912 = vsel %vm826, %v801, %v802
    %v913 = vsel %vm828, %v911, %v912
    %v914 = vsel %vm824, %v544, %v803
    %v915 = vsel %vm826, %v804, %v805
    %v916 = vsel %vm828, %v914, %v915
    %v917 = vsel %vm824, %v548, %v806
    %v918 = vsel %vm826, %v807, %v808
    %v919 = vsel %vm828, %v917, %v918
    %v920 = vsel %vm824, %v552, %v809
    %v921 = vsel %vm826, %v810, %v811
    %v922 = vsel %vm828, %v920, %v921
    %v923 = vsel %vm824, %v556, %v812
    %v924 = vsel %vm826, %v813, %v814
    %v925 = vsel %vm828, %v923, %v924
    %v926 = vsel %vm824, %v560, %v815
    %v927 = vsel %vm826, %v816, %v817
    %v928 = vsel %vm828, %v926, %v927
    %v929 = vsel %vm824, %v564, %v818
    %v930 = vsel %vm826, %v819, %v820
    %v931 = vsel %vm828, %v929, %v930
    %v932 = vsel %vm824, %v568, %v821
    %v933 = vsel %vm826, %v822, %v823
    %v934 = vsel %vm828, %v932, %v933
    %971 = vst [vmem:[#allocation2] sm:$0xff] %v829
    %972 = vst [vmem:[#allocation2 + $0x8] sm:$0xff] %v832
    %973 = vst [vmem:[#allocation2 + $0x10] sm:$0xff] %v835
    %974 = vst [vmem:[#allocation2 + $0x18] sm:$0xff] %v838
    %975 = vst [vmem:[#allocation2 + $0x20] sm:$0xff] %v841
    %976 = vst [vmem:[#allocation2 + $0x28] sm:$0xff] %v844
    %977 = vst [vmem:[#allocation2 + $0x30] sm:$0xff] %v847
    %978 = vst [vmem:[#allocation2 + $0x38] sm:$0xff] %v850
    %979 = vst [vmem:[#allocation2 + $0x40] sm:$0xff] %v853
    %980 = vst [vmem:[#allocation2 + $0x48] sm:$0xff] %v856
    %981 = vst [vmem:[#allocation2 + $0x50] sm:$0xff] %v859
    %982 = vst [vmem:[#allocation2 + $0x58] sm:$0xff] %v862
    %983 = vst [vmem:[#allocation2 + $0x60] sm:$0xff] %v865
    %984 = vst [vmem:[#allocation2 + $0x68] sm:$0xff] %v868
    %985 = vst [vmem:[#allocation2 + $0x70] sm:$0xff] %v871
    %986 = vst [vmem:[#allocation2 + $0x78] sm:$0xff] %v874
    %987 = vst [vmem:[#allocation2 + $0x80] sm:$0xff] %v877
    %988 = vst [vmem:[#allocation2 + $0x88] sm:$0xff] %v880
    %989 = vst [vmem:[#allocation2 + $0x90] sm:$0xff] %v883
    %990 = vst [vmem:[#allocation2 + $0x98] sm:$0xff] %v886
    %991 = vst [vmem:[#allocation2 + $0xa0] sm:$0xff] %v889
    %992 = vst [vmem:[#allocation2 + $0xa8] sm:$0xff] %v892
    %993 = vst [vmem:[#allocation2 + $0xb0] sm:$0xff] %v895
    %994 = vst [vmem:[#allocation2 + $0xb8] sm:$0xff] %v898
    %995 = vst [vmem:[#allocation2 + $0xc0] sm:$0xff] %v901
    %996 = vst [vmem:[#allocation2 + $0xc8] sm:$0xff] %v904
    %997 = vst [vmem:[#allocation2 + $0xd0] sm:$0xff] %v907
    %998 = vst [vmem:[#allocation2 + $0xd8] sm:$0xff] %v910
    %999 = vst [vmem:[#allocation2 + $0xe0] sm:$0xff] %v913
    %1000 = vst [vmem:[#allocation2 + $0xe8] sm:$0xff] %v916
    %1001 = vst [vmem:[#allocation2 + $0xf0] sm:$0xff] %v919
    %1002 = vst [vmem:[#allocation2 + $0xf8] sm:$0xff] %v922
    %1003 = vst [vmem:[#allocation2 + $0x100] sm:$0xff] %v925
    %1004 = vst [vmem:[#allocation2 + $0x108] sm:$0xff] %v928
    %1005 = vst [vmem:[#allocation2 + $0x110] sm:$0xff] %v931
    %1006 = vst [vmem:[#allocation2 + $0x118] sm:$0xff] %v934
    %v1007 = vld [vmem:[#allocation4] sm:$0xff]
    %v1008 = vld [vmem:[#allocation4 + $0x8] sm:$0xff]
    %v1009 = vld [vmem:[#allocation4 + $0x10] sm:$0xff]
    %v1010 = vld [vmem:[#allocation4 + $0x18] sm:$0xff]
    %v1011 = vld [vmem:[#allocation4 + $0x20] sm:$0xff]
    %v1012 = vld [vmem:[#allocation4 + $0x28] sm:$0xff]
    %v1013 = vld [vmem:[#allocation4 + $0x30] sm:$0xff]
    %v1014 = vld [vmem:[#allocation4 + $0x38] sm:$0xff]
    %v1015 = vld [vmem:[#allocation4 + $0x40] sm:$0xff]
    %v1016 = vld [vmem:[#allocation4 + $0x48] sm:$0xff]
    %v1017 = vld [vmem:[#allocation4 + $0x50] sm:$0xff]
    %v1018 = vld [vmem:[#allocation4 + $0x58] sm:$0xff]
    %v1019 = vld [vmem:[#allocation4 + $0x60] sm:$0xff]
    %v1020 = vld [vmem:[#allocation4 + $0x68] sm:$0xff]
    %v1021 = vld [vmem:[#allocation4 + $0x70] sm:$0xff]
    %v1022 = vld [vmem:[#allocation4 + $0x78] sm:$0xff]
    %v1023 = vld [vmem:[#allocation4 + $0x80] sm:$0xff]
    %v1024 = vld [vmem:[#allocation4 + $0x88] sm:$0xff]
    %v1025 = vld [vmem:[#allocation4 + $0x90] sm:$0xff]
    %v1026 = vld [vmem:[#allocation4 + $0x98] sm:$0xff]
    %v1027 = vld [vmem:[#allocation4 + $0xa0] sm:$0xff]
    %v1028 = vld [vmem:[#allocation4 + $0xa8] sm:$0xff]
    %v1029 = vld [vmem:[#allocation4 + $0xb0] sm:$0xff]
    %v1030 = vld [vmem:[#allocation4 + $0xb8] sm:$0xff]
    %v1031 = vld [vmem:[#allocation4 + $0xc0] sm:$0xff]
    %v1032 = vld [vmem:[#allocation4 + $0xc8] sm:$0xff]
    %v1033 = vld [vmem:[#allocation4 + $0xd0] sm:$0xff]
    %v1034 = vld [vmem:[#allocation4 + $0xd8] sm:$0xff]
    %v1035 = vld [vmem:[#allocation4 + $0xe0] sm:$0xff]
    %v1036 = vld [vmem:[#allocation4 + $0xe8] sm:$0xff]
    %v1037 = vld [vmem:[#allocation4 + $0xf0] sm:$0xff]
    %v1038 = vld [vmem:[#allocation4 + $0xf8] sm:$0xff]
    %v1071 = vunpack.c.l.b16 %v1007
    %v1072 = vunpack.c.h.b16 %v1007
    %v1073 = vunpack.c.l.b16 %v1008
    %v1074 = vunpack.c.h.b16 %v1008
    %v1075 = vunpack.c.l.b16 %v1009
    %v1076 = vunpack.c.h.b16 %v1009
    %v1077 = vunpack.c.l.b16 %v1010
    %v1078 = vunpack.c.h.b16 %v1010
    %v1079 = vunpack.c.l.b16 %v1011
    %v1080 = vunpack.c.h.b16 %v1011
    %v1081 = vunpack.c.l.b16 %v1012
    %v1082 = vunpack.c.h.b16 %v1012
    %v1083 = vunpack.c.l.b16 %v1013
    %v1084 = vunpack.c.h.b16 %v1013
    %v1085 = vunpack.c.l.b16 %v1014
    %v1086 = vunpack.c.h.b16 %v1014
    %v1087 = vunpack.c.l.b16 %v1015
    %v1088 = vunpack.c.h.b16 %v1015
    %v1089 = vunpack.c.l.b16 %v1016
    %v1090 = vunpack.c.h.b16 %v1016
    %v1091 = vunpack.c.l.b16 %v1017
    %v1092 = vunpack.c.h.b16 %v1017
    %v1093 = vunpack.c.l.b16 %v1018
    %v1094 = vunpack.c.h.b16 %v1018
    %v1095 = vunpack.c.l.b16 %v1019
    %v1096 = vunpack.c.h.b16 %v1019
    %v1097 = vunpack.c.l.b16 %v1020
    %v1098 = vunpack.c.h.b16 %v1020
    %v1099 = vunpack.c.l.b16 %v1021
    %v1100 = vunpack.c.h.b16 %v1021
    %v1101 = vunpack.c.l.b16 %v1022
    %v1102 = vunpack.c.h.b16 %v1022
    %v1103 = vunpack.c.l.b16 %v1023
    %v1104 = vunpack.c.h.b16 %v1023
    %v1105 = vunpack.c.l.b16 %v1024
    %v1106 = vunpack.c.h.b16 %v1024
    %v1107 = vunpack.c.l.b16 %v1025
    %v1108 = vunpack.c.h.b16 %v1025
    %v1109 = vunpack.c.l.b16 %v1026
    %v1110 = vunpack.c.h.b16 %v1026
    %v1111 = vunpack.c.l.b16 %v1027
    %v1112 = vunpack.c.h.b16 %v1027
    %v1113 = vunpack.c.l.b16 %v1028
    %v1114 = vunpack.c.h.b16 %v1028
    %v1115 = vunpack.c.l.b16 %v1029
    %v1116 = vunpack.c.h.b16 %v1029
    %v1117 = vunpack.c.l.b16 %v1030
    %v1118 = vunpack.c.h.b16 %v1030
    %v1119 = vunpack.c.l.b16 %v1031
    %v1120 = vunpack.c.h.b16 %v1031
    %v1121 = vunpack.c.l.b16 %v1032
    %v1122 = vunpack.c.h.b16 %v1032
    %v1123 = vunpack.c.l.b16 %v1033
    %v1124 = vunpack.c.h.b16 %v1033
    %v1125 = vunpack.c.l.b16 %v1034
    %v1126 = vunpack.c.h.b16 %v1034
    %v1127 = vunpack.c.l.b16 %v1035
    %v1128 = vunpack.c.h.b16 %v1035
    %v1129 = vunpack.c.l.b16 %v1036
    %v1130 = vunpack.c.h.b16 %v1036
    %v1131 = vunpack.c.l.b16 %v1037
    %v1132 = vunpack.c.h.b16 %v1037
    %v1133 = vunpack.c.l.b16 %v1038
    %v1134 = vunpack.c.h.b16 %v1038
    %v1135 = vpack.c.b16 %v1075, %v1071
    %v1136 = vpack.c.b16 %v1076, %v1072
    %v1137 = vpack.c.b16 %v1077, %v1073
    %v1138 = vpack.c.b16 %v1078, %v1074
    %v1139 = vpack.c.b16 %v1083, %v1079
    %v1140 = vpack.c.b16 %v1084, %v1080
    %v1141 = vpack.c.b16 %v1085, %v1081
    %v1142 = vpack.c.b16 %v1086, %v1082
    %v1143 = vpack.c.b16 %v1091, %v1087
    %v1144 = vpack.c.b16 %v1092, %v1088
    %v1145 = vpack.c.b16 %v1093, %v1089
    %v1146 = vpack.c.b16 %v1094, %v1090
    %v1147 = vpack.c.b16 %v1099, %v1095
    %v1148 = vpack.c.b16 %v1100, %v1096
    %v1149 = vpack.c.b16 %v1101, %v1097
    %v1150 = vpack.c.b16 %v1102, %v1098
    %v1151 = vpack.c.b16 %v1107, %v1103
    %v1152 = vpack.c.b16 %v1108, %v1104
    %v1153 = vpack.c.b16 %v1109, %v1105
    %v1154 = vpack.c.b16 %v1110, %v1106
    %v1155 = vpack.c.b16 %v1115, %v1111
    %v1156 = vpack.c.b16 %v1116, %v1112
    %v1157 = vpack.c.b16 %v1117, %v1113
    %v1158 = vpack.c.b16 %v1118, %v1114
    %v1159 = vpack.c.b16 %v1123, %v1119
    %v1160 = vpack.c.b16 %v1124, %v1120
    %v1161 = vpack.c.b16 %v1125, %v1121
    %v1162 = vpack.c.b16 %v1126, %v1122
    %v1163 = vpack.c.b16 %v1131, %v1127
    %v1164 = vpack.c.b16 %v1132, %v1128
    %v1165 = vpack.c.b16 %v1133, %v1129
    %v1166 = vpack.c.b16 %v1134, %v1130
    %1199 = vmatpush.bf16.msra.mxu0 %v1163
    %1200 = vmatpush.bf16.msra.mxu0 %v1159
    %1201 = vmatpush.bf16.msra.mxu0 %v1155
    %1202 = vmatpush.bf16.msra.mxu0 %v1151
    %1203 = vmatpush.bf16.msra.mxu0 %v1147
    %1204 = vmatpush.bf16.msra.mxu0 %v1143
    %1205 = vmatpush.bf16.msra.mxu0 %v1139
    %1206 = vmatpush.bf16.msra.mxu0 %v1135
    %1207 = vmatmul.bf16.gmra.mxu0 0
    %v1208 = vpop.f32.mrf.mxu0
    %v1209 = vadd.f32 0.0, %v1208
    %v1210 = vpop.f32.mrf.mxu0
    %1211 = vdwg.mxu0
    %1212 = vmatpush.bf16.msra.mxu0 %v1164
    %1213 = vmatpush.bf16.msra.mxu0 %v1160
    %1214 = vmatpush.bf16.msra.mxu0 %v1156
    %1215 = vmatpush.bf16.msra.mxu0 %v1152
    %1216 = vmatpush.bf16.msra.mxu0 %v1148
    %1217 = vmatpush.bf16.msra.mxu0 %v1144
    %1218 = vmatpush.bf16.msra.mxu0 %v1140
    %1219 = vmatpush.bf16.msra.mxu0 %v1136
    %1220 = vmatmul.bf16.gmra.mxu0 0
    %v1221 = vpop.f32.mrf.mxu0
    %v1222 = vadd.f32 0.0, %v1221
    %v1223 = vpop.f32.mrf.mxu0
    %1224 = vdwg.mxu0
    %1225 = vmatpush.bf16.msra.mxu0 %v1165
    %1226 = vmatpush.bf16.msra.mxu0 %v1161
    %1227 = vmatpush.bf16.msra.mxu0 %v1157
    %1228 = vmatpush.bf16.msra.mxu0 %v1153
    %1229 = vmatpush.bf16.msra.mxu0 %v1149
    %1230 = vmatpush.bf16.msra.mxu0 %v1145
    %1231 = vmatpush.bf16.msra.mxu0 %v1141
    %1232 = vmatpush.bf16.msra.mxu0 %v1137
    %1233 = vmatmul.bf16.gmra.mxu0 0
    %v1234 = vpop.f32.mrf.mxu0
    %v1235 = vadd.f32 0.0, %v1234
    %v1236 = vpop.f32.mrf.mxu0
    %1237 = vdwg.mxu0
    %1238 = vmatpush.bf16.msra.mxu0 %v1166
    %1239 = vmatpush.bf16.msra.mxu0 %v1162
    %1240 = vmatpush.bf16.msra.mxu0 %v1158
    %1241 = vmatpush.bf16.msra.mxu0 %v1154
    %1242 = vmatpush.bf16.msra.mxu0 %v1150
    %1243 = vmatpush.bf16.msra.mxu0 %v1146
    %1244 = vmatpush.bf16.msra.mxu0 %v1142
    %1245 = vmatpush.bf16.msra.mxu0 %v1138
    %1246 = vmatmul.bf16.gmra.mxu0 0
    %v1247 = vpop.f32.mrf.mxu0
    %v1248 = vadd.f32 0.0, %v1247
    %v1249 = vpop.f32.mrf.mxu0
    %1250 = vdwg.mxu0
    %v1251 = vld [vmem:[#allocation2] sm:$0xff]
    %v1256 = vrot.slane %v1222, 6
    %v1257 = vrot.slane %v1235, 4
    %v1258 = vrot.slane %v1248, 2
    %v1259 = vsel %vm824, %v1209, %v1256
    %v1260 = vsel %vm826, %v1257, %v1258
    %v1261 = vsel %vm828, %v1259, %v1260
    %v1263 = vadd.f32 %v1251, %v1261
    %v1264 = vsub.f32 0.0, %v1263
    %v1265 = vmul.f32 %v1264, 1.442695
    %v1266 = vpow.pop %v1265
    %v1267 = vadd.f32 %v1266, 1.0
    %v1268 = vrcp.pop %v1267
    %v1269 = vmul.f32 %v1267, %v1268
    %v1270 = vsub.f32 1.0, %v1269
    %v1271 = vmul.f32 %v1268, %v1270
    %v1272 = vadd.f32 %v1268, %v1271
    %vm1273 = vweird.f32 %v1267
    %vm1274 = vweird.f32 %v1268
    %vm1275 = vmor %vm1273, %vm1274
    %v1276 = vsel %vm1275, %v1268, %v1272
    %v1277 = vand.u32 2147483647, %v1267
    %vm1278 = vcmp.eq.f32.partialorder %v1277, 8.507059e+37
    %v1279 = vand.u32 %v1267, 2147483648
    %v1280 = vor.u32 1.1754944e-38, %v1279
    %v1281 = vsel %vm1278, %v1280, %v1276
    %v1282 = vmul.f32 1.0, %v1281
    %v1284 = vrot.slane %v1263, 4
    %v1286 = vtanh.pop %v1284
    %v1288 = vrot.slane %v1282, 2
    %v1290 = vmul.f32 %v1288, 0.0
    %v1291 = vmul.f32 %v1282, %v1286
    %v1292 = vadd.f32 %v1290, %v1291
    %v1293 = vrot.slane %v1263, 6
    %v1295 = vsub.f32 0.0, %v1293
    %v1296 = vmul.f32 %v1295, 1.442695
    %v1297 = vpow.pop %v1296
    %v1298 = vadd.f32 %v1297, 1.0
    %v1299 = vrcp.pop %v1298
    %v1300 = vmul.f32 %v1298, %v1299
    %v1301 = vsub.f32 1.0, %v1300
    %v1302 = vmul.f32 %v1299, %v1301
    %v1303 = vadd.f32 %v1299, %v1302
    %vm1304 = vweird.f32 %v1298
    %vm1305 = vweird.f32 %v1299
    %vm1306 = vmor %vm1304, %vm1305
    %v1307 = vsel %vm1306, %v1299, %v1303
    %v1308 = vand.u32 2147483647, %v1298
    %vm1309 = vcmp.eq.f32.partialorder %v1308, 8.507059e+37
    %v1310 = vand.u32 %v1298, 2147483648
    %v1311 = vor.u32 1.1754944e-38, %v1310
    %v1312 = vsel %vm1309, %v1311, %v1307
    %v1313 = vmul.f32 1.0, %v1312
    %v1314 = vtanh.pop %v1292
    %v1315 = vmul.f32 %v1313, %v1314
    %v1316 = vpack.c.bf16 %v1315, %v1315
    %1317 = vmatpush.bf16.msra.mxu0 %v1163
    %1318 = vmatpush.bf16.msra.mxu0 %v1159
    %1319 = vmatpush.bf16.msra.mxu0 %v1155
    %1320 = vmatpush.bf16.msra.mxu0 %v1151
    %1321 = vmatpush.bf16.msra.mxu0 %v1147
    %1322 = vmatpush.bf16.msra.mxu0 %v1143
    %1323 = vmatpush.bf16.msra.mxu0 %v1139
    %1324 = vmatpush.bf16.msra.mxu0 %v1135
    %1325 = vmatmul.bf16.gmra.mxu0 %v1316
    %v1326 = vpop.f32.mrf.mxu0
    %v1327 = vadd.f32 0.0, %v1326
    %v1328 = vpop.f32.mrf.mxu0
    %1329 = vdwg.mxu0
    %1330 = vmatpush.bf16.msra.mxu0 %v1164
    %1331 = vmatpush.bf16.msra.mxu0 %v1160
    %1332 = vmatpush.bf16.msra.mxu0 %v1156
    %1333 = vmatpush.bf16.msra.mxu0 %v1152
    %1334 = vmatpush.bf16.msra.mxu0 %v1148
    %1335 = vmatpush.bf16.msra.mxu0 %v1144
    %1336 = vmatpush.bf16.msra.mxu0 %v1140
    %1337 = vmatpush.bf16.msra.mxu0 %v1136
    %1338 = vmatmul.bf16.gmra.mxu0 %v1316
    %v1339 = vpop.f32.mrf.mxu0
    %v1340 = vadd.f32 0.0, %v1339
    %v1341 = vpop.f32.mrf.mxu0
    %1342 = vdwg.mxu0
    %1343 = vmatpush.bf16.msra.mxu0 %v1165
    %1344 = vmatpush.bf16.msra.mxu0 %v1161
    %1345 = vmatpush.bf16.msra.mxu0 %v1157
    %1346 = vmatpush.bf16.msra.mxu0 %v1153
    %1347 = vmatpush.bf16.msra.mxu0 %v1149
    %1348 = vmatpush.bf16.msra.mxu0 %v1145
    %1349 = vmatpush.bf16.msra.mxu0 %v1141
    %1350 = vmatpush.bf16.msra.mxu0 %v1137
    %1351 = vmatmul.bf16.gmra.mxu0 %v1316
    %v1352 = vpop.f32.mrf.mxu0
    %v1353 = vadd.f32 0.0, %v1352
    %v1354 = vpop.f32.mrf.mxu0
    %1355 = vdwg.mxu0
    %1356 = vmatpush.bf16.msra.mxu0 %v1166
    %1357 = vmatpush.bf16.msra.mxu0 %v1162
    %1358 = vmatpush.bf16.msra.mxu0 %v1158
    %1359 = vmatpush.bf16.msra.mxu0 %v1154
    %1360 = vmatpush.bf16.msra.mxu0 %v1150
    %1361 = vmatpush.bf16.msra.mxu0 %v1146
    %1362 = vmatpush.bf16.msra.mxu0 %v1142
    %1363 = vmatpush.bf16.msra.mxu0 %v1138
    %1364 = vmatmul.bf16.gmra.mxu0 %v1316
    %v1365 = vpop.f32.mrf.mxu0
    %v1366 = vadd.f32 0.0, %v1365
    %v1367 = vpop.f32.mrf.mxu0
    %1368 = vdwg.mxu0
    %s1369 = scalar_lea.vmem [#allocation2], 8
    %v1370 = vld [vmem:[%s1369] sm:$0xff]
    %v1375 = vrot.slane %v1340, 6
    %v1376 = vrot.slane %v1353, 4
    %v1377 = vrot.slane %v1366, 2
    %v1378 = vsel %vm824, %v1327, %v1375
    %v1379 = vsel %vm826, %v1376, %v1377
    %v1380 = vsel %vm828, %v1378, %v1379
    %v1382 = vadd.f32 %v1370, %v1380
    %v1383 = vsub.f32 0.0, %v1382
    %v1384 = vmul.f32 %v1383, 1.442695
    %v1385 = vpow.pop %v1384
    %v1386 = vadd.f32 %v1385, 1.0
    %v1387 = vrcp.pop %v1386
    %v1388 = vmul.f32 %v1386, %v1387
    %v1389 = vsub.f32 1.0, %v1388
    %v1390 = vmul.f32 %v1387, %v1389
    %v1391 = vadd.f32 %v1387, %v1390
    %vm1392 = vweird.f32 %v1386
    %vm1393 = vweird.f32 %v1387
    %vm1394 = vmor %vm1392, %vm1393
    %v1395 = vsel %vm1394, %v1387, %v1391
    %v1396 = vand.u32 2147483647, %v1386
    %vm1397 = vcmp.eq.f32.partialorder %v1396, 8.507059e+37
    %v1398 = vand.u32 %v1386, 2147483648
    %v1399 = vor.u32 1.1754944e-38, %v1398
    %v1400 = vsel %vm1397, %v1399, %v1395
    %v1401 = vmul.f32 1.0, %v1400
    %v1403 = vrot.slane %v1382, 4
    %v1405 = vtanh.pop %v1403
    %v1407 = vrot.slane %v1401, 2
    %v1409 = vmul.f32 %v1407, %v1292
    %v1410 = vmul.f32 %v1401, %v1405
    %v1411 = vadd.f32 %v1409, %v1410
    %v1412 = vrot.slane %v1382, 6
    %v1414 = vsub.f32 0.0, %v1412
    %v1415 = vmul.f32 %v1414, 1.442695
    %v1416 = vpow.pop %v1415
    %v1417 = vadd.f32 %v1416, 1.0
    %v1418 = vrcp.pop %v1417
    %v1419 = vmul.f32 %v1417, %v1418
    %v1420 = vsub.f32 1.0, %v1419
    %v1421 = vmul.f32 %v1418, %v1420
    %v1422 = vadd.f32 %v1418, %v1421
    %vm1423 = vweird.f32 %v1417
    %vm1424 = vweird.f32 %v1418
    %vm1425 = vmor %vm1423, %vm1424
    %v1426 = vsel %vm1425, %v1418, %v1422
    %v1427 = vand.u32 2147483647, %v1417
    %vm1428 = vcmp.eq.f32.partialorder %v1427, 8.507059e+37
    %v1429 = vand.u32 %v1417, 2147483648
    %v1430 = vor.u32 1.1754944e-38, %v1429
    %v1431 = vsel %vm1428, %v1430, %v1426
    %v1432 = vmul.f32 1.0, %v1431
    %v1433 = vtanh.pop %v1411
    %v1434 = vmul.f32 %v1432, %v1433
    %v1435 = vpack.c.bf16 %v1434, %v1434
    %1436 = vmatpush.bf16.msra.mxu0 %v1163
    %1437 = vmatpush.bf16.msra.mxu0 %v1159
    %1438 = vmatpush.bf16.msra.mxu0 %v1155
    %1439 = vmatpush.bf16.msra.mxu0 %v1151
    %1440 = vmatpush.bf16.msra.mxu0 %v1147
    %1441 = vmatpush.bf16.msra.mxu0 %v1143
    %1442 = vmatpush.bf16.msra.mxu0 %v1139
    %1443 = vmatpush.bf16.msra.mxu0 %v1135
    %1444 = vmatmul.bf16.gmra.mxu0 %v1435
    %v1445 = vpop.f32.mrf.mxu0
    %v1446 = vadd.f32 0.0, %v1445
    %v1447 = vpop.f32.mrf.mxu0
    %1448 = vdwg.mxu0
    %1449 = vmatpush.bf16.msra.mxu0 %v1164
    %1450 = vmatpush.bf16.msra.mxu0 %v1160
    %1451 = vmatpush.bf16.msra.mxu0 %v1156
    %1452 = vmatpush.bf16.msra.mxu0 %v1152
    %1453 = vmatpush.bf16.msra.mxu0 %v1148
    %1454 = vmatpush.bf16.msra.mxu0 %v1144
    %1455 = vmatpush.bf16.msra.mxu0 %v1140
    %1456 = vmatpush.bf16.msra.mxu0 %v1136
    %1457 = vmatmul.bf16.gmra.mxu0 %v1435
    %v1458 = vpop.f32.mrf.mxu0
    %v1459 = vadd.f32 0.0, %v1458
    %v1460 = vpop.f32.mrf.mxu0
    %1461 = vdwg.mxu0
    %1462 = vmatpush.bf16.msra.mxu0 %v1165
    %1463 = vmatpush.bf16.msra.mxu0 %v1161
    %1464 = vmatpush.bf16.msra.mxu0 %v1157
    %1465 = vmatpush.bf16.msra.mxu0 %v1153
    %1466 = vmatpush.bf16.msra.mxu0 %v1149
    %1467 = vmatpush.bf16.msra.mxu0 %v1145
    %1468 = vmatpush.bf16.msra.mxu0 %v1141
    %1469 = vmatpush.bf16.msra.mxu0 %v1137
    %1470 = vmatmul.bf16.gmra.mxu0 %v1435
    %v1471 = vpop.f32.mrf.mxu0
    %v1472 = vadd.f32 0.0, %v1471
    %v1473 = vpop.f32.mrf.mxu0
    %1474 = vdwg.mxu0
    %1475 = vmatpush.bf16.msra.mxu0 %v1166
    %1476 = vmatpush.bf16.msra.mxu0 %v1162
    %1477 = vmatpush.bf16.msra.mxu0 %v1158
    %1478 = vmatpush.bf16.msra.mxu0 %v1154
    %1479 = vmatpush.bf16.msra.mxu0 %v1150
    %1480 = vmatpush.bf16.msra.mxu0 %v1146
    %1481 = vmatpush.bf16.msra.mxu0 %v1142
    %1482 = vmatpush.bf16.msra.mxu0 %v1138
    %1483 = vmatmul.bf16.gmra.mxu0 %v1435
    %v1484 = vpop.f32.mrf.mxu0
    %v1485 = vadd.f32 0.0, %v1484
    %v1486 = vpop.f32.mrf.mxu0
    %1487 = vdwg.mxu0
    %s1488 = scalar_lea.vmem [#allocation2], 16
    %v1489 = vld [vmem:[%s1488] sm:$0xff]
    %v1494 = vrot.slane %v1459, 6
    %v1495 = vrot.slane %v1472, 4
    %v1496 = vrot.slane %v1485, 2
    %v1497 = vsel %vm824, %v1446, %v1494
    %v1498 = vsel %vm826, %v1495, %v1496
    %v1499 = vsel %vm828, %v1497, %v1498
    %v1501 = vadd.f32 %v1489, %v1499
    %v1502 = vsub.f32 0.0, %v1501
    %v1503 = vmul.f32 %v1502, 1.442695
    %v1504 = vpow.pop %v1503
    %v1505 = vadd.f32 %v1504, 1.0
    %v1506 = vrcp.pop %v1505
    %v1507 = vmul.f32 %v1505, %v1506
    %v1508 = vsub.f32 1.0, %v1507
    %v1509 = vmul.f32 %v1506, %v1508
    %v1510 = vadd.f32 %v1506, %v1509
    %vm1511 = vweird.f32 %v1505
    %vm1512 = vweird.f32 %v1506
    %vm1513 = vmor %vm1511, %vm1512
    %v1514 = vsel %vm1513, %v1506, %v1510
    %v1515 = vand.u32 2147483647, %v1505
    %vm1516 = vcmp.eq.f32.partialorder %v1515, 8.507059e+37
    %v1517 = vand.u32 %v1505, 2147483648
    %v1518 = vor.u32 1.1754944e-38, %v1517
    %v1519 = vsel %vm1516, %v1518, %v1514
    %v1520 = vmul.f32 1.0, %v1519
    %v1522 = vrot.slane %v1501, 4
    %v1524 = vtanh.pop %v1522
    %v1526 = vrot.slane %v1520, 2
    %v1528 = vmul.f32 %v1526, %v1411
    %v1529 = vmul.f32 %v1520, %v1524
    %v1530 = vadd.f32 %v1528, %v1529
    %v1531 = vrot.slane %v1501, 6
    %v1533 = vsub.f32 0.0, %v1531
    %v1534 = vmul.f32 %v1533, 1.442695
    %v1535 = vpow.pop %v1534
    %v1536 = vadd.f32 %v1535, 1.0
    %v1537 = vrcp.pop %v1536
    %v1538 = vmul.f32 %v1536, %v1537
    %v1539 = vsub.f32 1.0, %v1538
    %v1540 = vmul.f32 %v1537, %v1539
    %v1541 = vadd.f32 %v1537, %v1540
    %vm1542 = vweird.f32 %v1536
    %vm1543 = vweird.f32 %v1537
    %vm1544 = vmor %vm1542, %vm1543
    %v1545 = vsel %vm1544, %v1537, %v1541
    %v1546 = vand.u32 2147483647, %v1536
    %vm1547 = vcmp.eq.f32.partialorder %v1546, 8.507059e+37
    %v1548 = vand.u32 %v1536, 2147483648
    %v1549 = vor.u32 1.1754944e-38, %v1548
    %v1550 = vsel %vm1547, %v1549, %v1545
    %v1551 = vmul.f32 1.0, %v1550
    %v1552 = vtanh.pop %v1530
    %v1553 = vmul.f32 %v1551, %v1552
    %v1554 = vpack.c.bf16 %v1553, %v1553
    %1555 = vmatpush.bf16.msra.mxu0 %v1163
    %1556 = vmatpush.bf16.msra.mxu0 %v1159
    %1557 = vmatpush.bf16.msra.mxu0 %v1155
    %1558 = vmatpush.bf16.msra.mxu0 %v1151
    %1559 = vmatpush.bf16.msra.mxu0 %v1147
    %1560 = vmatpush.bf16.msra.mxu0 %v1143
    %1561 = vmatpush.bf16.msra.mxu0 %v1139
    %1562 = vmatpush.bf16.msra.mxu0 %v1135
    %1563 = vmatmul.bf16.gmra.mxu0 %v1554
    %v1564 = vpop.f32.mrf.mxu0
    %v1565 = vadd.f32 0.0, %v1564
    %v1566 = vpop.f32.mrf.mxu0
    %1567 = vdwg.mxu0
    %1568 = vmatpush.bf16.msra.mxu0 %v1164
    %1569 = vmatpush.bf16.msra.mxu0 %v1160
    %1570 = vmatpush.bf16.msra.mxu0 %v1156
    %1571 = vmatpush.bf16.msra.mxu0 %v1152
    %1572 = vmatpush.bf16.msra.mxu0 %v1148
    %1573 = vmatpush.bf16.msra.mxu0 %v1144
    %1574 = vmatpush.bf16.msra.mxu0 %v1140
    %1575 = vmatpush.bf16.msra.mxu0 %v1136
    %1576 = vmatmul.bf16.gmra.mxu0 %v1554
    %v1577 = vpop.f32.mrf.mxu0
    %v1578 = vadd.f32 0.0, %v1577
    %v1579 = vpop.f32.mrf.mxu0
    %1580 = vdwg.mxu0
    %1581 = vmatpush.bf16.msra.mxu0 %v1165
    %1582 = vmatpush.bf16.msra.mxu0 %v1161
    %1583 = vmatpush.bf16.msra.mxu0 %v1157
    %1584 = vmatpush.bf16.msra.mxu0 %v1153
    %1585 = vmatpush.bf16.msra.mxu0 %v1149
    %1586 = vmatpush.bf16.msra.mxu0 %v1145
    %1587 = vmatpush.bf16.msra.mxu0 %v1141
    %1588 = vmatpush.bf16.msra.mxu0 %v1137
    %1589 = vmatmul.bf16.gmra.mxu0 %v1554
    %v1590 = vpop.f32.mrf.mxu0
    %v1591 = vadd.f32 0.0, %v1590
    %v1592 = vpop.f32.mrf.mxu0
    %1593 = vdwg.mxu0
    %1594 = vmatpush.bf16.msra.mxu0 %v1166
    %1595 = vmatpush.bf16.msra.mxu0 %v1162
    %1596 = vmatpush.bf16.msra.mxu0 %v1158
    %1597 = vmatpush.bf16.msra.mxu0 %v1154
    %1598 = vmatpush.bf16.msra.mxu0 %v1150
    %1599 = vmatpush.bf16.msra.mxu0 %v1146
    %1600 = vmatpush.bf16.msra.mxu0 %v1142
    %1601 = vmatpush.bf16.msra.mxu0 %v1138
    %1602 = vmatmul.bf16.gmra.mxu0 %v1554
    %v1603 = vpop.f32.mrf.mxu0
    %v1604 = vadd.f32 0.0, %v1603
    %v1605 = vpop.f32.mrf.mxu0
    %1606 = vdwg.mxu0
    %s1607 = scalar_lea.vmem [#allocation2], 24
    %v1608 = vld [vmem:[%s1607] sm:$0xff]
    %v1613 = vrot.slane %v1578, 6
    %v1614 = vrot.slane %v1591, 4
    %v1615 = vrot.slane %v1604, 2
    %v1616 = vsel %vm824, %v1565, %v1613
    %v1617 = vsel %vm826, %v1614, %v1615
    %v1618 = vsel %vm828, %v1616, %v1617
    %v1620 = vadd.f32 %v1608, %v1618
    %v1621 = vsub.f32 0.0, %v1620
    %v1622 = vmul.f32 %v1621, 1.442695
    %v1623 = vpow.pop %v1622
    %v1624 = vadd.f32 %v1623, 1.0
    %v1625 = vrcp.pop %v1624
    %v1626 = vmul.f32 %v1624, %v1625
    %v1627 = vsub.f32 1.0, %v1626
    %v1628 = vmul.f32 %v1625, %v1627
    %v1629 = vadd.f32 %v1625, %v1628
    %vm1630 = vweird.f32 %v1624
    %vm1631 = vweird.f32 %v1625
    %vm1632 = vmor %vm1630, %vm1631
    %v1633 = vsel %vm1632, %v1625, %v1629
    %v1634 = vand.u32 2147483647, %v1624
    %vm1635 = vcmp.eq.f32.partialorder %v1634, 8.507059e+37
    %v1636 = vand.u32 %v1624, 2147483648
    %v1637 = vor.u32 1.1754944e-38, %v1636
    %v1638 = vsel %vm1635, %v1637, %v1633
    %v1639 = vmul.f32 1.0, %v1638
    %v1641 = vrot.slane %v1620, 4
    %v1643 = vtanh.pop %v1641
    %v1645 = vrot.slane %v1639, 2
    %v1647 = vmul.f32 %v1645, %v1530
    %v1648 = vmul.f32 %v1639, %v1643
    %v1649 = vadd.f32 %v1647, %v1648
    %v1650 = vrot.slane %v1620, 6
    %v1652 = vsub.f32 0.0, %v1650
    %v1653 = vmul.f32 %v1652, 1.442695
    %v1654 = vpow.pop %v1653
    %v1655 = vadd.f32 %v1654, 1.0
    %v1656 = vrcp.pop %v1655
    %v1657 = vmul.f32 %v1655, %v1656
    %v1658 = vsub.f32 1.0, %v1657
    %v1659 = vmul.f32 %v1656, %v1658
    %v1660 = vadd.f32 %v1656, %v1659
    %vm1661 = vweird.f32 %v1655
    %vm1662 = vweird.f32 %v1656
    %vm1663 = vmor %vm1661, %vm1662
    %v1664 = vsel %vm1663, %v1656, %v1660
    %v1665 = vand.u32 2147483647, %v1655
    %vm1666 = vcmp.eq.f32.partialorder %v1665, 8.507059e+37
    %v1667 = vand.u32 %v1655, 2147483648
    %v1668 = vor.u32 1.1754944e-38, %v1667
    %v1669 = vsel %vm1666, %v1668, %v1664
    %v1670 = vmul.f32 1.0, %v1669
    %v1671 = vtanh.pop %v1649
    %v1672 = vmul.f32 %v1670, %v1671
    %v1673 = vpack.c.bf16 %v1672, %v1672
    %1674 = vmatpush.bf16.msra.mxu0 %v1163
    %1675 = vmatpush.bf16.msra.mxu0 %v1159
    %1676 = vmatpush.bf16.msra.mxu0 %v1155
    %1677 = vmatpush.bf16.msra.mxu0 %v1151
    %1678 = vmatpush.bf16.msra.mxu0 %v1147
    %1679 = vmatpush.bf16.msra.mxu0 %v1143
    %1680 = vmatpush.bf16.msra.mxu0 %v1139
    %1681 = vmatpush.bf16.msra.mxu0 %v1135
    %1682 = vmatmul.bf16.gmra.mxu0 %v1673
    %v1683 = vpop.f32.mrf.mxu0
    %v1684 = vadd.f32 0.0, %v1683
    %v1685 = vpop.f32.mrf.mxu0
    %1686 = vdwg.mxu0
    %1687 = vmatpush.bf16.msra.mxu0 %v1164
    %1688 = vmatpush.bf16.msra.mxu0 %v1160
    %1689 = vmatpush.bf16.msra.mxu0 %v1156
    %1690 = vmatpush.bf16.msra.mxu0 %v1152
    %1691 = vmatpush.bf16.msra.mxu0 %v1148
    %1692 = vmatpush.bf16.msra.mxu0 %v1144
    %1693 = vmatpush.bf16.msra.mxu0 %v1140
    %1694 = vmatpush.bf16.msra.mxu0 %v1136
    %1695 = vmatmul.bf16.gmra.mxu0 %v1673
    %v1696 = vpop.f32.mrf.mxu0
    %v1697 = vadd.f32 0.0, %v1696
    %v1698 = vpop.f32.mrf.mxu0
    %1699 = vdwg.mxu0
    %1700 = vmatpush.bf16.msra.mxu0 %v1165
    %1701 = vmatpush.bf16.msra.mxu0 %v1161
    %1702 = vmatpush.bf16.msra.mxu0 %v1157
    %1703 = vmatpush.bf16.msra.mxu0 %v1153
    %1704 = vmatpush.bf16.msra.mxu0 %v1149
    %1705 = vmatpush.bf16.msra.mxu0 %v1145
    %1706 = vmatpush.bf16.msra.mxu0 %v1141
    %1707 = vmatpush.bf16.msra.mxu0 %v1137
    %1708 = vmatmul.bf16.gmra.mxu0 %v1673
    %v1709 = vpop.f32.mrf.mxu0
    %v1710 = vadd.f32 0.0, %v1709
    %v1711 = vpop.f32.mrf.mxu0
    %1712 = vdwg.mxu0
    %1713 = vmatpush.bf16.msra.mxu0 %v1166
    %1714 = vmatpush.bf16.msra.mxu0 %v1162
    %1715 = vmatpush.bf16.msra.mxu0 %v1158
    %1716 = vmatpush.bf16.msra.mxu0 %v1154
    %1717 = vmatpush.bf16.msra.mxu0 %v1150
    %1718 = vmatpush.bf16.msra.mxu0 %v1146
    %1719 = vmatpush.bf16.msra.mxu0 %v1142
    %1720 = vmatpush.bf16.msra.mxu0 %v1138
    %1721 = vmatmul.bf16.gmra.mxu0 %v1673
    %v1722 = vpop.f32.mrf.mxu0
    %v1723 = vadd.f32 0.0, %v1722
    %v1724 = vpop.f32.mrf.mxu0
    %1725 = vdwg.mxu0
    %s1726 = scalar_lea.vmem [#allocation2], 32
    %v1727 = vld [vmem:[%s1726] sm:$0xff]
    %v1732 = vrot.slane %v1697, 6
    %v1733 = vrot.slane %v1710, 4
    %v1734 = vrot.slane %v1723, 2
    %v1735 = vsel %vm824, %v1684, %v1732
    %v1736 = vsel %vm826, %v1733, %v1734
    %v1737 = vsel %vm828, %v1735, %v1736
    %v1739 = vadd.f32 %v1727, %v1737
    %v1740 = vsub.f32 0.0, %v1739
    %v1741 = vmul.f32 %v1740, 1.442695
    %v1742 = vpow.pop %v1741
    %v1743 = vadd.f32 %v1742, 1.0
    %v1744 = vrcp.pop %v1743
    %v1745 = vmul.f32 %v1743, %v1744
    %v1746 = vsub.f32 1.0, %v1745
    %v1747 = vmul.f32 %v1744, %v1746
    %v1748 = vadd.f32 %v1744, %v1747
    %vm1749 = vweird.f32 %v1743
    %vm1750 = vweird.f32 %v1744
    %vm1751 = vmor %vm1749, %vm1750
    %v1752 = vsel %vm1751, %v1744, %v1748
    %v1753 = vand.u32 2147483647, %v1743
    %vm1754 = vcmp.eq.f32.partialorder %v1753, 8.507059e+37
    %v1755 = vand.u32 %v1743, 2147483648
    %v1756 = vor.u32 1.1754944e-38, %v1755
    %v1757 = vsel %vm1754, %v1756, %v1752
    %v1758 = vmul.f32 1.0, %v1757
    %v1760 = vrot.slane %v1739, 4
    %v1762 = vtanh.pop %v1760
    %v1764 = vrot.slane %v1758, 2
    %v1766 = vmul.f32 %v1764, %v1649
    %v1767 = vmul.f32 %v1758, %v1762
    %v1768 = vadd.f32 %v1766, %v1767
    %v1769 = vrot.slane %v1739, 6
    %v1771 = vsub.f32 0.0, %v1769
    %v1772 = vmul.f32 %v1771, 1.442695
    %v1773 = vpow.pop %v1772
    %v1774 = vadd.f32 %v1773, 1.0
    %v1775 = vrcp.pop %v1774
    %v1776 = vmul.f32 %v1774, %v1775
    %v1777 = vsub.f32 1.0, %v1776
    %v1778 = vmul.f32 %v1775, %v1777
    %v1779 = vadd.f32 %v1775, %v1778
    %vm1780 = vweird.f32 %v1774
    %vm1781 = vweird.f32 %v1775
    %vm1782 = vmor %vm1780, %vm1781
    %v1783 = vsel %vm1782, %v1775, %v1779
    %v1784 = vand.u32 2147483647, %v1774
    %vm1785 = vcmp.eq.f32.partialorder %v1784, 8.507059e+37
    %v1786 = vand.u32 %v1774, 2147483648
    %v1787 = vor.u32 1.1754944e-38, %v1786
    %v1788 = vsel %vm1785, %v1787, %v1783
    %v1789 = vmul.f32 1.0, %v1788
    %v1790 = vtanh.pop %v1768
    %v1791 = vmul.f32 %v1789, %v1790
    %v1792 = vpack.c.bf16 %v1791, %v1791
    %1793 = vmatpush.bf16.msra.mxu0 %v1163
    %1794 = vmatpush.bf16.msra.mxu0 %v1159
    %1795 = vmatpush.bf16.msra.mxu0 %v1155
    %1796 = vmatpush.bf16.msra.mxu0 %v1151
    %1797 = vmatpush.bf16.msra.mxu0 %v1147
    %1798 = vmatpush.bf16.msra.mxu0 %v1143
    %1799 = vmatpush.bf16.msra.mxu0 %v1139
    %1800 = vmatpush.bf16.msra.mxu0 %v1135
    %1801 = vmatmul.bf16.gmra.mxu0 %v1792
    %v1802 = vpop.f32.mrf.mxu0
    %v1803 = vadd.f32 0.0, %v1802
    %v1804 = vpop.f32.mrf.mxu0
    %1805 = vdwg.mxu0
    %1806 = vmatpush.bf16.msra.mxu0 %v1164
    %1807 = vmatpush.bf16.msra.mxu0 %v1160
    %1808 = vmatpush.bf16.msra.mxu0 %v1156
    %1809 = vmatpush.bf16.msra.mxu0 %v1152
    %1810 = vmatpush.bf16.msra.mxu0 %v1148
    %1811 = vmatpush.bf16.msra.mxu0 %v1144
    %1812 = vmatpush.bf16.msra.mxu0 %v1140
    %1813 = vmatpush.bf16.msra.mxu0 %v1136
    %1814 = vmatmul.bf16.gmra.mxu0 %v1792
    %v1815 = vpop.f32.mrf.mxu0
    %v1816 = vadd.f32 0.0, %v1815
    %v1817 = vpop.f32.mrf.mxu0
    %1818 = vdwg.mxu0
    %1819 = vmatpush.bf16.msra.mxu0 %v1165
    %1820 = vmatpush.bf16.msra.mxu0 %v1161
    %1821 = vmatpush.bf16.msra.mxu0 %v1157
    %1822 = vmatpush.bf16.msra.mxu0 %v1153
    %1823 = vmatpush.bf16.msra.mxu0 %v1149
    %1824 = vmatpush.bf16.msra.mxu0 %v1145
    %1825 = vmatpush.bf16.msra.mxu0 %v1141
    %1826 = vmatpush.bf16.msra.mxu0 %v1137
    %1827 = vmatmul.bf16.gmra.mxu0 %v1792
    %v1828 = vpop.f32.mrf.mxu0
    %v1829 = vadd.f32 0.0, %v1828
    %v1830 = vpop.f32.mrf.mxu0
    %1831 = vdwg.mxu0
    %1832 = vmatpush.bf16.msra.mxu0 %v1166
    %1833 = vmatpush.bf16.msra.mxu0 %v1162
    %1834 = vmatpush.bf16.msra.mxu0 %v1158
    %1835 = vmatpush.bf16.msra.mxu0 %v1154
    %1836 = vmatpush.bf16.msra.mxu0 %v1150
    %1837 = vmatpush.bf16.msra.mxu0 %v1146
    %1838 = vmatpush.bf16.msra.mxu0 %v1142
    %1839 = vmatpush.bf16.msra.mxu0 %v1138
    %1840 = vmatmul.bf16.gmra.mxu0 %v1792
    %v1841 = vpop.f32.mrf.mxu0
    %v1842 = vadd.f32 0.0, %v1841
    %v1843 = vpop.f32.mrf.mxu0
    %1844 = vdwg.mxu0
    %s1845 = scalar_lea.vmem [#allocation2], 40
    %v1846 = vld [vmem:[%s1845] sm:$0xff]
    %v1851 = vrot.slane %v1816, 6
    %v1852 = vrot.slane %v1829, 4
    %v1853 = vrot.slane %v1842, 2
    %v1854 = vsel %vm824, %v1803, %v1851
    %v1855 = vsel %vm826, %v1852, %v1853
    %v1856 = vsel %vm828, %v1854, %v1855
    %v1858 = vadd.f32 %v1846, %v1856
    %v1859 = vsub.f32 0.0, %v1858
    %v1860 = vmul.f32 %v1859, 1.442695
    %v1861 = vpow.pop %v1860
    %v1862 = vadd.f32 %v1861, 1.0
    %v1863 = vrcp.pop %v1862
    %v1864 = vmul.f32 %v1862, %v1863
    %v1865 = vsub.f32 1.0, %v1864
    %v1866 = vmul.f32 %v1863, %v1865
    %v1867 = vadd.f32 %v1863, %v1866
    %vm1868 = vweird.f32 %v1862
    %vm1869 = vweird.f32 %v1863
    %vm1870 = vmor %vm1868, %vm1869
    %v1871 = vsel %vm1870, %v1863, %v1867
    %v1872 = vand.u32 2147483647, %v1862
    %vm1873 = vcmp.eq.f32.partialorder %v1872, 8.507059e+37
    %v1874 = vand.u32 %v1862, 2147483648
    %v1875 = vor.u32 1.1754944e-38, %v1874
    %v1876 = vsel %vm1873, %v1875, %v1871
    %v1877 = vmul.f32 1.0, %v1876
    %v1879 = vrot.slane %v1858, 4
    %v1881 = vtanh.pop %v1879
    %v1883 = vrot.slane %v1877, 2
    %v1885 = vmul.f32 %v1883, %v1768
    %v1886 = vmul.f32 %v1877, %v1881
    %v1887 = vadd.f32 %v1885, %v1886
    %v1888 = vrot.slane %v1858, 6
    %v1890 = vsub.f32 0.0, %v1888
    %v1891 = vmul.f32 %v1890, 1.442695
    %v1892 = vpow.pop %v1891
    %v1893 = vadd.f32 %v1892, 1.0
    %v1894 = vrcp.pop %v1893
    %v1895 = vmul.f32 %v1893, %v1894
    %v1896 = vsub.f32 1.0, %v1895
    %v1897 = vmul.f32 %v1894, %v1896
    %v1898 = vadd.f32 %v1894, %v1897
    %vm1899 = vweird.f32 %v1893
    %vm1900 = vweird.f32 %v1894
    %vm1901 = vmor %vm1899, %vm1900
    %v1902 = vsel %vm1901, %v1894, %v1898
    %v1903 = vand.u32 2147483647, %v1893
    %vm1904 = vcmp.eq.f32.partialorder %v1903, 8.507059e+37
    %v1905 = vand.u32 %v1893, 2147483648
    %v1906 = vor.u32 1.1754944e-38, %v1905
    %v1907 = vsel %vm1904, %v1906, %v1902
    %v1908 = vmul.f32 1.0, %v1907
    %v1909 = vtanh.pop %v1887
    %v1910 = vmul.f32 %v1908, %v1909
    %v1911 = vpack.c.bf16 %v1910, %v1910
    %1912 = vmatpush.bf16.msra.mxu0 %v1163
    %1913 = vmatpush.bf16.msra.mxu0 %v1159
    %1914 = vmatpush.bf16.msra.mxu0 %v1155
    %1915 = vmatpush.bf16.msra.mxu0 %v1151
    %1916 = vmatpush.bf16.msra.mxu0 %v1147
    %1917 = vmatpush.bf16.msra.mxu0 %v1143
    %1918 = vmatpush.bf16.msra.mxu0 %v1139
    %1919 = vmatpush.bf16.msra.mxu0 %v1135
    %1920 = vmatmul.bf16.gmra.mxu0 %v1911
    %v1921 = vpop.f32.mrf.mxu0
    %v1922 = vadd.f32 0.0, %v1921
    %v1923 = vpop.f32.mrf.mxu0
    %1924 = vdwg.mxu0
    %1925 = vmatpush.bf16.msra.mxu0 %v1164
    %1926 = vmatpush.bf16.msra.mxu0 %v1160
    %1927 = vmatpush.bf16.msra.mxu0 %v1156
    %1928 = vmatpush.bf16.msra.mxu0 %v1152
    %1929 = vmatpush.bf16.msra.mxu0 %v1148
    %1930 = vmatpush.bf16.msra.mxu0 %v1144
    %1931 = vmatpush.bf16.msra.mxu0 %v1140
    %1932 = vmatpush.bf16.msra.mxu0 %v1136
    %1933 = vmatmul.bf16.gmra.mxu0 %v1911
    %v1934 = vpop.f32.mrf.mxu0
    %v1935 = vadd.f32 0.0, %v1934
    %v1936 = vpop.f32.mrf.mxu0
    %1937 = vdwg.mxu0
    %1938 = vmatpush.bf16.msra.mxu0 %v1165
    %1939 = vmatpush.bf16.msra.mxu0 %v1161
    %1940 = vmatpush.bf16.msra.mxu0 %v1157
    %1941 = vmatpush.bf16.msra.mxu0 %v1153
    %1942 = vmatpush.bf16.msra.mxu0 %v1149
    %1943 = vmatpush.bf16.msra.mxu0 %v1145
    %1944 = vmatpush.bf16.msra.mxu0 %v1141
    %1945 = vmatpush.bf16.msra.mxu0 %v1137
    %1946 = vmatmul.bf16.gmra.mxu0 %v1911
    %v1947 = vpop.f32.mrf.mxu0
    %v1948 = vadd.f32 0.0, %v1947
    %v1949 = vpop.f32.mrf.mxu0
    %1950 = vdwg.mxu0
    %1951 = vmatpush.bf16.msra.mxu0 %v1166
    %1952 = vmatpush.bf16.msra.mxu0 %v1162
    %1953 = vmatpush.bf16.msra.mxu0 %v1158
    %1954 = vmatpush.bf16.msra.mxu0 %v1154
    %1955 = vmatpush.bf16.msra.mxu0 %v1150
    %1956 = vmatpush.bf16.msra.mxu0 %v1146
    %1957 = vmatpush.bf16.msra.mxu0 %v1142
    %1958 = vmatpush.bf16.msra.mxu0 %v1138
    %1959 = vmatmul.bf16.gmra.mxu0 %v1911
    %v1960 = vpop.f32.mrf.mxu0
    %v1961 = vadd.f32 0.0, %v1960
    %v1962 = vpop.f32.mrf.mxu0
    %1963 = vdwg.mxu0
    %s1964 = scalar_lea.vmem [#allocation2], 48
    %v1965 = vld [vmem:[%s1964] sm:$0xff]
    %v1970 = vrot.slane %v1935, 6
    %v1971 = vrot.slane %v1948, 4
    %v1972 = vrot.slane %v1961, 2
    %v1973 = vsel %vm824, %v1922, %v1970
    %v1974 = vsel %vm826, %v1971, %v1972
    %v1975 = vsel %vm828, %v1973, %v1974
    %v1977 = vadd.f32 %v1965, %v1975
    %v1978 = vsub.f32 0.0, %v1977
    %v1979 = vmul.f32 %v1978, 1.442695
    %v1980 = vpow.pop %v1979
    %v1981 = vadd.f32 %v1980, 1.0
    %v1982 = vrcp.pop %v1981
    %v1983 = vmul.f32 %v1981, %v1982
    %v1984 = vsub.f32 1.0, %v1983
    %v1985 = vmul.f32 %v1982, %v1984
    %v1986 = vadd.f32 %v1982, %v1985
    %vm1987 = vweird.f32 %v1981
    %vm1988 = vweird.f32 %v1982
    %vm1989 = vmor %vm1987, %vm1988
    %v1990 = vsel %vm1989, %v1982, %v1986
    %v1991 = vand.u32 2147483647, %v1981
    %vm1992 = vcmp.eq.f32.partialorder %v1991, 8.507059e+37
    %v1993 = vand.u32 %v1981, 2147483648
    %v1994 = vor.u32 1.1754944e-38, %v1993
    %v1995 = vsel %vm1992, %v1994, %v1990
    %v1996 = vmul.f32 1.0, %v1995
    %v1998 = vrot.slane %v1977, 4
    %v2000 = vtanh.pop %v1998
    %v2002 = vrot.slane %v1996, 2
    %v2004 = vmul.f32 %v2002, %v1887
    %v2005 = vmul.f32 %v1996, %v2000
    %v2006 = vadd.f32 %v2004, %v2005
    %v2007 = vrot.slane %v1977, 6
    %v2009 = vsub.f32 0.0, %v2007
    %v2010 = vmul.f32 %v2009, 1.442695
    %v2011 = vpow.pop %v2010
    %v2012 = vadd.f32 %v2011, 1.0
    %v2013 = vrcp.pop %v2012
    %v2014 = vmul.f32 %v2012, %v2013
    %v2015 = vsub.f32 1.0, %v2014
    %v2016 = vmul.f32 %v2013, %v2015
    %v2017 = vadd.f32 %v2013, %v2016
    %vm2018 = vweird.f32 %v2012
    %vm2019 = vweird.f32 %v2013
    %vm2020 = vmor %vm2018, %vm2019
    %v2021 = vsel %vm2020, %v2013, %v2017
    %v2022 = vand.u32 2147483647, %v2012
    %vm2023 = vcmp.eq.f32.partialorder %v2022, 8.507059e+37
    %v2024 = vand.u32 %v2012, 2147483648
    %v2025 = vor.u32 1.1754944e-38, %v2024
    %v2026 = vsel %vm2023, %v2025, %v2021
    %v2027 = vmul.f32 1.0, %v2026
    %v2028 = vtanh.pop %v2006
    %v2029 = vmul.f32 %v2027, %v2028
    %v2030 = vpack.c.bf16 %v2029, %v2029
    %2031 = vmatpush.bf16.msra.mxu0 %v1163
    %2032 = vmatpush.bf16.msra.mxu0 %v1159
    %2033 = vmatpush.bf16.msra.mxu0 %v1155
    %2034 = vmatpush.bf16.msra.mxu0 %v1151
    %2035 = vmatpush.bf16.msra.mxu0 %v1147
    %2036 = vmatpush.bf16.msra.mxu0 %v1143
    %2037 = vmatpush.bf16.msra.mxu0 %v1139
    %2038 = vmatpush.bf16.msra.mxu0 %v1135
    %2039 = vmatmul.bf16.gmra.mxu0 %v2030
    %v2040 = vpop.f32.mrf.mxu0
    %v2041 = vadd.f32 0.0, %v2040
    %v2042 = vpop.f32.mrf.mxu0
    %2043 = vdwg.mxu0
    %2044 = vmatpush.bf16.msra.mxu0 %v1164
    %2045 = vmatpush.bf16.msra.mxu0 %v1160
    %2046 = vmatpush.bf16.msra.mxu0 %v1156
    %2047 = vmatpush.bf16.msra.mxu0 %v1152
    %2048 = vmatpush.bf16.msra.mxu0 %v1148
    %2049 = vmatpush.bf16.msra.mxu0 %v1144
    %2050 = vmatpush.bf16.msra.mxu0 %v1140
    %2051 = vmatpush.bf16.msra.mxu0 %v1136
    %2052 = vmatmul.bf16.gmra.mxu0 %v2030
    %v2053 = vpop.f32.mrf.mxu0
    %v2054 = vadd.f32 0.0, %v2053
    %v2055 = vpop.f32.mrf.mxu0
    %2056 = vdwg.mxu0
    %2057 = vmatpush.bf16.msra.mxu0 %v1165
    %2058 = vmatpush.bf16.msra.mxu0 %v1161
    %2059 = vmatpush.bf16.msra.mxu0 %v1157
    %2060 = vmatpush.bf16.msra.mxu0 %v1153
    %2061 = vmatpush.bf16.msra.mxu0 %v1149
    %2062 = vmatpush.bf16.msra.mxu0 %v1145
    %2063 = vmatpush.bf16.msra.mxu0 %v1141
    %2064 = vmatpush.bf16.msra.mxu0 %v1137
    %2065 = vmatmul.bf16.gmra.mxu0 %v2030
    %v2066 = vpop.f32.mrf.mxu0
    %v2067 = vadd.f32 0.0, %v2066
    %v2068 = vpop.f32.mrf.mxu0
    %2069 = vdwg.mxu0
    %2070 = vmatpush.bf16.msra.mxu0 %v1166
    %2071 = vmatpush.bf16.msra.mxu0 %v1162
    %2072 = vmatpush.bf16.msra.mxu0 %v1158
    %2073 = vmatpush.bf16.msra.mxu0 %v1154
    %2074 = vmatpush.bf16.msra.mxu0 %v1150
    %2075 = vmatpush.bf16.msra.mxu0 %v1146
    %2076 = vmatpush.bf16.msra.mxu0 %v1142
    %2077 = vmatpush.bf16.msra.mxu0 %v1138
    %2078 = vmatmul.bf16.gmra.mxu0 %v2030
    %v2079 = vpop.f32.mrf.mxu0
    %v2080 = vadd.f32 0.0, %v2079
    %v2081 = vpop.f32.mrf.mxu0
    %2082 = vdwg.mxu0
    %s2083 = scalar_lea.vmem [#allocation2], 56
    %v2084 = vld [vmem:[%s2083] sm:$0xff]
    %v2089 = vrot.slane %v2054, 6
    %v2090 = vrot.slane %v2067, 4
    %v2091 = vrot.slane %v2080, 2
    %v2092 = vsel %vm824, %v2041, %v2089
    %v2093 = vsel %vm826, %v2090, %v2091
    %v2094 = vsel %vm828, %v2092, %v2093
    %v2096 = vadd.f32 %v2084, %v2094
    %v2097 = vsub.f32 0.0, %v2096
    %v2098 = vmul.f32 %v2097, 1.442695
    %v2099 = vpow.pop %v2098
    %v2100 = vadd.f32 %v2099, 1.0
    %v2101 = vrcp.pop %v2100
    %v2102 = vmul.f32 %v2100, %v2101
    %v2103 = vsub.f32 1.0, %v2102
    %v2104 = vmul.f32 %v2101, %v2103
    %v2105 = vadd.f32 %v2101, %v2104
    %vm2106 = vweird.f32 %v2100
    %vm2107 = vweird.f32 %v2101
    %vm2108 = vmor %vm2106, %vm2107
    %v2109 = vsel %vm2108, %v2101, %v2105
    %v2110 = vand.u32 2147483647, %v2100
    %vm2111 = vcmp.eq.f32.partialorder %v2110, 8.507059e+37
    %v2112 = vand.u32 %v2100, 2147483648
    %v2113 = vor.u32 1.1754944e-38, %v2112
    %v2114 = vsel %vm2111, %v2113, %v2109
    %v2115 = vmul.f32 1.0, %v2114
    %v2117 = vrot.slane %v2096, 4
    %v2119 = vtanh.pop %v2117
    %v2121 = vrot.slane %v2115, 2
    %v2123 = vmul.f32 %v2121, %v2006
    %v2124 = vmul.f32 %v2115, %v2119
    %v2125 = vadd.f32 %v2123, %v2124
    %v2126 = vrot.slane %v2096, 6
    %v2128 = vsub.f32 0.0, %v2126
    %v2129 = vmul.f32 %v2128, 1.442695
    %v2130 = vpow.pop %v2129
    %v2131 = vadd.f32 %v2130, 1.0
    %v2132 = vrcp.pop %v2131
    %v2133 = vmul.f32 %v2131, %v2132
    %v2134 = vsub.f32 1.0, %v2133
    %v2135 = vmul.f32 %v2132, %v2134
    %v2136 = vadd.f32 %v2132, %v2135
    %vm2137 = vweird.f32 %v2131
    %vm2138 = vweird.f32 %v2132
    %vm2139 = vmor %vm2137, %vm2138
    %v2140 = vsel %vm2139, %v2132, %v2136
    %v2141 = vand.u32 2147483647, %v2131
    %vm2142 = vcmp.eq.f32.partialorder %v2141, 8.507059e+37
    %v2143 = vand.u32 %v2131, 2147483648
    %v2144 = vor.u32 1.1754944e-38, %v2143
    %v2145 = vsel %vm2142, %v2144, %v2140
    %v2146 = vmul.f32 1.0, %v2145
    %v2147 = vtanh.pop %v2125
    %v2148 = vmul.f32 %v2146, %v2147
    %v2149 = vpack.c.bf16 %v2148, %v2148
    %2150 = vmatpush.bf16.msra.mxu0 %v1163
    %2151 = vmatpush.bf16.msra.mxu0 %v1159
    %2152 = vmatpush.bf16.msra.mxu0 %v1155
    %2153 = vmatpush.bf16.msra.mxu0 %v1151
    %2154 = vmatpush.bf16.msra.mxu0 %v1147
    %2155 = vmatpush.bf16.msra.mxu0 %v1143
    %2156 = vmatpush.bf16.msra.mxu0 %v1139
    %2157 = vmatpush.bf16.msra.mxu0 %v1135
    %2158 = vmatmul.bf16.gmra.mxu0 %v2149
    %v2159 = vpop.f32.mrf.mxu0
    %v2160 = vadd.f32 0.0, %v2159
    %v2161 = vpop.f32.mrf.mxu0
    %2162 = vdwg.mxu0
    %2163 = vmatpush.bf16.msra.mxu0 %v1164
    %2164 = vmatpush.bf16.msra.mxu0 %v1160
    %2165 = vmatpush.bf16.msra.mxu0 %v1156
    %2166 = vmatpush.bf16.msra.mxu0 %v1152
    %2167 = vmatpush.bf16.msra.mxu0 %v1148
    %2168 = vmatpush.bf16.msra.mxu0 %v1144
    %2169 = vmatpush.bf16.msra.mxu0 %v1140
    %2170 = vmatpush.bf16.msra.mxu0 %v1136
    %2171 = vmatmul.bf16.gmra.mxu0 %v2149
    %v2172 = vpop.f32.mrf.mxu0
    %v2173 = vadd.f32 0.0, %v2172
    %v2174 = vpop.f32.mrf.mxu0
    %2175 = vdwg.mxu0
    %2176 = vmatpush.bf16.msra.mxu0 %v1165
    %2177 = vmatpush.bf16.msra.mxu0 %v1161
    %2178 = vmatpush.bf16.msra.mxu0 %v1157
    %2179 = vmatpush.bf16.msra.mxu0 %v1153
    %2180 = vmatpush.bf16.msra.mxu0 %v1149
    %2181 = vmatpush.bf16.msra.mxu0 %v1145
    %2182 = vmatpush.bf16.msra.mxu0 %v1141
    %2183 = vmatpush.bf16.msra.mxu0 %v1137
    %2184 = vmatmul.bf16.gmra.mxu0 %v2149
    %v2185 = vpop.f32.mrf.mxu0
    %v2186 = vadd.f32 0.0, %v2185
    %v2187 = vpop.f32.mrf.mxu0
    %2188 = vdwg.mxu0
    %2189 = vmatpush.bf16.msra.mxu0 %v1166
    %2190 = vmatpush.bf16.msra.mxu0 %v1162
    %2191 = vmatpush.bf16.msra.mxu0 %v1158
    %2192 = vmatpush.bf16.msra.mxu0 %v1154
    %2193 = vmatpush.bf16.msra.mxu0 %v1150
    %2194 = vmatpush.bf16.msra.mxu0 %v1146
    %2195 = vmatpush.bf16.msra.mxu0 %v1142
    %2196 = vmatpush.bf16.msra.mxu0 %v1138
    %2197 = vmatmul.bf16.gmra.mxu0 %v2149
    %v2198 = vpop.f32.mrf.mxu0
    %v2199 = vadd.f32 0.0, %v2198
    %v2200 = vpop.f32.mrf.mxu0
    %2201 = vdwg.mxu0
    %s2202 = scalar_lea.vmem [#allocation2], 64
    %v2203 = vld [vmem:[%s2202] sm:$0xff]
    %v2208 = vrot.slane %v2173, 6
    %v2209 = vrot.slane %v2186, 4
    %v2210 = vrot.slane %v2199, 2
    %v2211 = vsel %vm824, %v2160, %v2208
    %v2212 = vsel %vm826, %v2209, %v2210
    %v2213 = vsel %vm828, %v2211, %v2212
    %v2215 = vadd.f32 %v2203, %v2213
    %v2216 = vsub.f32 0.0, %v2215
    %v2217 = vmul.f32 %v2216, 1.442695
    %v2218 = vpow.pop %v2217
    %v2219 = vadd.f32 %v2218, 1.0
    %v2220 = vrcp.pop %v2219
    %v2221 = vmul.f32 %v2219, %v2220
    %v2222 = vsub.f32 1.0, %v2221
    %v2223 = vmul.f32 %v2220, %v2222
    %v2224 = vadd.f32 %v2220, %v2223
    %vm2225 = vweird.f32 %v2219
    %vm2226 = vweird.f32 %v2220
    %vm2227 = vmor %vm2225, %vm2226
    %v2228 = vsel %vm2227, %v2220, %v2224
    %v2229 = vand.u32 2147483647, %v2219
    %vm2230 = vcmp.eq.f32.partialorder %v2229, 8.507059e+37
    %v2231 = vand.u32 %v2219, 2147483648
    %v2232 = vor.u32 1.1754944e-38, %v2231
    %v2233 = vsel %vm2230, %v2232, %v2228
    %v2234 = vmul.f32 1.0, %v2233
    %v2236 = vrot.slane %v2215, 4
    %v2238 = vtanh.pop %v2236
    %v2240 = vrot.slane %v2234, 2
    %v2242 = vmul.f32 %v2240, %v2125
    %v2243 = vmul.f32 %v2234, %v2238
    %v2244 = vadd.f32 %v2242, %v2243
    %v2245 = vrot.slane %v2215, 6
    %v2247 = vsub.f32 0.0, %v2245
    %v2248 = vmul.f32 %v2247, 1.442695
    %v2249 = vpow.pop %v2248
    %v2250 = vadd.f32 %v2249, 1.0
    %v2251 = vrcp.pop %v2250
    %v2252 = vmul.f32 %v2250, %v2251
    %v2253 = vsub.f32 1.0, %v2252
    %v2254 = vmul.f32 %v2251, %v2253
    %v2255 = vadd.f32 %v2251, %v2254
    %vm2256 = vweird.f32 %v2250
    %vm2257 = vweird.f32 %v2251
    %vm2258 = vmor %vm2256, %vm2257
    %v2259 = vsel %vm2258, %v2251, %v2255
    %v2260 = vand.u32 2147483647, %v2250
    %vm2261 = vcmp.eq.f32.partialorder %v2260, 8.507059e+37
    %v2262 = vand.u32 %v2250, 2147483648
    %v2263 = vor.u32 1.1754944e-38, %v2262
    %v2264 = vsel %vm2261, %v2263, %v2259
    %v2265 = vmul.f32 1.0, %v2264
    %v2266 = vtanh.pop %v2244
    %v2267 = vmul.f32 %v2265, %v2266
    %v2268 = vpack.c.bf16 %v2267, %v2267
    %2269 = vmatpush.bf16.msra.mxu0 %v1163
    %2270 = vmatpush.bf16.msra.mxu0 %v1159
    %2271 = vmatpush.bf16.msra.mxu0 %v1155
    %2272 = vmatpush.bf16.msra.mxu0 %v1151
    %2273 = vmatpush.bf16.msra.mxu0 %v1147
    %2274 = vmatpush.bf16.msra.mxu0 %v1143
    %2275 = vmatpush.bf16.msra.mxu0 %v1139
    %2276 = vmatpush.bf16.msra.mxu0 %v1135
    %2277 = vmatmul.bf16.gmra.mxu0 %v2268
    %v2278 = vpop.f32.mrf.mxu0
    %v2279 = vadd.f32 0.0, %v2278
    %v2280 = vpop.f32.mrf.mxu0
    %2281 = vdwg.mxu0
    %2282 = vmatpush.bf16.msra.mxu0 %v1164
    %2283 = vmatpush.bf16.msra.mxu0 %v1160
    %2284 = vmatpush.bf16.msra.mxu0 %v1156
    %2285 = vmatpush.bf16.msra.mxu0 %v1152
    %2286 = vmatpush.bf16.msra.mxu0 %v1148
    %2287 = vmatpush.bf16.msra.mxu0 %v1144
    %2288 = vmatpush.bf16.msra.mxu0 %v1140
    %2289 = vmatpush.bf16.msra.mxu0 %v1136
    %2290 = vmatmul.bf16.gmra.mxu0 %v2268
    %v2291 = vpop.f32.mrf.mxu0
    %v2292 = vadd.f32 0.0, %v2291
    %v2293 = vpop.f32.mrf.mxu0
    %2294 = vdwg.mxu0
    %2295 = vmatpush.bf16.msra.mxu0 %v1165
    %2296 = vmatpush.bf16.msra.mxu0 %v1161
    %2297 = vmatpush.bf16.msra.mxu0 %v1157
    %2298 = vmatpush.bf16.msra.mxu0 %v1153
    %2299 = vmatpush.bf16.msra.mxu0 %v1149
    %2300 = vmatpush.bf16.msra.mxu0 %v1145
    %2301 = vmatpush.bf16.msra.mxu0 %v1141
    %2302 = vmatpush.bf16.msra.mxu0 %v1137
    %2303 = vmatmul.bf16.gmra.mxu0 %v2268
    %v2304 = vpop.f32.mrf.mxu0
    %v2305 = vadd.f32 0.0, %v2304
    %v2306 = vpop.f32.mrf.mxu0
    %2307 = vdwg.mxu0
    %2308 = vmatpush.bf16.msra.mxu0 %v1166
    %2309 = vmatpush.bf16.msra.mxu0 %v1162
    %2310 = vmatpush.bf16.msra.mxu0 %v1158
    %2311 = vmatpush.bf16.msra.mxu0 %v1154
    %2312 = vmatpush.bf16.msra.mxu0 %v1150
    %2313 = vmatpush.bf16.msra.mxu0 %v1146
    %2314 = vmatpush.bf16.msra.mxu0 %v1142
    %2315 = vmatpush.bf16.msra.mxu0 %v1138
    %2316 = vmatmul.bf16.gmra.mxu0 %v2268
    %v2317 = vpop.f32.mrf.mxu0
    %v2318 = vadd.f32 0.0, %v2317
    %v2319 = vpop.f32.mrf.mxu0
    %2320 = vdwg.mxu0
    %s2321 = scalar_lea.vmem [#allocation2], 72
    %v2322 = vld [vmem:[%s2321] sm:$0xff]
    %v2327 = vrot.slane %v2292, 6
    %v2328 = vrot.slane %v2305, 4
    %v2329 = vrot.slane %v2318, 2
    %v2330 = vsel %vm824, %v2279, %v2327
    %v2331 = vsel %vm826, %v2328, %v2329
    %v2332 = vsel %vm828, %v2330, %v2331
    %v2334 = vadd.f32 %v2322, %v2332
    %v2335 = vsub.f32 0.0, %v2334
    %v2336 = vmul.f32 %v2335, 1.442695
    %v2337 = vpow.pop %v2336
    %v2338 = vadd.f32 %v2337, 1.0
    %v2339 = vrcp.pop %v2338
    %v2340 = vmul.f32 %v2338, %v2339
    %v2341 = vsub.f32 1.0, %v2340
    %v2342 = vmul.f32 %v2339, %v2341
    %v2343 = vadd.f32 %v2339, %v2342
    %vm2344 = vweird.f32 %v2338
    %vm2345 = vweird.f32 %v2339
    %vm2346 = vmor %vm2344, %vm2345
    %v2347 = vsel %vm2346, %v2339, %v2343
    %v2348 = vand.u32 2147483647, %v2338
    %vm2349 = vcmp.eq.f32.partialorder %v2348, 8.507059e+37
    %v2350 = vand.u32 %v2338, 2147483648
    %v2351 = vor.u32 1.1754944e-38, %v2350
    %v2352 = vsel %vm2349, %v2351, %v2347
    %v2353 = vmul.f32 1.0, %v2352
    %v2355 = vrot.slane %v2334, 4
    %v2357 = vtanh.pop %v2355
    %v2359 = vrot.slane %v2353, 2
    %v2361 = vmul.f32 %v2359, %v2244
    %v2362 = vmul.f32 %v2353, %v2357
    %v2363 = vadd.f32 %v2361, %v2362
    %v2364 = vrot.slane %v2334, 6
    %v2366 = vsub.f32 0.0, %v2364
    %v2367 = vmul.f32 %v2366, 1.442695
    %v2368 = vpow.pop %v2367
    %v2369 = vadd.f32 %v2368, 1.0
    %v2370 = vrcp.pop %v2369
    %v2371 = vmul.f32 %v2369, %v2370
    %v2372 = vsub.f32 1.0, %v2371
    %v2373 = vmul.f32 %v2370, %v2372
    %v2374 = vadd.f32 %v2370, %v2373
    %vm2375 = vweird.f32 %v2369
    %vm2376 = vweird.f32 %v2370
    %vm2377 = vmor %vm2375, %vm2376
    %v2378 = vsel %vm2377, %v2370, %v2374
    %v2379 = vand.u32 2147483647, %v2369
    %vm2380 = vcmp.eq.f32.partialorder %v2379, 8.507059e+37
    %v2381 = vand.u32 %v2369, 2147483648
    %v2382 = vor.u32 1.1754944e-38, %v2381
    %v2383 = vsel %vm2380, %v2382, %v2378
    %v2384 = vmul.f32 1.0, %v2383
    %v2385 = vtanh.pop %v2363
    %v2386 = vmul.f32 %v2384, %v2385
    %v2387 = vpack.c.bf16 %v2386, %v2386
    %2388 = vmatpush.bf16.msra.mxu0 %v1163
    %2389 = vmatpush.bf16.msra.mxu0 %v1159
    %2390 = vmatpush.bf16.msra.mxu0 %v1155
    %2391 = vmatpush.bf16.msra.mxu0 %v1151
    %2392 = vmatpush.bf16.msra.mxu0 %v1147
    %2393 = vmatpush.bf16.msra.mxu0 %v1143
    %2394 = vmatpush.bf16.msra.mxu0 %v1139
    %2395 = vmatpush.bf16.msra.mxu0 %v1135
    %2396 = vmatmul.bf16.gmra.mxu0 %v2387
    %v2397 = vpop.f32.mrf.mxu0
    %v2398 = vadd.f32 0.0, %v2397
    %v2399 = vpop.f32.mrf.mxu0
    %2400 = vdwg.mxu0
    %2401 = vmatpush.bf16.msra.mxu0 %v1164
    %2402 = vmatpush.bf16.msra.mxu0 %v1160
    %2403 = vmatpush.bf16.msra.mxu0 %v1156
    %2404 = vmatpush.bf16.msra.mxu0 %v1152
    %2405 = vmatpush.bf16.msra.mxu0 %v1148
    %2406 = vmatpush.bf16.msra.mxu0 %v1144
    %2407 = vmatpush.bf16.msra.mxu0 %v1140
    %2408 = vmatpush.bf16.msra.mxu0 %v1136
    %2409 = vmatmul.bf16.gmra.mxu0 %v2387
    %v2410 = vpop.f32.mrf.mxu0
    %v2411 = vadd.f32 0.0, %v2410
    %v2412 = vpop.f32.mrf.mxu0
    %2413 = vdwg.mxu0
    %2414 = vmatpush.bf16.msra.mxu0 %v1165
    %2415 = vmatpush.bf16.msra.mxu0 %v1161
    %2416 = vmatpush.bf16.msra.mxu0 %v1157
    %2417 = vmatpush.bf16.msra.mxu0 %v1153
    %2418 = vmatpush.bf16.msra.mxu0 %v1149
    %2419 = vmatpush.bf16.msra.mxu0 %v1145
    %2420 = vmatpush.bf16.msra.mxu0 %v1141
    %2421 = vmatpush.bf16.msra.mxu0 %v1137
    %2422 = vmatmul.bf16.gmra.mxu0 %v2387
    %v2423 = vpop.f32.mrf.mxu0
    %v2424 = vadd.f32 0.0, %v2423
    %v2425 = vpop.f32.mrf.mxu0
    %2426 = vdwg.mxu0
    %2427 = vmatpush.bf16.msra.mxu0 %v1166
    %2428 = vmatpush.bf16.msra.mxu0 %v1162
    %2429 = vmatpush.bf16.msra.mxu0 %v1158
    %2430 = vmatpush.bf16.msra.mxu0 %v1154
    %2431 = vmatpush.bf16.msra.mxu0 %v1150
    %2432 = vmatpush.bf16.msra.mxu0 %v1146
    %2433 = vmatpush.bf16.msra.mxu0 %v1142
    %2434 = vmatpush.bf16.msra.mxu0 %v1138
    %2435 = vmatmul.bf16.gmra.mxu0 %v2387
    %v2436 = vpop.f32.mrf.mxu0
    %v2437 = vadd.f32 0.0, %v2436
    %v2438 = vpop.f32.mrf.mxu0
    %2439 = vdwg.mxu0
    %s2440 = scalar_lea.vmem [#allocation2], 80
    %v2441 = vld [vmem:[%s2440] sm:$0xff]
    %v2446 = vrot.slane %v2411, 6
    %v2447 = vrot.slane %v2424, 4
    %v2448 = vrot.slane %v2437, 2
    %v2449 = vsel %vm824, %v2398, %v2446
    %v2450 = vsel %vm826, %v2447, %v2448
    %v2451 = vsel %vm828, %v2449, %v2450
    %v2453 = vadd.f32 %v2441, %v2451
    %v2454 = vsub.f32 0.0, %v2453
    %v2455 = vmul.f32 %v2454, 1.442695
    %v2456 = vpow.pop %v2455
    %v2457 = vadd.f32 %v2456, 1.0
    %v2458 = vrcp.pop %v2457
    %v2459 = vmul.f32 %v2457, %v2458
    %v2460 = vsub.f32 1.0, %v2459
    %v2461 = vmul.f32 %v2458, %v2460
    %v2462 = vadd.f32 %v2458, %v2461
    %vm2463 = vweird.f32 %v2457
    %vm2464 = vweird.f32 %v2458
    %vm2465 = vmor %vm2463, %vm2464
    %v2466 = vsel %vm2465, %v2458, %v2462
    %v2467 = vand.u32 2147483647, %v2457
    %vm2468 = vcmp.eq.f32.partialorder %v2467, 8.507059e+37
    %v2469 = vand.u32 %v2457, 2147483648
    %v2470 = vor.u32 1.1754944e-38, %v2469
    %v2471 = vsel %vm2468, %v2470, %v2466
    %v2472 = vmul.f32 1.0, %v2471
    %v2474 = vrot.slane %v2453, 4
    %v2476 = vtanh.pop %v2474
    %v2478 = vrot.slane %v2472, 2
    %v2480 = vmul.f32 %v2478, %v2363
    %v2481 = vmul.f32 %v2472, %v2476
    %v2482 = vadd.f32 %v2480, %v2481
    %v2483 = vrot.slane %v2453, 6
    %v2485 = vsub.f32 0.0, %v2483
    %v2486 = vmul.f32 %v2485, 1.442695
    %v2487 = vpow.pop %v2486
    %v2488 = vadd.f32 %v2487, 1.0
    %v2489 = vrcp.pop %v2488
    %v2490 = vmul.f32 %v2488, %v2489
    %v2491 = vsub.f32 1.0, %v2490
    %v2492 = vmul.f32 %v2489, %v2491
    %v2493 = vadd.f32 %v2489, %v2492
    %vm2494 = vweird.f32 %v2488
    %vm2495 = vweird.f32 %v2489
    %vm2496 = vmor %vm2494, %vm2495
    %v2497 = vsel %vm2496, %v2489, %v2493
    %v2498 = vand.u32 2147483647, %v2488
    %vm2499 = vcmp.eq.f32.partialorder %v2498, 8.507059e+37
    %v2500 = vand.u32 %v2488, 2147483648
    %v2501 = vor.u32 1.1754944e-38, %v2500
    %v2502 = vsel %vm2499, %v2501, %v2497
    %v2503 = vmul.f32 1.0, %v2502
    %v2504 = vtanh.pop %v2482
    %v2505 = vmul.f32 %v2503, %v2504
    %v2506 = vpack.c.bf16 %v2505, %v2505
    %2507 = vmatpush.bf16.msra.mxu0 %v1163
    %2508 = vmatpush.bf16.msra.mxu0 %v1159
    %2509 = vmatpush.bf16.msra.mxu0 %v1155
    %2510 = vmatpush.bf16.msra.mxu0 %v1151
    %2511 = vmatpush.bf16.msra.mxu0 %v1147
    %2512 = vmatpush.bf16.msra.mxu0 %v1143
    %2513 = vmatpush.bf16.msra.mxu0 %v1139
    %2514 = vmatpush.bf16.msra.mxu0 %v1135
    %2515 = vmatmul.bf16.gmra.mxu0 %v2506
    %v2516 = vpop.f32.mrf.mxu0
    %v2517 = vadd.f32 0.0, %v2516
    %v2518 = vpop.f32.mrf.mxu0
    %2519 = vdwg.mxu0
    %2520 = vmatpush.bf16.msra.mxu0 %v1164
    %2521 = vmatpush.bf16.msra.mxu0 %v1160
    %2522 = vmatpush.bf16.msra.mxu0 %v1156
    %2523 = vmatpush.bf16.msra.mxu0 %v1152
    %2524 = vmatpush.bf16.msra.mxu0 %v1148
    %2525 = vmatpush.bf16.msra.mxu0 %v1144
    %2526 = vmatpush.bf16.msra.mxu0 %v1140
    %2527 = vmatpush.bf16.msra.mxu0 %v1136
    %2528 = vmatmul.bf16.gmra.mxu0 %v2506
    %v2529 = vpop.f32.mrf.mxu0
    %v2530 = vadd.f32 0.0, %v2529
    %v2531 = vpop.f32.mrf.mxu0
    %2532 = vdwg.mxu0
    %2533 = vmatpush.bf16.msra.mxu0 %v1165
    %2534 = vmatpush.bf16.msra.mxu0 %v1161
    %2535 = vmatpush.bf16.msra.mxu0 %v1157
    %2536 = vmatpush.bf16.msra.mxu0 %v1153
    %2537 = vmatpush.bf16.msra.mxu0 %v1149
    %2538 = vmatpush.bf16.msra.mxu0 %v1145
    %2539 = vmatpush.bf16.msra.mxu0 %v1141
    %2540 = vmatpush.bf16.msra.mxu0 %v1137
    %2541 = vmatmul.bf16.gmra.mxu0 %v2506
    %v2542 = vpop.f32.mrf.mxu0
    %v2543 = vadd.f32 0.0, %v2542
    %v2544 = vpop.f32.mrf.mxu0
    %2545 = vdwg.mxu0
    %2546 = vmatpush.bf16.msra.mxu0 %v1166
    %2547 = vmatpush.bf16.msra.mxu0 %v1162
    %2548 = vmatpush.bf16.msra.mxu0 %v1158
    %2549 = vmatpush.bf16.msra.mxu0 %v1154
    %2550 = vmatpush.bf16.msra.mxu0 %v1150
    %2551 = vmatpush.bf16.msra.mxu0 %v1146
    %2552 = vmatpush.bf16.msra.mxu0 %v1142
    %2553 = vmatpush.bf16.msra.mxu0 %v1138
    %2554 = vmatmul.bf16.gmra.mxu0 %v2506
    %v2555 = vpop.f32.mrf.mxu0
    %v2556 = vadd.f32 0.0, %v2555
    %v2557 = vpop.f32.mrf.mxu0
    %2558 = vdwg.mxu0
    %s2559 = scalar_lea.vmem [#allocation2], 88
    %v2560 = vld [vmem:[%s2559] sm:$0xff]
    %v2565 = vrot.slane %v2530, 6
    %v2566 = vrot.slane %v2543, 4
    %v2567 = vrot.slane %v2556, 2
    %v2568 = vsel %vm824, %v2517, %v2565
    %v2569 = vsel %vm826, %v2566, %v2567
    %v2570 = vsel %vm828, %v2568, %v2569
    %v2572 = vadd.f32 %v2560, %v2570
    %v2573 = vsub.f32 0.0, %v2572
    %v2574 = vmul.f32 %v2573, 1.442695
    %v2575 = vpow.pop %v2574
    %v2576 = vadd.f32 %v2575, 1.0
    %v2577 = vrcp.pop %v2576
    %v2578 = vmul.f32 %v2576, %v2577
    %v2579 = vsub.f32 1.0, %v2578
    %v2580 = vmul.f32 %v2577, %v2579
    %v2581 = vadd.f32 %v2577, %v2580
    %vm2582 = vweird.f32 %v2576
    %vm2583 = vweird.f32 %v2577
    %vm2584 = vmor %vm2582, %vm2583
    %v2585 = vsel %vm2584, %v2577, %v2581
    %v2586 = vand.u32 2147483647, %v2576
    %vm2587 = vcmp.eq.f32.partialorder %v2586, 8.507059e+37
    %v2588 = vand.u32 %v2576, 2147483648
    %v2589 = vor.u32 1.1754944e-38, %v2588
    %v2590 = vsel %vm2587, %v2589, %v2585
    %v2591 = vmul.f32 1.0, %v2590
    %v2593 = vrot.slane %v2572, 4
    %v2595 = vtanh.pop %v2593
    %v2597 = vrot.slane %v2591, 2
    %v2599 = vmul.f32 %v2597, %v2482
    %v2600 = vmul.f32 %v2591, %v2595
    %v2601 = vadd.f32 %v2599, %v2600
    %v2602 = vrot.slane %v2572, 6
    %v2604 = vsub.f32 0.0, %v2602
    %v2605 = vmul.f32 %v2604, 1.442695
    %v2606 = vpow.pop %v2605
    %v2607 = vadd.f32 %v2606, 1.0
    %v2608 = vrcp.pop %v2607
    %v2609 = vmul.f32 %v2607, %v2608
    %v2610 = vsub.f32 1.0, %v2609
    %v2611 = vmul.f32 %v2608, %v2610
    %v2612 = vadd.f32 %v2608, %v2611
    %vm2613 = vweird.f32 %v2607
    %vm2614 = vweird.f32 %v2608
    %vm2615 = vmor %vm2613, %vm2614
    %v2616 = vsel %vm2615, %v2608, %v2612
    %v2617 = vand.u32 2147483647, %v2607
    %vm2618 = vcmp.eq.f32.partialorder %v2617, 8.507059e+37
    %v2619 = vand.u32 %v2607, 2147483648
    %v2620 = vor.u32 1.1754944e-38, %v2619
    %v2621 = vsel %vm2618, %v2620, %v2616
    %v2622 = vmul.f32 1.0, %v2621
    %v2623 = vtanh.pop %v2601
    %v2624 = vmul.f32 %v2622, %v2623
    %v2625 = vpack.c.bf16 %v2624, %v2624
    %2626 = vmatpush.bf16.msra.mxu0 %v1163
    %2627 = vmatpush.bf16.msra.mxu0 %v1159
    %2628 = vmatpush.bf16.msra.mxu0 %v1155
    %2629 = vmatpush.bf16.msra.mxu0 %v1151
    %2630 = vmatpush.bf16.msra.mxu0 %v1147
    %2631 = vmatpush.bf16.msra.mxu0 %v1143
    %2632 = vmatpush.bf16.msra.mxu0 %v1139
    %2633 = vmatpush.bf16.msra.mxu0 %v1135
    %2634 = vmatmul.bf16.gmra.mxu0 %v2625
    %v2635 = vpop.f32.mrf.mxu0
    %v2636 = vadd.f32 0.0, %v2635
    %v2637 = vpop.f32.mrf.mxu0
    %2638 = vdwg.mxu0
    %2639 = vmatpush.bf16.msra.mxu0 %v1164
    %2640 = vmatpush.bf16.msra.mxu0 %v1160
    %2641 = vmatpush.bf16.msra.mxu0 %v1156
    %2642 = vmatpush.bf16.msra.mxu0 %v1152
    %2643 = vmatpush.bf16.msra.mxu0 %v1148
    %2644 = vmatpush.bf16.msra.mxu0 %v1144
    %2645 = vmatpush.bf16.msra.mxu0 %v1140
    %2646 = vmatpush.bf16.msra.mxu0 %v1136
    %2647 = vmatmul.bf16.gmra.mxu0 %v2625
    %v2648 = vpop.f32.mrf.mxu0
    %v2649 = vadd.f32 0.0, %v2648
    %v2650 = vpop.f32.mrf.mxu0
    %2651 = vdwg.mxu0
    %2652 = vmatpush.bf16.msra.mxu0 %v1165
    %2653 = vmatpush.bf16.msra.mxu0 %v1161
    %2654 = vmatpush.bf16.msra.mxu0 %v1157
    %2655 = vmatpush.bf16.msra.mxu0 %v1153
    %2656 = vmatpush.bf16.msra.mxu0 %v1149
    %2657 = vmatpush.bf16.msra.mxu0 %v1145
    %2658 = vmatpush.bf16.msra.mxu0 %v1141
    %2659 = vmatpush.bf16.msra.mxu0 %v1137
    %2660 = vmatmul.bf16.gmra.mxu0 %v2625
    %v2661 = vpop.f32.mrf.mxu0
    %v2662 = vadd.f32 0.0, %v2661
    %v2663 = vpop.f32.mrf.mxu0
    %2664 = vdwg.mxu0
    %2665 = vmatpush.bf16.msra.mxu0 %v1166
    %2666 = vmatpush.bf16.msra.mxu0 %v1162
    %2667 = vmatpush.bf16.msra.mxu0 %v1158
    %2668 = vmatpush.bf16.msra.mxu0 %v1154
    %2669 = vmatpush.bf16.msra.mxu0 %v1150
    %2670 = vmatpush.bf16.msra.mxu0 %v1146
    %2671 = vmatpush.bf16.msra.mxu0 %v1142
    %2672 = vmatpush.bf16.msra.mxu0 %v1138
    %2673 = vmatmul.bf16.gmra.mxu0 %v2625
    %v2674 = vpop.f32.mrf.mxu0
    %v2675 = vadd.f32 0.0, %v2674
    %v2676 = vpop.f32.mrf.mxu0
    %2677 = vdwg.mxu0
    %s2678 = scalar_lea.vmem [#allocation2], 96
    %v2679 = vld [vmem:[%s2678] sm:$0xff]
    %v2684 = vrot.slane %v2649, 6
    %v2685 = vrot.slane %v2662, 4
    %v2686 = vrot.slane %v2675, 2
    %v2687 = vsel %vm824, %v2636, %v2684
    %v2688 = vsel %vm826, %v2685, %v2686
    %v2689 = vsel %vm828, %v2687, %v2688
    %v2691 = vadd.f32 %v2679, %v2689
    %v2692 = vsub.f32 0.0, %v2691
    %v2693 = vmul.f32 %v2692, 1.442695
    %v2694 = vpow.pop %v2693
    %v2695 = vadd.f32 %v2694, 1.0
    %v2696 = vrcp.pop %v2695
    %v2697 = vmul.f32 %v2695, %v2696
    %v2698 = vsub.f32 1.0, %v2697
    %v2699 = vmul.f32 %v2696, %v2698
    %v2700 = vadd.f32 %v2696, %v2699
    %vm2701 = vweird.f32 %v2695
    %vm2702 = vweird.f32 %v2696
    %vm2703 = vmor %vm2701, %vm2702
    %v2704 = vsel %vm2703, %v2696, %v2700
    %v2705 = vand.u32 2147483647, %v2695
    %vm2706 = vcmp.eq.f32.partialorder %v2705, 8.507059e+37
    %v2707 = vand.u32 %v2695, 2147483648
    %v2708 = vor.u32 1.1754944e-38, %v2707
    %v2709 = vsel %vm2706, %v2708, %v2704
    %v2710 = vmul.f32 1.0, %v2709
    %v2712 = vrot.slane %v2691, 4
    %v2714 = vtanh.pop %v2712
    %v2716 = vrot.slane %v2710, 2
    %v2718 = vmul.f32 %v2716, %v2601
    %v2719 = vmul.f32 %v2710, %v2714
    %v2720 = vadd.f32 %v2718, %v2719
    %v2721 = vrot.slane %v2691, 6
    %v2723 = vsub.f32 0.0, %v2721
    %v2724 = vmul.f32 %v2723, 1.442695
    %v2725 = vpow.pop %v2724
    %v2726 = vadd.f32 %v2725, 1.0
    %v2727 = vrcp.pop %v2726
    %v2728 = vmul.f32 %v2726, %v2727
    %v2729 = vsub.f32 1.0, %v2728
    %v2730 = vmul.f32 %v2727, %v2729
    %v2731 = vadd.f32 %v2727, %v2730
    %vm2732 = vweird.f32 %v2726
    %vm2733 = vweird.f32 %v2727
    %vm2734 = vmor %vm2732, %vm2733
    %v2735 = vsel %vm2734, %v2727, %v2731
    %v2736 = vand.u32 2147483647, %v2726
    %vm2737 = vcmp.eq.f32.partialorder %v2736, 8.507059e+37
    %v2738 = vand.u32 %v2726, 2147483648
    %v2739 = vor.u32 1.1754944e-38, %v2738
    %v2740 = vsel %vm2737, %v2739, %v2735
    %v2741 = vmul.f32 1.0, %v2740
    %v2742 = vtanh.pop %v2720
    %v2743 = vmul.f32 %v2741, %v2742
    %v2744 = vpack.c.bf16 %v2743, %v2743
    %2745 = vmatpush.bf16.msra.mxu0 %v1163
    %2746 = vmatpush.bf16.msra.mxu0 %v1159
    %2747 = vmatpush.bf16.msra.mxu0 %v1155
    %2748 = vmatpush.bf16.msra.mxu0 %v1151
    %2749 = vmatpush.bf16.msra.mxu0 %v1147
    %2750 = vmatpush.bf16.msra.mxu0 %v1143
    %2751 = vmatpush.bf16.msra.mxu0 %v1139
    %2752 = vmatpush.bf16.msra.mxu0 %v1135
    %2753 = vmatmul.bf16.gmra.mxu0 %v2744
    %v2754 = vpop.f32.mrf.mxu0
    %v2755 = vadd.f32 0.0, %v2754
    %v2756 = vpop.f32.mrf.mxu0
    %2757 = vdwg.mxu0
    %2758 = vmatpush.bf16.msra.mxu0 %v1164
    %2759 = vmatpush.bf16.msra.mxu0 %v1160
    %2760 = vmatpush.bf16.msra.mxu0 %v1156
    %2761 = vmatpush.bf16.msra.mxu0 %v1152
    %2762 = vmatpush.bf16.msra.mxu0 %v1148
    %2763 = vmatpush.bf16.msra.mxu0 %v1144
    %2764 = vmatpush.bf16.msra.mxu0 %v1140
    %2765 = vmatpush.bf16.msra.mxu0 %v1136
    %2766 = vmatmul.bf16.gmra.mxu0 %v2744
    %v2767 = vpop.f32.mrf.mxu0
    %v2768 = vadd.f32 0.0, %v2767
    %v2769 = vpop.f32.mrf.mxu0
    %2770 = vdwg.mxu0
    %2771 = vmatpush.bf16.msra.mxu0 %v1165
    %2772 = vmatpush.bf16.msra.mxu0 %v1161
    %2773 = vmatpush.bf16.msra.mxu0 %v1157
    %2774 = vmatpush.bf16.msra.mxu0 %v1153
    %2775 = vmatpush.bf16.msra.mxu0 %v1149
    %2776 = vmatpush.bf16.msra.mxu0 %v1145
    %2777 = vmatpush.bf16.msra.mxu0 %v1141
    %2778 = vmatpush.bf16.msra.mxu0 %v1137
    %2779 = vmatmul.bf16.gmra.mxu0 %v2744
    %v2780 = vpop.f32.mrf.mxu0
    %v2781 = vadd.f32 0.0, %v2780
    %v2782 = vpop.f32.mrf.mxu0
    %2783 = vdwg.mxu0
    %2784 = vmatpush.bf16.msra.mxu0 %v1166
    %2785 = vmatpush.bf16.msra.mxu0 %v1162
    %2786 = vmatpush.bf16.msra.mxu0 %v1158
    %2787 = vmatpush.bf16.msra.mxu0 %v1154
    %2788 = vmatpush.bf16.msra.mxu0 %v1150
    %2789 = vmatpush.bf16.msra.mxu0 %v1146
    %2790 = vmatpush.bf16.msra.mxu0 %v1142
    %2791 = vmatpush.bf16.msra.mxu0 %v1138
    %2792 = vmatmul.bf16.gmra.mxu0 %v2744
    %v2793 = vpop.f32.mrf.mxu0
    %v2794 = vadd.f32 0.0, %v2793
    %v2795 = vpop.f32.mrf.mxu0
    %2796 = vdwg.mxu0
    %s2797 = scalar_lea.vmem [#allocation2], 104
    %v2798 = vld [vmem:[%s2797] sm:$0xff]
    %v2803 = vrot.slane %v2768, 6
    %v2804 = vrot.slane %v2781, 4
    %v2805 = vrot.slane %v2794, 2
    %v2806 = vsel %vm824, %v2755, %v2803
    %v2807 = vsel %vm826, %v2804, %v2805
    %v2808 = vsel %vm828, %v2806, %v2807
    %v2810 = vadd.f32 %v2798, %v2808
    %v2811 = vsub.f32 0.0, %v2810
    %v2812 = vmul.f32 %v2811, 1.442695
    %v2813 = vpow.pop %v2812
    %v2814 = vadd.f32 %v2813, 1.0
    %v2815 = vrcp.pop %v2814
    %v2816 = vmul.f32 %v2814, %v2815
    %v2817 = vsub.f32 1.0, %v2816
    %v2818 = vmul.f32 %v2815, %v2817
    %v2819 = vadd.f32 %v2815, %v2818
    %vm2820 = vweird.f32 %v2814
    %vm2821 = vweird.f32 %v2815
    %vm2822 = vmor %vm2820, %vm2821
    %v2823 = vsel %vm2822, %v2815, %v2819
    %v2824 = vand.u32 2147483647, %v2814
    %vm2825 = vcmp.eq.f32.partialorder %v2824, 8.507059e+37
    %v2826 = vand.u32 %v2814, 2147483648
    %v2827 = vor.u32 1.1754944e-38, %v2826
    %v2828 = vsel %vm2825, %v2827, %v2823
    %v2829 = vmul.f32 1.0, %v2828
    %v2831 = vrot.slane %v2810, 4
    %v2833 = vtanh.pop %v2831
    %v2835 = vrot.slane %v2829, 2
    %v2837 = vmul.f32 %v2835, %v2720
    %v2838 = vmul.f32 %v2829, %v2833
    %v2839 = vadd.f32 %v2837, %v2838
    %v2840 = vrot.slane %v2810, 6
    %v2842 = vsub.f32 0.0, %v2840
    %v2843 = vmul.f32 %v2842, 1.442695
    %v2844 = vpow.pop %v2843
    %v2845 = vadd.f32 %v2844, 1.0
    %v2846 = vrcp.pop %v2845
    %v2847 = vmul.f32 %v2845, %v2846
    %v2848 = vsub.f32 1.0, %v2847
    %v2849 = vmul.f32 %v2846, %v2848
    %v2850 = vadd.f32 %v2846, %v2849
    %vm2851 = vweird.f32 %v2845
    %vm2852 = vweird.f32 %v2846
    %vm2853 = vmor %vm2851, %vm2852
    %v2854 = vsel %vm2853, %v2846, %v2850
    %v2855 = vand.u32 2147483647, %v2845
    %vm2856 = vcmp.eq.f32.partialorder %v2855, 8.507059e+37
    %v2857 = vand.u32 %v2845, 2147483648
    %v2858 = vor.u32 1.1754944e-38, %v2857
    %v2859 = vsel %vm2856, %v2858, %v2854
    %v2860 = vmul.f32 1.0, %v2859
    %v2861 = vtanh.pop %v2839
    %v2862 = vmul.f32 %v2860, %v2861
    %v2863 = vpack.c.bf16 %v2862, %v2862
    %2864 = vmatpush.bf16.msra.mxu0 %v1163
    %2865 = vmatpush.bf16.msra.mxu0 %v1159
    %2866 = vmatpush.bf16.msra.mxu0 %v1155
    %2867 = vmatpush.bf16.msra.mxu0 %v1151
    %2868 = vmatpush.bf16.msra.mxu0 %v1147
    %2869 = vmatpush.bf16.msra.mxu0 %v1143
    %2870 = vmatpush.bf16.msra.mxu0 %v1139
    %2871 = vmatpush.bf16.msra.mxu0 %v1135
    %2872 = vmatmul.bf16.gmra.mxu0 %v2863
    %v2873 = vpop.f32.mrf.mxu0
    %v2874 = vadd.f32 0.0, %v2873
    %v2875 = vpop.f32.mrf.mxu0
    %2876 = vdwg.mxu0
    %2877 = vmatpush.bf16.msra.mxu0 %v1164
    %2878 = vmatpush.bf16.msra.mxu0 %v1160
    %2879 = vmatpush.bf16.msra.mxu0 %v1156
    %2880 = vmatpush.bf16.msra.mxu0 %v1152
    %2881 = vmatpush.bf16.msra.mxu0 %v1148
    %2882 = vmatpush.bf16.msra.mxu0 %v1144
    %2883 = vmatpush.bf16.msra.mxu0 %v1140
    %2884 = vmatpush.bf16.msra.mxu0 %v1136
    %2885 = vmatmul.bf16.gmra.mxu0 %v2863
    %v2886 = vpop.f32.mrf.mxu0
    %v2887 = vadd.f32 0.0, %v2886
    %v2888 = vpop.f32.mrf.mxu0
    %2889 = vdwg.mxu0
    %2890 = vmatpush.bf16.msra.mxu0 %v1165
    %2891 = vmatpush.bf16.msra.mxu0 %v1161
    %2892 = vmatpush.bf16.msra.mxu0 %v1157
    %2893 = vmatpush.bf16.msra.mxu0 %v1153
    %2894 = vmatpush.bf16.msra.mxu0 %v1149
    %2895 = vmatpush.bf16.msra.mxu0 %v1145
    %2896 = vmatpush.bf16.msra.mxu0 %v1141
    %2897 = vmatpush.bf16.msra.mxu0 %v1137
    %2898 = vmatmul.bf16.gmra.mxu0 %v2863
    %v2899 = vpop.f32.mrf.mxu0
    %v2900 = vadd.f32 0.0, %v2899
    %v2901 = vpop.f32.mrf.mxu0
    %2902 = vdwg.mxu0
    %2903 = vmatpush.bf16.msra.mxu0 %v1166
    %2904 = vmatpush.bf16.msra.mxu0 %v1162
    %2905 = vmatpush.bf16.msra.mxu0 %v1158
    %2906 = vmatpush.bf16.msra.mxu0 %v1154
    %2907 = vmatpush.bf16.msra.mxu0 %v1150
    %2908 = vmatpush.bf16.msra.mxu0 %v1146
    %2909 = vmatpush.bf16.msra.mxu0 %v1142
    %2910 = vmatpush.bf16.msra.mxu0 %v1138
    %2911 = vmatmul.bf16.gmra.mxu0 %v2863
    %v2912 = vpop.f32.mrf.mxu0
    %v2913 = vadd.f32 0.0, %v2912
    %v2914 = vpop.f32.mrf.mxu0
    %2915 = vdwg.mxu0
    %s2916 = scalar_lea.vmem [#allocation2], 112
    %v2917 = vld [vmem:[%s2916] sm:$0xff]
    %v2922 = vrot.slane %v2887, 6
    %v2923 = vrot.slane %v2900, 4
    %v2924 = vrot.slane %v2913, 2
    %v2925 = vsel %vm824, %v2874, %v2922
    %v2926 = vsel %vm826, %v2923, %v2924
    %v2927 = vsel %vm828, %v2925, %v2926
    %v2929 = vadd.f32 %v2917, %v2927
    %v2930 = vsub.f32 0.0, %v2929
    %v2931 = vmul.f32 %v2930, 1.442695
    %v2932 = vpow.pop %v2931
    %v2933 = vadd.f32 %v2932, 1.0
    %v2934 = vrcp.pop %v2933
    %v2935 = vmul.f32 %v2933, %v2934
    %v2936 = vsub.f32 1.0, %v2935
    %v2937 = vmul.f32 %v2934, %v2936
    %v2938 = vadd.f32 %v2934, %v2937
    %vm2939 = vweird.f32 %v2933
    %vm2940 = vweird.f32 %v2934
    %vm2941 = vmor %vm2939, %vm2940
    %v2942 = vsel %vm2941, %v2934, %v2938
    %v2943 = vand.u32 2147483647, %v2933
    %vm2944 = vcmp.eq.f32.partialorder %v2943, 8.507059e+37
    %v2945 = vand.u32 %v2933, 2147483648
    %v2946 = vor.u32 1.1754944e-38, %v2945
    %v2947 = vsel %vm2944, %v2946, %v2942
    %v2948 = vmul.f32 1.0, %v2947
    %v2950 = vrot.slane %v2929, 4
    %v2952 = vtanh.pop %v2950
    %v2954 = vrot.slane %v2948, 2
    %v2956 = vmul.f32 %v2954, %v2839
    %v2957 = vmul.f32 %v2948, %v2952
    %v2958 = vadd.f32 %v2956, %v2957
    %v2959 = vrot.slane %v2929, 6
    %v2961 = vsub.f32 0.0, %v2959
    %v2962 = vmul.f32 %v2961, 1.442695
    %v2963 = vpow.pop %v2962
    %v2964 = vadd.f32 %v2963, 1.0
    %v2965 = vrcp.pop %v2964
    %v2966 = vmul.f32 %v2964, %v2965
    %v2967 = vsub.f32 1.0, %v2966
    %v2968 = vmul.f32 %v2965, %v2967
    %v2969 = vadd.f32 %v2965, %v2968
    %vm2970 = vweird.f32 %v2964
    %vm2971 = vweird.f32 %v2965
    %vm2972 = vmor %vm2970, %vm2971
    %v2973 = vsel %vm2972, %v2965, %v2969
    %v2974 = vand.u32 2147483647, %v2964
    %vm2975 = vcmp.eq.f32.partialorder %v2974, 8.507059e+37
    %v2976 = vand.u32 %v2964, 2147483648
    %v2977 = vor.u32 1.1754944e-38, %v2976
    %v2978 = vsel %vm2975, %v2977, %v2973
    %v2979 = vmul.f32 1.0, %v2978
    %v2980 = vtanh.pop %v2958
    %v2981 = vmul.f32 %v2979, %v2980
    %v2982 = vpack.c.bf16 %v2981, %v2981
    %2983 = vmatpush.bf16.msra.mxu0 %v1163
    %2984 = vmatpush.bf16.msra.mxu0 %v1159
    %2985 = vmatpush.bf16.msra.mxu0 %v1155
    %2986 = vmatpush.bf16.msra.mxu0 %v1151
    %2987 = vmatpush.bf16.msra.mxu0 %v1147
    %2988 = vmatpush.bf16.msra.mxu0 %v1143
    %2989 = vmatpush.bf16.msra.mxu0 %v1139
    %2990 = vmatpush.bf16.msra.mxu0 %v1135
    %2991 = vmatmul.bf16.gmra.mxu0 %v2982
    %v2992 = vpop.f32.mrf.mxu0
    %v2993 = vadd.f32 0.0, %v2992
    %v2994 = vpop.f32.mrf.mxu0
    %2995 = vdwg.mxu0
    %2996 = vmatpush.bf16.msra.mxu0 %v1164
    %2997 = vmatpush.bf16.msra.mxu0 %v1160
    %2998 = vmatpush.bf16.msra.mxu0 %v1156
    %2999 = vmatpush.bf16.msra.mxu0 %v1152
    %3000 = vmatpush.bf16.msra.mxu0 %v1148
    %3001 = vmatpush.bf16.msra.mxu0 %v1144
    %3002 = vmatpush.bf16.msra.mxu0 %v1140
    %3003 = vmatpush.bf16.msra.mxu0 %v1136
    %3004 = vmatmul.bf16.gmra.mxu0 %v2982
    %v3005 = vpop.f32.mrf.mxu0
    %v3006 = vadd.f32 0.0, %v3005
    %v3007 = vpop.f32.mrf.mxu0
    %3008 = vdwg.mxu0
    %3009 = vmatpush.bf16.msra.mxu0 %v1165
    %3010 = vmatpush.bf16.msra.mxu0 %v1161
    %3011 = vmatpush.bf16.msra.mxu0 %v1157
    %3012 = vmatpush.bf16.msra.mxu0 %v1153
    %3013 = vmatpush.bf16.msra.mxu0 %v1149
    %3014 = vmatpush.bf16.msra.mxu0 %v1145
    %3015 = vmatpush.bf16.msra.mxu0 %v1141
    %3016 = vmatpush.bf16.msra.mxu0 %v1137
    %3017 = vmatmul.bf16.gmra.mxu0 %v2982
    %v3018 = vpop.f32.mrf.mxu0
    %v3019 = vadd.f32 0.0, %v3018
    %v3020 = vpop.f32.mrf.mxu0
    %3021 = vdwg.mxu0
    %3022 = vmatpush.bf16.msra.mxu0 %v1166
    %3023 = vmatpush.bf16.msra.mxu0 %v1162
    %3024 = vmatpush.bf16.msra.mxu0 %v1158
    %3025 = vmatpush.bf16.msra.mxu0 %v1154
    %3026 = vmatpush.bf16.msra.mxu0 %v1150
    %3027 = vmatpush.bf16.msra.mxu0 %v1146
    %3028 = vmatpush.bf16.msra.mxu0 %v1142
    %3029 = vmatpush.bf16.msra.mxu0 %v1138
    %3030 = vmatmul.bf16.gmra.mxu0 %v2982
    %v3031 = vpop.f32.mrf.mxu0
    %v3032 = vadd.f32 0.0, %v3031
    %v3033 = vpop.f32.mrf.mxu0
    %3034 = vdwg.mxu0
    %s3035 = scalar_lea.vmem [#allocation2], 120
    %v3036 = vld [vmem:[%s3035] sm:$0xff]
    %v3041 = vrot.slane %v3006, 6
    %v3042 = vrot.slane %v3019, 4
    %v3043 = vrot.slane %v3032, 2
    %v3044 = vsel %vm824, %v2993, %v3041
    %v3045 = vsel %vm826, %v3042, %v3043
    %v3046 = vsel %vm828, %v3044, %v3045
    %v3048 = vadd.f32 %v3036, %v3046
    %v3049 = vsub.f32 0.0, %v3048
    %v3050 = vmul.f32 %v3049, 1.442695
    %v3051 = vpow.pop %v3050
    %v3052 = vadd.f32 %v3051, 1.0
    %v3053 = vrcp.pop %v3052
    %v3054 = vmul.f32 %v3052, %v3053
    %v3055 = vsub.f32 1.0, %v3054
    %v3056 = vmul.f32 %v3053, %v3055
    %v3057 = vadd.f32 %v3053, %v3056
    %vm3058 = vweird.f32 %v3052
    %vm3059 = vweird.f32 %v3053
    %vm3060 = vmor %vm3058, %vm3059
    %v3061 = vsel %vm3060, %v3053, %v3057
    %v3062 = vand.u32 2147483647, %v3052
    %vm3063 = vcmp.eq.f32.partialorder %v3062, 8.507059e+37
    %v3064 = vand.u32 %v3052, 2147483648
    %v3065 = vor.u32 1.1754944e-38, %v3064
    %v3066 = vsel %vm3063, %v3065, %v3061
    %v3067 = vmul.f32 1.0, %v3066
    %v3069 = vrot.slane %v3048, 4
    %v3071 = vtanh.pop %v3069
    %v3073 = vrot.slane %v3067, 2
    %v3075 = vmul.f32 %v3073, %v2958
    %v3076 = vmul.f32 %v3067, %v3071
    %v3077 = vadd.f32 %v3075, %v3076
    %v3078 = vrot.slane %v3048, 6
    %v3080 = vsub.f32 0.0, %v3078
    %v3081 = vmul.f32 %v3080, 1.442695
    %v3082 = vpow.pop %v3081
    %v3083 = vadd.f32 %v3082, 1.0
    %v3084 = vrcp.pop %v3083
    %v3085 = vmul.f32 %v3083, %v3084
    %v3086 = vsub.f32 1.0, %v3085
    %v3087 = vmul.f32 %v3084, %v3086
    %v3088 = vadd.f32 %v3084, %v3087
    %vm3089 = vweird.f32 %v3083
    %vm3090 = vweird.f32 %v3084
    %vm3091 = vmor %vm3089, %vm3090
    %v3092 = vsel %vm3091, %v3084, %v3088
    %v3093 = vand.u32 2147483647, %v3083
    %vm3094 = vcmp.eq.f32.partialorder %v3093, 8.507059e+37
    %v3095 = vand.u32 %v3083, 2147483648
    %v3096 = vor.u32 1.1754944e-38, %v3095
    %v3097 = vsel %vm3094, %v3096, %v3092
    %v3098 = vmul.f32 1.0, %v3097
    %v3099 = vtanh.pop %v3077
    %v3100 = vmul.f32 %v3098, %v3099
    %v3101 = vpack.c.bf16 %v3100, %v3100
    %3102 = vmatpush.bf16.msra.mxu0 %v1163
    %3103 = vmatpush.bf16.msra.mxu0 %v1159
    %3104 = vmatpush.bf16.msra.mxu0 %v1155
    %3105 = vmatpush.bf16.msra.mxu0 %v1151
    %3106 = vmatpush.bf16.msra.mxu0 %v1147
    %3107 = vmatpush.bf16.msra.mxu0 %v1143
    %3108 = vmatpush.bf16.msra.mxu0 %v1139
    %3109 = vmatpush.bf16.msra.mxu0 %v1135
    %3110 = vmatmul.bf16.gmra.mxu0 %v3101
    %v3111 = vpop.f32.mrf.mxu0
    %v3112 = vadd.f32 0.0, %v3111
    %v3113 = vpop.f32.mrf.mxu0
    %3114 = vdwg.mxu0
    %3115 = vmatpush.bf16.msra.mxu0 %v1164
    %3116 = vmatpush.bf16.msra.mxu0 %v1160
    %3117 = vmatpush.bf16.msra.mxu0 %v1156
    %3118 = vmatpush.bf16.msra.mxu0 %v1152
    %3119 = vmatpush.bf16.msra.mxu0 %v1148
    %3120 = vmatpush.bf16.msra.mxu0 %v1144
    %3121 = vmatpush.bf16.msra.mxu0 %v1140
    %3122 = vmatpush.bf16.msra.mxu0 %v1136
    %3123 = vmatmul.bf16.gmra.mxu0 %v3101
    %v3124 = vpop.f32.mrf.mxu0
    %v3125 = vadd.f32 0.0, %v3124
    %v3126 = vpop.f32.mrf.mxu0
    %3127 = vdwg.mxu0
    %3128 = vmatpush.bf16.msra.mxu0 %v1165
    %3129 = vmatpush.bf16.msra.mxu0 %v1161
    %3130 = vmatpush.bf16.msra.mxu0 %v1157
    %3131 = vmatpush.bf16.msra.mxu0 %v1153
    %3132 = vmatpush.bf16.msra.mxu0 %v1149
    %3133 = vmatpush.bf16.msra.mxu0 %v1145
    %3134 = vmatpush.bf16.msra.mxu0 %v1141
    %3135 = vmatpush.bf16.msra.mxu0 %v1137
    %3136 = vmatmul.bf16.gmra.mxu0 %v3101
    %v3137 = vpop.f32.mrf.mxu0
    %v3138 = vadd.f32 0.0, %v3137
    %v3139 = vpop.f32.mrf.mxu0
    %3140 = vdwg.mxu0
    %3141 = vmatpush.bf16.msra.mxu0 %v1166
    %3142 = vmatpush.bf16.msra.mxu0 %v1162
    %3143 = vmatpush.bf16.msra.mxu0 %v1158
    %3144 = vmatpush.bf16.msra.mxu0 %v1154
    %3145 = vmatpush.bf16.msra.mxu0 %v1150
    %3146 = vmatpush.bf16.msra.mxu0 %v1146
    %3147 = vmatpush.bf16.msra.mxu0 %v1142
    %3148 = vmatpush.bf16.msra.mxu0 %v1138
    %3149 = vmatmul.bf16.gmra.mxu0 %v3101
    %v3150 = vpop.f32.mrf.mxu0
    %v3151 = vadd.f32 0.0, %v3150
    %v3152 = vpop.f32.mrf.mxu0
    %3153 = vdwg.mxu0
    %s3154 = scalar_lea.vmem [#allocation2], 128
    %v3155 = vld [vmem:[%s3154] sm:$0xff]
    %v3160 = vrot.slane %v3125, 6
    %v3161 = vrot.slane %v3138, 4
    %v3162 = vrot.slane %v3151, 2
    %v3163 = vsel %vm824, %v3112, %v3160
    %v3164 = vsel %vm826, %v3161, %v3162
    %v3165 = vsel %vm828, %v3163, %v3164
    %v3167 = vadd.f32 %v3155, %v3165
    %v3168 = vsub.f32 0.0, %v3167
    %v3169 = vmul.f32 %v3168, 1.442695
    %v3170 = vpow.pop %v3169
    %v3171 = vadd.f32 %v3170, 1.0
    %v3172 = vrcp.pop %v3171
    %v3173 = vmul.f32 %v3171, %v3172
    %v3174 = vsub.f32 1.0, %v3173
    %v3175 = vmul.f32 %v3172, %v3174
    %v3176 = vadd.f32 %v3172, %v3175
    %vm3177 = vweird.f32 %v3171
    %vm3178 = vweird.f32 %v3172
    %vm3179 = vmor %vm3177, %vm3178
    %v3180 = vsel %vm3179, %v3172, %v3176
    %v3181 = vand.u32 2147483647, %v3171
    %vm3182 = vcmp.eq.f32.partialorder %v3181, 8.507059e+37
    %v3183 = vand.u32 %v3171, 2147483648
    %v3184 = vor.u32 1.1754944e-38, %v3183
    %v3185 = vsel %vm3182, %v3184, %v3180
    %v3186 = vmul.f32 1.0, %v3185
    %v3188 = vrot.slane %v3167, 4
    %v3190 = vtanh.pop %v3188
    %v3192 = vrot.slane %v3186, 2
    %v3194 = vmul.f32 %v3192, %v3077
    %v3195 = vmul.f32 %v3186, %v3190
    %v3196 = vadd.f32 %v3194, %v3195
    %v3197 = vrot.slane %v3167, 6
    %v3199 = vsub.f32 0.0, %v3197
    %v3200 = vmul.f32 %v3199, 1.442695
    %v3201 = vpow.pop %v3200
    %v3202 = vadd.f32 %v3201, 1.0
    %v3203 = vrcp.pop %v3202
    %v3204 = vmul.f32 %v3202, %v3203
    %v3205 = vsub.f32 1.0, %v3204
    %v3206 = vmul.f32 %v3203, %v3205
    %v3207 = vadd.f32 %v3203, %v3206
    %vm3208 = vweird.f32 %v3202
    %vm3209 = vweird.f32 %v3203
    %vm3210 = vmor %vm3208, %vm3209
    %v3211 = vsel %vm3210, %v3203, %v3207
    %v3212 = vand.u32 2147483647, %v3202
    %vm3213 = vcmp.eq.f32.partialorder %v3212, 8.507059e+37
    %v3214 = vand.u32 %v3202, 2147483648
    %v3215 = vor.u32 1.1754944e-38, %v3214
    %v3216 = vsel %vm3213, %v3215, %v3211
    %v3217 = vmul.f32 1.0, %v3216
    %v3218 = vtanh.pop %v3196
    %v3219 = vmul.f32 %v3217, %v3218
    %v3220 = vpack.c.bf16 %v3219, %v3219
    %3221 = vmatpush.bf16.msra.mxu0 %v1163
    %3222 = vmatpush.bf16.msra.mxu0 %v1159
    %3223 = vmatpush.bf16.msra.mxu0 %v1155
    %3224 = vmatpush.bf16.msra.mxu0 %v1151
    %3225 = vmatpush.bf16.msra.mxu0 %v1147
    %3226 = vmatpush.bf16.msra.mxu0 %v1143
    %3227 = vmatpush.bf16.msra.mxu0 %v1139
    %3228 = vmatpush.bf16.msra.mxu0 %v1135
    %3229 = vmatmul.bf16.gmra.mxu0 %v3220
    %v3230 = vpop.f32.mrf.mxu0
    %v3231 = vadd.f32 0.0, %v3230
    %v3232 = vpop.f32.mrf.mxu0
    %3233 = vdwg.mxu0
    %3234 = vmatpush.bf16.msra.mxu0 %v1164
    %3235 = vmatpush.bf16.msra.mxu0 %v1160
    %3236 = vmatpush.bf16.msra.mxu0 %v1156
    %3237 = vmatpush.bf16.msra.mxu0 %v1152
    %3238 = vmatpush.bf16.msra.mxu0 %v1148
    %3239 = vmatpush.bf16.msra.mxu0 %v1144
    %3240 = vmatpush.bf16.msra.mxu0 %v1140
    %3241 = vmatpush.bf16.msra.mxu0 %v1136
    %3242 = vmatmul.bf16.gmra.mxu0 %v3220
    %v3243 = vpop.f32.mrf.mxu0
    %v3244 = vadd.f32 0.0, %v3243
    %v3245 = vpop.f32.mrf.mxu0
    %3246 = vdwg.mxu0
    %3247 = vmatpush.bf16.msra.mxu0 %v1165
    %3248 = vmatpush.bf16.msra.mxu0 %v1161
    %3249 = vmatpush.bf16.msra.mxu0 %v1157
    %3250 = vmatpush.bf16.msra.mxu0 %v1153
    %3251 = vmatpush.bf16.msra.mxu0 %v1149
    %3252 = vmatpush.bf16.msra.mxu0 %v1145
    %3253 = vmatpush.bf16.msra.mxu0 %v1141
    %3254 = vmatpush.bf16.msra.mxu0 %v1137
    %3255 = vmatmul.bf16.gmra.mxu0 %v3220
    %v3256 = vpop.f32.mrf.mxu0
    %v3257 = vadd.f32 0.0, %v3256
    %v3258 = vpop.f32.mrf.mxu0
    %3259 = vdwg.mxu0
    %3260 = vmatpush.bf16.msra.mxu0 %v1166
    %3261 = vmatpush.bf16.msra.mxu0 %v1162
    %3262 = vmatpush.bf16.msra.mxu0 %v1158
    %3263 = vmatpush.bf16.msra.mxu0 %v1154
    %3264 = vmatpush.bf16.msra.mxu0 %v1150
    %3265 = vmatpush.bf16.msra.mxu0 %v1146
    %3266 = vmatpush.bf16.msra.mxu0 %v1142
    %3267 = vmatpush.bf16.msra.mxu0 %v1138
    %3268 = vmatmul.bf16.gmra.mxu0 %v3220
    %v3269 = vpop.f32.mrf.mxu0
    %v3270 = vadd.f32 0.0, %v3269
    %v3271 = vpop.f32.mrf.mxu0
    %3272 = vdwg.mxu0
    %s3273 = scalar_lea.vmem [#allocation2], 136
    %v3274 = vld [vmem:[%s3273] sm:$0xff]
    %v3279 = vrot.slane %v3244, 6
    %v3280 = vrot.slane %v3257, 4
    %v3281 = vrot.slane %v3270, 2
    %v3282 = vsel %vm824, %v3231, %v3279
    %v3283 = vsel %vm826, %v3280, %v3281
    %v3284 = vsel %vm828, %v3282, %v3283
    %v3286 = vadd.f32 %v3274, %v3284
    %v3287 = vsub.f32 0.0, %v3286
    %v3288 = vmul.f32 %v3287, 1.442695
    %v3289 = vpow.pop %v3288
    %v3290 = vadd.f32 %v3289, 1.0
    %v3291 = vrcp.pop %v3290
    %v3292 = vmul.f32 %v3290, %v3291
    %v3293 = vsub.f32 1.0, %v3292
    %v3294 = vmul.f32 %v3291, %v3293
    %v3295 = vadd.f32 %v3291, %v3294
    %vm3296 = vweird.f32 %v3290
    %vm3297 = vweird.f32 %v3291
    %vm3298 = vmor %vm3296, %vm3297
    %v3299 = vsel %vm3298, %v3291, %v3295
    %v3300 = vand.u32 2147483647, %v3290
    %vm3301 = vcmp.eq.f32.partialorder %v3300, 8.507059e+37
    %v3302 = vand.u32 %v3290, 2147483648
    %v3303 = vor.u32 1.1754944e-38, %v3302
    %v3304 = vsel %vm3301, %v3303, %v3299
    %v3305 = vmul.f32 1.0, %v3304
    %v3307 = vrot.slane %v3286, 4
    %v3309 = vtanh.pop %v3307
    %v3311 = vrot.slane %v3305, 2
    %v3313 = vmul.f32 %v3311, %v3196
    %v3314 = vmul.f32 %v3305, %v3309
    %v3315 = vadd.f32 %v3313, %v3314
    %v3316 = vrot.slane %v3286, 6
    %v3318 = vsub.f32 0.0, %v3316
    %v3319 = vmul.f32 %v3318, 1.442695
    %v3320 = vpow.pop %v3319
    %v3321 = vadd.f32 %v3320, 1.0
    %v3322 = vrcp.pop %v3321
    %v3323 = vmul.f32 %v3321, %v3322
    %v3324 = vsub.f32 1.0, %v3323
    %v3325 = vmul.f32 %v3322, %v3324
    %v3326 = vadd.f32 %v3322, %v3325
    %vm3327 = vweird.f32 %v3321
    %vm3328 = vweird.f32 %v3322
    %vm3329 = vmor %vm3327, %vm3328
    %v3330 = vsel %vm3329, %v3322, %v3326
    %v3331 = vand.u32 2147483647, %v3321
    %vm3332 = vcmp.eq.f32.partialorder %v3331, 8.507059e+37
    %v3333 = vand.u32 %v3321, 2147483648
    %v3334 = vor.u32 1.1754944e-38, %v3333
    %v3335 = vsel %vm3332, %v3334, %v3330
    %v3336 = vmul.f32 1.0, %v3335
    %v3337 = vtanh.pop %v3315
    %v3338 = vmul.f32 %v3336, %v3337
    %v3339 = vpack.c.bf16 %v3338, %v3338
    %3340 = vmatpush.bf16.msra.mxu0 %v1163
    %3341 = vmatpush.bf16.msra.mxu0 %v1159
    %3342 = vmatpush.bf16.msra.mxu0 %v1155
    %3343 = vmatpush.bf16.msra.mxu0 %v1151
    %3344 = vmatpush.bf16.msra.mxu0 %v1147
    %3345 = vmatpush.bf16.msra.mxu0 %v1143
    %3346 = vmatpush.bf16.msra.mxu0 %v1139
    %3347 = vmatpush.bf16.msra.mxu0 %v1135
    %3348 = vmatmul.bf16.gmra.mxu0 %v3339
    %v3349 = vpop.f32.mrf.mxu0
    %v3350 = vadd.f32 0.0, %v3349
    %v3351 = vpop.f32.mrf.mxu0
    %3352 = vdwg.mxu0
    %3353 = vmatpush.bf16.msra.mxu0 %v1164
    %3354 = vmatpush.bf16.msra.mxu0 %v1160
    %3355 = vmatpush.bf16.msra.mxu0 %v1156
    %3356 = vmatpush.bf16.msra.mxu0 %v1152
    %3357 = vmatpush.bf16.msra.mxu0 %v1148
    %3358 = vmatpush.bf16.msra.mxu0 %v1144
    %3359 = vmatpush.bf16.msra.mxu0 %v1140
    %3360 = vmatpush.bf16.msra.mxu0 %v1136
    %3361 = vmatmul.bf16.gmra.mxu0 %v3339
    %v3362 = vpop.f32.mrf.mxu0
    %v3363 = vadd.f32 0.0, %v3362
    %v3364 = vpop.f32.mrf.mxu0
    %3365 = vdwg.mxu0
    %3366 = vmatpush.bf16.msra.mxu0 %v1165
    %3367 = vmatpush.bf16.msra.mxu0 %v1161
    %3368 = vmatpush.bf16.msra.mxu0 %v1157
    %3369 = vmatpush.bf16.msra.mxu0 %v1153
    %3370 = vmatpush.bf16.msra.mxu0 %v1149
    %3371 = vmatpush.bf16.msra.mxu0 %v1145
    %3372 = vmatpush.bf16.msra.mxu0 %v1141
    %3373 = vmatpush.bf16.msra.mxu0 %v1137
    %3374 = vmatmul.bf16.gmra.mxu0 %v3339
    %v3375 = vpop.f32.mrf.mxu0
    %v3376 = vadd.f32 0.0, %v3375
    %v3377 = vpop.f32.mrf.mxu0
    %3378 = vdwg.mxu0
    %3379 = vmatpush.bf16.msra.mxu0 %v1166
    %3380 = vmatpush.bf16.msra.mxu0 %v1162
    %3381 = vmatpush.bf16.msra.mxu0 %v1158
    %3382 = vmatpush.bf16.msra.mxu0 %v1154
    %3383 = vmatpush.bf16.msra.mxu0 %v1150
    %3384 = vmatpush.bf16.msra.mxu0 %v1146
    %3385 = vmatpush.bf16.msra.mxu0 %v1142
    %3386 = vmatpush.bf16.msra.mxu0 %v1138
    %3387 = vmatmul.bf16.gmra.mxu0 %v3339
    %v3388 = vpop.f32.mrf.mxu0
    %v3389 = vadd.f32 0.0, %v3388
    %v3390 = vpop.f32.mrf.mxu0
    %3391 = vdwg.mxu0
    %s3392 = scalar_lea.vmem [#allocation2], 144
    %v3393 = vld [vmem:[%s3392] sm:$0xff]
    %v3398 = vrot.slane %v3363, 6
    %v3399 = vrot.slane %v3376, 4
    %v3400 = vrot.slane %v3389, 2
    %v3401 = vsel %vm824, %v3350, %v3398
    %v3402 = vsel %vm826, %v3399, %v3400
    %v3403 = vsel %vm828, %v3401, %v3402
    %v3405 = vadd.f32 %v3393, %v3403
    %v3406 = vsub.f32 0.0, %v3405
    %v3407 = vmul.f32 %v3406, 1.442695
    %v3408 = vpow.pop %v3407
    %v3409 = vadd.f32 %v3408, 1.0
    %v3410 = vrcp.pop %v3409
    %v3411 = vmul.f32 %v3409, %v3410
    %v3412 = vsub.f32 1.0, %v3411
    %v3413 = vmul.f32 %v3410, %v3412
    %v3414 = vadd.f32 %v3410, %v3413
    %vm3415 = vweird.f32 %v3409
    %vm3416 = vweird.f32 %v3410
    %vm3417 = vmor %vm3415, %vm3416
    %v3418 = vsel %vm3417, %v3410, %v3414
    %v3419 = vand.u32 2147483647, %v3409
    %vm3420 = vcmp.eq.f32.partialorder %v3419, 8.507059e+37
    %v3421 = vand.u32 %v3409, 2147483648
    %v3422 = vor.u32 1.1754944e-38, %v3421
    %v3423 = vsel %vm3420, %v3422, %v3418
    %v3424 = vmul.f32 1.0, %v3423
    %v3426 = vrot.slane %v3405, 4
    %v3428 = vtanh.pop %v3426
    %v3430 = vrot.slane %v3424, 2
    %v3432 = vmul.f32 %v3430, %v3315
    %v3433 = vmul.f32 %v3424, %v3428
    %v3434 = vadd.f32 %v3432, %v3433
    %v3435 = vrot.slane %v3405, 6
    %v3437 = vsub.f32 0.0, %v3435
    %v3438 = vmul.f32 %v3437, 1.442695
    %v3439 = vpow.pop %v3438
    %v3440 = vadd.f32 %v3439, 1.0
    %v3441 = vrcp.pop %v3440
    %v3442 = vmul.f32 %v3440, %v3441
    %v3443 = vsub.f32 1.0, %v3442
    %v3444 = vmul.f32 %v3441, %v3443
    %v3445 = vadd.f32 %v3441, %v3444
    %vm3446 = vweird.f32 %v3440
    %vm3447 = vweird.f32 %v3441
    %vm3448 = vmor %vm3446, %vm3447
    %v3449 = vsel %vm3448, %v3441, %v3445
    %v3450 = vand.u32 2147483647, %v3440
    %vm3451 = vcmp.eq.f32.partialorder %v3450, 8.507059e+37
    %v3452 = vand.u32 %v3440, 2147483648
    %v3453 = vor.u32 1.1754944e-38, %v3452
    %v3454 = vsel %vm3451, %v3453, %v3449
    %v3455 = vmul.f32 1.0, %v3454
    %v3456 = vtanh.pop %v3434
    %v3457 = vmul.f32 %v3455, %v3456
    %v3458 = vpack.c.bf16 %v3457, %v3457
    %3459 = vmatpush.bf16.msra.mxu0 %v1163
    %3460 = vmatpush.bf16.msra.mxu0 %v1159
    %3461 = vmatpush.bf16.msra.mxu0 %v1155
    %3462 = vmatpush.bf16.msra.mxu0 %v1151
    %3463 = vmatpush.bf16.msra.mxu0 %v1147
    %3464 = vmatpush.bf16.msra.mxu0 %v1143
    %3465 = vmatpush.bf16.msra.mxu0 %v1139
    %3466 = vmatpush.bf16.msra.mxu0 %v1135
    %3467 = vmatmul.bf16.gmra.mxu0 %v3458
    %v3468 = vpop.f32.mrf.mxu0
    %v3469 = vadd.f32 0.0, %v3468
    %v3470 = vpop.f32.mrf.mxu0
    %3471 = vdwg.mxu0
    %3472 = vmatpush.bf16.msra.mxu0 %v1164
    %3473 = vmatpush.bf16.msra.mxu0 %v1160
    %3474 = vmatpush.bf16.msra.mxu0 %v1156
    %3475 = vmatpush.bf16.msra.mxu0 %v1152
    %3476 = vmatpush.bf16.msra.mxu0 %v1148
    %3477 = vmatpush.bf16.msra.mxu0 %v1144
    %3478 = vmatpush.bf16.msra.mxu0 %v1140
    %3479 = vmatpush.bf16.msra.mxu0 %v1136
    %3480 = vmatmul.bf16.gmra.mxu0 %v3458
    %v3481 = vpop.f32.mrf.mxu0
    %v3482 = vadd.f32 0.0, %v3481
    %v3483 = vpop.f32.mrf.mxu0
    %3484 = vdwg.mxu0
    %3485 = vmatpush.bf16.msra.mxu0 %v1165
    %3486 = vmatpush.bf16.msra.mxu0 %v1161
    %3487 = vmatpush.bf16.msra.mxu0 %v1157
    %3488 = vmatpush.bf16.msra.mxu0 %v1153
    %3489 = vmatpush.bf16.msra.mxu0 %v1149
    %3490 = vmatpush.bf16.msra.mxu0 %v1145
    %3491 = vmatpush.bf16.msra.mxu0 %v1141
    %3492 = vmatpush.bf16.msra.mxu0 %v1137
    %3493 = vmatmul.bf16.gmra.mxu0 %v3458
    %v3494 = vpop.f32.mrf.mxu0
    %v3495 = vadd.f32 0.0, %v3494
    %v3496 = vpop.f32.mrf.mxu0
    %3497 = vdwg.mxu0
    %3498 = vmatpush.bf16.msra.mxu0 %v1166
    %3499 = vmatpush.bf16.msra.mxu0 %v1162
    %3500 = vmatpush.bf16.msra.mxu0 %v1158
    %3501 = vmatpush.bf16.msra.mxu0 %v1154
    %3502 = vmatpush.bf16.msra.mxu0 %v1150
    %3503 = vmatpush.bf16.msra.mxu0 %v1146
    %3504 = vmatpush.bf16.msra.mxu0 %v1142
    %3505 = vmatpush.bf16.msra.mxu0 %v1138
    %3506 = vmatmul.bf16.gmra.mxu0 %v3458
    %v3507 = vpop.f32.mrf.mxu0
    %v3508 = vadd.f32 0.0, %v3507
    %v3509 = vpop.f32.mrf.mxu0
    %3510 = vdwg.mxu0
    %s3511 = scalar_lea.vmem [#allocation2], 152
    %v3512 = vld [vmem:[%s3511] sm:$0xff]
    %v3517 = vrot.slane %v3482, 6
    %v3518 = vrot.slane %v3495, 4
    %v3519 = vrot.slane %v3508, 2
    %v3520 = vsel %vm824, %v3469, %v3517
    %v3521 = vsel %vm826, %v3518, %v3519
    %v3522 = vsel %vm828, %v3520, %v3521
    %v3524 = vadd.f32 %v3512, %v3522
    %v3525 = vsub.f32 0.0, %v3524
    %v3526 = vmul.f32 %v3525, 1.442695
    %v3527 = vpow.pop %v3526
    %v3528 = vadd.f32 %v3527, 1.0
    %v3529 = vrcp.pop %v3528
    %v3530 = vmul.f32 %v3528, %v3529
    %v3531 = vsub.f32 1.0, %v3530
    %v3532 = vmul.f32 %v3529, %v3531
    %v3533 = vadd.f32 %v3529, %v3532
    %vm3534 = vweird.f32 %v3528
    %vm3535 = vweird.f32 %v3529
    %vm3536 = vmor %vm3534, %vm3535
    %v3537 = vsel %vm3536, %v3529, %v3533
    %v3538 = vand.u32 2147483647, %v3528
    %vm3539 = vcmp.eq.f32.partialorder %v3538, 8.507059e+37
    %v3540 = vand.u32 %v3528, 2147483648
    %v3541 = vor.u32 1.1754944e-38, %v3540
    %v3542 = vsel %vm3539, %v3541, %v3537
    %v3543 = vmul.f32 1.0, %v3542
    %v3545 = vrot.slane %v3524, 4
    %v3547 = vtanh.pop %v3545
    %v3549 = vrot.slane %v3543, 2
    %v3551 = vmul.f32 %v3549, %v3434
    %v3552 = vmul.f32 %v3543, %v3547
    %v3553 = vadd.f32 %v3551, %v3552
    %v3554 = vrot.slane %v3524, 6
    %v3556 = vsub.f32 0.0, %v3554
    %v3557 = vmul.f32 %v3556, 1.442695
    %v3558 = vpow.pop %v3557
    %v3559 = vadd.f32 %v3558, 1.0
    %v3560 = vrcp.pop %v3559
    %v3561 = vmul.f32 %v3559, %v3560
    %v3562 = vsub.f32 1.0, %v3561
    %v3563 = vmul.f32 %v3560, %v3562
    %v3564 = vadd.f32 %v3560, %v3563
    %vm3565 = vweird.f32 %v3559
    %vm3566 = vweird.f32 %v3560
    %vm3567 = vmor %vm3565, %vm3566
    %v3568 = vsel %vm3567, %v3560, %v3564
    %v3569 = vand.u32 2147483647, %v3559
    %vm3570 = vcmp.eq.f32.partialorder %v3569, 8.507059e+37
    %v3571 = vand.u32 %v3559, 2147483648
    %v3572 = vor.u32 1.1754944e-38, %v3571
    %v3573 = vsel %vm3570, %v3572, %v3568
    %v3574 = vmul.f32 1.0, %v3573
    %v3575 = vtanh.pop %v3553
    %v3576 = vmul.f32 %v3574, %v3575
    %v3577 = vpack.c.bf16 %v3576, %v3576
    %3578 = vmatpush.bf16.msra.mxu0 %v1163
    %3579 = vmatpush.bf16.msra.mxu0 %v1159
    %3580 = vmatpush.bf16.msra.mxu0 %v1155
    %3581 = vmatpush.bf16.msra.mxu0 %v1151
    %3582 = vmatpush.bf16.msra.mxu0 %v1147
    %3583 = vmatpush.bf16.msra.mxu0 %v1143
    %3584 = vmatpush.bf16.msra.mxu0 %v1139
    %3585 = vmatpush.bf16.msra.mxu0 %v1135
    %3586 = vmatmul.bf16.gmra.mxu0 %v3577
    %v3587 = vpop.f32.mrf.mxu0
    %v3588 = vadd.f32 0.0, %v3587
    %v3589 = vpop.f32.mrf.mxu0
    %3590 = vdwg.mxu0
    %3591 = vmatpush.bf16.msra.mxu0 %v1164
    %3592 = vmatpush.bf16.msra.mxu0 %v1160
    %3593 = vmatpush.bf16.msra.mxu0 %v1156
    %3594 = vmatpush.bf16.msra.mxu0 %v1152
    %3595 = vmatpush.bf16.msra.mxu0 %v1148
    %3596 = vmatpush.bf16.msra.mxu0 %v1144
    %3597 = vmatpush.bf16.msra.mxu0 %v1140
    %3598 = vmatpush.bf16.msra.mxu0 %v1136
    %3599 = vmatmul.bf16.gmra.mxu0 %v3577
    %v3600 = vpop.f32.mrf.mxu0
    %v3601 = vadd.f32 0.0, %v3600
    %v3602 = vpop.f32.mrf.mxu0
    %3603 = vdwg.mxu0
    %3604 = vmatpush.bf16.msra.mxu0 %v1165
    %3605 = vmatpush.bf16.msra.mxu0 %v1161
    %3606 = vmatpush.bf16.msra.mxu0 %v1157
    %3607 = vmatpush.bf16.msra.mxu0 %v1153
    %3608 = vmatpush.bf16.msra.mxu0 %v1149
    %3609 = vmatpush.bf16.msra.mxu0 %v1145
    %3610 = vmatpush.bf16.msra.mxu0 %v1141
    %3611 = vmatpush.bf16.msra.mxu0 %v1137
    %3612 = vmatmul.bf16.gmra.mxu0 %v3577
    %v3613 = vpop.f32.mrf.mxu0
    %v3614 = vadd.f32 0.0, %v3613
    %v3615 = vpop.f32.mrf.mxu0
    %3616 = vdwg.mxu0
    %3617 = vmatpush.bf16.msra.mxu0 %v1166
    %3618 = vmatpush.bf16.msra.mxu0 %v1162
    %3619 = vmatpush.bf16.msra.mxu0 %v1158
    %3620 = vmatpush.bf16.msra.mxu0 %v1154
    %3621 = vmatpush.bf16.msra.mxu0 %v1150
    %3622 = vmatpush.bf16.msra.mxu0 %v1146
    %3623 = vmatpush.bf16.msra.mxu0 %v1142
    %3624 = vmatpush.bf16.msra.mxu0 %v1138
    %3625 = vmatmul.bf16.gmra.mxu0 %v3577
    %v3626 = vpop.f32.mrf.mxu0
    %v3627 = vadd.f32 0.0, %v3626
    %v3628 = vpop.f32.mrf.mxu0
    %3629 = vdwg.mxu0
    %s3630 = scalar_lea.vmem [#allocation2], 160
    %v3631 = vld [vmem:[%s3630] sm:$0xff]
    %v3636 = vrot.slane %v3601, 6
    %v3637 = vrot.slane %v3614, 4
    %v3638 = vrot.slane %v3627, 2
    %v3639 = vsel %vm824, %v3588, %v3636
    %v3640 = vsel %vm826, %v3637, %v3638
    %v3641 = vsel %vm828, %v3639, %v3640
    %v3643 = vadd.f32 %v3631, %v3641
    %v3644 = vsub.f32 0.0, %v3643
    %v3645 = vmul.f32 %v3644, 1.442695
    %v3646 = vpow.pop %v3645
    %v3647 = vadd.f32 %v3646, 1.0
    %v3648 = vrcp.pop %v3647
    %v3649 = vmul.f32 %v3647, %v3648
    %v3650 = vsub.f32 1.0, %v3649
    %v3651 = vmul.f32 %v3648, %v3650
    %v3652 = vadd.f32 %v3648, %v3651
    %vm3653 = vweird.f32 %v3647
    %vm3654 = vweird.f32 %v3648
    %vm3655 = vmor %vm3653, %vm3654
    %v3656 = vsel %vm3655, %v3648, %v3652
    %v3657 = vand.u32 2147483647, %v3647
    %vm3658 = vcmp.eq.f32.partialorder %v3657, 8.507059e+37
    %v3659 = vand.u32 %v3647, 2147483648
    %v3660 = vor.u32 1.1754944e-38, %v3659
    %v3661 = vsel %vm3658, %v3660, %v3656
    %v3662 = vmul.f32 1.0, %v3661
    %v3664 = vrot.slane %v3643, 4
    %v3666 = vtanh.pop %v3664
    %v3668 = vrot.slane %v3662, 2
    %v3670 = vmul.f32 %v3668, %v3553
    %v3671 = vmul.f32 %v3662, %v3666
    %v3672 = vadd.f32 %v3670, %v3671
    %v3673 = vrot.slane %v3643, 6
    %v3675 = vsub.f32 0.0, %v3673
    %v3676 = vmul.f32 %v3675, 1.442695
    %v3677 = vpow.pop %v3676
    %v3678 = vadd.f32 %v3677, 1.0
    %v3679 = vrcp.pop %v3678
    %v3680 = vmul.f32 %v3678, %v3679
    %v3681 = vsub.f32 1.0, %v3680
    %v3682 = vmul.f32 %v3679, %v3681
    %v3683 = vadd.f32 %v3679, %v3682
    %vm3684 = vweird.f32 %v3678
    %vm3685 = vweird.f32 %v3679
    %vm3686 = vmor %vm3684, %vm3685
    %v3687 = vsel %vm3686, %v3679, %v3683
    %v3688 = vand.u32 2147483647, %v3678
    %vm3689 = vcmp.eq.f32.partialorder %v3688, 8.507059e+37
    %v3690 = vand.u32 %v3678, 2147483648
    %v3691 = vor.u32 1.1754944e-38, %v3690
    %v3692 = vsel %vm3689, %v3691, %v3687
    %v3693 = vmul.f32 1.0, %v3692
    %v3694 = vtanh.pop %v3672
    %v3695 = vmul.f32 %v3693, %v3694
    %v3696 = vpack.c.bf16 %v3695, %v3695
    %3697 = vmatpush.bf16.msra.mxu0 %v1163
    %3698 = vmatpush.bf16.msra.mxu0 %v1159
    %3699 = vmatpush.bf16.msra.mxu0 %v1155
    %3700 = vmatpush.bf16.msra.mxu0 %v1151
    %3701 = vmatpush.bf16.msra.mxu0 %v1147
    %3702 = vmatpush.bf16.msra.mxu0 %v1143
    %3703 = vmatpush.bf16.msra.mxu0 %v1139
    %3704 = vmatpush.bf16.msra.mxu0 %v1135
    %3705 = vmatmul.bf16.gmra.mxu0 %v3696
    %v3706 = vpop.f32.mrf.mxu0
    %v3707 = vadd.f32 0.0, %v3706
    %v3708 = vpop.f32.mrf.mxu0
    %3709 = vdwg.mxu0
    %3710 = vmatpush.bf16.msra.mxu0 %v1164
    %3711 = vmatpush.bf16.msra.mxu0 %v1160
    %3712 = vmatpush.bf16.msra.mxu0 %v1156
    %3713 = vmatpush.bf16.msra.mxu0 %v1152
    %3714 = vmatpush.bf16.msra.mxu0 %v1148
    %3715 = vmatpush.bf16.msra.mxu0 %v1144
    %3716 = vmatpush.bf16.msra.mxu0 %v1140
    %3717 = vmatpush.bf16.msra.mxu0 %v1136
    %3718 = vmatmul.bf16.gmra.mxu0 %v3696
    %v3719 = vpop.f32.mrf.mxu0
    %v3720 = vadd.f32 0.0, %v3719
    %v3721 = vpop.f32.mrf.mxu0
    %3722 = vdwg.mxu0
    %3723 = vmatpush.bf16.msra.mxu0 %v1165
    %3724 = vmatpush.bf16.msra.mxu0 %v1161
    %3725 = vmatpush.bf16.msra.mxu0 %v1157
    %3726 = vmatpush.bf16.msra.mxu0 %v1153
    %3727 = vmatpush.bf16.msra.mxu0 %v1149
    %3728 = vmatpush.bf16.msra.mxu0 %v1145
    %3729 = vmatpush.bf16.msra.mxu0 %v1141
    %3730 = vmatpush.bf16.msra.mxu0 %v1137
    %3731 = vmatmul.bf16.gmra.mxu0 %v3696
    %v3732 = vpop.f32.mrf.mxu0
    %v3733 = vadd.f32 0.0, %v3732
    %v3734 = vpop.f32.mrf.mxu0
    %3735 = vdwg.mxu0
    %3736 = vmatpush.bf16.msra.mxu0 %v1166
    %3737 = vmatpush.bf16.msra.mxu0 %v1162
    %3738 = vmatpush.bf16.msra.mxu0 %v1158
    %3739 = vmatpush.bf16.msra.mxu0 %v1154
    %3740 = vmatpush.bf16.msra.mxu0 %v1150
    %3741 = vmatpush.bf16.msra.mxu0 %v1146
    %3742 = vmatpush.bf16.msra.mxu0 %v1142
    %3743 = vmatpush.bf16.msra.mxu0 %v1138
    %3744 = vmatmul.bf16.gmra.mxu0 %v3696
    %v3745 = vpop.f32.mrf.mxu0
    %v3746 = vadd.f32 0.0, %v3745
    %v3747 = vpop.f32.mrf.mxu0
    %3748 = vdwg.mxu0
    %s3749 = scalar_lea.vmem [#allocation2], 168
    %v3750 = vld [vmem:[%s3749] sm:$0xff]
    %v3755 = vrot.slane %v3720, 6
    %v3756 = vrot.slane %v3733, 4
    %v3757 = vrot.slane %v3746, 2
    %v3758 = vsel %vm824, %v3707, %v3755
    %v3759 = vsel %vm826, %v3756, %v3757
    %v3760 = vsel %vm828, %v3758, %v3759
    %v3762 = vadd.f32 %v3750, %v3760
    %v3763 = vsub.f32 0.0, %v3762
    %v3764 = vmul.f32 %v3763, 1.442695
    %v3765 = vpow.pop %v3764
    %v3766 = vadd.f32 %v3765, 1.0
    %v3767 = vrcp.pop %v3766
    %v3768 = vmul.f32 %v3766, %v3767
    %v3769 = vsub.f32 1.0, %v3768
    %v3770 = vmul.f32 %v3767, %v3769
    %v3771 = vadd.f32 %v3767, %v3770
    %vm3772 = vweird.f32 %v3766
    %vm3773 = vweird.f32 %v3767
    %vm3774 = vmor %vm3772, %vm3773
    %v3775 = vsel %vm3774, %v3767, %v3771
    %v3776 = vand.u32 2147483647, %v3766
    %vm3777 = vcmp.eq.f32.partialorder %v3776, 8.507059e+37
    %v3778 = vand.u32 %v3766, 2147483648
    %v3779 = vor.u32 1.1754944e-38, %v3778
    %v3780 = vsel %vm3777, %v3779, %v3775
    %v3781 = vmul.f32 1.0, %v3780
    %v3783 = vrot.slane %v3762, 4
    %v3785 = vtanh.pop %v3783
    %v3787 = vrot.slane %v3781, 2
    %v3789 = vmul.f32 %v3787, %v3672
    %v3790 = vmul.f32 %v3781, %v3785
    %v3791 = vadd.f32 %v3789, %v3790
    %v3792 = vrot.slane %v3762, 6
    %v3794 = vsub.f32 0.0, %v3792
    %v3795 = vmul.f32 %v3794, 1.442695
    %v3796 = vpow.pop %v3795
    %v3797 = vadd.f32 %v3796, 1.0
    %v3798 = vrcp.pop %v3797
    %v3799 = vmul.f32 %v3797, %v3798
    %v3800 = vsub.f32 1.0, %v3799
    %v3801 = vmul.f32 %v3798, %v3800
    %v3802 = vadd.f32 %v3798, %v3801
    %vm3803 = vweird.f32 %v3797
    %vm3804 = vweird.f32 %v3798
    %vm3805 = vmor %vm3803, %vm3804
    %v3806 = vsel %vm3805, %v3798, %v3802
    %v3807 = vand.u32 2147483647, %v3797
    %vm3808 = vcmp.eq.f32.partialorder %v3807, 8.507059e+37
    %v3809 = vand.u32 %v3797, 2147483648
    %v3810 = vor.u32 1.1754944e-38, %v3809
    %v3811 = vsel %vm3808, %v3810, %v3806
    %v3812 = vmul.f32 1.0, %v3811
    %v3813 = vtanh.pop %v3791
    %v3814 = vmul.f32 %v3812, %v3813
    %v3815 = vpack.c.bf16 %v3814, %v3814
    %3816 = vmatpush.bf16.msra.mxu0 %v1163
    %3817 = vmatpush.bf16.msra.mxu0 %v1159
    %3818 = vmatpush.bf16.msra.mxu0 %v1155
    %3819 = vmatpush.bf16.msra.mxu0 %v1151
    %3820 = vmatpush.bf16.msra.mxu0 %v1147
    %3821 = vmatpush.bf16.msra.mxu0 %v1143
    %3822 = vmatpush.bf16.msra.mxu0 %v1139
    %3823 = vmatpush.bf16.msra.mxu0 %v1135
    %3824 = vmatmul.bf16.gmra.mxu0 %v3815
    %v3825 = vpop.f32.mrf.mxu0
    %v3826 = vadd.f32 0.0, %v3825
    %v3827 = vpop.f32.mrf.mxu0
    %3828 = vdwg.mxu0
    %3829 = vmatpush.bf16.msra.mxu0 %v1164
    %3830 = vmatpush.bf16.msra.mxu0 %v1160
    %3831 = vmatpush.bf16.msra.mxu0 %v1156
    %3832 = vmatpush.bf16.msra.mxu0 %v1152
    %3833 = vmatpush.bf16.msra.mxu0 %v1148
    %3834 = vmatpush.bf16.msra.mxu0 %v1144
    %3835 = vmatpush.bf16.msra.mxu0 %v1140
    %3836 = vmatpush.bf16.msra.mxu0 %v1136
    %3837 = vmatmul.bf16.gmra.mxu0 %v3815
    %v3838 = vpop.f32.mrf.mxu0
    %v3839 = vadd.f32 0.0, %v3838
    %v3840 = vpop.f32.mrf.mxu0
    %3841 = vdwg.mxu0
    %3842 = vmatpush.bf16.msra.mxu0 %v1165
    %3843 = vmatpush.bf16.msra.mxu0 %v1161
    %3844 = vmatpush.bf16.msra.mxu0 %v1157
    %3845 = vmatpush.bf16.msra.mxu0 %v1153
    %3846 = vmatpush.bf16.msra.mxu0 %v1149
    %3847 = vmatpush.bf16.msra.mxu0 %v1145
    %3848 = vmatpush.bf16.msra.mxu0 %v1141
    %3849 = vmatpush.bf16.msra.mxu0 %v1137
    %3850 = vmatmul.bf16.gmra.mxu0 %v3815
    %v3851 = vpop.f32.mrf.mxu0
    %v3852 = vadd.f32 0.0, %v3851
    %v3853 = vpop.f32.mrf.mxu0
    %3854 = vdwg.mxu0
    %3855 = vmatpush.bf16.msra.mxu0 %v1166
    %3856 = vmatpush.bf16.msra.mxu0 %v1162
    %3857 = vmatpush.bf16.msra.mxu0 %v1158
    %3858 = vmatpush.bf16.msra.mxu0 %v1154
    %3859 = vmatpush.bf16.msra.mxu0 %v1150
    %3860 = vmatpush.bf16.msra.mxu0 %v1146
    %3861 = vmatpush.bf16.msra.mxu0 %v1142
    %3862 = vmatpush.bf16.msra.mxu0 %v1138
    %3863 = vmatmul.bf16.gmra.mxu0 %v3815
    %v3864 = vpop.f32.mrf.mxu0
    %v3865 = vadd.f32 0.0, %v3864
    %v3866 = vpop.f32.mrf.mxu0
    %3867 = vdwg.mxu0
    %s3868 = scalar_lea.vmem [#allocation2], 176
    %v3869 = vld [vmem:[%s3868] sm:$0xff]
    %v3874 = vrot.slane %v3839, 6
    %v3875 = vrot.slane %v3852, 4
    %v3876 = vrot.slane %v3865, 2
    %v3877 = vsel %vm824, %v3826, %v3874
    %v3878 = vsel %vm826, %v3875, %v3876
    %v3879 = vsel %vm828, %v3877, %v3878
    %v3881 = vadd.f32 %v3869, %v3879
    %v3882 = vsub.f32 0.0, %v3881
    %v3883 = vmul.f32 %v3882, 1.442695
    %v3884 = vpow.pop %v3883
    %v3885 = vadd.f32 %v3884, 1.0
    %v3886 = vrcp.pop %v3885
    %v3887 = vmul.f32 %v3885, %v3886
    %v3888 = vsub.f32 1.0, %v3887
    %v3889 = vmul.f32 %v3886, %v3888
    %v3890 = vadd.f32 %v3886, %v3889
    %vm3891 = vweird.f32 %v3885
    %vm3892 = vweird.f32 %v3886
    %vm3893 = vmor %vm3891, %vm3892
    %v3894 = vsel %vm3893, %v3886, %v3890
    %v3895 = vand.u32 2147483647, %v3885
    %vm3896 = vcmp.eq.f32.partialorder %v3895, 8.507059e+37
    %v3897 = vand.u32 %v3885, 2147483648
    %v3898 = vor.u32 1.1754944e-38, %v3897
    %v3899 = vsel %vm3896, %v3898, %v3894
    %v3900 = vmul.f32 1.0, %v3899
    %v3902 = vrot.slane %v3881, 4
    %v3904 = vtanh.pop %v3902
    %v3906 = vrot.slane %v3900, 2
    %v3908 = vmul.f32 %v3906, %v3791
    %v3909 = vmul.f32 %v3900, %v3904
    %v3910 = vadd.f32 %v3908, %v3909
    %v3911 = vrot.slane %v3881, 6
    %v3913 = vsub.f32 0.0, %v3911
    %v3914 = vmul.f32 %v3913, 1.442695
    %v3915 = vpow.pop %v3914
    %v3916 = vadd.f32 %v3915, 1.0
    %v3917 = vrcp.pop %v3916
    %v3918 = vmul.f32 %v3916, %v3917
    %v3919 = vsub.f32 1.0, %v3918
    %v3920 = vmul.f32 %v3917, %v3919
    %v3921 = vadd.f32 %v3917, %v3920
    %vm3922 = vweird.f32 %v3916
    %vm3923 = vweird.f32 %v3917
    %vm3924 = vmor %vm3922, %vm3923
    %v3925 = vsel %vm3924, %v3917, %v3921
    %v3926 = vand.u32 2147483647, %v3916
    %vm3927 = vcmp.eq.f32.partialorder %v3926, 8.507059e+37
    %v3928 = vand.u32 %v3916, 2147483648
    %v3929 = vor.u32 1.1754944e-38, %v3928
    %v3930 = vsel %vm3927, %v3929, %v3925
    %v3931 = vmul.f32 1.0, %v3930
    %v3932 = vtanh.pop %v3910
    %v3933 = vmul.f32 %v3931, %v3932
    %v3934 = vpack.c.bf16 %v3933, %v3933
    %3935 = vmatpush.bf16.msra.mxu0 %v1163
    %3936 = vmatpush.bf16.msra.mxu0 %v1159
    %3937 = vmatpush.bf16.msra.mxu0 %v1155
    %3938 = vmatpush.bf16.msra.mxu0 %v1151
    %3939 = vmatpush.bf16.msra.mxu0 %v1147
    %3940 = vmatpush.bf16.msra.mxu0 %v1143
    %3941 = vmatpush.bf16.msra.mxu0 %v1139
    %3942 = vmatpush.bf16.msra.mxu0 %v1135
    %3943 = vmatmul.bf16.gmra.mxu0 %v3934
    %v3944 = vpop.f32.mrf.mxu0
    %v3945 = vadd.f32 0.0, %v3944
    %v3946 = vpop.f32.mrf.mxu0
    %3947 = vdwg.mxu0
    %3948 = vmatpush.bf16.msra.mxu0 %v1164
    %3949 = vmatpush.bf16.msra.mxu0 %v1160
    %3950 = vmatpush.bf16.msra.mxu0 %v1156
    %3951 = vmatpush.bf16.msra.mxu0 %v1152
    %3952 = vmatpush.bf16.msra.mxu0 %v1148
    %3953 = vmatpush.bf16.msra.mxu0 %v1144
    %3954 = vmatpush.bf16.msra.mxu0 %v1140
    %3955 = vmatpush.bf16.msra.mxu0 %v1136
    %3956 = vmatmul.bf16.gmra.mxu0 %v3934
    %v3957 = vpop.f32.mrf.mxu0
    %v3958 = vadd.f32 0.0, %v3957
    %v3959 = vpop.f32.mrf.mxu0
    %3960 = vdwg.mxu0
    %3961 = vmatpush.bf16.msra.mxu0 %v1165
    %3962 = vmatpush.bf16.msra.mxu0 %v1161
    %3963 = vmatpush.bf16.msra.mxu0 %v1157
    %3964 = vmatpush.bf16.msra.mxu0 %v1153
    %3965 = vmatpush.bf16.msra.mxu0 %v1149
    %3966 = vmatpush.bf16.msra.mxu0 %v1145
    %3967 = vmatpush.bf16.msra.mxu0 %v1141
    %3968 = vmatpush.bf16.msra.mxu0 %v1137
    %3969 = vmatmul.bf16.gmra.mxu0 %v3934
    %v3970 = vpop.f32.mrf.mxu0
    %v3971 = vadd.f32 0.0, %v3970
    %v3972 = vpop.f32.mrf.mxu0
    %3973 = vdwg.mxu0
    %3974 = vmatpush.bf16.msra.mxu0 %v1166
    %3975 = vmatpush.bf16.msra.mxu0 %v1162
    %3976 = vmatpush.bf16.msra.mxu0 %v1158
    %3977 = vmatpush.bf16.msra.mxu0 %v1154
    %3978 = vmatpush.bf16.msra.mxu0 %v1150
    %3979 = vmatpush.bf16.msra.mxu0 %v1146
    %3980 = vmatpush.bf16.msra.mxu0 %v1142
    %3981 = vmatpush.bf16.msra.mxu0 %v1138
    %3982 = vmatmul.bf16.gmra.mxu0 %v3934
    %v3983 = vpop.f32.mrf.mxu0
    %v3984 = vadd.f32 0.0, %v3983
    %v3985 = vpop.f32.mrf.mxu0
    %3986 = vdwg.mxu0
    %s3987 = scalar_lea.vmem [#allocation2], 184
    %v3988 = vld [vmem:[%s3987] sm:$0xff]
    %v3993 = vrot.slane %v3958, 6
    %v3994 = vrot.slane %v3971, 4
    %v3995 = vrot.slane %v3984, 2
    %v3996 = vsel %vm824, %v3945, %v3993
    %v3997 = vsel %vm826, %v3994, %v3995
    %v3998 = vsel %vm828, %v3996, %v3997
    %v4000 = vadd.f32 %v3988, %v3998
    %v4001 = vsub.f32 0.0, %v4000
    %v4002 = vmul.f32 %v4001, 1.442695
    %v4003 = vpow.pop %v4002
    %v4004 = vadd.f32 %v4003, 1.0
    %v4005 = vrcp.pop %v4004
    %v4006 = vmul.f32 %v4004, %v4005
    %v4007 = vsub.f32 1.0, %v4006
    %v4008 = vmul.f32 %v4005, %v4007
    %v4009 = vadd.f32 %v4005, %v4008
    %vm4010 = vweird.f32 %v4004
    %vm4011 = vweird.f32 %v4005
    %vm4012 = vmor %vm4010, %vm4011
    %v4013 = vsel %vm4012, %v4005, %v4009
    %v4014 = vand.u32 2147483647, %v4004
    %vm4015 = vcmp.eq.f32.partialorder %v4014, 8.507059e+37
    %v4016 = vand.u32 %v4004, 2147483648
    %v4017 = vor.u32 1.1754944e-38, %v4016
    %v4018 = vsel %vm4015, %v4017, %v4013
    %v4019 = vmul.f32 1.0, %v4018
    %v4021 = vrot.slane %v4000, 4
    %v4023 = vtanh.pop %v4021
    %v4025 = vrot.slane %v4019, 2
    %v4027 = vmul.f32 %v4025, %v3910
    %v4028 = vmul.f32 %v4019, %v4023
    %v4029 = vadd.f32 %v4027, %v4028
    %v4030 = vrot.slane %v4000, 6
    %v4032 = vsub.f32 0.0, %v4030
    %v4033 = vmul.f32 %v4032, 1.442695
    %v4034 = vpow.pop %v4033
    %v4035 = vadd.f32 %v4034, 1.0
    %v4036 = vrcp.pop %v4035
    %v4037 = vmul.f32 %v4035, %v4036
    %v4038 = vsub.f32 1.0, %v4037
    %v4039 = vmul.f32 %v4036, %v4038
    %v4040 = vadd.f32 %v4036, %v4039
    %vm4041 = vweird.f32 %v4035
    %vm4042 = vweird.f32 %v4036
    %vm4043 = vmor %vm4041, %vm4042
    %v4044 = vsel %vm4043, %v4036, %v4040
    %v4045 = vand.u32 2147483647, %v4035
    %vm4046 = vcmp.eq.f32.partialorder %v4045, 8.507059e+37
    %v4047 = vand.u32 %v4035, 2147483648
    %v4048 = vor.u32 1.1754944e-38, %v4047
    %v4049 = vsel %vm4046, %v4048, %v4044
    %v4050 = vmul.f32 1.0, %v4049
    %v4051 = vtanh.pop %v4029
    %v4052 = vmul.f32 %v4050, %v4051
    %v4053 = vpack.c.bf16 %v4052, %v4052
    %4054 = vmatpush.bf16.msra.mxu0 %v1163
    %4055 = vmatpush.bf16.msra.mxu0 %v1159
    %4056 = vmatpush.bf16.msra.mxu0 %v1155
    %4057 = vmatpush.bf16.msra.mxu0 %v1151
    %4058 = vmatpush.bf16.msra.mxu0 %v1147
    %4059 = vmatpush.bf16.msra.mxu0 %v1143
    %4060 = vmatpush.bf16.msra.mxu0 %v1139
    %4061 = vmatpush.bf16.msra.mxu0 %v1135
    %4062 = vmatmul.bf16.gmra.mxu0 %v4053
    %v4063 = vpop.f32.mrf.mxu0
    %v4064 = vadd.f32 0.0, %v4063
    %v4065 = vpop.f32.mrf.mxu0
    %4066 = vdwg.mxu0
    %4067 = vmatpush.bf16.msra.mxu0 %v1164
    %4068 = vmatpush.bf16.msra.mxu0 %v1160
    %4069 = vmatpush.bf16.msra.mxu0 %v1156
    %4070 = vmatpush.bf16.msra.mxu0 %v1152
    %4071 = vmatpush.bf16.msra.mxu0 %v1148
    %4072 = vmatpush.bf16.msra.mxu0 %v1144
    %4073 = vmatpush.bf16.msra.mxu0 %v1140
    %4074 = vmatpush.bf16.msra.mxu0 %v1136
    %4075 = vmatmul.bf16.gmra.mxu0 %v4053
    %v4076 = vpop.f32.mrf.mxu0
    %v4077 = vadd.f32 0.0, %v4076
    %v4078 = vpop.f32.mrf.mxu0
    %4079 = vdwg.mxu0
    %4080 = vmatpush.bf16.msra.mxu0 %v1165
    %4081 = vmatpush.bf16.msra.mxu0 %v1161
    %4082 = vmatpush.bf16.msra.mxu0 %v1157
    %4083 = vmatpush.bf16.msra.mxu0 %v1153
    %4084 = vmatpush.bf16.msra.mxu0 %v1149
    %4085 = vmatpush.bf16.msra.mxu0 %v1145
    %4086 = vmatpush.bf16.msra.mxu0 %v1141
    %4087 = vmatpush.bf16.msra.mxu0 %v1137
    %4088 = vmatmul.bf16.gmra.mxu0 %v4053
    %v4089 = vpop.f32.mrf.mxu0
    %v4090 = vadd.f32 0.0, %v4089
    %v4091 = vpop.f32.mrf.mxu0
    %4092 = vdwg.mxu0
    %4093 = vmatpush.bf16.msra.mxu0 %v1166
    %4094 = vmatpush.bf16.msra.mxu0 %v1162
    %4095 = vmatpush.bf16.msra.mxu0 %v1158
    %4096 = vmatpush.bf16.msra.mxu0 %v1154
    %4097 = vmatpush.bf16.msra.mxu0 %v1150
    %4098 = vmatpush.bf16.msra.mxu0 %v1146
    %4099 = vmatpush.bf16.msra.mxu0 %v1142
    %4100 = vmatpush.bf16.msra.mxu0 %v1138
    %4101 = vmatmul.bf16.gmra.mxu0 %v4053
    %v4102 = vpop.f32.mrf.mxu0
    %v4103 = vadd.f32 0.0, %v4102
    %v4104 = vpop.f32.mrf.mxu0
    %4105 = vdwg.mxu0
    %s4106 = scalar_lea.vmem [#allocation2], 192
    %v4107 = vld [vmem:[%s4106] sm:$0xff]
    %v4112 = vrot.slane %v4077, 6
    %v4113 = vrot.slane %v4090, 4
    %v4114 = vrot.slane %v4103, 2
    %v4115 = vsel %vm824, %v4064, %v4112
    %v4116 = vsel %vm826, %v4113, %v4114
    %v4117 = vsel %vm828, %v4115, %v4116
    %v4119 = vadd.f32 %v4107, %v4117
    %v4120 = vsub.f32 0.0, %v4119
    %v4121 = vmul.f32 %v4120, 1.442695
    %v4122 = vpow.pop %v4121
    %v4123 = vadd.f32 %v4122, 1.0
    %v4124 = vrcp.pop %v4123
    %v4125 = vmul.f32 %v4123, %v4124
    %v4126 = vsub.f32 1.0, %v4125
    %v4127 = vmul.f32 %v4124, %v4126
    %v4128 = vadd.f32 %v4124, %v4127
    %vm4129 = vweird.f32 %v4123
    %vm4130 = vweird.f32 %v4124
    %vm4131 = vmor %vm4129, %vm4130
    %v4132 = vsel %vm4131, %v4124, %v4128
    %v4133 = vand.u32 2147483647, %v4123
    %vm4134 = vcmp.eq.f32.partialorder %v4133, 8.507059e+37
    %v4135 = vand.u32 %v4123, 2147483648
    %v4136 = vor.u32 1.1754944e-38, %v4135
    %v4137 = vsel %vm4134, %v4136, %v4132
    %v4138 = vmul.f32 1.0, %v4137
    %v4140 = vrot.slane %v4119, 4
    %v4142 = vtanh.pop %v4140
    %v4144 = vrot.slane %v4138, 2
    %v4146 = vmul.f32 %v4144, %v4029
    %v4147 = vmul.f32 %v4138, %v4142
    %v4148 = vadd.f32 %v4146, %v4147
    %v4149 = vrot.slane %v4119, 6
    %v4151 = vsub.f32 0.0, %v4149
    %v4152 = vmul.f32 %v4151, 1.442695
    %v4153 = vpow.pop %v4152
    %v4154 = vadd.f32 %v4153, 1.0
    %v4155 = vrcp.pop %v4154
    %v4156 = vmul.f32 %v4154, %v4155
    %v4157 = vsub.f32 1.0, %v4156
    %v4158 = vmul.f32 %v4155, %v4157
    %v4159 = vadd.f32 %v4155, %v4158
    %vm4160 = vweird.f32 %v4154
    %vm4161 = vweird.f32 %v4155
    %vm4162 = vmor %vm4160, %vm4161
    %v4163 = vsel %vm4162, %v4155, %v4159
    %v4164 = vand.u32 2147483647, %v4154
    %vm4165 = vcmp.eq.f32.partialorder %v4164, 8.507059e+37
    %v4166 = vand.u32 %v4154, 2147483648
    %v4167 = vor.u32 1.1754944e-38, %v4166
    %v4168 = vsel %vm4165, %v4167, %v4163
    %v4169 = vmul.f32 1.0, %v4168
    %v4170 = vtanh.pop %v4148
    %v4171 = vmul.f32 %v4169, %v4170
    %v4172 = vpack.c.bf16 %v4171, %v4171
    %4173 = vmatpush.bf16.msra.mxu0 %v1163
    %4174 = vmatpush.bf16.msra.mxu0 %v1159
    %4175 = vmatpush.bf16.msra.mxu0 %v1155
    %4176 = vmatpush.bf16.msra.mxu0 %v1151
    %4177 = vmatpush.bf16.msra.mxu0 %v1147
    %4178 = vmatpush.bf16.msra.mxu0 %v1143
    %4179 = vmatpush.bf16.msra.mxu0 %v1139
    %4180 = vmatpush.bf16.msra.mxu0 %v1135
    %4181 = vmatmul.bf16.gmra.mxu0 %v4172
    %v4182 = vpop.f32.mrf.mxu0
    %v4183 = vadd.f32 0.0, %v4182
    %v4184 = vpop.f32.mrf.mxu0
    %4185 = vdwg.mxu0
    %4186 = vmatpush.bf16.msra.mxu0 %v1164
    %4187 = vmatpush.bf16.msra.mxu0 %v1160
    %4188 = vmatpush.bf16.msra.mxu0 %v1156
    %4189 = vmatpush.bf16.msra.mxu0 %v1152
    %4190 = vmatpush.bf16.msra.mxu0 %v1148
    %4191 = vmatpush.bf16.msra.mxu0 %v1144
    %4192 = vmatpush.bf16.msra.mxu0 %v1140
    %4193 = vmatpush.bf16.msra.mxu0 %v1136
    %4194 = vmatmul.bf16.gmra.mxu0 %v4172
    %v4195 = vpop.f32.mrf.mxu0
    %v4196 = vadd.f32 0.0, %v4195
    %v4197 = vpop.f32.mrf.mxu0
    %4198 = vdwg.mxu0
    %4199 = vmatpush.bf16.msra.mxu0 %v1165
    %4200 = vmatpush.bf16.msra.mxu0 %v1161
    %4201 = vmatpush.bf16.msra.mxu0 %v1157
    %4202 = vmatpush.bf16.msra.mxu0 %v1153
    %4203 = vmatpush.bf16.msra.mxu0 %v1149
    %4204 = vmatpush.bf16.msra.mxu0 %v1145
    %4205 = vmatpush.bf16.msra.mxu0 %v1141
    %4206 = vmatpush.bf16.msra.mxu0 %v1137
    %4207 = vmatmul.bf16.gmra.mxu0 %v4172
    %v4208 = vpop.f32.mrf.mxu0
    %v4209 = vadd.f32 0.0, %v4208
    %v4210 = vpop.f32.mrf.mxu0
    %4211 = vdwg.mxu0
    %4212 = vmatpush.bf16.msra.mxu0 %v1166
    %4213 = vmatpush.bf16.msra.mxu0 %v1162
    %4214 = vmatpush.bf16.msra.mxu0 %v1158
    %4215 = vmatpush.bf16.msra.mxu0 %v1154
    %4216 = vmatpush.bf16.msra.mxu0 %v1150
    %4217 = vmatpush.bf16.msra.mxu0 %v1146
    %4218 = vmatpush.bf16.msra.mxu0 %v1142
    %4219 = vmatpush.bf16.msra.mxu0 %v1138
    %4220 = vmatmul.bf16.gmra.mxu0 %v4172
    %v4221 = vpop.f32.mrf.mxu0
    %v4222 = vadd.f32 0.0, %v4221
    %v4223 = vpop.f32.mrf.mxu0
    %4224 = vdwg.mxu0
    %s4225 = scalar_lea.vmem [#allocation2], 200
    %v4226 = vld [vmem:[%s4225] sm:$0xff]
    %v4231 = vrot.slane %v4196, 6
    %v4232 = vrot.slane %v4209, 4
    %v4233 = vrot.slane %v4222, 2
    %v4234 = vsel %vm824, %v4183, %v4231
    %v4235 = vsel %vm826, %v4232, %v4233
    %v4236 = vsel %vm828, %v4234, %v4235
    %v4238 = vadd.f32 %v4226, %v4236
    %v4239 = vsub.f32 0.0, %v4238
    %v4240 = vmul.f32 %v4239, 1.442695
    %v4241 = vpow.pop %v4240
    %v4242 = vadd.f32 %v4241, 1.0
    %v4243 = vrcp.pop %v4242
    %v4244 = vmul.f32 %v4242, %v4243
    %v4245 = vsub.f32 1.0, %v4244
    %v4246 = vmul.f32 %v4243, %v4245
    %v4247 = vadd.f32 %v4243, %v4246
    %vm4248 = vweird.f32 %v4242
    %vm4249 = vweird.f32 %v4243
    %vm4250 = vmor %vm4248, %vm4249
    %v4251 = vsel %vm4250, %v4243, %v4247
    %v4252 = vand.u32 2147483647, %v4242
    %vm4253 = vcmp.eq.f32.partialorder %v4252, 8.507059e+37
    %v4254 = vand.u32 %v4242, 2147483648
    %v4255 = vor.u32 1.1754944e-38, %v4254
    %v4256 = vsel %vm4253, %v4255, %v4251
    %v4257 = vmul.f32 1.0, %v4256
    %v4259 = vrot.slane %v4238, 4
    %v4261 = vtanh.pop %v4259
    %v4263 = vrot.slane %v4257, 2
    %v4265 = vmul.f32 %v4263, %v4148
    %v4266 = vmul.f32 %v4257, %v4261
    %v4267 = vadd.f32 %v4265, %v4266
    %v4268 = vrot.slane %v4238, 6
    %v4270 = vsub.f32 0.0, %v4268
    %v4271 = vmul.f32 %v4270, 1.442695
    %v4272 = vpow.pop %v4271
    %v4273 = vadd.f32 %v4272, 1.0
    %v4274 = vrcp.pop %v4273
    %v4275 = vmul.f32 %v4273, %v4274
    %v4276 = vsub.f32 1.0, %v4275
    %v4277 = vmul.f32 %v4274, %v4276
    %v4278 = vadd.f32 %v4274, %v4277
    %vm4279 = vweird.f32 %v4273
    %vm4280 = vweird.f32 %v4274
    %vm4281 = vmor %vm4279, %vm4280
    %v4282 = vsel %vm4281, %v4274, %v4278
    %v4283 = vand.u32 2147483647, %v4273
    %vm4284 = vcmp.eq.f32.partialorder %v4283, 8.507059e+37
    %v4285 = vand.u32 %v4273, 2147483648
    %v4286 = vor.u32 1.1754944e-38, %v4285
    %v4287 = vsel %vm4284, %v4286, %v4282
    %v4288 = vmul.f32 1.0, %v4287
    %v4289 = vtanh.pop %v4267
    %v4290 = vmul.f32 %v4288, %v4289
    %v4291 = vpack.c.bf16 %v4290, %v4290
    %4292 = vmatpush.bf16.msra.mxu0 %v1163
    %4293 = vmatpush.bf16.msra.mxu0 %v1159
    %4294 = vmatpush.bf16.msra.mxu0 %v1155
    %4295 = vmatpush.bf16.msra.mxu0 %v1151
    %4296 = vmatpush.bf16.msra.mxu0 %v1147
    %4297 = vmatpush.bf16.msra.mxu0 %v1143
    %4298 = vmatpush.bf16.msra.mxu0 %v1139
    %4299 = vmatpush.bf16.msra.mxu0 %v1135
    %4300 = vmatmul.bf16.gmra.mxu0 %v4291
    %v4301 = vpop.f32.mrf.mxu0
    %v4302 = vadd.f32 0.0, %v4301
    %v4303 = vpop.f32.mrf.mxu0
    %4304 = vdwg.mxu0
    %4305 = vmatpush.bf16.msra.mxu0 %v1164
    %4306 = vmatpush.bf16.msra.mxu0 %v1160
    %4307 = vmatpush.bf16.msra.mxu0 %v1156
    %4308 = vmatpush.bf16.msra.mxu0 %v1152
    %4309 = vmatpush.bf16.msra.mxu0 %v1148
    %4310 = vmatpush.bf16.msra.mxu0 %v1144
    %4311 = vmatpush.bf16.msra.mxu0 %v1140
    %4312 = vmatpush.bf16.msra.mxu0 %v1136
    %4313 = vmatmul.bf16.gmra.mxu0 %v4291
    %v4314 = vpop.f32.mrf.mxu0
    %v4315 = vadd.f32 0.0, %v4314
    %v4316 = vpop.f32.mrf.mxu0
    %4317 = vdwg.mxu0
    %4318 = vmatpush.bf16.msra.mxu0 %v1165
    %4319 = vmatpush.bf16.msra.mxu0 %v1161
    %4320 = vmatpush.bf16.msra.mxu0 %v1157
    %4321 = vmatpush.bf16.msra.mxu0 %v1153
    %4322 = vmatpush.bf16.msra.mxu0 %v1149
    %4323 = vmatpush.bf16.msra.mxu0 %v1145
    %4324 = vmatpush.bf16.msra.mxu0 %v1141
    %4325 = vmatpush.bf16.msra.mxu0 %v1137
    %4326 = vmatmul.bf16.gmra.mxu0 %v4291
    %v4327 = vpop.f32.mrf.mxu0
    %v4328 = vadd.f32 0.0, %v4327
    %v4329 = vpop.f32.mrf.mxu0
    %4330 = vdwg.mxu0
    %4331 = vmatpush.bf16.msra.mxu0 %v1166
    %4332 = vmatpush.bf16.msra.mxu0 %v1162
    %4333 = vmatpush.bf16.msra.mxu0 %v1158
    %4334 = vmatpush.bf16.msra.mxu0 %v1154
    %4335 = vmatpush.bf16.msra.mxu0 %v1150
    %4336 = vmatpush.bf16.msra.mxu0 %v1146
    %4337 = vmatpush.bf16.msra.mxu0 %v1142
    %4338 = vmatpush.bf16.msra.mxu0 %v1138
    %4339 = vmatmul.bf16.gmra.mxu0 %v4291
    %v4340 = vpop.f32.mrf.mxu0
    %v4341 = vadd.f32 0.0, %v4340
    %v4342 = vpop.f32.mrf.mxu0
    %4343 = vdwg.mxu0
    %s4344 = scalar_lea.vmem [#allocation2], 208
    %v4345 = vld [vmem:[%s4344] sm:$0xff]
    %v4350 = vrot.slane %v4315, 6
    %v4351 = vrot.slane %v4328, 4
    %v4352 = vrot.slane %v4341, 2
    %v4353 = vsel %vm824, %v4302, %v4350
    %v4354 = vsel %vm826, %v4351, %v4352
    %v4355 = vsel %vm828, %v4353, %v4354
    %v4357 = vadd.f32 %v4345, %v4355
    %v4358 = vsub.f32 0.0, %v4357
    %v4359 = vmul.f32 %v4358, 1.442695
    %v4360 = vpow.pop %v4359
    %v4361 = vadd.f32 %v4360, 1.0
    %v4362 = vrcp.pop %v4361
    %v4363 = vmul.f32 %v4361, %v4362
    %v4364 = vsub.f32 1.0, %v4363
    %v4365 = vmul.f32 %v4362, %v4364
    %v4366 = vadd.f32 %v4362, %v4365
    %vm4367 = vweird.f32 %v4361
    %vm4368 = vweird.f32 %v4362
    %vm4369 = vmor %vm4367, %vm4368
    %v4370 = vsel %vm4369, %v4362, %v4366
    %v4371 = vand.u32 2147483647, %v4361
    %vm4372 = vcmp.eq.f32.partialorder %v4371, 8.507059e+37
    %v4373 = vand.u32 %v4361, 2147483648
    %v4374 = vor.u32 1.1754944e-38, %v4373
    %v4375 = vsel %vm4372, %v4374, %v4370
    %v4376 = vmul.f32 1.0, %v4375
    %v4378 = vrot.slane %v4357, 4
    %v4380 = vtanh.pop %v4378
    %v4382 = vrot.slane %v4376, 2
    %v4384 = vmul.f32 %v4382, %v4267
    %v4385 = vmul.f32 %v4376, %v4380
    %v4386 = vadd.f32 %v4384, %v4385
    %v4387 = vrot.slane %v4357, 6
    %v4389 = vsub.f32 0.0, %v4387
    %v4390 = vmul.f32 %v4389, 1.442695
    %v4391 = vpow.pop %v4390
    %v4392 = vadd.f32 %v4391, 1.0
    %v4393 = vrcp.pop %v4392
    %v4394 = vmul.f32 %v4392, %v4393
    %v4395 = vsub.f32 1.0, %v4394
    %v4396 = vmul.f32 %v4393, %v4395
    %v4397 = vadd.f32 %v4393, %v4396
    %vm4398 = vweird.f32 %v4392
    %vm4399 = vweird.f32 %v4393
    %vm4400 = vmor %vm4398, %vm4399
    %v4401 = vsel %vm4400, %v4393, %v4397
    %v4402 = vand.u32 2147483647, %v4392
    %vm4403 = vcmp.eq.f32.partialorder %v4402, 8.507059e+37
    %v4404 = vand.u32 %v4392, 2147483648
    %v4405 = vor.u32 1.1754944e-38, %v4404
    %v4406 = vsel %vm4403, %v4405, %v4401
    %v4407 = vmul.f32 1.0, %v4406
    %v4408 = vtanh.pop %v4386
    %v4409 = vmul.f32 %v4407, %v4408
    %v4410 = vpack.c.bf16 %v4409, %v4409
    %4411 = vmatpush.bf16.msra.mxu0 %v1163
    %4412 = vmatpush.bf16.msra.mxu0 %v1159
    %4413 = vmatpush.bf16.msra.mxu0 %v1155
    %4414 = vmatpush.bf16.msra.mxu0 %v1151
    %4415 = vmatpush.bf16.msra.mxu0 %v1147
    %4416 = vmatpush.bf16.msra.mxu0 %v1143
    %4417 = vmatpush.bf16.msra.mxu0 %v1139
    %4418 = vmatpush.bf16.msra.mxu0 %v1135
    %4419 = vmatmul.bf16.gmra.mxu0 %v4410
    %v4420 = vpop.f32.mrf.mxu0
    %v4421 = vadd.f32 0.0, %v4420
    %v4422 = vpop.f32.mrf.mxu0
    %4423 = vdwg.mxu0
    %4424 = vmatpush.bf16.msra.mxu0 %v1164
    %4425 = vmatpush.bf16.msra.mxu0 %v1160
    %4426 = vmatpush.bf16.msra.mxu0 %v1156
    %4427 = vmatpush.bf16.msra.mxu0 %v1152
    %4428 = vmatpush.bf16.msra.mxu0 %v1148
    %4429 = vmatpush.bf16.msra.mxu0 %v1144
    %4430 = vmatpush.bf16.msra.mxu0 %v1140
    %4431 = vmatpush.bf16.msra.mxu0 %v1136
    %4432 = vmatmul.bf16.gmra.mxu0 %v4410
    %v4433 = vpop.f32.mrf.mxu0
    %v4434 = vadd.f32 0.0, %v4433
    %v4435 = vpop.f32.mrf.mxu0
    %4436 = vdwg.mxu0
    %4437 = vmatpush.bf16.msra.mxu0 %v1165
    %4438 = vmatpush.bf16.msra.mxu0 %v1161
    %4439 = vmatpush.bf16.msra.mxu0 %v1157
    %4440 = vmatpush.bf16.msra.mxu0 %v1153
    %4441 = vmatpush.bf16.msra.mxu0 %v1149
    %4442 = vmatpush.bf16.msra.mxu0 %v1145
    %4443 = vmatpush.bf16.msra.mxu0 %v1141
    %4444 = vmatpush.bf16.msra.mxu0 %v1137
    %4445 = vmatmul.bf16.gmra.mxu0 %v4410
    %v4446 = vpop.f32.mrf.mxu0
    %v4447 = vadd.f32 0.0, %v4446
    %v4448 = vpop.f32.mrf.mxu0
    %4449 = vdwg.mxu0
    %4450 = vmatpush.bf16.msra.mxu0 %v1166
    %4451 = vmatpush.bf16.msra.mxu0 %v1162
    %4452 = vmatpush.bf16.msra.mxu0 %v1158
    %4453 = vmatpush.bf16.msra.mxu0 %v1154
    %4454 = vmatpush.bf16.msra.mxu0 %v1150
    %4455 = vmatpush.bf16.msra.mxu0 %v1146
    %4456 = vmatpush.bf16.msra.mxu0 %v1142
    %4457 = vmatpush.bf16.msra.mxu0 %v1138
    %4458 = vmatmul.bf16.gmra.mxu0 %v4410
    %v4459 = vpop.f32.mrf.mxu0
    %v4460 = vadd.f32 0.0, %v4459
    %v4461 = vpop.f32.mrf.mxu0
    %4462 = vdwg.mxu0
    %s4463 = scalar_lea.vmem [#allocation2], 216
    %v4464 = vld [vmem:[%s4463] sm:$0xff]
    %v4469 = vrot.slane %v4434, 6
    %v4470 = vrot.slane %v4447, 4
    %v4471 = vrot.slane %v4460, 2
    %v4472 = vsel %vm824, %v4421, %v4469
    %v4473 = vsel %vm826, %v4470, %v4471
    %v4474 = vsel %vm828, %v4472, %v4473
    %v4476 = vadd.f32 %v4464, %v4474
    %v4477 = vsub.f32 0.0, %v4476
    %v4478 = vmul.f32 %v4477, 1.442695
    %v4479 = vpow.pop %v4478
    %v4480 = vadd.f32 %v4479, 1.0
    %v4481 = vrcp.pop %v4480
    %v4482 = vmul.f32 %v4480, %v4481
    %v4483 = vsub.f32 1.0, %v4482
    %v4484 = vmul.f32 %v4481, %v4483
    %v4485 = vadd.f32 %v4481, %v4484
    %vm4486 = vweird.f32 %v4480
    %vm4487 = vweird.f32 %v4481
    %vm4488 = vmor %vm4486, %vm4487
    %v4489 = vsel %vm4488, %v4481, %v4485
    %v4490 = vand.u32 2147483647, %v4480
    %vm4491 = vcmp.eq.f32.partialorder %v4490, 8.507059e+37
    %v4492 = vand.u32 %v4480, 2147483648
    %v4493 = vor.u32 1.1754944e-38, %v4492
    %v4494 = vsel %vm4491, %v4493, %v4489
    %v4495 = vmul.f32 1.0, %v4494
    %v4497 = vrot.slane %v4476, 4
    %v4499 = vtanh.pop %v4497
    %v4501 = vrot.slane %v4495, 2
    %v4503 = vmul.f32 %v4501, %v4386
    %v4504 = vmul.f32 %v4495, %v4499
    %v4505 = vadd.f32 %v4503, %v4504
    %v4506 = vrot.slane %v4476, 6
    %v4508 = vsub.f32 0.0, %v4506
    %v4509 = vmul.f32 %v4508, 1.442695
    %v4510 = vpow.pop %v4509
    %v4511 = vadd.f32 %v4510, 1.0
    %v4512 = vrcp.pop %v4511
    %v4513 = vmul.f32 %v4511, %v4512
    %v4514 = vsub.f32 1.0, %v4513
    %v4515 = vmul.f32 %v4512, %v4514
    %v4516 = vadd.f32 %v4512, %v4515
    %vm4517 = vweird.f32 %v4511
    %vm4518 = vweird.f32 %v4512
    %vm4519 = vmor %vm4517, %vm4518
    %v4520 = vsel %vm4519, %v4512, %v4516
    %v4521 = vand.u32 2147483647, %v4511
    %vm4522 = vcmp.eq.f32.partialorder %v4521, 8.507059e+37
    %v4523 = vand.u32 %v4511, 2147483648
    %v4524 = vor.u32 1.1754944e-38, %v4523
    %v4525 = vsel %vm4522, %v4524, %v4520
    %v4526 = vmul.f32 1.0, %v4525
    %v4527 = vtanh.pop %v4505
    %v4528 = vmul.f32 %v4526, %v4527
    %v4529 = vpack.c.bf16 %v4528, %v4528
    %4530 = vmatpush.bf16.msra.mxu0 %v1163
    %4531 = vmatpush.bf16.msra.mxu0 %v1159
    %4532 = vmatpush.bf16.msra.mxu0 %v1155
    %4533 = vmatpush.bf16.msra.mxu0 %v1151
    %4534 = vmatpush.bf16.msra.mxu0 %v1147
    %4535 = vmatpush.bf16.msra.mxu0 %v1143
    %4536 = vmatpush.bf16.msra.mxu0 %v1139
    %4537 = vmatpush.bf16.msra.mxu0 %v1135
    %4538 = vmatmul.bf16.gmra.mxu0 %v4529
    %v4539 = vpop.f32.mrf.mxu0
    %v4540 = vadd.f32 0.0, %v4539
    %v4541 = vpop.f32.mrf.mxu0
    %4542 = vdwg.mxu0
    %4543 = vmatpush.bf16.msra.mxu0 %v1164
    %4544 = vmatpush.bf16.msra.mxu0 %v1160
    %4545 = vmatpush.bf16.msra.mxu0 %v1156
    %4546 = vmatpush.bf16.msra.mxu0 %v1152
    %4547 = vmatpush.bf16.msra.mxu0 %v1148
    %4548 = vmatpush.bf16.msra.mxu0 %v1144
    %4549 = vmatpush.bf16.msra.mxu0 %v1140
    %4550 = vmatpush.bf16.msra.mxu0 %v1136
    %4551 = vmatmul.bf16.gmra.mxu0 %v4529
    %v4552 = vpop.f32.mrf.mxu0
    %v4553 = vadd.f32 0.0, %v4552
    %v4554 = vpop.f32.mrf.mxu0
    %4555 = vdwg.mxu0
    %4556 = vmatpush.bf16.msra.mxu0 %v1165
    %4557 = vmatpush.bf16.msra.mxu0 %v1161
    %4558 = vmatpush.bf16.msra.mxu0 %v1157
    %4559 = vmatpush.bf16.msra.mxu0 %v1153
    %4560 = vmatpush.bf16.msra.mxu0 %v1149
    %4561 = vmatpush.bf16.msra.mxu0 %v1145
    %4562 = vmatpush.bf16.msra.mxu0 %v1141
    %4563 = vmatpush.bf16.msra.mxu0 %v1137
    %4564 = vmatmul.bf16.gmra.mxu0 %v4529
    %v4565 = vpop.f32.mrf.mxu0
    %v4566 = vadd.f32 0.0, %v4565
    %v4567 = vpop.f32.mrf.mxu0
    %4568 = vdwg.mxu0
    %4569 = vmatpush.bf16.msra.mxu0 %v1166
    %4570 = vmatpush.bf16.msra.mxu0 %v1162
    %4571 = vmatpush.bf16.msra.mxu0 %v1158
    %4572 = vmatpush.bf16.msra.mxu0 %v1154
    %4573 = vmatpush.bf16.msra.mxu0 %v1150
    %4574 = vmatpush.bf16.msra.mxu0 %v1146
    %4575 = vmatpush.bf16.msra.mxu0 %v1142
    %4576 = vmatpush.bf16.msra.mxu0 %v1138
    %4577 = vmatmul.bf16.gmra.mxu0 %v4529
    %v4578 = vpop.f32.mrf.mxu0
    %v4579 = vadd.f32 0.0, %v4578
    %v4580 = vpop.f32.mrf.mxu0
    %4581 = vdwg.mxu0
    %s4582 = scalar_lea.vmem [#allocation2], 224
    %v4583 = vld [vmem:[%s4582] sm:$0xff]
    %v4588 = vrot.slane %v4553, 6
    %v4589 = vrot.slane %v4566, 4
    %v4590 = vrot.slane %v4579, 2
    %v4591 = vsel %vm824, %v4540, %v4588
    %v4592 = vsel %vm826, %v4589, %v4590
    %v4593 = vsel %vm828, %v4591, %v4592
    %v4595 = vadd.f32 %v4583, %v4593
    %v4596 = vsub.f32 0.0, %v4595
    %v4597 = vmul.f32 %v4596, 1.442695
    %v4598 = vpow.pop %v4597
    %v4599 = vadd.f32 %v4598, 1.0
    %v4600 = vrcp.pop %v4599
    %v4601 = vmul.f32 %v4599, %v4600
    %v4602 = vsub.f32 1.0, %v4601
    %v4603 = vmul.f32 %v4600, %v4602
    %v4604 = vadd.f32 %v4600, %v4603
    %vm4605 = vweird.f32 %v4599
    %vm4606 = vweird.f32 %v4600
    %vm4607 = vmor %vm4605, %vm4606
    %v4608 = vsel %vm4607, %v4600, %v4604
    %v4609 = vand.u32 2147483647, %v4599
    %vm4610 = vcmp.eq.f32.partialorder %v4609, 8.507059e+37
    %v4611 = vand.u32 %v4599, 2147483648
    %v4612 = vor.u32 1.1754944e-38, %v4611
    %v4613 = vsel %vm4610, %v4612, %v4608
    %v4614 = vmul.f32 1.0, %v4613
    %v4616 = vrot.slane %v4595, 4
    %v4618 = vtanh.pop %v4616
    %v4620 = vrot.slane %v4614, 2
    %v4622 = vmul.f32 %v4620, %v4505
    %v4623 = vmul.f32 %v4614, %v4618
    %v4624 = vadd.f32 %v4622, %v4623
    %v4625 = vrot.slane %v4595, 6
    %v4627 = vsub.f32 0.0, %v4625
    %v4628 = vmul.f32 %v4627, 1.442695
    %v4629 = vpow.pop %v4628
    %v4630 = vadd.f32 %v4629, 1.0
    %v4631 = vrcp.pop %v4630
    %v4632 = vmul.f32 %v4630, %v4631
    %v4633 = vsub.f32 1.0, %v4632
    %v4634 = vmul.f32 %v4631, %v4633
    %v4635 = vadd.f32 %v4631, %v4634
    %vm4636 = vweird.f32 %v4630
    %vm4637 = vweird.f32 %v4631
    %vm4638 = vmor %vm4636, %vm4637
    %v4639 = vsel %vm4638, %v4631, %v4635
    %v4640 = vand.u32 2147483647, %v4630
    %vm4641 = vcmp.eq.f32.partialorder %v4640, 8.507059e+37
    %v4642 = vand.u32 %v4630, 2147483648
    %v4643 = vor.u32 1.1754944e-38, %v4642
    %v4644 = vsel %vm4641, %v4643, %v4639
    %v4645 = vmul.f32 1.0, %v4644
    %v4646 = vtanh.pop %v4624
    %v4647 = vmul.f32 %v4645, %v4646
    %v4648 = vpack.c.bf16 %v4647, %v4647
    %4649 = vmatpush.bf16.msra.mxu0 %v1163
    %4650 = vmatpush.bf16.msra.mxu0 %v1159
    %4651 = vmatpush.bf16.msra.mxu0 %v1155
    %4652 = vmatpush.bf16.msra.mxu0 %v1151
    %4653 = vmatpush.bf16.msra.mxu0 %v1147
    %4654 = vmatpush.bf16.msra.mxu0 %v1143
    %4655 = vmatpush.bf16.msra.mxu0 %v1139
    %4656 = vmatpush.bf16.msra.mxu0 %v1135
    %4657 = vmatmul.bf16.gmra.mxu0 %v4648
    %v4658 = vpop.f32.mrf.mxu0
    %v4659 = vadd.f32 0.0, %v4658
    %v4660 = vpop.f32.mrf.mxu0
    %4661 = vdwg.mxu0
    %4662 = vmatpush.bf16.msra.mxu0 %v1164
    %4663 = vmatpush.bf16.msra.mxu0 %v1160
    %4664 = vmatpush.bf16.msra.mxu0 %v1156
    %4665 = vmatpush.bf16.msra.mxu0 %v1152
    %4666 = vmatpush.bf16.msra.mxu0 %v1148
    %4667 = vmatpush.bf16.msra.mxu0 %v1144
    %4668 = vmatpush.bf16.msra.mxu0 %v1140
    %4669 = vmatpush.bf16.msra.mxu0 %v1136
    %4670 = vmatmul.bf16.gmra.mxu0 %v4648
    %v4671 = vpop.f32.mrf.mxu0
    %v4672 = vadd.f32 0.0, %v4671
    %v4673 = vpop.f32.mrf.mxu0
    %4674 = vdwg.mxu0
    %4675 = vmatpush.bf16.msra.mxu0 %v1165
    %4676 = vmatpush.bf16.msra.mxu0 %v1161
    %4677 = vmatpush.bf16.msra.mxu0 %v1157
    %4678 = vmatpush.bf16.msra.mxu0 %v1153
    %4679 = vmatpush.bf16.msra.mxu0 %v1149
    %4680 = vmatpush.bf16.msra.mxu0 %v1145
    %4681 = vmatpush.bf16.msra.mxu0 %v1141
    %4682 = vmatpush.bf16.msra.mxu0 %v1137
    %4683 = vmatmul.bf16.gmra.mxu0 %v4648
    %v4684 = vpop.f32.mrf.mxu0
    %v4685 = vadd.f32 0.0, %v4684
    %v4686 = vpop.f32.mrf.mxu0
    %4687 = vdwg.mxu0
    %4688 = vmatpush.bf16.msra.mxu0 %v1166
    %4689 = vmatpush.bf16.msra.mxu0 %v1162
    %4690 = vmatpush.bf16.msra.mxu0 %v1158
    %4691 = vmatpush.bf16.msra.mxu0 %v1154
    %4692 = vmatpush.bf16.msra.mxu0 %v1150
    %4693 = vmatpush.bf16.msra.mxu0 %v1146
    %4694 = vmatpush.bf16.msra.mxu0 %v1142
    %4695 = vmatpush.bf16.msra.mxu0 %v1138
    %4696 = vmatmul.bf16.gmra.mxu0 %v4648
    %v4697 = vpop.f32.mrf.mxu0
    %v4698 = vadd.f32 0.0, %v4697
    %v4699 = vpop.f32.mrf.mxu0
    %4700 = vdwg.mxu0
    %s4701 = scalar_lea.vmem [#allocation2], 232
    %v4702 = vld [vmem:[%s4701] sm:$0xff]
    %v4707 = vrot.slane %v4672, 6
    %v4708 = vrot.slane %v4685, 4
    %v4709 = vrot.slane %v4698, 2
    %v4710 = vsel %vm824, %v4659, %v4707
    %v4711 = vsel %vm826, %v4708, %v4709
    %v4712 = vsel %vm828, %v4710, %v4711
    %v4714 = vadd.f32 %v4702, %v4712
    %v4715 = vsub.f32 0.0, %v4714
    %v4716 = vmul.f32 %v4715, 1.442695
    %v4717 = vpow.pop %v4716
    %v4718 = vadd.f32 %v4717, 1.0
    %v4719 = vrcp.pop %v4718
    %v4720 = vmul.f32 %v4718, %v4719
    %v4721 = vsub.f32 1.0, %v4720
    %v4722 = vmul.f32 %v4719, %v4721
    %v4723 = vadd.f32 %v4719, %v4722
    %vm4724 = vweird.f32 %v4718
    %vm4725 = vweird.f32 %v4719
    %vm4726 = vmor %vm4724, %vm4725
    %v4727 = vsel %vm4726, %v4719, %v4723
    %v4728 = vand.u32 2147483647, %v4718
    %vm4729 = vcmp.eq.f32.partialorder %v4728, 8.507059e+37
    %v4730 = vand.u32 %v4718, 2147483648
    %v4731 = vor.u32 1.1754944e-38, %v4730
    %v4732 = vsel %vm4729, %v4731, %v4727
    %v4733 = vmul.f32 1.0, %v4732
    %v4735 = vrot.slane %v4714, 4
    %v4737 = vtanh.pop %v4735
    %v4739 = vrot.slane %v4733, 2
    %v4741 = vmul.f32 %v4739, %v4624
    %v4742 = vmul.f32 %v4733, %v4737
    %v4743 = vadd.f32 %v4741, %v4742
    %v4744 = vrot.slane %v4714, 6
    %v4746 = vsub.f32 0.0, %v4744
    %v4747 = vmul.f32 %v4746, 1.442695
    %v4748 = vpow.pop %v4747
    %v4749 = vadd.f32 %v4748, 1.0
    %v4750 = vrcp.pop %v4749
    %v4751 = vmul.f32 %v4749, %v4750
    %v4752 = vsub.f32 1.0, %v4751
    %v4753 = vmul.f32 %v4750, %v4752
    %v4754 = vadd.f32 %v4750, %v4753
    %vm4755 = vweird.f32 %v4749
    %vm4756 = vweird.f32 %v4750
    %vm4757 = vmor %vm4755, %vm4756
    %v4758 = vsel %vm4757, %v4750, %v4754
    %v4759 = vand.u32 2147483647, %v4749
    %vm4760 = vcmp.eq.f32.partialorder %v4759, 8.507059e+37
    %v4761 = vand.u32 %v4749, 2147483648
    %v4762 = vor.u32 1.1754944e-38, %v4761
    %v4763 = vsel %vm4760, %v4762, %v4758
    %v4764 = vmul.f32 1.0, %v4763
    %v4765 = vtanh.pop %v4743
    %v4766 = vmul.f32 %v4764, %v4765
    %v4767 = vpack.c.bf16 %v4766, %v4766
    %4768 = vmatpush.bf16.msra.mxu0 %v1163
    %4769 = vmatpush.bf16.msra.mxu0 %v1159
    %4770 = vmatpush.bf16.msra.mxu0 %v1155
    %4771 = vmatpush.bf16.msra.mxu0 %v1151
    %4772 = vmatpush.bf16.msra.mxu0 %v1147
    %4773 = vmatpush.bf16.msra.mxu0 %v1143
    %4774 = vmatpush.bf16.msra.mxu0 %v1139
    %4775 = vmatpush.bf16.msra.mxu0 %v1135
    %4776 = vmatmul.bf16.gmra.mxu0 %v4767
    %v4777 = vpop.f32.mrf.mxu0
    %v4778 = vadd.f32 0.0, %v4777
    %v4779 = vpop.f32.mrf.mxu0
    %4780 = vdwg.mxu0
    %4781 = vmatpush.bf16.msra.mxu0 %v1164
    %4782 = vmatpush.bf16.msra.mxu0 %v1160
    %4783 = vmatpush.bf16.msra.mxu0 %v1156
    %4784 = vmatpush.bf16.msra.mxu0 %v1152
    %4785 = vmatpush.bf16.msra.mxu0 %v1148
    %4786 = vmatpush.bf16.msra.mxu0 %v1144
    %4787 = vmatpush.bf16.msra.mxu0 %v1140
    %4788 = vmatpush.bf16.msra.mxu0 %v1136
    %4789 = vmatmul.bf16.gmra.mxu0 %v4767
    %v4790 = vpop.f32.mrf.mxu0
    %v4791 = vadd.f32 0.0, %v4790
    %v4792 = vpop.f32.mrf.mxu0
    %4793 = vdwg.mxu0
    %4794 = vmatpush.bf16.msra.mxu0 %v1165
    %4795 = vmatpush.bf16.msra.mxu0 %v1161
    %4796 = vmatpush.bf16.msra.mxu0 %v1157
    %4797 = vmatpush.bf16.msra.mxu0 %v1153
    %4798 = vmatpush.bf16.msra.mxu0 %v1149
    %4799 = vmatpush.bf16.msra.mxu0 %v1145
    %4800 = vmatpush.bf16.msra.mxu0 %v1141
    %4801 = vmatpush.bf16.msra.mxu0 %v1137
    %4802 = vmatmul.bf16.gmra.mxu0 %v4767
    %v4803 = vpop.f32.mrf.mxu0
    %v4804 = vadd.f32 0.0, %v4803
    %v4805 = vpop.f32.mrf.mxu0
    %4806 = vdwg.mxu0
    %4807 = vmatpush.bf16.msra.mxu0 %v1166
    %4808 = vmatpush.bf16.msra.mxu0 %v1162
    %4809 = vmatpush.bf16.msra.mxu0 %v1158
    %4810 = vmatpush.bf16.msra.mxu0 %v1154
    %4811 = vmatpush.bf16.msra.mxu0 %v1150
    %4812 = vmatpush.bf16.msra.mxu0 %v1146
    %4813 = vmatpush.bf16.msra.mxu0 %v1142
    %4814 = vmatpush.bf16.msra.mxu0 %v1138
    %4815 = vmatmul.bf16.gmra.mxu0 %v4767
    %v4816 = vpop.f32.mrf.mxu0
    %v4817 = vadd.f32 0.0, %v4816
    %v4818 = vpop.f32.mrf.mxu0
    %4819 = vdwg.mxu0
    %s4820 = scalar_lea.vmem [#allocation2], 240
    %v4821 = vld [vmem:[%s4820] sm:$0xff]
    %v4826 = vrot.slane %v4791, 6
    %v4827 = vrot.slane %v4804, 4
    %v4828 = vrot.slane %v4817, 2
    %v4829 = vsel %vm824, %v4778, %v4826
    %v4830 = vsel %vm826, %v4827, %v4828
    %v4831 = vsel %vm828, %v4829, %v4830
    %v4833 = vadd.f32 %v4821, %v4831
    %v4834 = vsub.f32 0.0, %v4833
    %v4835 = vmul.f32 %v4834, 1.442695
    %v4836 = vpow.pop %v4835
    %v4837 = vadd.f32 %v4836, 1.0
    %v4838 = vrcp.pop %v4837
    %v4839 = vmul.f32 %v4837, %v4838
    %v4840 = vsub.f32 1.0, %v4839
    %v4841 = vmul.f32 %v4838, %v4840
    %v4842 = vadd.f32 %v4838, %v4841
    %vm4843 = vweird.f32 %v4837
    %vm4844 = vweird.f32 %v4838
    %vm4845 = vmor %vm4843, %vm4844
    %v4846 = vsel %vm4845, %v4838, %v4842
    %v4847 = vand.u32 2147483647, %v4837
    %vm4848 = vcmp.eq.f32.partialorder %v4847, 8.507059e+37
    %v4849 = vand.u32 %v4837, 2147483648
    %v4850 = vor.u32 1.1754944e-38, %v4849
    %v4851 = vsel %vm4848, %v4850, %v4846
    %v4852 = vmul.f32 1.0, %v4851
    %v4854 = vrot.slane %v4833, 4
    %v4856 = vtanh.pop %v4854
    %v4858 = vrot.slane %v4852, 2
    %v4860 = vmul.f32 %v4858, %v4743
    %v4861 = vmul.f32 %v4852, %v4856
    %v4862 = vadd.f32 %v4860, %v4861
    %v4863 = vrot.slane %v4833, 6
    %v4865 = vsub.f32 0.0, %v4863
    %v4866 = vmul.f32 %v4865, 1.442695
    %v4867 = vpow.pop %v4866
    %v4868 = vadd.f32 %v4867, 1.0
    %v4869 = vrcp.pop %v4868
    %v4870 = vmul.f32 %v4868, %v4869
    %v4871 = vsub.f32 1.0, %v4870
    %v4872 = vmul.f32 %v4869, %v4871
    %v4873 = vadd.f32 %v4869, %v4872
    %vm4874 = vweird.f32 %v4868
    %vm4875 = vweird.f32 %v4869
    %vm4876 = vmor %vm4874, %vm4875
    %v4877 = vsel %vm4876, %v4869, %v4873
    %v4878 = vand.u32 2147483647, %v4868
    %vm4879 = vcmp.eq.f32.partialorder %v4878, 8.507059e+37
    %v4880 = vand.u32 %v4868, 2147483648
    %v4881 = vor.u32 1.1754944e-38, %v4880
    %v4882 = vsel %vm4879, %v4881, %v4877
    %v4883 = vmul.f32 1.0, %v4882
    %v4884 = vtanh.pop %v4862
    %v4885 = vmul.f32 %v4883, %v4884
    %v4886 = vpack.c.bf16 %v4885, %v4885
    %4887 = vmatpush.bf16.msra.mxu0 %v1163
    %4888 = vmatpush.bf16.msra.mxu0 %v1159
    %4889 = vmatpush.bf16.msra.mxu0 %v1155
    %4890 = vmatpush.bf16.msra.mxu0 %v1151
    %4891 = vmatpush.bf16.msra.mxu0 %v1147
    %4892 = vmatpush.bf16.msra.mxu0 %v1143
    %4893 = vmatpush.bf16.msra.mxu0 %v1139
    %4894 = vmatpush.bf16.msra.mxu0 %v1135
    %4895 = vmatmul.bf16.gmra.mxu0 %v4886
    %v4896 = vpop.f32.mrf.mxu0
    %v4897 = vadd.f32 0.0, %v4896
    %v4898 = vpop.f32.mrf.mxu0
    %4899 = vdwg.mxu0
    %4900 = vmatpush.bf16.msra.mxu0 %v1164
    %4901 = vmatpush.bf16.msra.mxu0 %v1160
    %4902 = vmatpush.bf16.msra.mxu0 %v1156
    %4903 = vmatpush.bf16.msra.mxu0 %v1152
    %4904 = vmatpush.bf16.msra.mxu0 %v1148
    %4905 = vmatpush.bf16.msra.mxu0 %v1144
    %4906 = vmatpush.bf16.msra.mxu0 %v1140
    %4907 = vmatpush.bf16.msra.mxu0 %v1136
    %4908 = vmatmul.bf16.gmra.mxu0 %v4886
    %v4909 = vpop.f32.mrf.mxu0
    %v4910 = vadd.f32 0.0, %v4909
    %v4911 = vpop.f32.mrf.mxu0
    %4912 = vdwg.mxu0
    %4913 = vmatpush.bf16.msra.mxu0 %v1165
    %4914 = vmatpush.bf16.msra.mxu0 %v1161
    %4915 = vmatpush.bf16.msra.mxu0 %v1157
    %4916 = vmatpush.bf16.msra.mxu0 %v1153
    %4917 = vmatpush.bf16.msra.mxu0 %v1149
    %4918 = vmatpush.bf16.msra.mxu0 %v1145
    %4919 = vmatpush.bf16.msra.mxu0 %v1141
    %4920 = vmatpush.bf16.msra.mxu0 %v1137
    %4921 = vmatmul.bf16.gmra.mxu0 %v4886
    %v4922 = vpop.f32.mrf.mxu0
    %v4923 = vadd.f32 0.0, %v4922
    %v4924 = vpop.f32.mrf.mxu0
    %4925 = vdwg.mxu0
    %4926 = vmatpush.bf16.msra.mxu0 %v1166
    %4927 = vmatpush.bf16.msra.mxu0 %v1162
    %4928 = vmatpush.bf16.msra.mxu0 %v1158
    %4929 = vmatpush.bf16.msra.mxu0 %v1154
    %4930 = vmatpush.bf16.msra.mxu0 %v1150
    %4931 = vmatpush.bf16.msra.mxu0 %v1146
    %4932 = vmatpush.bf16.msra.mxu0 %v1142
    %4933 = vmatpush.bf16.msra.mxu0 %v1138
    %4934 = vmatmul.bf16.gmra.mxu0 %v4886
    %v4935 = vpop.f32.mrf.mxu0
    %v4936 = vadd.f32 0.0, %v4935
    %v4937 = vpop.f32.mrf.mxu0
    %4938 = vdwg.mxu0
    %s4939 = scalar_lea.vmem [#allocation2], 248
    %v4940 = vld [vmem:[%s4939] sm:$0xff]
    %v4945 = vrot.slane %v4910, 6
    %v4946 = vrot.slane %v4923, 4
    %v4947 = vrot.slane %v4936, 2
    %v4948 = vsel %vm824, %v4897, %v4945
    %v4949 = vsel %vm826, %v4946, %v4947
    %v4950 = vsel %vm828, %v4948, %v4949
    %v4952 = vadd.f32 %v4940, %v4950
    %v4953 = vsub.f32 0.0, %v4952
    %v4954 = vmul.f32 %v4953, 1.442695
    %v4955 = vpow.pop %v4954
    %v4956 = vadd.f32 %v4955, 1.0
    %v4957 = vrcp.pop %v4956
    %v4958 = vmul.f32 %v4956, %v4957
    %v4959 = vsub.f32 1.0, %v4958
    %v4960 = vmul.f32 %v4957, %v4959
    %v4961 = vadd.f32 %v4957, %v4960
    %vm4962 = vweird.f32 %v4956
    %vm4963 = vweird.f32 %v4957
    %vm4964 = vmor %vm4962, %vm4963
    %v4965 = vsel %vm4964, %v4957, %v4961
    %v4966 = vand.u32 2147483647, %v4956
    %vm4967 = vcmp.eq.f32.partialorder %v4966, 8.507059e+37
    %v4968 = vand.u32 %v4956, 2147483648
    %v4969 = vor.u32 1.1754944e-38, %v4968
    %v4970 = vsel %vm4967, %v4969, %v4965
    %v4971 = vmul.f32 1.0, %v4970
    %v4973 = vrot.slane %v4952, 4
    %v4975 = vtanh.pop %v4973
    %v4977 = vrot.slane %v4971, 2
    %v4979 = vmul.f32 %v4977, %v4862
    %v4980 = vmul.f32 %v4971, %v4975
    %v4981 = vadd.f32 %v4979, %v4980
    %v4982 = vrot.slane %v4952, 6
    %v4984 = vsub.f32 0.0, %v4982
    %v4985 = vmul.f32 %v4984, 1.442695
    %v4986 = vpow.pop %v4985
    %v4987 = vadd.f32 %v4986, 1.0
    %v4988 = vrcp.pop %v4987
    %v4989 = vmul.f32 %v4987, %v4988
    %v4990 = vsub.f32 1.0, %v4989
    %v4991 = vmul.f32 %v4988, %v4990
    %v4992 = vadd.f32 %v4988, %v4991
    %vm4993 = vweird.f32 %v4987
    %vm4994 = vweird.f32 %v4988
    %vm4995 = vmor %vm4993, %vm4994
    %v4996 = vsel %vm4995, %v4988, %v4992
    %v4997 = vand.u32 2147483647, %v4987
    %vm4998 = vcmp.eq.f32.partialorder %v4997, 8.507059e+37
    %v4999 = vand.u32 %v4987, 2147483648
    %v5000 = vor.u32 1.1754944e-38, %v4999
    %v5001 = vsel %vm4998, %v5000, %v4996
    %v5002 = vmul.f32 1.0, %v5001
    %v5003 = vtanh.pop %v4981
    %v5004 = vmul.f32 %v5002, %v5003
    %v5005 = vpack.c.bf16 %v5004, %v5004
    %5006 = vmatpush.bf16.msra.mxu0 %v1163
    %5007 = vmatpush.bf16.msra.mxu0 %v1159
    %5008 = vmatpush.bf16.msra.mxu0 %v1155
    %5009 = vmatpush.bf16.msra.mxu0 %v1151
    %5010 = vmatpush.bf16.msra.mxu0 %v1147
    %5011 = vmatpush.bf16.msra.mxu0 %v1143
    %5012 = vmatpush.bf16.msra.mxu0 %v1139
    %5013 = vmatpush.bf16.msra.mxu0 %v1135
    %5014 = vmatmul.bf16.gmra.mxu0 %v5005
    %v5015 = vpop.f32.mrf.mxu0
    %v5016 = vadd.f32 0.0, %v5015
    %v5017 = vpop.f32.mrf.mxu0
    %5018 = vdwg.mxu0
    %5019 = vmatpush.bf16.msra.mxu0 %v1164
    %5020 = vmatpush.bf16.msra.mxu0 %v1160
    %5021 = vmatpush.bf16.msra.mxu0 %v1156
    %5022 = vmatpush.bf16.msra.mxu0 %v1152
    %5023 = vmatpush.bf16.msra.mxu0 %v1148
    %5024 = vmatpush.bf16.msra.mxu0 %v1144
    %5025 = vmatpush.bf16.msra.mxu0 %v1140
    %5026 = vmatpush.bf16.msra.mxu0 %v1136
    %5027 = vmatmul.bf16.gmra.mxu0 %v5005
    %v5028 = vpop.f32.mrf.mxu0
    %v5029 = vadd.f32 0.0, %v5028
    %v5030 = vpop.f32.mrf.mxu0
    %5031 = vdwg.mxu0
    %5032 = vmatpush.bf16.msra.mxu0 %v1165
    %5033 = vmatpush.bf16.msra.mxu0 %v1161
    %5034 = vmatpush.bf16.msra.mxu0 %v1157
    %5035 = vmatpush.bf16.msra.mxu0 %v1153
    %5036 = vmatpush.bf16.msra.mxu0 %v1149
    %5037 = vmatpush.bf16.msra.mxu0 %v1145
    %5038 = vmatpush.bf16.msra.mxu0 %v1141
    %5039 = vmatpush.bf16.msra.mxu0 %v1137
    %5040 = vmatmul.bf16.gmra.mxu0 %v5005
    %v5041 = vpop.f32.mrf.mxu0
    %v5042 = vadd.f32 0.0, %v5041
    %v5043 = vpop.f32.mrf.mxu0
    %5044 = vdwg.mxu0
    %5045 = vmatpush.bf16.msra.mxu0 %v1166
    %5046 = vmatpush.bf16.msra.mxu0 %v1162
    %5047 = vmatpush.bf16.msra.mxu0 %v1158
    %5048 = vmatpush.bf16.msra.mxu0 %v1154
    %5049 = vmatpush.bf16.msra.mxu0 %v1150
    %5050 = vmatpush.bf16.msra.mxu0 %v1146
    %5051 = vmatpush.bf16.msra.mxu0 %v1142
    %5052 = vmatpush.bf16.msra.mxu0 %v1138
    %5053 = vmatmul.bf16.gmra.mxu0 %v5005
    %v5054 = vpop.f32.mrf.mxu0
    %v5055 = vadd.f32 0.0, %v5054
    %v5056 = vpop.f32.mrf.mxu0
    %5057 = vdwg.mxu0
    %s5058 = scalar_lea.vmem [#allocation2], 256
    %v5059 = vld [vmem:[%s5058] sm:$0xff]
    %v5064 = vrot.slane %v5029, 6
    %v5065 = vrot.slane %v5042, 4
    %v5066 = vrot.slane %v5055, 2
    %v5067 = vsel %vm824, %v5016, %v5064
    %v5068 = vsel %vm826, %v5065, %v5066
    %v5069 = vsel %vm828, %v5067, %v5068
    %v5071 = vadd.f32 %v5059, %v5069
    %v5072 = vsub.f32 0.0, %v5071
    %v5073 = vmul.f32 %v5072, 1.442695
    %v5074 = vpow.pop %v5073
    %v5075 = vadd.f32 %v5074, 1.0
    %v5076 = vrcp.pop %v5075
    %v5077 = vmul.f32 %v5075, %v5076
    %v5078 = vsub.f32 1.0, %v5077
    %v5079 = vmul.f32 %v5076, %v5078
    %v5080 = vadd.f32 %v5076, %v5079
    %vm5081 = vweird.f32 %v5075
    %vm5082 = vweird.f32 %v5076
    %vm5083 = vmor %vm5081, %vm5082
    %v5084 = vsel %vm5083, %v5076, %v5080
    %v5085 = vand.u32 2147483647, %v5075
    %vm5086 = vcmp.eq.f32.partialorder %v5085, 8.507059e+37
    %v5087 = vand.u32 %v5075, 2147483648
    %v5088 = vor.u32 1.1754944e-38, %v5087
    %v5089 = vsel %vm5086, %v5088, %v5084
    %v5090 = vmul.f32 1.0, %v5089
    %v5092 = vrot.slane %v5071, 4
    %v5094 = vtanh.pop %v5092
    %v5096 = vrot.slane %v5090, 2
    %v5098 = vmul.f32 %v5096, %v4981
    %v5099 = vmul.f32 %v5090, %v5094
    %v5100 = vadd.f32 %v5098, %v5099
    %v5101 = vrot.slane %v5071, 6
    %v5103 = vsub.f32 0.0, %v5101
    %v5104 = vmul.f32 %v5103, 1.442695
    %v5105 = vpow.pop %v5104
    %v5106 = vadd.f32 %v5105, 1.0
    %v5107 = vrcp.pop %v5106
    %v5108 = vmul.f32 %v5106, %v5107
    %v5109 = vsub.f32 1.0, %v5108
    %v5110 = vmul.f32 %v5107, %v5109
    %v5111 = vadd.f32 %v5107, %v5110
    %vm5112 = vweird.f32 %v5106
    %vm5113 = vweird.f32 %v5107
    %vm5114 = vmor %vm5112, %vm5113
    %v5115 = vsel %vm5114, %v5107, %v5111
    %v5116 = vand.u32 2147483647, %v5106
    %vm5117 = vcmp.eq.f32.partialorder %v5116, 8.507059e+37
    %v5118 = vand.u32 %v5106, 2147483648
    %v5119 = vor.u32 1.1754944e-38, %v5118
    %v5120 = vsel %vm5117, %v5119, %v5115
    %v5121 = vmul.f32 1.0, %v5120
    %v5122 = vtanh.pop %v5100
    %v5123 = vmul.f32 %v5121, %v5122
    %v5124 = vpack.c.bf16 %v5123, %v5123
    %5125 = vmatpush.bf16.msra.mxu0 %v1163
    %5126 = vmatpush.bf16.msra.mxu0 %v1159
    %5127 = vmatpush.bf16.msra.mxu0 %v1155
    %5128 = vmatpush.bf16.msra.mxu0 %v1151
    %5129 = vmatpush.bf16.msra.mxu0 %v1147
    %5130 = vmatpush.bf16.msra.mxu0 %v1143
    %5131 = vmatpush.bf16.msra.mxu0 %v1139
    %5132 = vmatpush.bf16.msra.mxu0 %v1135
    %5133 = vmatmul.bf16.gmra.mxu0 %v5124
    %v5134 = vpop.f32.mrf.mxu0
    %v5135 = vadd.f32 0.0, %v5134
    %v5136 = vpop.f32.mrf.mxu0
    %5137 = vdwg.mxu0
    %5138 = vmatpush.bf16.msra.mxu0 %v1164
    %5139 = vmatpush.bf16.msra.mxu0 %v1160
    %5140 = vmatpush.bf16.msra.mxu0 %v1156
    %5141 = vmatpush.bf16.msra.mxu0 %v1152
    %5142 = vmatpush.bf16.msra.mxu0 %v1148
    %5143 = vmatpush.bf16.msra.mxu0 %v1144
    %5144 = vmatpush.bf16.msra.mxu0 %v1140
    %5145 = vmatpush.bf16.msra.mxu0 %v1136
    %5146 = vmatmul.bf16.gmra.mxu0 %v5124
    %v5147 = vpop.f32.mrf.mxu0
    %v5148 = vadd.f32 0.0, %v5147
    %v5149 = vpop.f32.mrf.mxu0
    %5150 = vdwg.mxu0
    %5151 = vmatpush.bf16.msra.mxu0 %v1165
    %5152 = vmatpush.bf16.msra.mxu0 %v1161
    %5153 = vmatpush.bf16.msra.mxu0 %v1157
    %5154 = vmatpush.bf16.msra.mxu0 %v1153
    %5155 = vmatpush.bf16.msra.mxu0 %v1149
    %5156 = vmatpush.bf16.msra.mxu0 %v1145
    %5157 = vmatpush.bf16.msra.mxu0 %v1141
    %5158 = vmatpush.bf16.msra.mxu0 %v1137
    %5159 = vmatmul.bf16.gmra.mxu0 %v5124
    %v5160 = vpop.f32.mrf.mxu0
    %v5161 = vadd.f32 0.0, %v5160
    %v5162 = vpop.f32.mrf.mxu0
    %5163 = vdwg.mxu0
    %5164 = vmatpush.bf16.msra.mxu0 %v1166
    %5165 = vmatpush.bf16.msra.mxu0 %v1162
    %5166 = vmatpush.bf16.msra.mxu0 %v1158
    %5167 = vmatpush.bf16.msra.mxu0 %v1154
    %5168 = vmatpush.bf16.msra.mxu0 %v1150
    %5169 = vmatpush.bf16.msra.mxu0 %v1146
    %5170 = vmatpush.bf16.msra.mxu0 %v1142
    %5171 = vmatpush.bf16.msra.mxu0 %v1138
    %5172 = vmatmul.bf16.gmra.mxu0 %v5124
    %v5173 = vpop.f32.mrf.mxu0
    %v5174 = vadd.f32 0.0, %v5173
    %v5175 = vpop.f32.mrf.mxu0
    %5176 = vdwg.mxu0
    %s5177 = scalar_lea.vmem [#allocation2], 264
    %v5178 = vld [vmem:[%s5177] sm:$0xff]
    %v5183 = vrot.slane %v5148, 6
    %v5184 = vrot.slane %v5161, 4
    %v5185 = vrot.slane %v5174, 2
    %v5186 = vsel %vm824, %v5135, %v5183
    %v5187 = vsel %vm826, %v5184, %v5185
    %v5188 = vsel %vm828, %v5186, %v5187
    %v5190 = vadd.f32 %v5178, %v5188
    %v5191 = vsub.f32 0.0, %v5190
    %v5192 = vmul.f32 %v5191, 1.442695
    %v5193 = vpow.pop %v5192
    %v5194 = vadd.f32 %v5193, 1.0
    %v5195 = vrcp.pop %v5194
    %v5196 = vmul.f32 %v5194, %v5195
    %v5197 = vsub.f32 1.0, %v5196
    %v5198 = vmul.f32 %v5195, %v5197
    %v5199 = vadd.f32 %v5195, %v5198
    %vm5200 = vweird.f32 %v5194
    %vm5201 = vweird.f32 %v5195
    %vm5202 = vmor %vm5200, %vm5201
    %v5203 = vsel %vm5202, %v5195, %v5199
    %v5204 = vand.u32 2147483647, %v5194
    %vm5205 = vcmp.eq.f32.partialorder %v5204, 8.507059e+37
    %v5206 = vand.u32 %v5194, 2147483648
    %v5207 = vor.u32 1.1754944e-38, %v5206
    %v5208 = vsel %vm5205, %v5207, %v5203
    %v5209 = vmul.f32 1.0, %v5208
    %v5211 = vrot.slane %v5190, 4
    %v5213 = vtanh.pop %v5211
    %v5215 = vrot.slane %v5209, 2
    %v5217 = vmul.f32 %v5215, %v5100
    %v5218 = vmul.f32 %v5209, %v5213
    %v5219 = vadd.f32 %v5217, %v5218
    %v5220 = vrot.slane %v5190, 6
    %v5222 = vsub.f32 0.0, %v5220
    %v5223 = vmul.f32 %v5222, 1.442695
    %v5224 = vpow.pop %v5223
    %v5225 = vadd.f32 %v5224, 1.0
    %v5226 = vrcp.pop %v5225
    %v5227 = vmul.f32 %v5225, %v5226
    %v5228 = vsub.f32 1.0, %v5227
    %v5229 = vmul.f32 %v5226, %v5228
    %v5230 = vadd.f32 %v5226, %v5229
    %vm5231 = vweird.f32 %v5225
    %vm5232 = vweird.f32 %v5226
    %vm5233 = vmor %vm5231, %vm5232
    %v5234 = vsel %vm5233, %v5226, %v5230
    %v5235 = vand.u32 2147483647, %v5225
    %vm5236 = vcmp.eq.f32.partialorder %v5235, 8.507059e+37
    %v5237 = vand.u32 %v5225, 2147483648
    %v5238 = vor.u32 1.1754944e-38, %v5237
    %v5239 = vsel %vm5236, %v5238, %v5234
    %v5240 = vmul.f32 1.0, %v5239
    %v5241 = vtanh.pop %v5219
    %v5242 = vmul.f32 %v5240, %v5241
    %v5243 = vpack.c.bf16 %v5242, %v5242
    %5244 = vmatpush.bf16.msra.mxu0 %v1163
    %5245 = vmatpush.bf16.msra.mxu0 %v1159
    %5246 = vmatpush.bf16.msra.mxu0 %v1155
    %5247 = vmatpush.bf16.msra.mxu0 %v1151
    %5248 = vmatpush.bf16.msra.mxu0 %v1147
    %5249 = vmatpush.bf16.msra.mxu0 %v1143
    %5250 = vmatpush.bf16.msra.mxu0 %v1139
    %5251 = vmatpush.bf16.msra.mxu0 %v1135
    %5252 = vmatmul.bf16.gmra.mxu0 %v5243
    %v5253 = vpop.f32.mrf.mxu0
    %v5254 = vadd.f32 0.0, %v5253
    %v5255 = vpop.f32.mrf.mxu0
    %5256 = vdwg.mxu0
    %5257 = vmatpush.bf16.msra.mxu0 %v1164
    %5258 = vmatpush.bf16.msra.mxu0 %v1160
    %5259 = vmatpush.bf16.msra.mxu0 %v1156
    %5260 = vmatpush.bf16.msra.mxu0 %v1152
    %5261 = vmatpush.bf16.msra.mxu0 %v1148
    %5262 = vmatpush.bf16.msra.mxu0 %v1144
    %5263 = vmatpush.bf16.msra.mxu0 %v1140
    %5264 = vmatpush.bf16.msra.mxu0 %v1136
    %5265 = vmatmul.bf16.gmra.mxu0 %v5243
    %v5266 = vpop.f32.mrf.mxu0
    %v5267 = vadd.f32 0.0, %v5266
    %v5268 = vpop.f32.mrf.mxu0
    %5269 = vdwg.mxu0
    %5270 = vmatpush.bf16.msra.mxu0 %v1165
    %5271 = vmatpush.bf16.msra.mxu0 %v1161
    %5272 = vmatpush.bf16.msra.mxu0 %v1157
    %5273 = vmatpush.bf16.msra.mxu0 %v1153
    %5274 = vmatpush.bf16.msra.mxu0 %v1149
    %5275 = vmatpush.bf16.msra.mxu0 %v1145
    %5276 = vmatpush.bf16.msra.mxu0 %v1141
    %5277 = vmatpush.bf16.msra.mxu0 %v1137
    %5278 = vmatmul.bf16.gmra.mxu0 %v5243
    %v5279 = vpop.f32.mrf.mxu0
    %v5280 = vadd.f32 0.0, %v5279
    %v5281 = vpop.f32.mrf.mxu0
    %5282 = vdwg.mxu0
    %5283 = vmatpush.bf16.msra.mxu0 %v1166
    %5284 = vmatpush.bf16.msra.mxu0 %v1162
    %5285 = vmatpush.bf16.msra.mxu0 %v1158
    %5286 = vmatpush.bf16.msra.mxu0 %v1154
    %5287 = vmatpush.bf16.msra.mxu0 %v1150
    %5288 = vmatpush.bf16.msra.mxu0 %v1146
    %5289 = vmatpush.bf16.msra.mxu0 %v1142
    %5290 = vmatpush.bf16.msra.mxu0 %v1138
    %5291 = vmatmul.bf16.gmra.mxu0 %v5243
    %v5292 = vpop.f32.mrf.mxu0
    %v5293 = vadd.f32 0.0, %v5292
    %v5294 = vpop.f32.mrf.mxu0
    %5295 = vdwg.mxu0
    %s5296 = scalar_lea.vmem [#allocation2], 272
    %v5297 = vld [vmem:[%s5296] sm:$0xff]
    %v5302 = vrot.slane %v5267, 6
    %v5303 = vrot.slane %v5280, 4
    %v5304 = vrot.slane %v5293, 2
    %v5305 = vsel %vm824, %v5254, %v5302
    %v5306 = vsel %vm826, %v5303, %v5304
    %v5307 = vsel %vm828, %v5305, %v5306
    %v5309 = vadd.f32 %v5297, %v5307
    %v5310 = vsub.f32 0.0, %v5309
    %v5311 = vmul.f32 %v5310, 1.442695
    %v5312 = vpow.pop %v5311
    %v5313 = vadd.f32 %v5312, 1.0
    %v5314 = vrcp.pop %v5313
    %v5315 = vmul.f32 %v5313, %v5314
    %v5316 = vsub.f32 1.0, %v5315
    %v5317 = vmul.f32 %v5314, %v5316
    %v5318 = vadd.f32 %v5314, %v5317
    %vm5319 = vweird.f32 %v5313
    %vm5320 = vweird.f32 %v5314
    %vm5321 = vmor %vm5319, %vm5320
    %v5322 = vsel %vm5321, %v5314, %v5318
    %v5323 = vand.u32 2147483647, %v5313
    %vm5324 = vcmp.eq.f32.partialorder %v5323, 8.507059e+37
    %v5325 = vand.u32 %v5313, 2147483648
    %v5326 = vor.u32 1.1754944e-38, %v5325
    %v5327 = vsel %vm5324, %v5326, %v5322
    %v5328 = vmul.f32 1.0, %v5327
    %v5330 = vrot.slane %v5309, 4
    %v5332 = vtanh.pop %v5330
    %v5334 = vrot.slane %v5328, 2
    %v5336 = vmul.f32 %v5334, %v5219
    %v5337 = vmul.f32 %v5328, %v5332
    %v5338 = vadd.f32 %v5336, %v5337
    %v5339 = vrot.slane %v5309, 6
    %v5341 = vsub.f32 0.0, %v5339
    %v5342 = vmul.f32 %v5341, 1.442695
    %v5343 = vpow.pop %v5342
    %v5344 = vadd.f32 %v5343, 1.0
    %v5345 = vrcp.pop %v5344
    %v5346 = vmul.f32 %v5344, %v5345
    %v5347 = vsub.f32 1.0, %v5346
    %v5348 = vmul.f32 %v5345, %v5347
    %v5349 = vadd.f32 %v5345, %v5348
    %vm5350 = vweird.f32 %v5344
    %vm5351 = vweird.f32 %v5345
    %vm5352 = vmor %vm5350, %vm5351
    %v5353 = vsel %vm5352, %v5345, %v5349
    %v5354 = vand.u32 2147483647, %v5344
    %vm5355 = vcmp.eq.f32.partialorder %v5354, 8.507059e+37
    %v5356 = vand.u32 %v5344, 2147483648
    %v5357 = vor.u32 1.1754944e-38, %v5356
    %v5358 = vsel %vm5355, %v5357, %v5353
    %v5359 = vmul.f32 1.0, %v5358
    %v5360 = vtanh.pop %v5338
    %v5361 = vmul.f32 %v5359, %v5360
    %v5362 = vpack.c.bf16 %v5361, %v5361
    %5363 = vmatpush.bf16.msra.mxu0 %v1163
    %5364 = vmatpush.bf16.msra.mxu0 %v1159
    %5365 = vmatpush.bf16.msra.mxu0 %v1155
    %5366 = vmatpush.bf16.msra.mxu0 %v1151
    %5367 = vmatpush.bf16.msra.mxu0 %v1147
    %5368 = vmatpush.bf16.msra.mxu0 %v1143
    %5369 = vmatpush.bf16.msra.mxu0 %v1139
    %5370 = vmatpush.bf16.msra.mxu0 %v1135
    %5371 = vmatmul.bf16.gmra.mxu0 %v5362
    %v5372 = vpop.f32.mrf.mxu0
    %v5373 = vadd.f32 0.0, %v5372
    %v5374 = vpop.f32.mrf.mxu0
    %5375 = vdwg.mxu0
    %5376 = vmatpush.bf16.msra.mxu0 %v1164
    %5377 = vmatpush.bf16.msra.mxu0 %v1160
    %5378 = vmatpush.bf16.msra.mxu0 %v1156
    %5379 = vmatpush.bf16.msra.mxu0 %v1152
    %5380 = vmatpush.bf16.msra.mxu0 %v1148
    %5381 = vmatpush.bf16.msra.mxu0 %v1144
    %5382 = vmatpush.bf16.msra.mxu0 %v1140
    %5383 = vmatpush.bf16.msra.mxu0 %v1136
    %5384 = vmatmul.bf16.gmra.mxu0 %v5362
    %v5385 = vpop.f32.mrf.mxu0
    %v5386 = vadd.f32 0.0, %v5385
    %v5387 = vpop.f32.mrf.mxu0
    %5388 = vdwg.mxu0
    %5389 = vmatpush.bf16.msra.mxu0 %v1165
    %5390 = vmatpush.bf16.msra.mxu0 %v1161
    %5391 = vmatpush.bf16.msra.mxu0 %v1157
    %5392 = vmatpush.bf16.msra.mxu0 %v1153
    %5393 = vmatpush.bf16.msra.mxu0 %v1149
    %5394 = vmatpush.bf16.msra.mxu0 %v1145
    %5395 = vmatpush.bf16.msra.mxu0 %v1141
    %5396 = vmatpush.bf16.msra.mxu0 %v1137
    %5397 = vmatmul.bf16.gmra.mxu0 %v5362
    %v5398 = vpop.f32.mrf.mxu0
    %v5399 = vadd.f32 0.0, %v5398
    %v5400 = vpop.f32.mrf.mxu0
    %5401 = vdwg.mxu0
    %5402 = vmatpush.bf16.msra.mxu0 %v1166
    %5403 = vmatpush.bf16.msra.mxu0 %v1162
    %5404 = vmatpush.bf16.msra.mxu0 %v1158
    %5405 = vmatpush.bf16.msra.mxu0 %v1154
    %5406 = vmatpush.bf16.msra.mxu0 %v1150
    %5407 = vmatpush.bf16.msra.mxu0 %v1146
    %5408 = vmatpush.bf16.msra.mxu0 %v1142
    %5409 = vmatpush.bf16.msra.mxu0 %v1138
    %5410 = vmatmul.bf16.gmra.mxu0 %v5362
    %v5411 = vpop.f32.mrf.mxu0
    %v5412 = vadd.f32 0.0, %v5411
    %v5413 = vpop.f32.mrf.mxu0
    %5414 = vdwg.mxu0
    %s5415 = scalar_lea.vmem [#allocation2], 280
    %v5416 = vld [vmem:[%s5415] sm:$0xff]
    %v5421 = vrot.slane %v5386, 6
    %v5422 = vrot.slane %v5399, 4
    %v5423 = vrot.slane %v5412, 2
    %v5424 = vsel %vm824, %v5373, %v5421
    %v5425 = vsel %vm826, %v5422, %v5423
    %v5426 = vsel %vm828, %v5424, %v5425
    %v5428 = vadd.f32 %v5416, %v5426
    %v5429 = vsub.f32 0.0, %v5428
    %v5430 = vmul.f32 %v5429, 1.442695
    %v5431 = vpow.pop %v5430
    %v5432 = vadd.f32 %v5431, 1.0
    %v5433 = vrcp.pop %v5432
    %v5434 = vmul.f32 %v5432, %v5433
    %v5435 = vsub.f32 1.0, %v5434
    %v5436 = vmul.f32 %v5433, %v5435
    %v5437 = vadd.f32 %v5433, %v5436
    %vm5438 = vweird.f32 %v5432
    %vm5439 = vweird.f32 %v5433
    %vm5440 = vmor %vm5438, %vm5439
    %v5441 = vsel %vm5440, %v5433, %v5437
    %v5442 = vand.u32 2147483647, %v5432
    %vm5443 = vcmp.eq.f32.partialorder %v5442, 8.507059e+37
    %v5444 = vand.u32 %v5432, 2147483648
    %v5445 = vor.u32 1.1754944e-38, %v5444
    %v5446 = vsel %vm5443, %v5445, %v5441
    %v5447 = vmul.f32 1.0, %v5446
    %v5449 = vrot.slane %v5428, 4
    %v5451 = vtanh.pop %v5449
    %v5453 = vrot.slane %v5447, 2
    %v5455 = vmul.f32 %v5453, %v5338
    %v5456 = vmul.f32 %v5447, %v5451
    %v5457 = vadd.f32 %v5455, %v5456
    %v5458 = vrot.slane %v5428, 6
    %v5460 = vsub.f32 0.0, %v5458
    %v5461 = vmul.f32 %v5460, 1.442695
    %v5462 = vpow.pop %v5461
    %v5463 = vadd.f32 %v5462, 1.0
    %v5464 = vrcp.pop %v5463
    %v5465 = vmul.f32 %v5463, %v5464
    %v5466 = vsub.f32 1.0, %v5465
    %v5467 = vmul.f32 %v5464, %v5466
    %v5468 = vadd.f32 %v5464, %v5467
    %vm5469 = vweird.f32 %v5463
    %vm5470 = vweird.f32 %v5464
    %vm5471 = vmor %vm5469, %vm5470
    %v5472 = vsel %vm5471, %v5464, %v5468
    %v5473 = vand.u32 2147483647, %v5463
    %vm5474 = vcmp.eq.f32.partialorder %v5473, 8.507059e+37
    %v5475 = vand.u32 %v5463, 2147483648
    %v5476 = vor.u32 1.1754944e-38, %v5475
    %v5477 = vsel %vm5474, %v5476, %v5472
    %v5478 = vmul.f32 1.0, %v5477
    %v5479 = vtanh.pop %v5457
    %v5480 = vmul.f32 %v5478, %v5479
    %v5481 = vpack.c.bf16 %v5480, %v5480
    %v5482 = vld [vmem:[%s4] sm:$0xf]
    %v5483 = vld [vmem:[%s4 + $0x4] sm:$0xf]
    %v5484 = vld [vmem:[%s4 + $0x8] sm:$0xf]
    %v5485 = vld [vmem:[%s4 + $0xc] sm:$0xf]
    %v5486 = vld [vmem:[%s4 + $0x10] sm:$0xf]
    %v5487 = vld [vmem:[%s4 + $0x14] sm:$0xf]
    %v5488 = vld [vmem:[%s4 + $0x18] sm:$0xf]
    %v5489 = vld [vmem:[%s4 + $0x1c] sm:$0xf]
    %v5490 = vld [vmem:[%s4 + $0x20] sm:$0xf]
    %v5491 = vld [vmem:[%s4 + $0x24] sm:$0xf]
    %v5492 = vld [vmem:[%s4 + $0x28] sm:$0xf]
    %v5493 = vld [vmem:[%s4 + $0x2c] sm:$0xf]
    %v5494 = vld [vmem:[%s4 + $0x30] sm:$0xf]
    %v5495 = vld [vmem:[%s4 + $0x34] sm:$0xf]
    %v5496 = vld [vmem:[%s4 + $0x38] sm:$0xf]
    %v5497 = vld [vmem:[%s4 + $0x3c] sm:$0xf]
    %v5498 = vld [vmem:[%s5] sm:$0x1]
    %v5500 = vperm.slane %v5498, 0
    %v5518 = vunpack.c.l.b16 %v5482
    %v5519 = vunpack.c.l.b16 %v5483
    %v5520 = vunpack.c.l.b16 %v5484
    %v5521 = vunpack.c.l.b16 %v5485
    %v5522 = vunpack.c.l.b16 %v5486
    %v5523 = vunpack.c.l.b16 %v5487
    %v5524 = vunpack.c.l.b16 %v5488
    %v5525 = vunpack.c.l.b16 %v5489
    %v5526 = vunpack.c.l.b16 %v5490
    %v5527 = vunpack.c.l.b16 %v5491
    %v5528 = vunpack.c.l.b16 %v5492
    %v5529 = vunpack.c.l.b16 %v5493
    %v5530 = vunpack.c.l.b16 %v5494
    %v5531 = vunpack.c.l.b16 %v5495
    %v5532 = vunpack.c.l.b16 %v5496
    %v5533 = vunpack.c.l.b16 %v5497
    %v5534 = vpack.c.b16 %v5519, %v5518
    %v5535 = vpack.c.b16 %v5521, %v5520
    %v5536 = vpack.c.b16 %v5523, %v5522
    %v5537 = vpack.c.b16 %v5525, %v5524
    %v5538 = vpack.c.b16 %v5527, %v5526
    %v5539 = vpack.c.b16 %v5529, %v5528
    %v5540 = vpack.c.b16 %v5531, %v5530
    %v5541 = vpack.c.b16 %v5533, %v5532
    %5550 = vmatpush.bf16.msra.mxu0 %v5541
    %5551 = vmatpush.bf16.msra.mxu0 %v5540
    %5552 = vmatpush.bf16.msra.mxu0 %v5539
    %5553 = vmatpush.bf16.msra.mxu0 %v5538
    %5554 = vmatpush.bf16.msra.mxu0 %v5537
    %5555 = vmatpush.bf16.msra.mxu0 %v5536
    %5556 = vmatpush.bf16.msra.mxu0 %v5535
    %5557 = vmatpush.bf16.msra.mxu0 %v5534
    %5558 = vmatmul.bf16.gmra.mxu0 %v5481
    %v5559 = vpop.f32.mrf.mxu0
    %v5560 = vadd.f32 %v5500, %v5559
    %v5561 = vpop.f32.mrf.mxu0
    %5562 = vdwg.mxu0
    %v5563 = vmax.f32 %v5560, 0.0
    %v5564 = vld [vmem:[%s6] sm:$0x1]
    %v5566 = vperm.slane %v5564, 0
    %v5568 = vmul.f32 %v5563, %v5566
    %v5569 = vsel %vm824, %v5568, 0.0
    %5570 = vadd.xlane.f32.xlu0 %v5569
    %v5571 = vpop.xlane.xlu0 %5570
    %v5572 = vld [vmem:[#allocation3] sm:$0x1]
    %v5574 = vperm.slane %v5572, 0
    %v5576 = vadd.f32 %v5571, %v5574
    %vm5577 = vcmask 1024
    %5578 = vst.msk [vmem:[%s8] sm:$0x3] %vm5577, %v5576
    // Predicated region
    $region38: #{tpu_custom_call.1} parent=1 // pred_check
      _
    $region39: #{tpu_custom_call.1} parent=1 // pred_check_branch
      %5580 = sbr.rel (0) target = $region41
    $region40: #{tpu_custom_call.1} parent=1 // pred_region
      _
    $region41: #{tpu_custom_call.1} parent=1 // pred_fallthru
      _
    // Predicated region
    $region42: #{tpu_custom_call.1} parent=1 // pred_check
      _
    $region43: #{tpu_custom_call.1} parent=1 // pred_check_branch
      %5582 = sbr.rel (0) target = $region45
    $region44: #{tpu_custom_call.1} parent=1 // pred_region
      _
    $region45: #{tpu_custom_call.1} parent=1 // pred_fallthru
      _
    %5583 = vsyncpa [#allocation5], 1

</llo_original>
